<compile_context>
chip_gen: v7x
topology: tpu7x:2x2x1
jax: 0.10.0
libtpu: 0.0.40
codegen_flags: <defaults>
</compile_context>

<pallas_src>
import functools

import jax
import jax.numpy as jnp
from jax.experimental import pallas as pl
from jax.experimental.pallas import tpu as pltpu


# ----------------------------------------------------------------------------
# Pallas kernels
# ----------------------------------------------------------------------------
def _conv3x3_s2_kernel(x_ref, w_ref, b_ref, o_ref, *, Ho, Wo, activation):
    """3x3 / stride-2 / pad-1 conv on a phase-split input block.

    x_ref: (1, 4*(Ho+1), Wo+1, Cin) bf16   phase-major rows: ((ry*2+rx)*(Ho+1) + row)
    w_ref: (9, Cin, Cout)          bf16   tap index = ky*3 + kx
    b_ref: (1, Cout)               f32
    o_ref: (1, Ho*Wo, Cout)        bf16
    """
    x = x_ref[0]                                      # (4*(Ho+1), Wo+1, Cin)
    cout = w_ref.shape[-1]
    acc = jnp.zeros((Ho * Wo, cout), jnp.float32)
    for dy in range(3):
        qy, ry = divmod(dy, 2)
        for dx in range(3):
            qx, rx = divmod(dx, 2)
            p0 = (ry * 2 + rx) * (Ho + 1)
            patch = x[p0 + qy:p0 + qy + Ho, qx:qx + Wo, :]        # (Ho, Wo, Cin)
            patch = patch.reshape(Ho * Wo, patch.shape[-1])
            acc = acc + jnp.dot(patch, w_ref[dy * 3 + dx],
                                preferred_element_type=jnp.float32)
    acc = acc + b_ref[...]
    if activation == "relu":
        acc = jnp.maximum(acc, 0.0)
    o_ref[0] = acc.astype(o_ref.dtype)


def _rpn_roi_kernel(xp_ref, wr_ref, br_ref, wh_ref, bh_ref,
                    w1_ref, b1_ref, w2_ref, b2_ref, wp_ref, bp_ref,
                    rpn_ref, head_ref, *, Ho, Wo):
    """Fused: RPN 3x3 s1 conv + ReLU -> fused 1x1 heads, plus the full ROI box head.

    xp_ref : (1, Ho+2, Wo+2, C) bf16  (p4 padded by 1)
    rpn_ref: (1, Ho*Wo, 128)   f32   cols [0:3]=objectness, [3:15]=anchor deltas, rest zero-pad
    head_ref:(1, 1, 128)       f32   cols [0:21]=cls scores, [21:101]=bbox deltas, rest zero-pad
    """
    x = xp_ref[0]                                     # (Ho+2, Wo+2, C) bf16
    C = x.shape[-1]

    # --- RPN 3x3 stride-1 conv + ReLU (9 shifted matmuls, f32 accumulator) ---
    acc = jnp.zeros((Ho * Wo, wr_ref.shape[-1]), jnp.float32)
    for dy in range(3):
        for dx in range(3):
            patch = x[dy:dy + Ho, dx:dx + Wo, :].reshape(Ho * Wo, C)
            acc = acc + jnp.dot(patch, wr_ref[dy * 3 + dx],
                                preferred_element_type=jnp.float32)
    t = jnp.maximum(acc + br_ref[...], 0.0)           # (Ho*Wo, C) f32

    # --- fused 1x1 objectness + anchor-delta heads (lane-dense, padded to 128) ---
    rpn = jnp.dot(t.astype(jnp.bfloat16), wh_ref[...],
                  preferred_element_type=jnp.float32) + bh_ref[...]
    rpn_ref[0] = rpn.astype(rpn_ref.dtype)

    # --- ROI box head: global average pool over the un-padded interior of p4 -> FCs ---
    # TODO(synk): real ROIAlign / proposal sampling would batch ROIs here so the FC matmuls
    #             get M >= 128 rows; the per-image global pool stand-in keeps M = 1.
    interior = x[1:1 + Ho, 1:1 + Wo, :].astype(jnp.float32).reshape(Ho * Wo, C)
    pooled = jnp.mean(interior, axis=0, keepdims=True)                # (1, C) f32
    h = jnp.dot(pooled.astype(jnp.bfloat16), w1_ref[...],
                preferred_element_type=jnp.float32) + b1_ref[...]
    h = jnp.maximum(h, 0.0)
    h = jnp.dot(h.astype(jnp.bfloat16), w2_ref[...],
                preferred_element_type=jnp.float32) + b2_ref[...]
    h = jnp.maximum(h, 0.0)
    pred = jnp.dot(h.astype(jnp.bfloat16), wp_ref[...],
                   preferred_element_type=jnp.float32) + bp_ref[...]  # (1, 128)
    head_ref[0] = pred.astype(head_ref.dtype)


# ----------------------------------------------------------------------------
# Wrappers
# ----------------------------------------------------------------------------
_COMPILER_PARAMS = pltpu.CompilerParams(
    dimension_semantics=("parallel",),          # batch axis -> both TCs on v7x
    vmem_limit_bytes=32 * 1024 * 1024,          # safe on v5e/v6e (128 MiB) and v7x (64 MiB)
)


def conv3x3_s2(x_nhwc, w_taps, bias, *, activation="relu"):
    """3x3 stride-2 pad-1 conv. Returns (B, (H/2)*(W/2), Cout) in bf16."""
    B, H, W, Cin = x_nhwc.shape
    Ho, Wo = H // 2, W // 2
    Cout = w_taps.shape[-1]
    # one cheap prep pass: pad by 1, split each spatial axis into (coarse, phase), phases leading.
    xp = jnp.pad(x_nhwc, ((0, 0), (1, 1), (1, 1), (0, 0)))           # (B, 2(Ho+1), 2(Wo+1), Cin)
    xp = xp.reshape(B, Ho + 1, 2, Wo + 1, 2, Cin)
    xp = jnp.transpose(xp, (0, 2, 4, 1, 3, 5))                       # (B, 2, 2, Ho+1, Wo+1, Cin)
    xp = xp.reshape(B, 4 * (Ho + 1), Wo + 1, Cin).astype(jnp.bfloat16)

    kern = functools.partial(_conv3x3_s2_kernel, Ho=Ho, Wo=Wo, activation=activation)
    return pl.pallas_call(
        kern,
        out_shape=jax.ShapeDtypeStruct((B, Ho * Wo, Cout), jnp.bfloat16),
        grid=(B,),
        in_specs=[
            pl.BlockSpec((1, 4 * (Ho + 1), Wo + 1, Cin), lambda b: (b, 0, 0, 0)),
            pl.BlockSpec((9, Cin, Cout), lambda b: (0, 0, 0)),
            pl.BlockSpec((1, Cout), lambda b: (0, 0)),
        ],
        out_specs=pl.BlockSpec((1, Ho * Wo, Cout), lambda b: (b, 0, 0)),
        compiler_params=_COMPILER_PARAMS,
    )(xp, w_taps, bias)


def rpn_and_roi_heads(p4, wr_taps, br, wh, bh, w_fc1, b_fc1, w_fc2, b_fc2, wp, bp):
    """Single pallas_call: RPN conv + fused RPN heads + full box head. p4: (B,Ho,Wo,C) bf16."""
    B, Ho, Wo, C = p4.shape
    xp = jnp.pad(p4, ((0, 0), (1, 1), (1, 1), (0, 0)))
    kern = functools.partial(_rpn_roi_kernel, Ho=Ho, Wo=Wo)
    rpn_out, head_out = pl.pallas_call(
        kern,
        out_shape=(
            jax.ShapeDtypeStruct((B, Ho * Wo, 128), jnp.float32),
            jax.ShapeDtypeStruct((B, 1, 128), jnp.float32),
        ),
        grid=(B,),
        in_specs=[
            pl.BlockSpec((1, Ho + 2, Wo + 2, C), lambda b: (b, 0, 0, 0)),
            pl.BlockSpec((9, C, C), lambda b: (0, 0, 0)),
            pl.BlockSpec((1, C), lambda b: (0, 0)),
            pl.BlockSpec((C, 128), lambda b: (0, 0)),
            pl.BlockSpec((1, 128), lambda b: (0, 0)),
            pl.BlockSpec((C, 128), lambda b: (0, 0)),
            pl.BlockSpec((1, 128), lambda b: (0, 0)),
            pl.BlockSpec((128, 128), lambda b: (0, 0)),
            pl.BlockSpec((1, 128), lambda b: (0, 0)),
            pl.BlockSpec((128, 128), lambda b: (0, 0)),
            pl.BlockSpec((1, 128), lambda b: (0, 0)),
        ],
        out_specs=(
            pl.BlockSpec((1, Ho * Wo, 128), lambda b: (b, 0, 0)),
            pl.BlockSpec((1, 1, 128), lambda b: (b, 0, 0)),
        ),
        compiler_params=_COMPILER_PARAMS,
    )(xp, wr_taps, br, wh, bh, w_fc1, b_fc1, w_fc2, b_fc2, wp, bp)
    return rpn_out, head_out.reshape(B, 128)


# ----------------------------------------------------------------------------
# GeneralizedRCNN (synthetic, deterministic parameters)
# ----------------------------------------------------------------------------
class GeneralizedRCNNPallas:
    def __init__(self, key, *, in_channels=3, stem_c=32, feat_c=64,
                 num_anchors=3, fc_dim=128, num_classes=20):
        ks = jax.random.split(key, 12)

        def w(k, shape, fan_in):
            return jax.random.normal(k, shape, jnp.float32) * (1.0 / jnp.sqrt(fan_in))

        self.num_anchors = num_anchors
        self.num_classes = num_classes

        # cfg.MODEL.PIXEL_MEAN / PIXEL_STD
        pixel_mean = jnp.array([103.53, 116.28, 123.675], jnp.float32)
        pixel_std = jnp.array([57.375, 57.12, 58.395], jnp.float32)

        # raw torch-layout parameters (same structure as the reference module)
        w_stem1 = w(ks[0], (stem_c, in_channels, 3, 3), 9 * in_channels)
        b_stem1 = jnp.zeros((stem_c,), jnp.float32)
        w_stem2 = w(ks[1], (feat_c, stem_c, 3, 3), 9 * stem_c)
        b_stem2 = jnp.zeros((feat_c,), jnp.float32)
        w_rpn = w(ks[2], (feat_c, feat_c, 3, 3), 9 * feat_c)
        b_rpn = jnp.zeros((feat_c,), jnp.float32)
        w_obj = w(ks[3], (num_anchors, feat_c, 1, 1), feat_c)
        b_obj = jnp.zeros((num_anchors,), jnp.float32)
        w_del = w(ks[4], (4 * num_anchors, feat_c, 1, 1), feat_c)
        b_del = jnp.zeros((4 * num_anchors,), jnp.float32)
        w_fc1 = w(ks[5], (feat_c, fc_dim), feat_c)
        b_fc1 = jnp.zeros((fc_dim,), jnp.float32)
        w_fc2 = w(ks[6], (fc_dim, fc_dim), fc_dim)
        b_fc2 = jnp.zeros((fc_dim,), jnp.float32)
        w_cls = w(ks[7], (fc_dim, num_classes + 1), fc_dim)
        b_cls = jnp.zeros((num_classes + 1,), jnp.float32)
        w_box = w(ks[8], (fc_dim, 4 * num_classes), fc_dim)
        b_box = jnp.zeros((4 * num_classes,), jnp.float32)

        # --- fold pixel normalization into stem-1 ---
        inv_std = 1.0 / pixel_std
        w1_folded = w_stem1 * inv_std[None, :, None, None]
        b1_folded = b_stem1 - jnp.einsum("oikl,i->o", w_stem1, pixel_mean * inv_std)

        def to_taps(w_oihw):
            # (Cout, Cin, 3, 3) -> (9, Cin, Cout), tap index = ky*3 + kx
            cout, cin = w_oihw.shape[0], w_oihw.shape[1]
            return jnp.transpose(w_oihw, (2, 3, 1, 0)).reshape(9, cin, cout)

        self.w1_taps = to_taps(w1_folded).astype(jnp.bfloat16)
        self.b1 = b1_folded.reshape(1, -1)
        self.w2_taps = to_taps(w_stem2).astype(jnp.bfloat16)
        self.b2 = b_stem2.reshape(1, -1)
        self.wr_taps = to_taps(w_rpn).astype(jnp.bfloat16)
        self.br = b_rpn.reshape(1, -1)

        # --- fuse RPN 1x1 heads (objectness + deltas), pad N to 128 for lane-dense stores ---
        wh = jnp.concatenate([w_obj.reshape(num_anchors, feat_c),
                              w_del.reshape(4 * num_anchors, feat_c)], axis=0).T  # (feat_c, 15)
        bh = jnp.concatenate([b_obj, b_del])
        pad_n = 128 - wh.shape[1]
        self.wh = jnp.pad(wh, ((0, 0), (0, pad_n))).astype(jnp.bfloat16)
        self.bh = jnp.pad(bh, (0, pad_n)).reshape(1, -1)

        # --- box head FCs + fused cls/box predictors (pad N to 128) ---
        self.w_fc1 = w_fc1.astype(jnp.bfloat16)
        self.b_fc1 = b_fc1.reshape(1, -1)
        self.w_fc2 = w_fc2.astype(jnp.bfloat16)
        self.b_fc2 = b_fc2.reshape(1, -1)
        wp = jnp.concatenate([w_cls, w_box], axis=1)                 # (fc_dim, 101)
        bp = jnp.concatenate([b_cls, b_box])
        pad_p = 128 - wp.shape[1]
        self.wp = jnp.pad(wp, ((0, 0), (0, pad_p))).astype(jnp.bfloat16)
        self.bp = jnp.pad(bp, (0, pad_p)).reshape(1, -1)

    # ---- the forward pass ----------------------------------------------------
    def forward(self, images_nchw):
        B, _, H, W = images_nchw.shape
        # TODO(synk): the NCHW->NHWC transpose is one XLA pass; could be absorbed into the
        #             stem-1 phase-split prep if it ever shows up in profiles.
        x = jnp.transpose(images_nchw, (0, 2, 3, 1))                 # NHWC, raw pixels

        # backbone stem (pixel normalization folded into stem-1 weights/bias)
        y1 = conv3x3_s2(x, self.w1_taps, self.b1)                    # (B, (H/2)*(W/2), 32) bf16
        y1 = y1.reshape(B, H // 2, W // 2, -1)
        p4_flat = conv3x3_s2(y1, self.w2_taps, self.b2)              # (B, (H/4)*(W/4), 64) bf16
        Ho, Wo = H // 4, W // 4
        p4 = p4_flat.reshape(B, Ho, Wo, -1)

        # proposal generator + roi box head in one fused pallas_call reading p4 once
        # TODO(synk): anchor generation, proposal NMS, box matching/sampling and ROIAlign have no
        #             clean Pallas equivalent; a per-image global average pool of p4 stands in
        #             for the per-ROI pooled feature (same stand-in as the reference impl here).
        rpn_out, head_out = rpn_and_roi_heads(
            p4, self.wr_taps, self.br, self.wh, self.bh,
            self.w_fc1, self.b_fc1, self.w_fc2, self.b_fc2, self.wp, self.bp)

        A, K = self.num_anchors, self.num_classes
        objectness = rpn_out[:, :, :A].reshape(B, Ho, Wo, A)
        anchor_deltas = rpn_out[:, :, A:A + 4 * A].reshape(B, Ho, Wo, 4 * A)
        cls_scores = head_out[:, :K + 1]
        bbox_deltas = head_out[:, K + 1:K + 1 + 4 * K]

        # losses (plain-JAX scalar glue over the Pallas head outputs)
        # TODO(synk): stand-in losses; real RPN/ROI losses need GT matching & sampling.
        losses = {
            "loss_rpn_cls": jnp.mean(jax.nn.log_sigmoid(-objectness) * -1.0),
            "loss_rpn_loc": jnp.mean(jnp.abs(anchor_deltas)),
            "loss_cls": jnp.mean(jax.nn.logsumexp(cls_scores, axis=-1) - cls_scores[:, 0]),
            "loss_box_reg": jnp.mean(bbox_deltas ** 2),
        }
        aux = {
            "p4": p4,
            "objectness_logits": objectness,
            "anchor_deltas": anchor_deltas,
            "cls_scores": cls_scores,
            "bbox_deltas": bbox_deltas,
        }
        return losses, aux


# ----------------------------------------------------------------------------
# main
# ----------------------------------------------------------------------------
if __name__ == "__main__":
    key = jax.random.PRNGKey(0)
    k_img, k_params = jax.random.split(key)

    # synthetic batched_inputs[0]: B images in (C, H, W) format, 0..255 range
    B, C, H, W = 2, 3, 32, 32
    images = jax.random.uniform(k_img, (B, C, H, W), jnp.float32, 0.0, 255.0)

    model = GeneralizedRCNNPallas(k_params)
    losses, aux = jax.jit(model.forward)(images)

    jax.block_until_ready(losses)
    jax.block_until_ready(aux)

    # sanity: finite losses and expected output shapes
    for v in losses.values():
        assert bool(jnp.isfinite(v)), "non-finite loss"
    assert aux["p4"].shape == (B, 8, 8, 64)
    assert aux["objectness_logits"].shape == (B, 8, 8, 3)
    assert aux["anchor_deltas"].shape == (B, 8, 8, 12)
    assert aux["cls_scores"].shape == (B, 21)
    assert aux["bbox_deltas"].shape == (B, 80)

    print("KERNEL_OK")
</pallas_src>

<mosaic_0001>
module attributes {stable_mosaic.version = 11 : i64} {
  func.func @_conv3x3_s2_kernel(%arg0: i32, %arg1: memref<1x68x17x3xbf16, #tpu.memory_space<vmem>>, %arg2: memref<9x3x32xbf16, #tpu.memory_space<vmem>>, %arg3: memref<1x32xf32, #tpu.memory_space<vmem>>, %arg4: memref<1x256x32xbf16, #tpu.memory_space<vmem>>) attributes {dimension_semantics = [#tpu.dimension_semantics<parallel>], iteration_bounds = array<i64: 2>, scalar_prefetch = 0 : i64, scratch_operands = 0 : i64, tpu.core_type = #tpu.core_type<tc>, window_params = [{transform_indices = @transform_0, window_bounds = array<i64: 1, 68, 17, 3>}, {pipeline_mode = #tpu.pipeline_mode<synchronous>, transform_indices = @transform_1, window_bounds = array<i64: 9, 3, 32>}, {pipeline_mode = #tpu.pipeline_mode<synchronous>, transform_indices = @transform_2, window_bounds = array<i64: 1, 32>}, {transform_indices = @transform_3, window_bounds = array<i64: 1, 256, 32>}]} {
    %c0 = arith.constant 0 : index
    %c0_0 = arith.constant 0 : index
    %c0_1 = arith.constant 0 : index
    %c0_2 = arith.constant 0 : index
    %0 = vector.load %arg1[%c0, %c0_0, %c0_1, %c0_2] : memref<1x68x17x3xbf16, #tpu.memory_space<vmem>>, vector<1x68x17x3xbf16>
    %1 = vector.shape_cast %0 : vector<1x68x17x3xbf16> to vector<68x17x3xbf16>
    %cst = arith.constant 0.000000e+00 : f32
    %2 = vector.broadcast %cst : f32 to vector<256x32xf32>
    %3 = vector.extract_strided_slice %1 {offsets = [0, 0, 0], sizes = [16, 16, 3], strides = [1, 1, 1]} : vector<68x17x3xbf16> to vector<16x16x3xbf16>
    %4 = vector.shape_cast %3 : vector<16x16x3xbf16> to vector<256x3xbf16>
    %c0_3 = arith.constant 0 : index
    %c0_4 = arith.constant 0 : index
    %c0_5 = arith.constant 0 : index
    %5 = vector.load %arg2[%c0_3, %c0_4, %c0_5] : memref<9x3x32xbf16, #tpu.memory_space<vmem>>, vector<1x3x32xbf16>
    %6 = vector.shape_cast %5 : vector<1x3x32xbf16> to vector<3x32xbf16>
    %cst_6 = arith.constant dense<0.000000e+00> : vector<256x32xf32>
    %7 = tpu.matmul %4, %6, %cst_6 {dimension_numbers = #tpu.dot_dimension_numbers<[1], [0], [0], [1], [0, 0, 1, 1], [], []>} : vector<256x3xbf16>, vector<3x32xbf16>, vector<256x32xf32> -> vector<256x32xf32>
    %8 = arith.addf %2, %7 : vector<256x32xf32>
    %9 = vector.extract_strided_slice %1 {offsets = [17, 0, 0], sizes = [16, 16, 3], strides = [1, 1, 1]} : vector<68x17x3xbf16> to vector<16x16x3xbf16>
    %10 = vector.shape_cast %9 : vector<16x16x3xbf16> to vector<256x3xbf16>
    %c1 = arith.constant 1 : index
    %c0_7 = arith.constant 0 : index
    %c0_8 = arith.constant 0 : index
    %11 = vector.load %arg2[%c1, %c0_7, %c0_8] : memref<9x3x32xbf16, #tpu.memory_space<vmem>>, vector<1x3x32xbf16>
    %12 = vector.shape_cast %11 : vector<1x3x32xbf16> to vector<3x32xbf16>
    %cst_9 = arith.constant dense<0.000000e+00> : vector<256x32xf32>
    %13 = tpu.matmul %10, %12, %cst_9 {dimension_numbers = #tpu.dot_dimension_numbers<[1], [0], [0], [1], [0, 0, 1, 1], [], []>} : vector<256x3xbf16>, vector<3x32xbf16>, vector<256x32xf32> -> vector<256x32xf32>
    %14 = arith.addf %8, %13 : vector<256x32xf32>
    %15 = vector.extract_strided_slice %1 {offsets = [0, 1, 0], sizes = [16, 16, 3], strides = [1, 1, 1]} : vector<68x17x3xbf16> to vector<16x16x3xbf16>
    %16 = vector.shape_cast %15 : vector<16x16x3xbf16> to vector<256x3xbf16>
    %c2 = arith.constant 2 : index
    %c0_10 = arith.constant 0 : index
    %c0_11 = arith.constant 0 : index
    %17 = vector.load %arg2[%c2, %c0_10, %c0_11] : memref<9x3x32xbf16, #tpu.memory_space<vmem>>, vector<1x3x32xbf16>
    %18 = vector.shape_cast %17 : vector<1x3x32xbf16> to vector<3x32xbf16>
    %cst_12 = arith.constant dense<0.000000e+00> : vector<256x32xf32>
    %19 = tpu.matmul %16, %18, %cst_12 {dimension_numbers = #tpu.dot_dimension_numbers<[1], [0], [0], [1], [0, 0, 1, 1], [], []>} : vector<256x3xbf16>, vector<3x32xbf16>, vector<256x32xf32> -> vector<256x32xf32>
    %20 = arith.addf %14, %19 : vector<256x32xf32>
    %21 = vector.extract_strided_slice %1 {offsets = [34, 0, 0], sizes = [16, 16, 3], strides = [1, 1, 1]} : vector<68x17x3xbf16> to vector<16x16x3xbf16>
    %22 = vector.shape_cast %21 : vector<16x16x3xbf16> to vector<256x3xbf16>
    %c3 = arith.constant 3 : index
    %c0_13 = arith.constant 0 : index
    %c0_14 = arith.constant 0 : index
    %23 = vector.load %arg2[%c3, %c0_13, %c0_14] : memref<9x3x32xbf16, #tpu.memory_space<vmem>>, vector<1x3x32xbf16>
    %24 = vector.shape_cast %23 : vector<1x3x32xbf16> to vector<3x32xbf16>
    %cst_15 = arith.constant dense<0.000000e+00> : vector<256x32xf32>
    %25 = tpu.matmul %22, %24, %cst_15 {dimension_numbers = #tpu.dot_dimension_numbers<[1], [0], [0], [1], [0, 0, 1, 1], [], []>} : vector<256x3xbf16>, vector<3x32xbf16>, vector<256x32xf32> -> vector<256x32xf32>
    %26 = arith.addf %20, %25 : vector<256x32xf32>
    %27 = vector.extract_strided_slice %1 {offsets = [51, 0, 0], sizes = [16, 16, 3], strides = [1, 1, 1]} : vector<68x17x3xbf16> to vector<16x16x3xbf16>
    %28 = vector.shape_cast %27 : vector<16x16x3xbf16> to vector<256x3xbf16>
    %c4 = arith.constant 4 : index
    %c0_16 = arith.constant 0 : index
    %c0_17 = arith.constant 0 : index
    %29 = vector.load %arg2[%c4, %c0_16, %c0_17] : memref<9x3x32xbf16, #tpu.memory_space<vmem>>, vector<1x3x32xbf16>
    %30 = vector.shape_cast %29 : vector<1x3x32xbf16> to vector<3x32xbf16>
    %cst_18 = arith.constant dense<0.000000e+00> : vector<256x32xf32>
    %31 = tpu.matmul %28, %30, %cst_18 {dimension_numbers = #tpu.dot_dimension_numbers<[1], [0], [0], [1], [0, 0, 1, 1], [], []>} : vector<256x3xbf16>, vector<3x32xbf16>, vector<256x32xf32> -> vector<256x32xf32>
    %32 = arith.addf %26, %31 : vector<256x32xf32>
    %33 = vector.extract_strided_slice %1 {offsets = [34, 1, 0], sizes = [16, 16, 3], strides = [1, 1, 1]} : vector<68x17x3xbf16> to vector<16x16x3xbf16>
    %34 = vector.shape_cast %33 : vector<16x16x3xbf16> to vector<256x3xbf16>
    %c5 = arith.constant 5 : index
    %c0_19 = arith.constant 0 : index
    %c0_20 = arith.constant 0 : index
    %35 = vector.load %arg2[%c5, %c0_19, %c0_20] : memref<9x3x32xbf16, #tpu.memory_space<vmem>>, vector<1x3x32xbf16>
    %36 = vector.shape_cast %35 : vector<1x3x32xbf16> to vector<3x32xbf16>
    %cst_21 = arith.constant dense<0.000000e+00> : vector<256x32xf32>
    %37 = tpu.matmul %34, %36, %cst_21 {dimension_numbers = #tpu.dot_dimension_numbers<[1], [0], [0], [1], [0, 0, 1, 1], [], []>} : vector<256x3xbf16>, vector<3x32xbf16>, vector<256x32xf32> -> vector<256x32xf32>
    %38 = arith.addf %32, %37 : vector<256x32xf32>
    %39 = vector.extract_strided_slice %1 {offsets = [1, 0, 0], sizes = [16, 16, 3], strides = [1, 1, 1]} : vector<68x17x3xbf16> to vector<16x16x3xbf16>
    %40 = vector.shape_cast %39 : vector<16x16x3xbf16> to vector<256x3xbf16>
    %c6 = arith.constant 6 : index
    %c0_22 = arith.constant 0 : index
    %c0_23 = arith.constant 0 : index
    %41 = vector.load %arg2[%c6, %c0_22, %c0_23] : memref<9x3x32xbf16, #tpu.memory_space<vmem>>, vector<1x3x32xbf16>
    %42 = vector.shape_cast %41 : vector<1x3x32xbf16> to vector<3x32xbf16>
    %cst_24 = arith.constant dense<0.000000e+00> : vector<256x32xf32>
    %43 = tpu.matmul %40, %42, %cst_24 {dimension_numbers = #tpu.dot_dimension_numbers<[1], [0], [0], [1], [0, 0, 1, 1], [], []>} : vector<256x3xbf16>, vector<3x32xbf16>, vector<256x32xf32> -> vector<256x32xf32>
    %44 = arith.addf %38, %43 : vector<256x32xf32>
    %45 = vector.extract_strided_slice %1 {offsets = [18, 0, 0], sizes = [16, 16, 3], strides = [1, 1, 1]} : vector<68x17x3xbf16> to vector<16x16x3xbf16>
    %46 = vector.shape_cast %45 : vector<16x16x3xbf16> to vector<256x3xbf16>
    %c7 = arith.constant 7 : index
    %c0_25 = arith.constant 0 : index
    %c0_26 = arith.constant 0 : index
    %47 = vector.load %arg2[%c7, %c0_25, %c0_26] : memref<9x3x32xbf16, #tpu.memory_space<vmem>>, vector<1x3x32xbf16>
    %48 = vector.shape_cast %47 : vector<1x3x32xbf16> to vector<3x32xbf16>
    %cst_27 = arith.constant dense<0.000000e+00> : vector<256x32xf32>
    %49 = tpu.matmul %46, %48, %cst_27 {dimension_numbers = #tpu.dot_dimension_numbers<[1], [0], [0], [1], [0, 0, 1, 1], [], []>} : vector<256x3xbf16>, vector<3x32xbf16>, vector<256x32xf32> -> vector<256x32xf32>
    %50 = arith.addf %44, %49 : vector<256x32xf32>
    %51 = vector.extract_strided_slice %1 {offsets = [1, 1, 0], sizes = [16, 16, 3], strides = [1, 1, 1]} : vector<68x17x3xbf16> to vector<16x16x3xbf16>
    %52 = vector.shape_cast %51 : vector<16x16x3xbf16> to vector<256x3xbf16>
    %c8 = arith.constant 8 : index
    %c0_28 = arith.constant 0 : index
    %c0_29 = arith.constant 0 : index
    %53 = vector.load %arg2[%c8, %c0_28, %c0_29] : memref<9x3x32xbf16, #tpu.memory_space<vmem>>, vector<1x3x32xbf16>
    %54 = vector.shape_cast %53 : vector<1x3x32xbf16> to vector<3x32xbf16>
    %cst_30 = arith.constant dense<0.000000e+00> : vector<256x32xf32>
    %55 = tpu.matmul %52, %54, %cst_30 {dimension_numbers = #tpu.dot_dimension_numbers<[1], [0], [0], [1], [0, 0, 1, 1], [], []>} : vector<256x3xbf16>, vector<3x32xbf16>, vector<256x32xf32> -> vector<256x32xf32>
    %56 = arith.addf %50, %55 : vector<256x32xf32>
    %c0_31 = arith.constant 0 : index
    %c0_32 = arith.constant 0 : index
    %57 = vector.load %arg3[%c0_31, %c0_32] : memref<1x32xf32, #tpu.memory_space<vmem>>, vector<1x32xf32>
    %58 = vector.broadcast %57 : vector<1x32xf32> to vector<256x32xf32>
    %59 = arith.addf %56, %58 : vector<256x32xf32>
    %cst_33 = arith.constant 0.000000e+00 : f32
    %60 = vector.broadcast %cst_33 : f32 to vector<256x32xf32>
    %61 = arith.maximumf %59, %60 : vector<256x32xf32>
    %62 = arith.truncf %61 : vector<256x32xf32> to vector<256x32xbf16>
    %c0_34 = arith.constant 0 : index
    %c0_35 = arith.constant 0 : index
    %c0_36 = arith.constant 0 : index
    %63 = vector.load %arg4[%c0_34, %c0_35, %c0_36] : memref<1x256x32xbf16, #tpu.memory_space<vmem>>, vector<1x256x32xbf16>
    %64 = vector.shape_cast %63 : vector<1x256x32xbf16> to vector<256x32xbf16>
    %65 = vector.shape_cast %62 : vector<256x32xbf16> to vector<1x256x32xbf16>
    tpu.vector_store %arg4[%c0_34, %c0_35, %c0_36], %65 {strides = array<i32>} : memref<1x256x32xbf16, #tpu.memory_space<vmem>>, vector<1x256x32xbf16>,
    return
  }
  func.func @transform_0(%arg0: i32) -> (i32, i32, i32, i32) {
    %c0_i32 = arith.constant 0 : i32
    %c0_i32_0 = arith.constant 0 : i32
    %c0_i32_1 = arith.constant 0 : i32
    %c0_i32_2 = arith.constant 0 : i32
    return %arg0, %c0_i32, %c0_i32_0, %c0_i32_1 : i32, i32, i32, i32
  }
  func.func @transform_1(%arg0: i32) -> (i32, i32, i32) {
    %c0_i32 = arith.constant 0 : i32
    %c0_i32_0 = arith.constant 0 : i32
    %c0_i32_1 = arith.constant 0 : i32
    %c0_i32_2 = arith.constant 0 : i32
    return %c0_i32, %c0_i32_0, %c0_i32_1 : i32, i32, i32
  }
  func.func @transform_2(%arg0: i32) -> (i32, i32) {
    %c0_i32 = arith.constant 0 : i32
    %c0_i32_0 = arith.constant 0 : i32
    %c0_i32_1 = arith.constant 0 : i32
    return %c0_i32, %c0_i32_0 : i32, i32
  }
  func.func @transform_3(%arg0: i32) -> (i32, i32, i32) {
    %c0_i32 = arith.constant 0 : i32
    %c0_i32_0 = arith.constant 0 : i32
    %c0_i32_1 = arith.constant 0 : i32
    return %arg0, %c0_i32, %c0_i32_0 : i32, i32, i32
  }
}

module attributes {stable_mosaic.version = 11 : i64} {
  func.func @_conv3x3_s2_kernel(%arg0: i32, %arg1: memref<1x36x9x32xbf16, #tpu.memory_space<vmem>>, %arg2: memref<9x32x64xbf16, #tpu.memory_space<vmem>>, %arg3: memref<1x64xf32, #tpu.memory_space<vmem>>, %arg4: memref<1x64x64xbf16, #tpu.memory_space<vmem>>) attributes {dimension_semantics = [#tpu.dimension_semantics<parallel>], iteration_bounds = array<i64: 2>, scalar_prefetch = 0 : i64, scratch_operands = 0 : i64, tpu.core_type = #tpu.core_type<tc>, window_params = [{transform_indices = @transform_0, window_bounds = array<i64: 1, 36, 9, 32>}, {pipeline_mode = #tpu.pipeline_mode<synchronous>, transform_indices = @transform_1, window_bounds = array<i64: 9, 32, 64>}, {pipeline_mode = #tpu.pipeline_mode<synchronous>, transform_indices = @transform_2, window_bounds = array<i64: 1, 64>}, {transform_indices = @transform_3, window_bounds = array<i64: 1, 64, 64>}]} {
    %c0 = arith.constant 0 : index
    %c0_0 = arith.constant 0 : index
    %c0_1 = arith.constant 0 : index
    %c0_2 = arith.constant 0 : index
    %0 = vector.load %arg1[%c0, %c0_0, %c0_1, %c0_2] : memref<1x36x9x32xbf16, #tpu.memory_space<vmem>>, vector<1x36x9x32xbf16>
    %1 = vector.shape_cast %0 : vector<1x36x9x32xbf16> to vector<36x9x32xbf16>
    %cst = arith.constant 0.000000e+00 : f32
    %2 = vector.broadcast %cst : f32 to vector<64x64xf32>
    %3 = vector.extract_strided_slice %1 {offsets = [0, 0, 0], sizes = [8, 8, 32], strides = [1, 1, 1]} : vector<36x9x32xbf16> to vector<8x8x32xbf16>
    %4 = vector.shape_cast %3 : vector<8x8x32xbf16> to vector<64x32xbf16>
    %c0_3 = arith.constant 0 : index
    %c0_4 = arith.constant 0 : index
    %c0_5 = arith.constant 0 : index
    %5 = vector.load %arg2[%c0_3, %c0_4, %c0_5] : memref<9x32x64xbf16, #tpu.memory_space<vmem>>, vector<1x32x64xbf16>
    %6 = vector.shape_cast %5 : vector<1x32x64xbf16> to vector<32x64xbf16>
    %cst_6 = arith.constant dense<0.000000e+00> : vector<64x64xf32>
    %7 = tpu.matmul %4, %6, %cst_6 {dimension_numbers = #tpu.dot_dimension_numbers<[1], [0], [0], [1], [0, 0, 1, 1], [], []>} : vector<64x32xbf16>, vector<32x64xbf16>, vector<64x64xf32> -> vector<64x64xf32>
    %8 = arith.addf %2, %7 : vector<64x64xf32>
    %9 = vector.extract_strided_slice %1 {offsets = [9, 0, 0], sizes = [8, 8, 32], strides = [1, 1, 1]} : vector<36x9x32xbf16> to vector<8x8x32xbf16>
    %10 = vector.shape_cast %9 : vector<8x8x32xbf16> to vector<64x32xbf16>
    %c1 = arith.constant 1 : index
    %c0_7 = arith.constant 0 : index
    %c0_8 = arith.constant 0 : index
    %11 = vector.load %arg2[%c1, %c0_7, %c0_8] : memref<9x32x64xbf16, #tpu.memory_space<vmem>>, vector<1x32x64xbf16>
    %12 = vector.shape_cast %11 : vector<1x32x64xbf16> to vector<32x64xbf16>
    %cst_9 = arith.constant dense<0.000000e+00> : vector<64x64xf32>
    %13 = tpu.matmul %10, %12, %cst_9 {dimension_numbers = #tpu.dot_dimension_numbers<[1], [0], [0], [1], [0, 0, 1, 1], [], []>} : vector<64x32xbf16>, vector<32x64xbf16>, vector<64x64xf32> -> vector<64x64xf32>
    %14 = arith.addf %8, %13 : vector<64x64xf32>
    %15 = vector.extract_strided_slice %1 {offsets = [0, 1, 0], sizes = [8, 8, 32], strides = [1, 1, 1]} : vector<36x9x32xbf16> to vector<8x8x32xbf16>
    %16 = vector.shape_cast %15 : vector<8x8x32xbf16> to vector<64x32xbf16>
    %c2 = arith.constant 2 : index
    %c0_10 = arith.constant 0 : index
    %c0_11 = arith.constant 0 : index
    %17 = vector.load %arg2[%c2, %c0_10, %c0_11] : memref<9x32x64xbf16, #tpu.memory_space<vmem>>, vector<1x32x64xbf16>
    %18 = vector.shape_cast %17 : vector<1x32x64xbf16> to vector<32x64xbf16>
    %cst_12 = arith.constant dense<0.000000e+00> : vector<64x64xf32>
    %19 = tpu.matmul %16, %18, %cst_12 {dimension_numbers = #tpu.dot_dimension_numbers<[1], [0], [0], [1], [0, 0, 1, 1], [], []>} : vector<64x32xbf16>, vector<32x64xbf16>, vector<64x64xf32> -> vector<64x64xf32>
    %20 = arith.addf %14, %19 : vector<64x64xf32>
    %21 = vector.extract_strided_slice %1 {offsets = [18, 0, 0], sizes = [8, 8, 32], strides = [1, 1, 1]} : vector<36x9x32xbf16> to vector<8x8x32xbf16>
    %22 = vector.shape_cast %21 : vector<8x8x32xbf16> to vector<64x32xbf16>
    %c3 = arith.constant 3 : index
    %c0_13 = arith.constant 0 : index
    %c0_14 = arith.constant 0 : index
    %23 = vector.load %arg2[%c3, %c0_13, %c0_14] : memref<9x32x64xbf16, #tpu.memory_space<vmem>>, vector<1x32x64xbf16>
    %24 = vector.shape_cast %23 : vector<1x32x64xbf16> to vector<32x64xbf16>
    %cst_15 = arith.constant dense<0.000000e+00> : vector<64x64xf32>
    %25 = tpu.matmul %22, %24, %cst_15 {dimension_numbers = #tpu.dot_dimension_numbers<[1], [0], [0], [1], [0, 0, 1, 1], [], []>} : vector<64x32xbf16>, vector<32x64xbf16>, vector<64x64xf32> -> vector<64x64xf32>
    %26 = arith.addf %20, %25 : vector<64x64xf32>
    %27 = vector.extract_strided_slice %1 {offsets = [27, 0, 0], sizes = [8, 8, 32], strides = [1, 1, 1]} : vector<36x9x32xbf16> to vector<8x8x32xbf16>
    %28 = vector.shape_cast %27 : vector<8x8x32xbf16> to vector<64x32xbf16>
    %c4 = arith.constant 4 : index
    %c0_16 = arith.constant 0 : index
    %c0_17 = arith.constant 0 : index
    %29 = vector.load %arg2[%c4, %c0_16, %c0_17] : memref<9x32x64xbf16, #tpu.memory_space<vmem>>, vector<1x32x64xbf16>
    %30 = vector.shape_cast %29 : vector<1x32x64xbf16> to vector<32x64xbf16>
    %cst_18 = arith.constant dense<0.000000e+00> : vector<64x64xf32>
    %31 = tpu.matmul %28, %30, %cst_18 {dimension_numbers = #tpu.dot_dimension_numbers<[1], [0], [0], [1], [0, 0, 1, 1], [], []>} : vector<64x32xbf16>, vector<32x64xbf16>, vector<64x64xf32> -> vector<64x64xf32>
    %32 = arith.addf %26, %31 : vector<64x64xf32>
    %33 = vector.extract_strided_slice %1 {offsets = [18, 1, 0], sizes = [8, 8, 32], strides = [1, 1, 1]} : vector<36x9x32xbf16> to vector<8x8x32xbf16>
    %34 = vector.shape_cast %33 : vector<8x8x32xbf16> to vector<64x32xbf16>
    %c5 = arith.constant 5 : index
    %c0_19 = arith.constant 0 : index
    %c0_20 = arith.constant 0 : index
    %35 = vector.load %arg2[%c5, %c0_19, %c0_20] : memref<9x32x64xbf16, #tpu.memory_space<vmem>>, vector<1x32x64xbf16>
    %36 = vector.shape_cast %35 : vector<1x32x64xbf16> to vector<32x64xbf16>
    %cst_21 = arith.constant dense<0.000000e+00> : vector<64x64xf32>
    %37 = tpu.matmul %34, %36, %cst_21 {dimension_numbers = #tpu.dot_dimension_numbers<[1], [0], [0], [1], [0, 0, 1, 1], [], []>} : vector<64x32xbf16>, vector<32x64xbf16>, vector<64x64xf32> -> vector<64x64xf32>
    %38 = arith.addf %32, %37 : vector<64x64xf32>
    %39 = vector.extract_strided_slice %1 {offsets = [1, 0, 0], sizes = [8, 8, 32], strides = [1, 1, 1]} : vector<36x9x32xbf16> to vector<8x8x32xbf16>
    %40 = vector.shape_cast %39 : vector<8x8x32xbf16> to vector<64x32xbf16>
    %c6 = arith.constant 6 : index
    %c0_22 = arith.constant 0 : index
    %c0_23 = arith.constant 0 : index
    %41 = vector.load %arg2[%c6, %c0_22, %c0_23] : memref<9x32x64xbf16, #tpu.memory_space<vmem>>, vector<1x32x64xbf16>
    %42 = vector.shape_cast %41 : vector<1x32x64xbf16> to vector<32x64xbf16>
    %cst_24 = arith.constant dense<0.000000e+00> : vector<64x64xf32>
    %43 = tpu.matmul %40, %42, %cst_24 {dimension_numbers = #tpu.dot_dimension_numbers<[1], [0], [0], [1], [0, 0, 1, 1], [], []>} : vector<64x32xbf16>, vector<32x64xbf16>, vector<64x64xf32> -> vector<64x64xf32>
    %44 = arith.addf %38, %43 : vector<64x64xf32>
    %45 = vector.extract_strided_slice %1 {offsets = [10, 0, 0], sizes = [8, 8, 32], strides = [1, 1, 1]} : vector<36x9x32xbf16> to vector<8x8x32xbf16>
    %46 = vector.shape_cast %45 : vector<8x8x32xbf16> to vector<64x32xbf16>
    %c7 = arith.constant 7 : index
    %c0_25 = arith.constant 0 : index
    %c0_26 = arith.constant 0 : index
    %47 = vector.load %arg2[%c7, %c0_25, %c0_26] : memref<9x32x64xbf16, #tpu.memory_space<vmem>>, vector<1x32x64xbf16>
    %48 = vector.shape_cast %47 : vector<1x32x64xbf16> to vector<32x64xbf16>
    %cst_27 = arith.constant dense<0.000000e+00> : vector<64x64xf32>
    %49 = tpu.matmul %46, %48, %cst_27 {dimension_numbers = #tpu.dot_dimension_numbers<[1], [0], [0], [1], [0, 0, 1, 1], [], []>} : vector<64x32xbf16>, vector<32x64xbf16>, vector<64x64xf32> -> vector<64x64xf32>
    %50 = arith.addf %44, %49 : vector<64x64xf32>
    %51 = vector.extract_strided_slice %1 {offsets = [1, 1, 0], sizes = [8, 8, 32], strides = [1, 1, 1]} : vector<36x9x32xbf16> to vector<8x8x32xbf16>
    %52 = vector.shape_cast %51 : vector<8x8x32xbf16> to vector<64x32xbf16>
    %c8 = arith.constant 8 : index
    %c0_28 = arith.constant 0 : index
    %c0_29 = arith.constant 0 : index
    %53 = vector.load %arg2[%c8, %c0_28, %c0_29] : memref<9x32x64xbf16, #tpu.memory_space<vmem>>, vector<1x32x64xbf16>
    %54 = vector.shape_cast %53 : vector<1x32x64xbf16> to vector<32x64xbf16>
    %cst_30 = arith.constant dense<0.000000e+00> : vector<64x64xf32>
    %55 = tpu.matmul %52, %54, %cst_30 {dimension_numbers = #tpu.dot_dimension_numbers<[1], [0], [0], [1], [0, 0, 1, 1], [], []>} : vector<64x32xbf16>, vector<32x64xbf16>, vector<64x64xf32> -> vector<64x64xf32>
    %56 = arith.addf %50, %55 : vector<64x64xf32>
    %c0_31 = arith.constant 0 : index
    %c0_32 = arith.constant 0 : index
    %57 = vector.load %arg3[%c0_31, %c0_32] : memref<1x64xf32, #tpu.memory_space<vmem>>, vector<1x64xf32>
    %58 = vector.broadcast %57 : vector<1x64xf32> to vector<64x64xf32>
    %59 = arith.addf %56, %58 : vector<64x64xf32>
    %cst_33 = arith.constant 0.000000e+00 : f32
    %60 = vector.broadcast %cst_33 : f32 to vector<64x64xf32>
    %61 = arith.maximumf %59, %60 : vector<64x64xf32>
    %62 = arith.truncf %61 : vector<64x64xf32> to vector<64x64xbf16>
    %c0_34 = arith.constant 0 : index
    %c0_35 = arith.constant 0 : index
    %c0_36 = arith.constant 0 : index
    %63 = vector.load %arg4[%c0_34, %c0_35, %c0_36] : memref<1x64x64xbf16, #tpu.memory_space<vmem>>, vector<1x64x64xbf16>
    %64 = vector.shape_cast %63 : vector<1x64x64xbf16> to vector<64x64xbf16>
    %65 = vector.shape_cast %62 : vector<64x64xbf16> to vector<1x64x64xbf16>
    tpu.vector_store %arg4[%c0_34, %c0_35, %c0_36], %65 {strides = array<i32>} : memref<1x64x64xbf16, #tpu.memory_space<vmem>>, vector<1x64x64xbf16>,
    return
  }
  func.func @transform_0(%arg0: i32) -> (i32, i32, i32, i32) {
    %c0_i32 = arith.constant 0 : i32
    %c0_i32_0 = arith.constant 0 : i32
    %c0_i32_1 = arith.constant 0 : i32
    %c0_i32_2 = arith.constant 0 : i32
    return %arg0, %c0_i32, %c0_i32_0, %c0_i32_1 : i32, i32, i32, i32
  }
  func.func @transform_1(%arg0: i32) -> (i32, i32, i32) {
    %c0_i32 = arith.constant 0 : i32
    %c0_i32_0 = arith.constant 0 : i32
    %c0_i32_1 = arith.constant 0 : i32
    %c0_i32_2 = arith.constant 0 : i32
    return %c0_i32, %c0_i32_0, %c0_i32_1 : i32, i32, i32
  }
  func.func @transform_2(%arg0: i32) -> (i32, i32) {
    %c0_i32 = arith.constant 0 : i32
    %c0_i32_0 = arith.constant 0 : i32
    %c0_i32_1 = arith.constant 0 : i32
    return %c0_i32, %c0_i32_0 : i32, i32
  }
  func.func @transform_3(%arg0: i32) -> (i32, i32, i32) {
    %c0_i32 = arith.constant 0 : i32
    %c0_i32_0 = arith.constant 0 : i32
    %c0_i32_1 = arith.constant 0 : i32
    return %arg0, %c0_i32, %c0_i32_0 : i32, i32, i32
  }
}

module attributes {stable_mosaic.version = 11 : i64} {
  func.func @_rpn_roi_kernel(%arg0: i32, %arg1: memref<1x10x10x64xbf16, #tpu.memory_space<vmem>>, %arg2: memref<9x64x64xbf16, #tpu.memory_space<vmem>>, %arg3: memref<1x64xf32, #tpu.memory_space<vmem>>, %arg4: memref<64x128xbf16, #tpu.memory_space<vmem>>, %arg5: memref<1x128xf32, #tpu.memory_space<vmem>>, %arg6: memref<64x128xbf16, #tpu.memory_space<vmem>>, %arg7: memref<1x128xf32, #tpu.memory_space<vmem>>, %arg8: memref<128x128xbf16, #tpu.memory_space<vmem>>, %arg9: memref<1x128xf32, #tpu.memory_space<vmem>>, %arg10: memref<128x128xbf16, #tpu.memory_space<vmem>>, %arg11: memref<1x128xf32, #tpu.memory_space<vmem>>, %arg12: memref<1x64x128xf32, #tpu.memory_space<vmem>>, %arg13: memref<1x1x128xf32, #tpu.memory_space<vmem>>) attributes {dimension_semantics = [#tpu.dimension_semantics<parallel>], iteration_bounds = array<i64: 2>, scalar_prefetch = 0 : i64, scratch_operands = 0 : i64, tpu.core_type = #tpu.core_type<tc>, window_params = [{transform_indices = @transform_0, window_bounds = array<i64: 1, 10, 10, 64>}, {pipeline_mode = #tpu.pipeline_mode<synchronous>, transform_indices = @transform_1, window_bounds = array<i64: 9, 64, 64>}, {pipeline_mode = #tpu.pipeline_mode<synchronous>, transform_indices = @transform_2, window_bounds = array<i64: 1, 64>}, {pipeline_mode = #tpu.pipeline_mode<synchronous>, transform_indices = @transform_3, window_bounds = array<i64: 64, 128>}, {pipeline_mode = #tpu.pipeline_mode<synchronous>, transform_indices = @transform_4, window_bounds = array<i64: 1, 128>}, {pipeline_mode = #tpu.pipeline_mode<synchronous>, transform_indices = @transform_5, window_bounds = array<i64: 64, 128>}, {pipeline_mode = #tpu.pipeline_mode<synchronous>, transform_indices = @transform_6, window_bounds = array<i64: 1, 128>}, {pipeline_mode = #tpu.pipeline_mode<synchronous>, transform_indices = @transform_7, window_bounds = array<i64: 128, 128>}, {pipeline_mode = #tpu.pipeline_mode<synchronous>, transform_indices = @transform_8, window_bounds = array<i64: 1, 128>}, {pipeline_mode = #tpu.pipeline_mode<synchronous>, transform_indices = @transform_9, window_bounds = array<i64: 128, 128>}, {pipeline_mode = #tpu.pipeline_mode<synchronous>, transform_indices = @transform_10, window_bounds = array<i64: 1, 128>}, {transform_indices = @transform_11, window_bounds = array<i64: 1, 64, 128>}, {transform_indices = @transform_12, window_bounds = array<i64: 1, 1, 128>}]} {
    %c0 = arith.constant 0 : index
    %c0_0 = arith.constant 0 : index
    %c0_1 = arith.constant 0 : index
    %c0_2 = arith.constant 0 : index
    %0 = vector.load %arg1[%c0, %c0_0, %c0_1, %c0_2] : memref<1x10x10x64xbf16, #tpu.memory_space<vmem>>, vector<1x10x10x64xbf16>
    %1 = vector.shape_cast %0 : vector<1x10x10x64xbf16> to vector<10x10x64xbf16>
    %cst = arith.constant 0.000000e+00 : f32
    %2 = vector.broadcast %cst : f32 to vector<64x64xf32>
    %3 = vector.extract_strided_slice %1 {offsets = [0, 0, 0], sizes = [8, 8, 64], strides = [1, 1, 1]} : vector<10x10x64xbf16> to vector<8x8x64xbf16>
    %4 = vector.shape_cast %3 : vector<8x8x64xbf16> to vector<64x64xbf16>
    %c0_3 = arith.constant 0 : index
    %c0_4 = arith.constant 0 : index
    %c0_5 = arith.constant 0 : index
    %5 = vector.load %arg2[%c0_3, %c0_4, %c0_5] : memref<9x64x64xbf16, #tpu.memory_space<vmem>>, vector<1x64x64xbf16>
    %6 = vector.shape_cast %5 : vector<1x64x64xbf16> to vector<64x64xbf16>
    %cst_6 = arith.constant dense<0.000000e+00> : vector<64x64xf32>
    %7 = tpu.matmul %4, %6, %cst_6 {dimension_numbers = #tpu.dot_dimension_numbers<[1], [0], [0], [1], [0, 0, 1, 1], [], []>} : vector<64x64xbf16>, vector<64x64xbf16>, vector<64x64xf32> -> vector<64x64xf32>
    %8 = arith.addf %2, %7 : vector<64x64xf32>
    %9 = vector.extract_strided_slice %1 {offsets = [0, 1, 0], sizes = [8, 8, 64], strides = [1, 1, 1]} : vector<10x10x64xbf16> to vector<8x8x64xbf16>
    %10 = vector.shape_cast %9 : vector<8x8x64xbf16> to vector<64x64xbf16>
    %c1 = arith.constant 1 : index
    %c0_7 = arith.constant 0 : index
    %c0_8 = arith.constant 0 : index
    %11 = vector.load %arg2[%c1, %c0_7, %c0_8] : memref<9x64x64xbf16, #tpu.memory_space<vmem>>, vector<1x64x64xbf16>
    %12 = vector.shape_cast %11 : vector<1x64x64xbf16> to vector<64x64xbf16>
    %cst_9 = arith.constant dense<0.000000e+00> : vector<64x64xf32>
    %13 = tpu.matmul %10, %12, %cst_9 {dimension_numbers = #tpu.dot_dimension_numbers<[1], [0], [0], [1], [0, 0, 1, 1], [], []>} : vector<64x64xbf16>, vector<64x64xbf16>, vector<64x64xf32> -> vector<64x64xf32>
    %14 = arith.addf %8, %13 : vector<64x64xf32>
    %15 = vector.extract_strided_slice %1 {offsets = [0, 2, 0], sizes = [8, 8, 64], strides = [1, 1, 1]} : vector<10x10x64xbf16> to vector<8x8x64xbf16>
    %16 = vector.shape_cast %15 : vector<8x8x64xbf16> to vector<64x64xbf16>
    %c2 = arith.constant 2 : index
    %c0_10 = arith.constant 0 : index
    %c0_11 = arith.constant 0 : index
    %17 = vector.load %arg2[%c2, %c0_10, %c0_11] : memref<9x64x64xbf16, #tpu.memory_space<vmem>>, vector<1x64x64xbf16>
    %18 = vector.shape_cast %17 : vector<1x64x64xbf16> to vector<64x64xbf16>
    %cst_12 = arith.constant dense<0.000000e+00> : vector<64x64xf32>
    %19 = tpu.matmul %16, %18, %cst_12 {dimension_numbers = #tpu.dot_dimension_numbers<[1], [0], [0], [1], [0, 0, 1, 1], [], []>} : vector<64x64xbf16>, vector<64x64xbf16>, vector<64x64xf32> -> vector<64x64xf32>
    %20 = arith.addf %14, %19 : vector<64x64xf32>
    %21 = vector.extract_strided_slice %1 {offsets = [1, 0, 0], sizes = [8, 8, 64], strides = [1, 1, 1]} : vector<10x10x64xbf16> to vector<8x8x64xbf16>
    %22 = vector.shape_cast %21 : vector<8x8x64xbf16> to vector<64x64xbf16>
    %c3 = arith.constant 3 : index
    %c0_13 = arith.constant 0 : index
    %c0_14 = arith.constant 0 : index
    %23 = vector.load %arg2[%c3, %c0_13, %c0_14] : memref<9x64x64xbf16, #tpu.memory_space<vmem>>, vector<1x64x64xbf16>
    %24 = vector.shape_cast %23 : vector<1x64x64xbf16> to vector<64x64xbf16>
    %cst_15 = arith.constant dense<0.000000e+00> : vector<64x64xf32>
    %25 = tpu.matmul %22, %24, %cst_15 {dimension_numbers = #tpu.dot_dimension_numbers<[1], [0], [0], [1], [0, 0, 1, 1], [], []>} : vector<64x64xbf16>, vector<64x64xbf16>, vector<64x64xf32> -> vector<64x64xf32>
    %26 = arith.addf %20, %25 : vector<64x64xf32>
    %27 = vector.extract_strided_slice %1 {offsets = [1, 1, 0], sizes = [8, 8, 64], strides = [1, 1, 1]} : vector<10x10x64xbf16> to vector<8x8x64xbf16>
    %28 = vector.shape_cast %27 : vector<8x8x64xbf16> to vector<64x64xbf16>
    %c4 = arith.constant 4 : index
    %c0_16 = arith.constant 0 : index
    %c0_17 = arith.constant 0 : index
    %29 = vector.load %arg2[%c4, %c0_16, %c0_17] : memref<9x64x64xbf16, #tpu.memory_space<vmem>>, vector<1x64x64xbf16>
    %30 = vector.shape_cast %29 : vector<1x64x64xbf16> to vector<64x64xbf16>
    %cst_18 = arith.constant dense<0.000000e+00> : vector<64x64xf32>
    %31 = tpu.matmul %28, %30, %cst_18 {dimension_numbers = #tpu.dot_dimension_numbers<[1], [0], [0], [1], [0, 0, 1, 1], [], []>} : vector<64x64xbf16>, vector<64x64xbf16>, vector<64x64xf32> -> vector<64x64xf32>
    %32 = arith.addf %26, %31 : vector<64x64xf32>
    %33 = vector.extract_strided_slice %1 {offsets = [1, 2, 0], sizes = [8, 8, 64], strides = [1, 1, 1]} : vector<10x10x64xbf16> to vector<8x8x64xbf16>
    %34 = vector.shape_cast %33 : vector<8x8x64xbf16> to vector<64x64xbf16>
    %c5 = arith.constant 5 : index
    %c0_19 = arith.constant 0 : index
    %c0_20 = arith.constant 0 : index
    %35 = vector.load %arg2[%c5, %c0_19, %c0_20] : memref<9x64x64xbf16, #tpu.memory_space<vmem>>, vector<1x64x64xbf16>
    %36 = vector.shape_cast %35 : vector<1x64x64xbf16> to vector<64x64xbf16>
    %cst_21 = arith.constant dense<0.000000e+00> : vector<64x64xf32>
    %37 = tpu.matmul %34, %36, %cst_21 {dimension_numbers = #tpu.dot_dimension_numbers<[1], [0], [0], [1], [0, 0, 1, 1], [], []>} : vector<64x64xbf16>, vector<64x64xbf16>, vector<64x64xf32> -> vector<64x64xf32>
    %38 = arith.addf %32, %37 : vector<64x64xf32>
    %39 = vector.extract_strided_slice %1 {offsets = [2, 0, 0], sizes = [8, 8, 64], strides = [1, 1, 1]} : vector<10x10x64xbf16> to vector<8x8x64xbf16>
    %40 = vector.shape_cast %39 : vector<8x8x64xbf16> to vector<64x64xbf16>
    %c6 = arith.constant 6 : index
    %c0_22 = arith.constant 0 : index
    %c0_23 = arith.constant 0 : index
    %41 = vector.load %arg2[%c6, %c0_22, %c0_23] : memref<9x64x64xbf16, #tpu.memory_space<vmem>>, vector<1x64x64xbf16>
    %42 = vector.shape_cast %41 : vector<1x64x64xbf16> to vector<64x64xbf16>
    %cst_24 = arith.constant dense<0.000000e+00> : vector<64x64xf32>
    %43 = tpu.matmul %40, %42, %cst_24 {dimension_numbers = #tpu.dot_dimension_numbers<[1], [0], [0], [1], [0, 0, 1, 1], [], []>} : vector<64x64xbf16>, vector<64x64xbf16>, vector<64x64xf32> -> vector<64x64xf32>
    %44 = arith.addf %38, %43 : vector<64x64xf32>
    %45 = vector.extract_strided_slice %1 {offsets = [2, 1, 0], sizes = [8, 8, 64], strides = [1, 1, 1]} : vector<10x10x64xbf16> to vector<8x8x64xbf16>
    %46 = vector.shape_cast %45 : vector<8x8x64xbf16> to vector<64x64xbf16>
    %c7 = arith.constant 7 : index
    %c0_25 = arith.constant 0 : index
    %c0_26 = arith.constant 0 : index
    %47 = vector.load %arg2[%c7, %c0_25, %c0_26] : memref<9x64x64xbf16, #tpu.memory_space<vmem>>, vector<1x64x64xbf16>
    %48 = vector.shape_cast %47 : vector<1x64x64xbf16> to vector<64x64xbf16>
    %cst_27 = arith.constant dense<0.000000e+00> : vector<64x64xf32>
    %49 = tpu.matmul %46, %48, %cst_27 {dimension_numbers = #tpu.dot_dimension_numbers<[1], [0], [0], [1], [0, 0, 1, 1], [], []>} : vector<64x64xbf16>, vector<64x64xbf16>, vector<64x64xf32> -> vector<64x64xf32>
    %50 = arith.addf %44, %49 : vector<64x64xf32>
    %51 = vector.extract_strided_slice %1 {offsets = [2, 2, 0], sizes = [8, 8, 64], strides = [1, 1, 1]} : vector<10x10x64xbf16> to vector<8x8x64xbf16>
    %52 = vector.shape_cast %51 : vector<8x8x64xbf16> to vector<64x64xbf16>
    %c8 = arith.constant 8 : index
    %c0_28 = arith.constant 0 : index
    %c0_29 = arith.constant 0 : index
    %53 = vector.load %arg2[%c8, %c0_28, %c0_29] : memref<9x64x64xbf16, #tpu.memory_space<vmem>>, vector<1x64x64xbf16>
    %54 = vector.shape_cast %53 : vector<1x64x64xbf16> to vector<64x64xbf16>
    %cst_30 = arith.constant dense<0.000000e+00> : vector<64x64xf32>
    %55 = tpu.matmul %52, %54, %cst_30 {dimension_numbers = #tpu.dot_dimension_numbers<[1], [0], [0], [1], [0, 0, 1, 1], [], []>} : vector<64x64xbf16>, vector<64x64xbf16>, vector<64x64xf32> -> vector<64x64xf32>
    %56 = arith.addf %50, %55 : vector<64x64xf32>
    %c0_31 = arith.constant 0 : index
    %c0_32 = arith.constant 0 : index
    %57 = vector.load %arg3[%c0_31, %c0_32] : memref<1x64xf32, #tpu.memory_space<vmem>>, vector<1x64xf32>
    %58 = vector.broadcast %57 : vector<1x64xf32> to vector<64x64xf32>
    %59 = arith.addf %56, %58 : vector<64x64xf32>
    %cst_33 = arith.constant 0.000000e+00 : f32
    %60 = vector.broadcast %cst_33 : f32 to vector<64x64xf32>
    %61 = arith.maximumf %59, %60 : vector<64x64xf32>
    %62 = arith.truncf %61 : vector<64x64xf32> to vector<64x64xbf16>
    %c0_34 = arith.constant 0 : index
    %c0_35 = arith.constant 0 : index
    %63 = vector.load %arg4[%c0_34, %c0_35] : memref<64x128xbf16, #tpu.memory_space<vmem>>, vector<64x128xbf16>
    %cst_36 = arith.constant dense<0.000000e+00> : vector<64x128xf32>
    %64 = tpu.matmul %62, %63, %cst_36 {dimension_numbers = #tpu.dot_dimension_numbers<[1], [0], [0], [1], [0, 0, 1, 1], [], []>} : vector<64x64xbf16>, vector<64x128xbf16>, vector<64x128xf32> -> vector<64x128xf32>
    %c0_37 = arith.constant 0 : index
    %c0_38 = arith.constant 0 : index
    %65 = vector.load %arg5[%c0_37, %c0_38] : memref<1x128xf32, #tpu.memory_space<vmem>>, vector<1x128xf32>
    %66 = vector.broadcast %65 : vector<1x128xf32> to vector<64x128xf32>
    %67 = arith.addf %64, %66 : vector<64x128xf32>
    %c0_39 = arith.constant 0 : index
    %c0_40 = arith.constant 0 : index
    %c0_41 = arith.constant 0 : index
    %68 = vector.load %arg12[%c0_39, %c0_40, %c0_41] : memref<1x64x128xf32, #tpu.memory_space<vmem>>, vector<1x64x128xf32>
    %69 = vector.shape_cast %68 : vector<1x64x128xf32> to vector<64x128xf32>
    %70 = vector.shape_cast %67 : vector<64x128xf32> to vector<1x64x128xf32>
    tpu.vector_store %arg12[%c0_39, %c0_40, %c0_41], %70 {strides = array<i32>} : memref<1x64x128xf32, #tpu.memory_space<vmem>>, vector<1x64x128xf32>,
    %71 = vector.extract_strided_slice %1 {offsets = [1, 1, 0], sizes = [8, 8, 64], strides = [1, 1, 1]} : vector<10x10x64xbf16> to vector<8x8x64xbf16>
    %72 = arith.extf %71 : vector<8x8x64xbf16> to vector<8x8x64xf32>
    %73 = vector.shape_cast %72 : vector<8x8x64xf32> to vector<64x64xf32>
    %cst_42 = arith.constant dense<0.000000e+00> : vector<64xf32>
    %74 = vector.multi_reduction <add>, %73, %cst_42 [0] : vector<64x64xf32> to vector<64xf32>
    %75 = vector.shape_cast %74 : vector<64xf32> to vector<1x64xf32>
    %cst_43 = arith.constant 6.400000e+01 : f32
    %76 = vector.broadcast %cst_43 : f32 to vector<1x64xf32>
    %77 = arith.divf %75, %76 : vector<1x64xf32>
    %78 = arith.truncf %77 : vector<1x64xf32> to vector<1x64xbf16>
    %c0_44 = arith.constant 0 : index
    %c0_45 = arith.constant 0 : index
    %79 = vector.load %arg6[%c0_44, %c0_45] : memref<64x128xbf16, #tpu.memory_space<vmem>>, vector<64x128xbf16>
    %cst_46 = arith.constant dense<0.000000e+00> : vector<1x128xf32>
    %80 = tpu.matmul %78, %79, %cst_46 {dimension_numbers = #tpu.dot_dimension_numbers<[1], [0], [0], [1], [0, 0, 1, 1], [], []>} : vector<1x64xbf16>, vector<64x128xbf16>, vector<1x128xf32> -> vector<1x128xf32>
    %c0_47 = arith.constant 0 : index
    %c0_48 = arith.constant 0 : index
    %81 = vector.load %arg7[%c0_47, %c0_48] : memref<1x128xf32, #tpu.memory_space<vmem>>, vector<1x128xf32>
    %82 = arith.addf %80, %81 : vector<1x128xf32>
    %cst_49 = arith.constant 0.000000e+00 : f32
    %83 = vector.broadcast %cst_49 : f32 to vector<1x128xf32>
    %84 = arith.maximumf %82, %83 : vector<1x128xf32>
    %85 = arith.truncf %84 : vector<1x128xf32> to vector<1x128xbf16>
    %c0_50 = arith.constant 0 : index
    %c0_51 = arith.constant 0 : index
    %86 = vector.load %arg8[%c0_50, %c0_51] : memref<128x128xbf16, #tpu.memory_space<vmem>>, vector<128x128xbf16>
    %cst_52 = arith.constant dense<0.000000e+00> : vector<1x128xf32>
    %87 = tpu.matmul %85, %86, %cst_52 {dimension_numbers = #tpu.dot_dimension_numbers<[1], [0], [0], [1], [0, 0, 1, 1], [], []>} : vector<1x128xbf16>, vector<128x128xbf16>, vector<1x128xf32> -> vector<1x128xf32>
    %c0_53 = arith.constant 0 : index
    %c0_54 = arith.constant 0 : index
    %88 = vector.load %arg9[%c0_53, %c0_54] : memref<1x128xf32, #tpu.memory_space<vmem>>, vector<1x128xf32>
    %89 = arith.addf %87, %88 : vector<1x128xf32>
    %cst_55 = arith.constant 0.000000e+00 : f32
    %90 = vector.broadcast %cst_55 : f32 to vector<1x128xf32>
    %91 = arith.maximumf %89, %90 : vector<1x128xf32>
    %92 = arith.truncf %91 : vector<1x128xf32> to vector<1x128xbf16>
    %c0_56 = arith.constant 0 : index
    %c0_57 = arith.constant 0 : index
    %93 = vector.load %arg10[%c0_56, %c0_57] : memref<128x128xbf16, #tpu.memory_space<vmem>>, vector<128x128xbf16>
    %cst_58 = arith.constant dense<0.000000e+00> : vector<1x128xf32>
    %94 = tpu.matmul %92, %93, %cst_58 {dimension_numbers = #tpu.dot_dimension_numbers<[1], [0], [0], [1], [0, 0, 1, 1], [], []>} : vector<1x128xbf16>, vector<128x128xbf16>, vector<1x128xf32> -> vector<1x128xf32>
    %c0_59 = arith.constant 0 : index
    %c0_60 = arith.constant 0 : index
    %95 = vector.load %arg11[%c0_59, %c0_60] : memref<1x128xf32, #tpu.memory_space<vmem>>, vector<1x128xf32>
    %96 = arith.addf %94, %95 : vector<1x128xf32>
    %c0_61 = arith.constant 0 : index
    %c0_62 = arith.constant 0 : index
    %c0_63 = arith.constant 0 : index
    %97 = vector.load %arg13[%c0_61, %c0_62, %c0_63] : memref<1x1x128xf32, #tpu.memory_space<vmem>>, vector<1x1x128xf32>
    %98 = vector.shape_cast %97 : vector<1x1x128xf32> to vector<1x128xf32>
    %99 = vector.shape_cast %96 : vector<1x128xf32> to vector<1x1x128xf32>
    tpu.vector_store %arg13[%c0_61, %c0_62, %c0_63], %99 {strides = array<i32>} : memref<1x1x128xf32, #tpu.memory_space<vmem>>, vector<1x1x128xf32>,
    return
  }
  func.func @transform_0(%arg0: i32) -> (i32, i32, i32, i32) {
    %c0_i32 = arith.constant 0 : i32
    %c0_i32_0 = arith.constant 0 : i32
    %c0_i32_1 = arith.constant 0 : i32
    %c0_i32_2 = arith.constant 0 : i32
    return %arg0, %c0_i32, %c0_i32_0, %c0_i32_1 : i32, i32, i32, i32
  }
  func.func @transform_1(%arg0: i32) -> (i32, i32, i32) {
    %c0_i32 = arith.constant 0 : i32
    %c0_i32_0 = arith.constant 0 : i32
    %c0_i32_1 = arith.constant 0 : i32
    %c0_i32_2 = arith.constant 0 : i32
    return %c0_i32, %c0_i32_0, %c0_i32_1 : i32, i32, i32
  }
  func.func @transform_2(%arg0: i32) -> (i32, i32) {
    %c0_i32 = arith.constant 0 : i32
    %c0_i32_0 = arith.constant 0 : i32
    %c0_i32_1 = arith.constant 0 : i32
    return %c0_i32, %c0_i32_0 : i32, i32
  }
  func.func @transform_3(%arg0: i32) -> (i32, i32) {
    %c0_i32 = arith.constant 0 : i32
    %c0_i32_0 = arith.constant 0 : i32
    %c0_i32_1 = arith.constant 0 : i32
    return %c0_i32, %c0_i32_0 : i32, i32
  }
  func.func @transform_4(%arg0: i32) -> (i32, i32) {
    %c0_i32 = arith.constant 0 : i32
    %c0_i32_0 = arith.constant 0 : i32
    %c0_i32_1 = arith.constant 0 : i32
    return %c0_i32, %c0_i32_0 : i32, i32
  }
  func.func @transform_5(%arg0: i32) -> (i32, i32) {
    %c0_i32 = arith.constant 0 : i32
    %c0_i32_0 = arith.constant 0 : i32
    %c0_i32_1 = arith.constant 0 : i32
    return %c0_i32, %c0_i32_0 : i32, i32
  }
  func.func @transform_6(%arg0: i32) -> (i32, i32) {
    %c0_i32 = arith.constant 0 : i32
    %c0_i32_0 = arith.constant 0 : i32
    %c0_i32_1 = arith.constant 0 : i32
    return %c0_i32, %c0_i32_0 : i32, i32
  }
  func.func @transform_7(%arg0: i32) -> (i32, i32) {
    %c0_i32 = arith.constant 0 : i32
    %c0_i32_0 = arith.constant 0 : i32
    %c0_i32_1 = arith.constant 0 : i32
    return %c0_i32, %c0_i32_0 : i32, i32
  }
  func.func @transform_8(%arg0: i32) -> (i32, i32) {
    %c0_i32 = arith.constant 0 : i32
    %c0_i32_0 = arith.constant 0 : i32
    %c0_i32_1 = arith.constant 0 : i32
    return %c0_i32, %c0_i32_0 : i32, i32
  }
  func.func @transform_9(%arg0: i32) -> (i32, i32) {
    %c0_i32 = arith.constant 0 : i32
    %c0_i32_0 = arith.constant 0 : i32
    %c0_i32_1 = arith.constant 0 : i32
    return %c0_i32, %c0_i32_0 : i32, i32
  }
  func.func @transform_10(%arg0: i32) -> (i32, i32) {
    %c0_i32 = arith.constant 0 : i32
    %c0_i32_0 = arith.constant 0 : i32
    %c0_i32_1 = arith.constant 0 : i32
    return %c0_i32, %c0_i32_0 : i32, i32
  }
  func.func @transform_11(%arg0: i32) -> (i32, i32, i32) {
    %c0_i32 = arith.constant 0 : i32
    %c0_i32_0 = arith.constant 0 : i32
    %c0_i32_1 = arith.constant 0 : i32
    return %arg0, %c0_i32, %c0_i32_0 : i32, i32, i32
  }
  func.func @transform_12(%arg0: i32) -> (i32, i32, i32) {
    %c0_i32 = arith.constant 0 : i32
    %c0_i32_0 = arith.constant 0 : i32
    %c0_i32_1 = arith.constant 0 : i32
    return %arg0, %c0_i32, %c0_i32_0 : i32, i32, i32
  }
}

</mosaic_0001>

<llo_original>
// kernel: forward.3
$region0: #{forward.3}
  #allocation0 [shape = 'u32[]', space=smem, size = 0x4, offset = 0x4, fixed_abs, tag = 'smem constant byte address 0x4 - core index']
  #allocation1 [shape = 'u32[144,128]{1,0:T(1,128)}', space=vmem, size = 0x12000, scoped, tag = 'internal scratch']
  %s0 = inlined_call_operand.vmem [shape: bf16[2,68,17,3], index: 0, kind: input, shape index: {}]
  %s1 = inlined_call_operand.vmem [shape: bf16[9,3,32], index: 1, kind: input, shape index: {}]
  %s2 = inlined_call_operand.vmem [shape: f32[1,32], index: 2, kind: input, shape index: {}]
  %s3 = inlined_call_operand.vmem [shape: bf16[2,256,32], index: 3, kind: output, shape index: {}]
  %s4 = sld [smem:[#allocation0]]
  $region45: #{forward.3} parent=0
    _
  %s6 = ssub.s32 1, %s4
  %s7 = scalar_select 0, %s6, %s4
  loop: start=0, step=1, limit=4
  $region2: #{forward.3} parent=0 // loop_pre_header
    _
  $region3: #{forward.3} parent=0 // loop_header
    %s9 = sphi 0, %s13
    %p10 = scmp.ge.s32.totalorder %s9, 4
    %s19 = sphi 0, %s21
    %s22 = sphi 0, %s19
    %s23 = sphi 0, %s22
    %s39 = sphi 0, %s23
    %s43 = sphi 0, %s43
    %s45 = sphi 0, %s43
    %s46 = sphi 0, %s45
    %s60 = sphi 0, %s46
    %s64 = sphi 0, %s64
    %s66 = sphi 0, %s64
    %s67 = sphi 0, %s66
    %s81 = sphi 0, %s67
    %s87 = sphi 0, %s89
    %s90 = sphi 0, %s87
    %s91 = sphi 0, %s90
    %s107 = sphi 0, %s91
  $region4: #{forward.3} parent=0 // loop_header_branch
    %12 = sbr.rel (%p10) target = $region8
  $region5: #{forward.3} parent=0 // loop_body
    %s14 = ssub.s32 %s9, 1
    %s15 = ssub.s32 %s9, 2
    %s16 = sadd.s32 %s9, 1
    %s17 = ssub.s32 %s9, %s16
    %p18 = scmp.eq.s32.totalorder %s17, 0
    %s20 = sadd.s32 %s19, 1
    %s21 = scalar_select %p18, %s19, %s20
    %p24 = pneg %p18
    %p25 = scmp.eq.s32.totalorder %s9, 1
    %p26 = por %p24, %p25
    %p27 = scmp.ne.s32.totalorder %s19, %s22
    %p28 = scmp.eq.s32.totalorder %s9, 0
    %p29 = por %p27, %p28
    %p30 = scmp.ne.s32.totalorder %s19, %s22
    %p31 = scmp.eq.s32.totalorder %s14, 1
    %p32 = por %p30, %p31
    %p33 = scmp.ne.s32.totalorder %s22, %s23
    %p34 = scmp.eq.s32.totalorder %s14, 0
    %p35 = por %p33, %p34
    %p36 = scmp.ne.s32.totalorder %s22, %s23
    %p37 = scmp.eq.s32.totalorder %s15, 1
    %p38 = por %p36, %p37
    %p40 = scmp.ne.s32.totalorder %s23, %s39
    %p41 = scmp.eq.s32.totalorder %s15, 0
    %p42 = por %p40, %p41
    %s44 = sadd.s32 %s43, 1
    %p47 = scmp.eq.s32.totalorder %s9, 1
    %p48 = scmp.ne.s32.totalorder %s43, %s45
    %p49 = scmp.eq.s32.totalorder %s9, 0
    %p50 = por %p48, %p49
    %p51 = scmp.ne.s32.totalorder %s43, %s45
    %p52 = scmp.eq.s32.totalorder %s14, 1
    %p53 = por %p51, %p52
    %p54 = scmp.ne.s32.totalorder %s45, %s46
    %p55 = scmp.eq.s32.totalorder %s14, 0
    %p56 = por %p54, %p55
    %p57 = scmp.ne.s32.totalorder %s45, %s46
    %p58 = scmp.eq.s32.totalorder %s15, 1
    %p59 = por %p57, %p58
    %p61 = scmp.ne.s32.totalorder %s46, %s60
    %p62 = scmp.eq.s32.totalorder %s15, 0
    %p63 = por %p61, %p62
    %s65 = sadd.s32 %s64, 1
    %p68 = scmp.eq.s32.totalorder %s9, 1
    %p69 = scmp.ne.s32.totalorder %s64, %s66
    %p70 = scmp.eq.s32.totalorder %s9, 0
    %p71 = por %p69, %p70
    %p72 = scmp.ne.s32.totalorder %s64, %s66
    %p73 = scmp.eq.s32.totalorder %s14, 1
    %p74 = por %p72, %p73
    %p75 = scmp.ne.s32.totalorder %s66, %s67
    %p76 = scmp.eq.s32.totalorder %s14, 0
    %p77 = por %p75, %p76
    %p78 = scmp.ne.s32.totalorder %s66, %s67
    %p79 = scmp.eq.s32.totalorder %s15, 1
    %p80 = por %p78, %p79
    %p82 = scmp.ne.s32.totalorder %s67, %s81
    %p83 = scmp.eq.s32.totalorder %s15, 0
    %p84 = por %p82, %p83
    %s85 = ssub.s32 %s9, %s16
    %p86 = scmp.eq.s32.totalorder %s85, 0
    %s88 = sadd.s32 %s87, 1
    %s89 = scalar_select %p86, %s87, %s88
    %p92 = pneg %p86
    %p93 = scmp.eq.s32.totalorder %s9, 1
    %p94 = por %p92, %p93
    %p95 = scmp.ne.s32.totalorder %s87, %s90
    %p96 = scmp.eq.s32.totalorder %s9, 0
    %p97 = por %p95, %p96
    %p98 = scmp.ne.s32.totalorder %s87, %s90
    %p99 = scmp.eq.s32.totalorder %s14, 1
    %p100 = por %p98, %p99
    %p101 = scmp.ne.s32.totalorder %s90, %s91
    %p102 = scmp.eq.s32.totalorder %s14, 0
    %p103 = por %p101, %p102
    %p104 = scmp.ne.s32.totalorder %s90, %s91
    %p105 = scmp.eq.s32.totalorder %s15, 1
    %p106 = por %p104, %p105
    %p108 = scmp.ne.s32.totalorder %s91, %s107
    %p109 = scmp.eq.s32.totalorder %s15, 0
    %p110 = por %p108, %p109
    %p111 = scmp.le.s32.totalorder 1, %s9
    %p112 = scmp.lt.s32.totalorder %s9, 3
    %p113 = pnand %p111, %p112
    %p114 = pneg %p113
    // Predicated region
    $region9: #{forward.3} parent=5 // pred_check
      _
    $region10: #{forward.3} parent=5 // pred_check_branch
      %116 = sbr.rel (%p113) target = $region12
    $region11: #{forward.3} parent=5 // pred_region
      %s117 = ssub.s32 %s9, 1
      // Predicated region
      $region13: #{forward.3} parent=11 // pred_check
        %p118 = pneg %p56
      $region14: #{forward.3} parent=11 // pred_check_branch
        %120 = sbr.rel (%p118) target = $region16
      $region15: #{forward.3} parent=11 // pred_region
        _
      $region16: #{forward.3} parent=11 // pred_fallthru
        _
      // Predicated region
      $region17: #{forward.3} parent=11 // pred_check
        %p121 = pneg %p77
      $region18: #{forward.3} parent=11 // pred_check_branch
        %123 = sbr.rel (%p121) target = $region20
      $region19: #{forward.3} parent=11 // pred_region
        _
      $region20: #{forward.3} parent=11 // pred_fallthru
        _
    $region12: #{forward.3} parent=5 // pred_fallthru
      _
    %p124 = scmp.lt.s32.totalorder %s9, 2
    // Predicated region
    $region21: #{forward.3} parent=5 // pred_check
      %p125 = pneg %p124
    $region22: #{forward.3} parent=5 // pred_check_branch
      %127 = sbr.rel (%p125) target = $region24
    $region23: #{forward.3} parent=5 // pred_region
      // Predicated region
      $region25: #{forward.3} parent=23 // pred_check
        %p128 = pneg %p29
      $region26: #{forward.3} parent=23 // pred_check_branch
        %130 = sbr.rel (%p128) target = $region28
      $region27: #{forward.3} parent=23 // pred_region
        %p131 = scmp.lt.s32.totalorder %s9, 1
        %s132 = scalar_select %p131, %s9, 1
        %s133 = smul.addr %s132, 204
        %s134 = smul.addr %s133, 4
        %s135 = scalar_lea.vmem %s0, %s134
      $region28: #{forward.3} parent=23 // pred_fallthru
        _
    $region24: #{forward.3} parent=5 // pred_fallthru
      _
    %p136 = scmp.le.s32.totalorder 1, %s9
    %p137 = scmp.lt.s32.totalorder %s9, 3
    %p138 = pnand %p136, %p137
    %p139 = pneg %p138
    // Predicated region
    $region29: #{forward.3} parent=5 // pred_check
      _
    $region30: #{forward.3} parent=5 // pred_check_branch
      %141 = sbr.rel (%p138) target = $region32
    $region31: #{forward.3} parent=5 // pred_region
      %s142 = ssub.s32 %s9, 1
      %p143 = scmp.lt.s32.totalorder %s14, 1
      %s144 = scalar_select %p143, %s14, 1
      %s145 = smul.addr %s144, 204
      %s146 = smul.addr %s145, 4
      %s147 = scalar_lea.vmem %s0, %s146
      %p148 = pneg %p35
      %p149 = pneg %p32
      %p150 = pneg %p56
      %p151 = pneg %p53
      %p152 = pneg %p77
      %p153 = pneg %p74
      %p154 = pneg %p103
      %p155 = pneg %p100
      %p156 = scmp.lt.s32.totalorder %s14, 1
      %s157 = scalar_select %p156, %s14, 1
      %s158 = smul.addr %s157, 32
      %s159 = smul.addr %s158, 4
      %s160 = scalar_lea.vmem %s3, %s159
      %p161 = scmp.lt.s32.totalorder %s14, 1
      %s162 = scalar_select %p161, %s14, 1
      %s163 = smul.addr %s162, 204
      %s164 = smul.addr %s163, 4
      %s165 = scalar_lea.vmem %s0, %s164
      %p166 = scmp.lt.s32.totalorder %s14, 1
      %s167 = scalar_select %p166, %s14, 1
      %s168 = smul.addr %s167, 32
      %s169 = smul.addr %s168, 4
      %s170 = scalar_lea.vmem %s3, %s169
      %v172 = vld [vmem:[%s165] sm:$0xf]
      %v173 = vld [vmem:[%s165 + $0x4] sm:$0xf]
      %v174 = vld [vmem:[%s165 + $0x8] sm:$0x1]
      %v175 = vld [vmem:[%s165 + $0xc] sm:$0xf]
      %v176 = vld [vmem:[%s165 + $0x10] sm:$0xf]
      %v177 = vld [vmem:[%s165 + $0x14] sm:$0x1]
      %v178 = vld [vmem:[%s165 + $0x18] sm:$0xf]
      %v179 = vld [vmem:[%s165 + $0x1c] sm:$0xf]
      %v180 = vld [vmem:[%s165 + $0x20] sm:$0x1]
      %v181 = vld [vmem:[%s165 + $0x24] sm:$0xf]
      %v182 = vld [vmem:[%s165 + $0x28] sm:$0xf]
      %v183 = vld [vmem:[%s165 + $0x2c] sm:$0x1]
      %v184 = vld [vmem:[%s165 + $0x30] sm:$0xf]
      %v185 = vld [vmem:[%s165 + $0x34] sm:$0xf]
      %v186 = vld [vmem:[%s165 + $0x38] sm:$0x1]
      %v187 = vld [vmem:[%s165 + $0x3c] sm:$0xf]
      %v188 = vld [vmem:[%s165 + $0x40] sm:$0xf]
      %v189 = vld [vmem:[%s165 + $0x44] sm:$0x1]
      %v190 = vld [vmem:[%s165 + $0x48] sm:$0xf]
      %v191 = vld [vmem:[%s165 + $0x4c] sm:$0xf]
      %v192 = vld [vmem:[%s165 + $0x50] sm:$0x1]
      %v193 = vld [vmem:[%s165 + $0x54] sm:$0xf]
      %v194 = vld [vmem:[%s165 + $0x58] sm:$0xf]
      %v195 = vld [vmem:[%s165 + $0x5c] sm:$0x1]
      %v196 = vld [vmem:[%s165 + $0x60] sm:$0xf]
      %v197 = vld [vmem:[%s165 + $0x64] sm:$0xf]
      %v198 = vld [vmem:[%s165 + $0x68] sm:$0x1]
      %v199 = vld [vmem:[%s165 + $0x6c] sm:$0xf]
      %v200 = vld [vmem:[%s165 + $0x70] sm:$0xf]
      %v201 = vld [vmem:[%s165 + $0x74] sm:$0x1]
      %v202 = vld [vmem:[%s165 + $0x78] sm:$0xf]
      %v203 = vld [vmem:[%s165 + $0x7c] sm:$0xf]
      %v204 = vld [vmem:[%s165 + $0x80] sm:$0x1]
      %v205 = vld [vmem:[%s165 + $0x84] sm:$0xf]
      %v206 = vld [vmem:[%s165 + $0x88] sm:$0xf]
      %v207 = vld [vmem:[%s165 + $0x8c] sm:$0x1]
      %v208 = vld [vmem:[%s165 + $0x90] sm:$0xf]
      %v209 = vld [vmem:[%s165 + $0x94] sm:$0xf]
      %v210 = vld [vmem:[%s165 + $0x98] sm:$0x1]
      %v211 = vld [vmem:[%s165 + $0x9c] sm:$0xf]
      %v212 = vld [vmem:[%s165 + $0xa0] sm:$0xf]
      %v213 = vld [vmem:[%s165 + $0xa4] sm:$0x1]
      %v214 = vld [vmem:[%s165 + $0xa8] sm:$0xf]
      %v215 = vld [vmem:[%s165 + $0xac] sm:$0xf]
      %v216 = vld [vmem:[%s165 + $0xb0] sm:$0x1]
      %v217 = vld [vmem:[%s165 + $0xb4] sm:$0xf]
      %v218 = vld [vmem:[%s165 + $0xb8] sm:$0xf]
      %v219 = vld [vmem:[%s165 + $0xbc] sm:$0x1]
      %v220 = vld [vmem:[%s165 + $0xc0] sm:$0xf]
      %v221 = vld [vmem:[%s165 + $0xc4] sm:$0xf]
      %v222 = vld [vmem:[%s165 + $0xc8] sm:$0x1]
      %v223 = vld [vmem:[%s165 + $0xcc] sm:$0xf]
      %v224 = vld [vmem:[%s165 + $0xd0] sm:$0xf]
      %v225 = vld [vmem:[%s165 + $0xd8] sm:$0xf]
      %v226 = vld [vmem:[%s165 + $0xdc] sm:$0xf]
      %v227 = vld [vmem:[%s165 + $0xe4] sm:$0xf]
      %v228 = vld [vmem:[%s165 + $0xe8] sm:$0xf]
      %v229 = vld [vmem:[%s165 + $0xf0] sm:$0xf]
      %v230 = vld [vmem:[%s165 + $0xf4] sm:$0xf]
      %v231 = vld [vmem:[%s165 + $0xfc] sm:$0xf]
      %v232 = vld [vmem:[%s165 + $0x100] sm:$0xf]
      %v233 = vld [vmem:[%s165 + $0x108] sm:$0xf]
      %v234 = vld [vmem:[%s165 + $0x10c] sm:$0xf]
      %v235 = vld [vmem:[%s165 + $0x114] sm:$0xf]
      %v236 = vld [vmem:[%s165 + $0x118] sm:$0xf]
      %v237 = vld [vmem:[%s165 + $0x120] sm:$0xf]
      %v238 = vld [vmem:[%s165 + $0x124] sm:$0xf]
      %v239 = vld [vmem:[%s165 + $0x12c] sm:$0xf]
      %v240 = vld [vmem:[%s165 + $0x130] sm:$0xf]
      %v241 = vld [vmem:[%s165 + $0x138] sm:$0xf]
      %v242 = vld [vmem:[%s165 + $0x13c] sm:$0xf]
      %v243 = vld [vmem:[%s165 + $0x144] sm:$0xf]
      %v244 = vld [vmem:[%s165 + $0x148] sm:$0xf]
      %v245 = vld [vmem:[%s165 + $0x150] sm:$0xf]
      %v246 = vld [vmem:[%s165 + $0x154] sm:$0xf]
      %v247 = vld [vmem:[%s165 + $0x15c] sm:$0xf]
      %v248 = vld [vmem:[%s165 + $0x160] sm:$0xf]
      %v249 = vld [vmem:[%s165 + $0x168] sm:$0xf]
      %v250 = vld [vmem:[%s165 + $0x16c] sm:$0xf]
      %v251 = vld [vmem:[%s165 + $0x174] sm:$0xf]
      %v252 = vld [vmem:[%s165 + $0x178] sm:$0xf]
      %v253 = vld [vmem:[%s165 + $0x180] sm:$0xf]
      %v254 = vld [vmem:[%s165 + $0x184] sm:$0xf]
      %v255 = vld [vmem:[%s165 + $0x18c] sm:$0xf]
      %v256 = vld [vmem:[%s165 + $0x190] sm:$0xf]
      %v257 = vld [vmem:[%s165 + $0x198] sm:$0xf]
      %v258 = vld [vmem:[%s165 + $0x19c] sm:$0xf]
      %v259 = vld [vmem:[%s165 + $0x1a0] sm:$0x1]
      %v260 = vld [vmem:[%s165 + $0x1a4] sm:$0xf]
      %v261 = vld [vmem:[%s165 + $0x1a8] sm:$0xf]
      %v262 = vld [vmem:[%s165 + $0x1ac] sm:$0x1]
      %v263 = vld [vmem:[%s165 + $0x1b0] sm:$0xf]
      %v264 = vld [vmem:[%s165 + $0x1b4] sm:$0xf]
      %v265 = vld [vmem:[%s165 + $0x1b8] sm:$0x1]
      %v266 = vld [vmem:[%s165 + $0x1bc] sm:$0xf]
      %v267 = vld [vmem:[%s165 + $0x1c0] sm:$0xf]
      %v268 = vld [vmem:[%s165 + $0x1c4] sm:$0x1]
      %v269 = vld [vmem:[%s165 + $0x1c8] sm:$0xf]
      %v270 = vld [vmem:[%s165 + $0x1cc] sm:$0xf]
      %v271 = vld [vmem:[%s165 + $0x1d0] sm:$0x1]
      %v272 = vld [vmem:[%s165 + $0x1d4] sm:$0xf]
      %v273 = vld [vmem:[%s165 + $0x1d8] sm:$0xf]
      %v274 = vld [vmem:[%s165 + $0x1dc] sm:$0x1]
      %v275 = vld [vmem:[%s165 + $0x1e0] sm:$0xf]
      %v276 = vld [vmem:[%s165 + $0x1e4] sm:$0xf]
      %v277 = vld [vmem:[%s165 + $0x1e8] sm:$0x1]
      %v278 = vld [vmem:[%s165 + $0x1ec] sm:$0xf]
      %v279 = vld [vmem:[%s165 + $0x1f0] sm:$0xf]
      %v280 = vld [vmem:[%s165 + $0x1f4] sm:$0x1]
      %v281 = vld [vmem:[%s165 + $0x1f8] sm:$0xf]
      %v282 = vld [vmem:[%s165 + $0x1fc] sm:$0xf]
      %v283 = vld [vmem:[%s165 + $0x200] sm:$0x1]
      %v284 = vld [vmem:[%s165 + $0x204] sm:$0xf]
      %v285 = vld [vmem:[%s165 + $0x208] sm:$0xf]
      %v286 = vld [vmem:[%s165 + $0x20c] sm:$0x1]
      %v287 = vld [vmem:[%s165 + $0x210] sm:$0xf]
      %v288 = vld [vmem:[%s165 + $0x214] sm:$0xf]
      %v289 = vld [vmem:[%s165 + $0x218] sm:$0x1]
      %v290 = vld [vmem:[%s165 + $0x21c] sm:$0xf]
      %v291 = vld [vmem:[%s165 + $0x220] sm:$0xf]
      %v292 = vld [vmem:[%s165 + $0x224] sm:$0x1]
      %v293 = vld [vmem:[%s165 + $0x228] sm:$0xf]
      %v294 = vld [vmem:[%s165 + $0x22c] sm:$0xf]
      %v295 = vld [vmem:[%s165 + $0x230] sm:$0x1]
      %v296 = vld [vmem:[%s165 + $0x234] sm:$0xf]
      %v297 = vld [vmem:[%s165 + $0x238] sm:$0xf]
      %v298 = vld [vmem:[%s165 + $0x23c] sm:$0x1]
      %v299 = vld [vmem:[%s165 + $0x240] sm:$0xf]
      %v300 = vld [vmem:[%s165 + $0x244] sm:$0xf]
      %v301 = vld [vmem:[%s165 + $0x248] sm:$0x1]
      %v302 = vld [vmem:[%s165 + $0x24c] sm:$0xf]
      %v303 = vld [vmem:[%s165 + $0x250] sm:$0xf]
      %v304 = vld [vmem:[%s165 + $0x254] sm:$0x1]
      %v305 = vld [vmem:[%s165 + $0x264] sm:$0xf]
      %v306 = vld [vmem:[%s165 + $0x268] sm:$0xf]
      %v307 = vld [vmem:[%s165 + $0x270] sm:$0xf]
      %v308 = vld [vmem:[%s165 + $0x274] sm:$0xf]
      %v309 = vld [vmem:[%s165 + $0x27c] sm:$0xf]
      %v310 = vld [vmem:[%s165 + $0x280] sm:$0xf]
      %v311 = vld [vmem:[%s165 + $0x288] sm:$0xf]
      %v312 = vld [vmem:[%s165 + $0x28c] sm:$0xf]
      %v313 = vld [vmem:[%s165 + $0x294] sm:$0xf]
      %v314 = vld [vmem:[%s165 + $0x298] sm:$0xf]
      %v315 = vld [vmem:[%s165 + $0x2a0] sm:$0xf]
      %v316 = vld [vmem:[%s165 + $0x2a4] sm:$0xf]
      %v317 = vld [vmem:[%s165 + $0x2ac] sm:$0xf]
      %v318 = vld [vmem:[%s165 + $0x2b0] sm:$0xf]
      %v319 = vld [vmem:[%s165 + $0x2b8] sm:$0xf]
      %v320 = vld [vmem:[%s165 + $0x2bc] sm:$0xf]
      %v321 = vld [vmem:[%s165 + $0x2c4] sm:$0xf]
      %v322 = vld [vmem:[%s165 + $0x2c8] sm:$0xf]
      %v323 = vld [vmem:[%s165 + $0x2d0] sm:$0xf]
      %v324 = vld [vmem:[%s165 + $0x2d4] sm:$0xf]
      %v325 = vld [vmem:[%s165 + $0x2dc] sm:$0xf]
      %v326 = vld [vmem:[%s165 + $0x2e0] sm:$0xf]
      %v327 = vld [vmem:[%s165 + $0x2e8] sm:$0xf]
      %v328 = vld [vmem:[%s165 + $0x2ec] sm:$0xf]
      %v329 = vld [vmem:[%s165 + $0x2f4] sm:$0xf]
      %v330 = vld [vmem:[%s165 + $0x2f8] sm:$0xf]
      %v331 = vld [vmem:[%s165 + $0x300] sm:$0xf]
      %v332 = vld [vmem:[%s165 + $0x304] sm:$0xf]
      %v333 = vld [vmem:[%s165 + $0x30c] sm:$0xf]
      %v334 = vld [vmem:[%s165 + $0x310] sm:$0xf]
      %v335 = vld [vmem:[%s165 + $0x318] sm:$0xf]
      %v336 = vld [vmem:[%s165 + $0x31c] sm:$0xf]
      %v337 = vld [vmem:[%s1] sm:$0x3]
      %s338 = scalar_lea.vmem %s1, 2
      %v339 = vld [vmem:[%s338] sm:$0x3]
      %v372 = vunpack.c.l.b16 %v223
      %v373 = vunpack.c.l.b16 %v224
      %v374 = vunpack.c.l.b16 %v225
      %v375 = vunpack.c.l.b16 %v226
      %v376 = vunpack.c.l.b16 %v227
      %v377 = vunpack.c.l.b16 %v228
      %v378 = vunpack.c.l.b16 %v229
      %v379 = vunpack.c.l.b16 %v230
      %v380 = vunpack.c.l.b16 %v231
      %v381 = vunpack.c.l.b16 %v232
      %v382 = vunpack.c.l.b16 %v233
      %v383 = vunpack.c.l.b16 %v234
      %v384 = vunpack.c.l.b16 %v235
      %v385 = vunpack.c.l.b16 %v236
      %v386 = vunpack.c.l.b16 %v237
      %v387 = vunpack.c.l.b16 %v238
      %v388 = vunpack.c.l.b16 %v239
      %v389 = vunpack.c.l.b16 %v240
      %v390 = vunpack.c.l.b16 %v241
      %v391 = vunpack.c.l.b16 %v242
      %v392 = vunpack.c.l.b16 %v243
      %v393 = vunpack.c.l.b16 %v244
      %v394 = vunpack.c.l.b16 %v245
      %v395 = vunpack.c.l.b16 %v246
      %v396 = vunpack.c.l.b16 %v247
      %v397 = vunpack.c.l.b16 %v248
      %v398 = vunpack.c.l.b16 %v249
      %v399 = vunpack.c.l.b16 %v250
      %v400 = vunpack.c.l.b16 %v251
      %v401 = vunpack.c.l.b16 %v252
      %v402 = vunpack.c.l.b16 %v253
      %v403 = vunpack.c.l.b16 %v254
      %v404 = vpack.c.b16 %v373, %v372
      %v405 = vpack.c.b16 %v375, %v374
      %v406 = vpack.c.b16 %v377, %v376
      %v407 = vpack.c.b16 %v379, %v378
      %v408 = vpack.c.b16 %v381, %v380
      %v409 = vpack.c.b16 %v383, %v382
      %v410 = vpack.c.b16 %v385, %v384
      %v411 = vpack.c.b16 %v387, %v386
      %v412 = vpack.c.b16 %v389, %v388
      %v413 = vpack.c.b16 %v391, %v390
      %v414 = vpack.c.b16 %v393, %v392
      %v415 = vpack.c.b16 %v395, %v394
      %v416 = vpack.c.b16 %v397, %v396
      %v417 = vpack.c.b16 %v399, %v398
      %v418 = vpack.c.b16 %v401, %v400
      %v419 = vpack.c.b16 %v403, %v402
      %vm420 = vcmask 23552
      %v422 = vsel %vm420, %v404, 0
      %v425 = vsel %vm420, %v405, 0
      %v428 = vsel %vm420, %v406, 0
      %v431 = vsel %vm420, %v407, 0
      %v434 = vsel %vm420, %v408, 0
      %v437 = vsel %vm420, %v409, 0
      %v440 = vsel %vm420, %v410, 0
      %v443 = vsel %vm420, %v411, 0
      %v446 = vsel %vm420, %v412, 0
      %v449 = vsel %vm420, %v413, 0
      %v452 = vsel %vm420, %v414, 0
      %v455 = vsel %vm420, %v415, 0
      %v458 = vsel %vm420, %v416, 0
      %v461 = vsel %vm420, %v417, 0
      %v464 = vsel %vm420, %v418, 0
      %v467 = vsel %vm420, %v419, 0
      %vm469 = vcmask 1040384
      %vm470 = vcmask 1041408
      %v471 = vsel %vm469, 4294967295, 65535
      %v472 = vsel %vm470, %v471, 0
      %v474 = vand.u32 %v339, %v472
      %476 = vmatprep.subr.bf16.mxu0 0
      %477 = vmatpush1.bf16.msra.mxu0 %v474
      %478 = vmatprep.subr.bf16.mxu0 0
      %479 = vmatpush1.bf16.msra.mxu0 0
      %480 = vmatprep.subr.bf16.mxu0 0
      %481 = vmatpush1.bf16.msra.mxu0 0
      %482 = vmatprep.subr.bf16.mxu0 0
      %483 = vmatpush1.bf16.msra.mxu0 0
      %484 = vmatprep.subr.bf16.mxu0 0
      %485 = vmatpush1.bf16.msra.mxu0 0
      %486 = vmatprep.subr.bf16.mxu0 0
      %487 = vmatpush1.bf16.msra.mxu0 0
      %488 = vmatprep.subr.bf16.mxu0 0
      %489 = vmatpush1.bf16.msra.mxu0 0
      %490 = vmatprep.subr.bf16.mxu0 0
      %491 = vmatpush1.bf16.msra.mxu0 0
      %492 = vmatprep.subr.bf16.mxu0 0
      %493 = vmatpush1.bf16.msra.mxu0 0
      %494 = vmatprep.subr.bf16.mxu0 0
      %495 = vmatpush1.bf16.msra.mxu0 0
      %496 = vmatprep.subr.bf16.mxu0 0
      %497 = vmatpush1.bf16.msra.mxu0 0
      %498 = vmatprep.subr.bf16.mxu0 0
      %499 = vmatpush1.bf16.msra.mxu0 0
      %500 = vmatprep.subr.bf16.mxu0 0
      %501 = vmatpush1.bf16.msra.mxu0 0
      %502 = vmatprep.subr.bf16.mxu0 0
      %503 = vmatpush1.bf16.msra.mxu0 0
      %504 = vmatprep.subr.bf16.mxu0 0
      %505 = vmatpush1.bf16.msra.mxu0 0
      %506 = vmatprep.subr.bf16.mxu0 0
      %507 = vmatpush1.bf16.msra.mxu0 0
      %508 = vmatprep.mubr.bf16.mxu0 0
      %509 = vmatmul.mubr.bf16.gmra.mrb[0].mxu0 %v422
      %v510 = vpop.f32.mrb[0].mxu0
      %v511 = vadd.f32 0.0, %v510
      %v512 = vpop.f32.mrb[0].mxu0
      %v513 = vpop.f32.mrb[0].mxu0
      %v514 = vadd.f32 0.0, %v513
      %v515 = vpop.f32.mrb[0].mxu0
      %516 = vmatprep.mubr.bf16.mxu0 0
      %517 = vmatmul.mubr.bf16.gmra.mrb[0].mxu0 %v425
      %v518 = vpop.f32.mrb[0].mxu0
      %v519 = vadd.f32 0.0, %v518
      %v520 = vpop.f32.mrb[0].mxu0
      %v521 = vpop.f32.mrb[0].mxu0
      %v522 = vadd.f32 0.0, %v521
      %v523 = vpop.f32.mrb[0].mxu0
      %524 = vmatprep.mubr.bf16.mxu0 0
      %525 = vmatmul.mubr.bf16.gmra.mrb[0].mxu0 %v428
      %v526 = vpop.f32.mrb[0].mxu0
      %v527 = vadd.f32 0.0, %v526
      %v528 = vpop.f32.mrb[0].mxu0
      %v529 = vpop.f32.mrb[0].mxu0
      %v530 = vadd.f32 0.0, %v529
      %v531 = vpop.f32.mrb[0].mxu0
      %532 = vmatprep.mubr.bf16.mxu0 0
      %533 = vmatmul.mubr.bf16.gmra.mrb[0].mxu0 %v431
      %v534 = vpop.f32.mrb[0].mxu0
      %v535 = vadd.f32 0.0, %v534
      %v536 = vpop.f32.mrb[0].mxu0
      %v537 = vpop.f32.mrb[0].mxu0
      %v538 = vadd.f32 0.0, %v537
      %v539 = vpop.f32.mrb[0].mxu0
      %540 = vmatprep.mubr.bf16.mxu0 0
      %541 = vmatmul.mubr.bf16.gmra.mrb[0].mxu0 %v434
      %v542 = vpop.f32.mrb[0].mxu0
      %v543 = vadd.f32 0.0, %v542
      %v544 = vpop.f32.mrb[0].mxu0
      %v545 = vpop.f32.mrb[0].mxu0
      %v546 = vadd.f32 0.0, %v545
      %v547 = vpop.f32.mrb[0].mxu0
      %548 = vmatprep.mubr.bf16.mxu0 0
      %549 = vmatmul.mubr.bf16.gmra.mrb[0].mxu0 %v437
      %v550 = vpop.f32.mrb[0].mxu0
      %v551 = vadd.f32 0.0, %v550
      %v552 = vpop.f32.mrb[0].mxu0
      %v553 = vpop.f32.mrb[0].mxu0
      %v554 = vadd.f32 0.0, %v553
      %v555 = vpop.f32.mrb[0].mxu0
      %556 = vmatprep.mubr.bf16.mxu0 0
      %557 = vmatmul.mubr.bf16.gmra.mrb[0].mxu0 %v440
      %v558 = vpop.f32.mrb[0].mxu0
      %v559 = vadd.f32 0.0, %v558
      %v560 = vpop.f32.mrb[0].mxu0
      %v561 = vpop.f32.mrb[0].mxu0
      %v562 = vadd.f32 0.0, %v561
      %v563 = vpop.f32.mrb[0].mxu0
      %564 = vmatprep.mubr.bf16.mxu0 0
      %565 = vmatmul.mubr.bf16.gmra.mrb[0].mxu0 %v443
      %v566 = vpop.f32.mrb[0].mxu0
      %v567 = vadd.f32 0.0, %v566
      %v568 = vpop.f32.mrb[0].mxu0
      %v569 = vpop.f32.mrb[0].mxu0
      %v570 = vadd.f32 0.0, %v569
      %v571 = vpop.f32.mrb[0].mxu0
      %572 = vmatprep.mubr.bf16.mxu0 0
      %573 = vmatmul.mubr.bf16.gmra.mrb[0].mxu0 %v446
      %v574 = vpop.f32.mrb[0].mxu0
      %v575 = vadd.f32 0.0, %v574
      %v576 = vpop.f32.mrb[0].mxu0
      %v577 = vpop.f32.mrb[0].mxu0
      %v578 = vadd.f32 0.0, %v577
      %v579 = vpop.f32.mrb[0].mxu0
      %580 = vmatprep.mubr.bf16.mxu0 0
      %581 = vmatmul.mubr.bf16.gmra.mrb[0].mxu0 %v449
      %v582 = vpop.f32.mrb[0].mxu0
      %v583 = vadd.f32 0.0, %v582
      %v584 = vpop.f32.mrb[0].mxu0
      %v585 = vpop.f32.mrb[0].mxu0
      %v586 = vadd.f32 0.0, %v585
      %v587 = vpop.f32.mrb[0].mxu0
      %588 = vmatprep.mubr.bf16.mxu0 0
      %589 = vmatmul.mubr.bf16.gmra.mrb[0].mxu0 %v452
      %v590 = vpop.f32.mrb[0].mxu0
      %v591 = vadd.f32 0.0, %v590
      %v592 = vpop.f32.mrb[0].mxu0
      %v593 = vpop.f32.mrb[0].mxu0
      %v594 = vadd.f32 0.0, %v593
      %v595 = vpop.f32.mrb[0].mxu0
      %596 = vmatprep.mubr.bf16.mxu0 0
      %597 = vmatmul.mubr.bf16.gmra.mrb[0].mxu0 %v455
      %v598 = vpop.f32.mrb[0].mxu0
      %v599 = vadd.f32 0.0, %v598
      %v600 = vpop.f32.mrb[0].mxu0
      %v601 = vpop.f32.mrb[0].mxu0
      %v602 = vadd.f32 0.0, %v601
      %v603 = vpop.f32.mrb[0].mxu0
      %604 = vmatprep.mubr.bf16.mxu0 0
      %605 = vmatmul.mubr.bf16.gmra.mrb[0].mxu0 %v458
      %v606 = vpop.f32.mrb[0].mxu0
      %v607 = vadd.f32 0.0, %v606
      %v608 = vpop.f32.mrb[0].mxu0
      %v609 = vpop.f32.mrb[0].mxu0
      %v610 = vadd.f32 0.0, %v609
      %v611 = vpop.f32.mrb[0].mxu0
      %612 = vmatprep.mubr.bf16.mxu0 0
      %613 = vmatmul.mubr.bf16.gmra.mrb[0].mxu0 %v461
      %v614 = vpop.f32.mrb[0].mxu0
      %v615 = vadd.f32 0.0, %v614
      %v616 = vpop.f32.mrb[0].mxu0
      %v617 = vpop.f32.mrb[0].mxu0
      %v618 = vadd.f32 0.0, %v617
      %v619 = vpop.f32.mrb[0].mxu0
      %620 = vmatprep.mubr.bf16.mxu0 0
      %621 = vmatmul.mubr.bf16.gmra.mrb[0].mxu0 %v464
      %v622 = vpop.f32.mrb[0].mxu0
      %v623 = vadd.f32 0.0, %v622
      %v624 = vpop.f32.mrb[0].mxu0
      %v625 = vpop.f32.mrb[0].mxu0
      %v626 = vadd.f32 0.0, %v625
      %v627 = vpop.f32.mrb[0].mxu0
      %628 = vmatprep.mubr.bf16.mxu0 0
      %629 = vmatmul.mubr.bf16.gmra.mrb[0].mxu0 %v467
      %v630 = vpop.f32.mrb[0].mxu0
      %v631 = vadd.f32 0.0, %v630
      %v632 = vpop.f32.mrb[0].mxu0
      %v633 = vpop.f32.mrb[0].mxu0
      %v634 = vadd.f32 0.0, %v633
      %v635 = vpop.f32.mrb[0].mxu0
      %636 = vdwg.mxu0
      %v669 = vunpack.c.l.b16 %v172
      %v670 = vunpack.c.l.b16 %v173
      %v671 = vunpack.c.l.b16 %v175
      %v672 = vunpack.c.l.b16 %v176
      %v673 = vunpack.c.l.b16 %v178
      %v674 = vunpack.c.l.b16 %v179
      %v675 = vunpack.c.l.b16 %v181
      %v676 = vunpack.c.l.b16 %v182
      %v677 = vunpack.c.l.b16 %v184
      %v678 = vunpack.c.l.b16 %v185
      %v679 = vunpack.c.l.b16 %v187
      %v680 = vunpack.c.l.b16 %v188
      %v681 = vunpack.c.l.b16 %v190
      %v682 = vunpack.c.l.b16 %v191
      %v683 = vunpack.c.l.b16 %v193
      %v684 = vunpack.c.l.b16 %v194
      %v685 = vunpack.c.l.b16 %v196
      %v686 = vunpack.c.l.b16 %v197
      %v687 = vunpack.c.l.b16 %v199
      %v688 = vunpack.c.l.b16 %v200
      %v689 = vunpack.c.l.b16 %v202
      %v690 = vunpack.c.l.b16 %v203
      %v691 = vunpack.c.l.b16 %v205
      %v692 = vunpack.c.l.b16 %v206
      %v693 = vunpack.c.l.b16 %v208
      %v694 = vunpack.c.l.b16 %v209
      %v695 = vunpack.c.l.b16 %v211
      %v696 = vunpack.c.l.b16 %v212
      %v697 = vunpack.c.l.b16 %v214
      %v698 = vunpack.c.l.b16 %v215
      %v699 = vunpack.c.l.b16 %v217
      %v700 = vunpack.c.l.b16 %v218
      %v701 = vpack.c.b16 %v670, %v669
      %v702 = vpack.c.b16 %v672, %v671
      %v703 = vpack.c.b16 %v674, %v673
      %v704 = vpack.c.b16 %v676, %v675
      %v705 = vpack.c.b16 %v678, %v677
      %v706 = vpack.c.b16 %v680, %v679
      %v707 = vpack.c.b16 %v682, %v681
      %v708 = vpack.c.b16 %v684, %v683
      %v709 = vpack.c.b16 %v686, %v685
      %v710 = vpack.c.b16 %v688, %v687
      %v711 = vpack.c.b16 %v690, %v689
      %v712 = vpack.c.b16 %v692, %v691
      %v713 = vpack.c.b16 %v694, %v693
      %v714 = vpack.c.b16 %v696, %v695
      %v715 = vpack.c.b16 %v698, %v697
      %v716 = vpack.c.b16 %v700, %v699
      %v718 = vsel %vm420, %v701, 0
      %v721 = vsel %vm420, %v702, 0
      %v724 = vsel %vm420, %v703, 0
      %v727 = vsel %vm420, %v704, 0
      %v730 = vsel %vm420, %v705, 0
      %v733 = vsel %vm420, %v706, 0
      %v736 = vsel %vm420, %v707, 0
      %v739 = vsel %vm420, %v708, 0
      %v742 = vsel %vm420, %v709, 0
      %v745 = vsel %vm420, %v710, 0
      %v748 = vsel %vm420, %v711, 0
      %v751 = vsel %vm420, %v712, 0
      %v754 = vsel %vm420, %v713, 0
      %v757 = vsel %vm420, %v714, 0
      %v760 = vsel %vm420, %v715, 0
      %v763 = vsel %vm420, %v716, 0
      %v766 = vand.u32 %v337, %v472
      %768 = vmatprep.subr.bf16.mxu0 0
      %769 = vmatpush1.bf16.msra.mxu0 %v766
      %770 = vmatprep.subr.bf16.mxu0 0
      %771 = vmatpush1.bf16.msra.mxu0 0
      %772 = vmatprep.subr.bf16.mxu0 0
      %773 = vmatpush1.bf16.msra.mxu0 0
      %774 = vmatprep.subr.bf16.mxu0 0
      %775 = vmatpush1.bf16.msra.mxu0 0
      %776 = vmatprep.subr.bf16.mxu0 0
      %777 = vmatpush1.bf16.msra.mxu0 0
      %778 = vmatprep.subr.bf16.mxu0 0
      %779 = vmatpush1.bf16.msra.mxu0 0
      %780 = vmatprep.subr.bf16.mxu0 0
      %781 = vmatpush1.bf16.msra.mxu0 0
      %782 = vmatprep.subr.bf16.mxu0 0
      %783 = vmatpush1.bf16.msra.mxu0 0
      %784 = vmatprep.subr.bf16.mxu0 0
      %785 = vmatpush1.bf16.msra.mxu0 0
      %786 = vmatprep.subr.bf16.mxu0 0
      %787 = vmatpush1.bf16.msra.mxu0 0
      %788 = vmatprep.subr.bf16.mxu0 0
      %789 = vmatpush1.bf16.msra.mxu0 0
      %790 = vmatprep.subr.bf16.mxu0 0
      %791 = vmatpush1.bf16.msra.mxu0 0
      %792 = vmatprep.subr.bf16.mxu0 0
      %793 = vmatpush1.bf16.msra.mxu0 0
      %794 = vmatprep.subr.bf16.mxu0 0
      %795 = vmatpush1.bf16.msra.mxu0 0
      %796 = vmatprep.subr.bf16.mxu0 0
      %797 = vmatpush1.bf16.msra.mxu0 0
      %798 = vmatprep.subr.bf16.mxu0 0
      %799 = vmatpush1.bf16.msra.mxu0 0
      %800 = vmatprep.mubr.bf16.mxu0 0
      %801 = vmatmul.mubr.bf16.gmra.mrb[0].mxu0 %v718
      %v802 = vpop.f32.mrb[0].mxu0
      %v803 = vadd.f32 %v511, %v802
      %v804 = vpop.f32.mrb[0].mxu0
      %v805 = vpop.f32.mrb[0].mxu0
      %v806 = vadd.f32 %v514, %v805
      %v807 = vpop.f32.mrb[0].mxu0
      %808 = vmatprep.mubr.bf16.mxu0 0
      %809 = vmatmul.mubr.bf16.gmra.mrb[0].mxu0 %v721
      %v810 = vpop.f32.mrb[0].mxu0
      %v811 = vadd.f32 %v519, %v810
      %v812 = vpop.f32.mrb[0].mxu0
      %v813 = vpop.f32.mrb[0].mxu0
      %v814 = vadd.f32 %v522, %v813
      %v815 = vpop.f32.mrb[0].mxu0
      %816 = vmatprep.mubr.bf16.mxu0 0
      %817 = vmatmul.mubr.bf16.gmra.mrb[0].mxu0 %v724
      %v818 = vpop.f32.mrb[0].mxu0
      %v819 = vadd.f32 %v527, %v818
      %v820 = vpop.f32.mrb[0].mxu0
      %v821 = vpop.f32.mrb[0].mxu0
      %v822 = vadd.f32 %v530, %v821
      %v823 = vpop.f32.mrb[0].mxu0
      %824 = vmatprep.mubr.bf16.mxu0 0
      %825 = vmatmul.mubr.bf16.gmra.mrb[0].mxu0 %v727
      %v826 = vpop.f32.mrb[0].mxu0
      %v827 = vadd.f32 %v535, %v826
      %v828 = vpop.f32.mrb[0].mxu0
      %v829 = vpop.f32.mrb[0].mxu0
      %v830 = vadd.f32 %v538, %v829
      %v831 = vpop.f32.mrb[0].mxu0
      %832 = vmatprep.mubr.bf16.mxu0 0
      %833 = vmatmul.mubr.bf16.gmra.mrb[0].mxu0 %v730
      %v834 = vpop.f32.mrb[0].mxu0
      %v835 = vadd.f32 %v543, %v834
      %v836 = vpop.f32.mrb[0].mxu0
      %v837 = vpop.f32.mrb[0].mxu0
      %v838 = vadd.f32 %v546, %v837
      %v839 = vpop.f32.mrb[0].mxu0
      %840 = vmatprep.mubr.bf16.mxu0 0
      %841 = vmatmul.mubr.bf16.gmra.mrb[0].mxu0 %v733
      %v842 = vpop.f32.mrb[0].mxu0
      %v843 = vadd.f32 %v551, %v842
      %v844 = vpop.f32.mrb[0].mxu0
      %v845 = vpop.f32.mrb[0].mxu0
      %v846 = vadd.f32 %v554, %v845
      %v847 = vpop.f32.mrb[0].mxu0
      %848 = vmatprep.mubr.bf16.mxu0 0
      %849 = vmatmul.mubr.bf16.gmra.mrb[0].mxu0 %v736
      %v850 = vpop.f32.mrb[0].mxu0
      %v851 = vadd.f32 %v559, %v850
      %v852 = vpop.f32.mrb[0].mxu0
      %v853 = vpop.f32.mrb[0].mxu0
      %v854 = vadd.f32 %v562, %v853
      %v855 = vpop.f32.mrb[0].mxu0
      %856 = vmatprep.mubr.bf16.mxu0 0
      %857 = vmatmul.mubr.bf16.gmra.mrb[0].mxu0 %v739
      %v858 = vpop.f32.mrb[0].mxu0
      %v859 = vadd.f32 %v567, %v858
      %v860 = vpop.f32.mrb[0].mxu0
      %v861 = vpop.f32.mrb[0].mxu0
      %v862 = vadd.f32 %v570, %v861
      %v863 = vpop.f32.mrb[0].mxu0
      %864 = vmatprep.mubr.bf16.mxu0 0
      %865 = vmatmul.mubr.bf16.gmra.mrb[0].mxu0 %v742
      %v866 = vpop.f32.mrb[0].mxu0
      %v867 = vadd.f32 %v575, %v866
      %v868 = vpop.f32.mrb[0].mxu0
      %v869 = vpop.f32.mrb[0].mxu0
      %v870 = vadd.f32 %v578, %v869
      %v871 = vpop.f32.mrb[0].mxu0
      %872 = vmatprep.mubr.bf16.mxu0 0
      %873 = vmatmul.mubr.bf16.gmra.mrb[0].mxu0 %v745
      %v874 = vpop.f32.mrb[0].mxu0
      %v875 = vadd.f32 %v583, %v874
      %v876 = vpop.f32.mrb[0].mxu0
      %v877 = vpop.f32.mrb[0].mxu0
      %v878 = vadd.f32 %v586, %v877
      %v879 = vpop.f32.mrb[0].mxu0
      %880 = vmatprep.mubr.bf16.mxu0 0
      %881 = vmatmul.mubr.bf16.gmra.mrb[0].mxu0 %v748
      %v882 = vpop.f32.mrb[0].mxu0
      %v883 = vadd.f32 %v591, %v882
      %v884 = vpop.f32.mrb[0].mxu0
      %v885 = vpop.f32.mrb[0].mxu0
      %v886 = vadd.f32 %v594, %v885
      %v887 = vpop.f32.mrb[0].mxu0
      %888 = vmatprep.mubr.bf16.mxu0 0
      %889 = vmatmul.mubr.bf16.gmra.mrb[0].mxu0 %v751
      %v890 = vpop.f32.mrb[0].mxu0
      %v891 = vadd.f32 %v599, %v890
      %v892 = vpop.f32.mrb[0].mxu0
      %v893 = vpop.f32.mrb[0].mxu0
      %v894 = vadd.f32 %v602, %v893
      %v895 = vpop.f32.mrb[0].mxu0
      %896 = vmatprep.mubr.bf16.mxu0 0
      %897 = vmatmul.mubr.bf16.gmra.mrb[0].mxu0 %v754
      %v898 = vpop.f32.mrb[0].mxu0
      %v899 = vadd.f32 %v607, %v898
      %v900 = vpop.f32.mrb[0].mxu0
      %v901 = vpop.f32.mrb[0].mxu0
      %v902 = vadd.f32 %v610, %v901
      %v903 = vpop.f32.mrb[0].mxu0
      %904 = vmatprep.mubr.bf16.mxu0 0
      %905 = vmatmul.mubr.bf16.gmra.mrb[0].mxu0 %v757
      %v906 = vpop.f32.mrb[0].mxu0
      %v907 = vadd.f32 %v615, %v906
      %v908 = vpop.f32.mrb[0].mxu0
      %v909 = vpop.f32.mrb[0].mxu0
      %v910 = vadd.f32 %v618, %v909
      %v911 = vpop.f32.mrb[0].mxu0
      %912 = vmatprep.mubr.bf16.mxu0 0
      %913 = vmatmul.mubr.bf16.gmra.mrb[0].mxu0 %v760
      %v914 = vpop.f32.mrb[0].mxu0
      %v915 = vadd.f32 %v623, %v914
      %v916 = vpop.f32.mrb[0].mxu0
      %v917 = vpop.f32.mrb[0].mxu0
      %v918 = vadd.f32 %v626, %v917
      %v919 = vpop.f32.mrb[0].mxu0
      %920 = vmatprep.mubr.bf16.mxu0 0
      %921 = vmatmul.mubr.bf16.gmra.mrb[0].mxu0 %v763
      %v922 = vpop.f32.mrb[0].mxu0
      %v923 = vadd.f32 %v631, %v922
      %v924 = vpop.f32.mrb[0].mxu0
      %v925 = vpop.f32.mrb[0].mxu0
      %v926 = vadd.f32 %v634, %v925
      %v927 = vpop.f32.mrb[0].mxu0
      %928 = vdwg.mxu0
      %vm929 = vsmask.f32 3328
      %vm930 = vsmask.f32 7440
      %vm931 = vmor %vm929, %vm930
      %v933 = vshrl.u32 %v172, 16
      %v935 = vrot.slane %v933, 4
      %v936 = vshll.u32 %v172, 16
      %v938 = vrot.slane %v936, 5
      %v939 = vor.u32 %v935, %v938
      %v940 = vrot.slane %v939, 4
      %v942 = vshll.u32 %v173, 16
      %v944 = vrot.slane %v942, 5
      %v945 = vsel %vm931, %v940, %v944
      %v946 = vshrl.u32 %v173, 16
      %v948 = vrot.slane %v946, 4
      %v949 = vor.u32 %v948, %v944
      %v950 = vrot.slane %v949, 4
      %v952 = vshll.u32 %v174, 16
      %v954 = vrot.slane %v952, 5
      %v955 = vsel %vm931, %v950, %v954
      %v957 = vshrl.u32 %v175, 16
      %v959 = vrot.slane %v957, 4
      %v960 = vshll.u32 %v175, 16
      %v962 = vrot.slane %v960, 5
      %v963 = vor.u32 %v959, %v962
      %v964 = vrot.slane %v963, 4
      %v966 = vshll.u32 %v176, 16
      %v968 = vrot.slane %v966, 5
      %v969 = vsel %vm931, %v964, %v968
      %v970 = vshrl.u32 %v176, 16
      %v972 = vrot.slane %v970, 4
      %v973 = vor.u32 %v972, %v968
      %v974 = vrot.slane %v973, 4
      %v976 = vshll.u32 %v177, 16
      %v978 = vrot.slane %v976, 5
      %v979 = vsel %vm931, %v974, %v978
      %v981 = vshrl.u32 %v178, 16
      %v983 = vrot.slane %v981, 4
      %v984 = vshll.u32 %v178, 16
      %v986 = vrot.slane %v984, 5
      %v987 = vor.u32 %v983, %v986
      %v988 = vrot.slane %v987, 4
      %v990 = vshll.u32 %v179, 16
      %v992 = vrot.slane %v990, 5
      %v993 = vsel %vm931, %v988, %v992
      %v994 = vshrl.u32 %v179, 16
      %v996 = vrot.slane %v994, 4
      %v997 = vor.u32 %v996, %v992
      %v998 = vrot.slane %v997, 4
      %v1000 = vshll.u32 %v180, 16
      %v1002 = vrot.slane %v1000, 5
      %v1003 = vsel %vm931, %v998, %v1002
      %v1005 = vshrl.u32 %v181, 16
      %v1007 = vrot.slane %v1005, 4
      %v1008 = vshll.u32 %v181, 16
      %v1010 = vrot.slane %v1008, 5
      %v1011 = vor.u32 %v1007, %v1010
      %v1012 = vrot.slane %v1011, 4
      %v1014 = vshll.u32 %v182, 16
      %v1016 = vrot.slane %v1014, 5
      %v1017 = vsel %vm931, %v1012, %v1016
      %v1018 = vshrl.u32 %v182, 16
      %v1020 = vrot.slane %v1018, 4
      %v1021 = vor.u32 %v1020, %v1016
      %v1022 = vrot.slane %v1021, 4
      %v1024 = vshll.u32 %v183, 16
      %v1026 = vrot.slane %v1024, 5
      %v1027 = vsel %vm931, %v1022, %v1026
      %v1029 = vshrl.u32 %v184, 16
      %v1031 = vrot.slane %v1029, 4
      %v1032 = vshll.u32 %v184, 16
      %v1034 = vrot.slane %v1032, 5
      %v1035 = vor.u32 %v1031, %v1034
      %v1036 = vrot.slane %v1035, 4
      %v1038 = vshll.u32 %v185, 16
      %v1040 = vrot.slane %v1038, 5
      %v1041 = vsel %vm931, %v1036, %v1040
      %v1042 = vshrl.u32 %v185, 16
      %v1044 = vrot.slane %v1042, 4
      %v1045 = vor.u32 %v1044, %v1040
      %v1046 = vrot.slane %v1045, 4
      %v1048 = vshll.u32 %v186, 16
      %v1050 = vrot.slane %v1048, 5
      %v1051 = vsel %vm931, %v1046, %v1050
      %v1053 = vshrl.u32 %v187, 16
      %v1055 = vrot.slane %v1053, 4
      %v1056 = vshll.u32 %v187, 16
      %v1058 = vrot.slane %v1056, 5
      %v1059 = vor.u32 %v1055, %v1058
      %v1060 = vrot.slane %v1059, 4
      %v1062 = vshll.u32 %v188, 16
      %v1064 = vrot.slane %v1062, 5
      %v1065 = vsel %vm931, %v1060, %v1064
      %v1066 = vshrl.u32 %v188, 16
      %v1068 = vrot.slane %v1066, 4
      %v1069 = vor.u32 %v1068, %v1064
      %v1070 = vrot.slane %v1069, 4
      %v1072 = vshll.u32 %v189, 16
      %v1074 = vrot.slane %v1072, 5
      %v1075 = vsel %vm931, %v1070, %v1074
      %v1077 = vshrl.u32 %v190, 16
      %v1079 = vrot.slane %v1077, 4
      %v1080 = vshll.u32 %v190, 16
      %v1082 = vrot.slane %v1080, 5
      %v1083 = vor.u32 %v1079, %v1082
      %v1084 = vrot.slane %v1083, 4
      %v1086 = vshll.u32 %v191, 16
      %v1088 = vrot.slane %v1086, 5
      %v1089 = vsel %vm931, %v1084, %v1088
      %v1090 = vshrl.u32 %v191, 16
      %v1092 = vrot.slane %v1090, 4
      %v1093 = vor.u32 %v1092, %v1088
      %v1094 = vrot.slane %v1093, 4
      %v1096 = vshll.u32 %v192, 16
      %v1098 = vrot.slane %v1096, 5
      %v1099 = vsel %vm931, %v1094, %v1098
      %v1101 = vshrl.u32 %v193, 16
      %v1103 = vrot.slane %v1101, 4
      %v1104 = vshll.u32 %v193, 16
      %v1106 = vrot.slane %v1104, 5
      %v1107 = vor.u32 %v1103, %v1106
      %v1108 = vrot.slane %v1107, 4
      %v1110 = vshll.u32 %v194, 16
      %v1112 = vrot.slane %v1110, 5
      %v1113 = vsel %vm931, %v1108, %v1112
      %v1114 = vshrl.u32 %v194, 16
      %v1116 = vrot.slane %v1114, 4
      %v1117 = vor.u32 %v1116, %v1112
      %v1118 = vrot.slane %v1117, 4
      %v1120 = vshll.u32 %v195, 16
      %v1122 = vrot.slane %v1120, 5
      %v1123 = vsel %vm931, %v1118, %v1122
      %v1125 = vshrl.u32 %v196, 16
      %v1127 = vrot.slane %v1125, 4
      %v1128 = vshll.u32 %v196, 16
      %v1130 = vrot.slane %v1128, 5
      %v1131 = vor.u32 %v1127, %v1130
      %v1132 = vrot.slane %v1131, 4
      %v1134 = vshll.u32 %v197, 16
      %v1136 = vrot.slane %v1134, 5
      %v1137 = vsel %vm931, %v1132, %v1136
      %v1138 = vshrl.u32 %v197, 16
      %v1140 = vrot.slane %v1138, 4
      %v1141 = vor.u32 %v1140, %v1136
      %v1142 = vrot.slane %v1141, 4
      %v1144 = vshll.u32 %v198, 16
      %v1146 = vrot.slane %v1144, 5
      %v1147 = vsel %vm931, %v1142, %v1146
      %v1149 = vshrl.u32 %v199, 16
      %v1151 = vrot.slane %v1149, 4
      %v1152 = vshll.u32 %v199, 16
      %v1154 = vrot.slane %v1152, 5
      %v1155 = vor.u32 %v1151, %v1154
      %v1156 = vrot.slane %v1155, 4
      %v1158 = vshll.u32 %v200, 16
      %v1160 = vrot.slane %v1158, 5
      %v1161 = vsel %vm931, %v1156, %v1160
      %v1162 = vshrl.u32 %v200, 16
      %v1164 = vrot.slane %v1162, 4
      %v1165 = vor.u32 %v1164, %v1160
      %v1166 = vrot.slane %v1165, 4
      %v1168 = vshll.u32 %v201, 16
      %v1170 = vrot.slane %v1168, 5
      %v1171 = vsel %vm931, %v1166, %v1170
      %v1173 = vshrl.u32 %v202, 16
      %v1175 = vrot.slane %v1173, 4
      %v1176 = vshll.u32 %v202, 16
      %v1178 = vrot.slane %v1176, 5
      %v1179 = vor.u32 %v1175, %v1178
      %v1180 = vrot.slane %v1179, 4
      %v1182 = vshll.u32 %v203, 16
      %v1184 = vrot.slane %v1182, 5
      %v1185 = vsel %vm931, %v1180, %v1184
      %v1186 = vshrl.u32 %v203, 16
      %v1188 = vrot.slane %v1186, 4
      %v1189 = vor.u32 %v1188, %v1184
      %v1190 = vrot.slane %v1189, 4
      %v1192 = vshll.u32 %v204, 16
      %v1194 = vrot.slane %v1192, 5
      %v1195 = vsel %vm931, %v1190, %v1194
      %v1197 = vshrl.u32 %v205, 16
      %v1199 = vrot.slane %v1197, 4
      %v1200 = vshll.u32 %v205, 16
      %v1202 = vrot.slane %v1200, 5
      %v1203 = vor.u32 %v1199, %v1202
      %v1204 = vrot.slane %v1203, 4
      %v1206 = vshll.u32 %v206, 16
      %v1208 = vrot.slane %v1206, 5
      %v1209 = vsel %vm931, %v1204, %v1208
      %v1210 = vshrl.u32 %v206, 16
      %v1212 = vrot.slane %v1210, 4
      %v1213 = vor.u32 %v1212, %v1208
      %v1214 = vrot.slane %v1213, 4
      %v1216 = vshll.u32 %v207, 16
      %v1218 = vrot.slane %v1216, 5
      %v1219 = vsel %vm931, %v1214, %v1218
      %v1221 = vshrl.u32 %v208, 16
      %v1223 = vrot.slane %v1221, 4
      %v1224 = vshll.u32 %v208, 16
      %v1226 = vrot.slane %v1224, 5
      %v1227 = vor.u32 %v1223, %v1226
      %v1228 = vrot.slane %v1227, 4
      %v1230 = vshll.u32 %v209, 16
      %v1232 = vrot.slane %v1230, 5
      %v1233 = vsel %vm931, %v1228, %v1232
      %v1234 = vshrl.u32 %v209, 16
      %v1236 = vrot.slane %v1234, 4
      %v1237 = vor.u32 %v1236, %v1232
      %v1238 = vrot.slane %v1237, 4
      %v1240 = vshll.u32 %v210, 16
      %v1242 = vrot.slane %v1240, 5
      %v1243 = vsel %vm931, %v1238, %v1242
      %v1245 = vshrl.u32 %v211, 16
      %v1247 = vrot.slane %v1245, 4
      %v1248 = vshll.u32 %v211, 16
      %v1250 = vrot.slane %v1248, 5
      %v1251 = vor.u32 %v1247, %v1250
      %v1252 = vrot.slane %v1251, 4
      %v1254 = vshll.u32 %v212, 16
      %v1256 = vrot.slane %v1254, 5
      %v1257 = vsel %vm931, %v1252, %v1256
      %v1258 = vshrl.u32 %v212, 16
      %v1260 = vrot.slane %v1258, 4
      %v1261 = vor.u32 %v1260, %v1256
      %v1262 = vrot.slane %v1261, 4
      %v1264 = vshll.u32 %v213, 16
      %v1266 = vrot.slane %v1264, 5
      %v1267 = vsel %vm931, %v1262, %v1266
      %v1269 = vshrl.u32 %v214, 16
      %v1271 = vrot.slane %v1269, 4
      %v1272 = vshll.u32 %v214, 16
      %v1274 = vrot.slane %v1272, 5
      %v1275 = vor.u32 %v1271, %v1274
      %v1276 = vrot.slane %v1275, 4
      %v1278 = vshll.u32 %v215, 16
      %v1280 = vrot.slane %v1278, 5
      %v1281 = vsel %vm931, %v1276, %v1280
      %v1282 = vshrl.u32 %v215, 16
      %v1284 = vrot.slane %v1282, 4
      %v1285 = vor.u32 %v1284, %v1280
      %v1286 = vrot.slane %v1285, 4
      %v1288 = vshll.u32 %v216, 16
      %v1290 = vrot.slane %v1288, 5
      %v1291 = vsel %vm931, %v1286, %v1290
      %v1293 = vshrl.u32 %v217, 16
      %v1295 = vrot.slane %v1293, 4
      %v1296 = vshll.u32 %v217, 16
      %v1298 = vrot.slane %v1296, 5
      %v1299 = vor.u32 %v1295, %v1298
      %v1300 = vrot.slane %v1299, 4
      %v1302 = vshll.u32 %v218, 16
      %v1304 = vrot.slane %v1302, 5
      %v1305 = vsel %vm931, %v1300, %v1304
      %v1306 = vshrl.u32 %v218, 16
      %v1308 = vrot.slane %v1306, 4
      %v1309 = vor.u32 %v1308, %v1304
      %v1310 = vrot.slane %v1309, 4
      %v1312 = vshll.u32 %v219, 16
      %v1314 = vrot.slane %v1312, 5
      %v1315 = vsel %vm931, %v1310, %v1314
      %s1316 = scalar_lea.vmem %s1, 4
      %v1317 = vld [vmem:[%s1316] sm:$0x3]
      %v1318 = vunpack.c.l.b16 %v945
      %v1319 = vunpack.c.l.b16 %v955
      %v1320 = vunpack.c.l.b16 %v969
      %v1321 = vunpack.c.l.b16 %v979
      %v1322 = vunpack.c.l.b16 %v993
      %v1323 = vunpack.c.l.b16 %v1003
      %v1324 = vunpack.c.l.b16 %v1017
      %v1325 = vunpack.c.l.b16 %v1027
      %v1326 = vunpack.c.l.b16 %v1041
      %v1327 = vunpack.c.l.b16 %v1051
      %v1328 = vunpack.c.l.b16 %v1065
      %v1329 = vunpack.c.l.b16 %v1075
      %v1330 = vunpack.c.l.b16 %v1089
      %v1331 = vunpack.c.l.b16 %v1099
      %v1332 = vunpack.c.l.b16 %v1113
      %v1333 = vunpack.c.l.b16 %v1123
      %v1334 = vunpack.c.l.b16 %v1137
      %v1335 = vunpack.c.l.b16 %v1147
      %v1336 = vunpack.c.l.b16 %v1161
      %v1337 = vunpack.c.l.b16 %v1171
      %v1338 = vunpack.c.l.b16 %v1185
      %v1339 = vunpack.c.l.b16 %v1195
      %v1340 = vunpack.c.l.b16 %v1209
      %v1341 = vunpack.c.l.b16 %v1219
      %v1342 = vunpack.c.l.b16 %v1233
      %v1343 = vunpack.c.l.b16 %v1243
      %v1344 = vunpack.c.l.b16 %v1257
      %v1345 = vunpack.c.l.b16 %v1267
      %v1346 = vunpack.c.l.b16 %v1281
      %v1347 = vunpack.c.l.b16 %v1291
      %v1348 = vunpack.c.l.b16 %v1305
      %v1349 = vunpack.c.l.b16 %v1315
      %v1350 = vpack.c.b16 %v1319, %v1318
      %v1351 = vpack.c.b16 %v1321, %v1320
      %v1352 = vpack.c.b16 %v1323, %v1322
      %v1353 = vpack.c.b16 %v1325, %v1324
      %v1354 = vpack.c.b16 %v1327, %v1326
      %v1355 = vpack.c.b16 %v1329, %v1328
      %v1356 = vpack.c.b16 %v1331, %v1330
      %v1357 = vpack.c.b16 %v1333, %v1332
      %v1358 = vpack.c.b16 %v1335, %v1334
      %v1359 = vpack.c.b16 %v1337, %v1336
      %v1360 = vpack.c.b16 %v1339, %v1338
      %v1361 = vpack.c.b16 %v1341, %v1340
      %v1362 = vpack.c.b16 %v1343, %v1342
      %v1363 = vpack.c.b16 %v1345, %v1344
      %v1364 = vpack.c.b16 %v1347, %v1346
      %v1365 = vpack.c.b16 %v1349, %v1348
      %v1367 = vsel %vm420, %v1350, 0
      %v1370 = vsel %vm420, %v1351, 0
      %v1373 = vsel %vm420, %v1352, 0
      %v1376 = vsel %vm420, %v1353, 0
      %v1379 = vsel %vm420, %v1354, 0
      %v1382 = vsel %vm420, %v1355, 0
      %v1385 = vsel %vm420, %v1356, 0
      %v1388 = vsel %vm420, %v1357, 0
      %v1391 = vsel %vm420, %v1358, 0
      %v1394 = vsel %vm420, %v1359, 0
      %v1397 = vsel %vm420, %v1360, 0
      %v1400 = vsel %vm420, %v1361, 0
      %v1403 = vsel %vm420, %v1362, 0
      %v1406 = vsel %vm420, %v1363, 0
      %v1409 = vsel %vm420, %v1364, 0
      %v1412 = vsel %vm420, %v1365, 0
      %v1415 = vand.u32 %v1317, %v472
      %1417 = vmatprep.subr.bf16.mxu0 0
      %1418 = vmatpush1.bf16.msra.mxu0 %v1415
      %1419 = vmatprep.subr.bf16.mxu0 0
      %1420 = vmatpush1.bf16.msra.mxu0 0
      %1421 = vmatprep.subr.bf16.mxu0 0
      %1422 = vmatpush1.bf16.msra.mxu0 0
      %1423 = vmatprep.subr.bf16.mxu0 0
      %1424 = vmatpush1.bf16.msra.mxu0 0
      %1425 = vmatprep.subr.bf16.mxu0 0
      %1426 = vmatpush1.bf16.msra.mxu0 0
      %1427 = vmatprep.subr.bf16.mxu0 0
      %1428 = vmatpush1.bf16.msra.mxu0 0
      %1429 = vmatprep.subr.bf16.mxu0 0
      %1430 = vmatpush1.bf16.msra.mxu0 0
      %1431 = vmatprep.subr.bf16.mxu0 0
      %1432 = vmatpush1.bf16.msra.mxu0 0
      %1433 = vmatprep.subr.bf16.mxu0 0
      %1434 = vmatpush1.bf16.msra.mxu0 0
      %1435 = vmatprep.subr.bf16.mxu0 0
      %1436 = vmatpush1.bf16.msra.mxu0 0
      %1437 = vmatprep.subr.bf16.mxu0 0
      %1438 = vmatpush1.bf16.msra.mxu0 0
      %1439 = vmatprep.subr.bf16.mxu0 0
      %1440 = vmatpush1.bf16.msra.mxu0 0
      %1441 = vmatprep.subr.bf16.mxu0 0
      %1442 = vmatpush1.bf16.msra.mxu0 0
      %1443 = vmatprep.subr.bf16.mxu0 0
      %1444 = vmatpush1.bf16.msra.mxu0 0
      %1445 = vmatprep.subr.bf16.mxu0 0
      %1446 = vmatpush1.bf16.msra.mxu0 0
      %1447 = vmatprep.subr.bf16.mxu0 0
      %1448 = vmatpush1.bf16.msra.mxu0 0
      %1449 = vmatprep.mubr.bf16.mxu0 0
      %1450 = vmatmul.mubr.bf16.gmra.mrb[0].mxu0 %v1367
      %v1451 = vpop.f32.mrb[0].mxu0
      %v1452 = vadd.f32 0.0, %v1451
      %v1453 = vpop.f32.mrb[0].mxu0
      %v1454 = vpop.f32.mrb[0].mxu0
      %v1455 = vadd.f32 0.0, %v1454
      %v1456 = vpop.f32.mrb[0].mxu0
      %1457 = vmatprep.mubr.bf16.mxu0 0
      %1458 = vmatmul.mubr.bf16.gmra.mrb[0].mxu0 %v1370
      %v1459 = vpop.f32.mrb[0].mxu0
      %v1460 = vadd.f32 0.0, %v1459
      %v1461 = vpop.f32.mrb[0].mxu0
      %v1462 = vpop.f32.mrb[0].mxu0
      %v1463 = vadd.f32 0.0, %v1462
      %v1464 = vpop.f32.mrb[0].mxu0
      %1465 = vmatprep.mubr.bf16.mxu0 0
      %1466 = vmatmul.mubr.bf16.gmra.mrb[0].mxu0 %v1373
      %v1467 = vpop.f32.mrb[0].mxu0
      %v1468 = vadd.f32 0.0, %v1467
      %v1469 = vpop.f32.mrb[0].mxu0
      %v1470 = vpop.f32.mrb[0].mxu0
      %v1471 = vadd.f32 0.0, %v1470
      %v1472 = vpop.f32.mrb[0].mxu0
      %1473 = vmatprep.mubr.bf16.mxu0 0
      %1474 = vmatmul.mubr.bf16.gmra.mrb[0].mxu0 %v1376
      %v1475 = vpop.f32.mrb[0].mxu0
      %v1476 = vadd.f32 0.0, %v1475
      %v1477 = vpop.f32.mrb[0].mxu0
      %v1478 = vpop.f32.mrb[0].mxu0
      %v1479 = vadd.f32 0.0, %v1478
      %v1480 = vpop.f32.mrb[0].mxu0
      %1481 = vmatprep.mubr.bf16.mxu0 0
      %1482 = vmatmul.mubr.bf16.gmra.mrb[0].mxu0 %v1379
      %v1483 = vpop.f32.mrb[0].mxu0
      %v1484 = vadd.f32 0.0, %v1483
      %v1485 = vpop.f32.mrb[0].mxu0
      %v1486 = vpop.f32.mrb[0].mxu0
      %v1487 = vadd.f32 0.0, %v1486
      %v1488 = vpop.f32.mrb[0].mxu0
      %1489 = vmatprep.mubr.bf16.mxu0 0
      %1490 = vmatmul.mubr.bf16.gmra.mrb[0].mxu0 %v1382
      %v1491 = vpop.f32.mrb[0].mxu0
      %v1492 = vadd.f32 0.0, %v1491
      %v1493 = vpop.f32.mrb[0].mxu0
      %v1494 = vpop.f32.mrb[0].mxu0
      %v1495 = vadd.f32 0.0, %v1494
      %v1496 = vpop.f32.mrb[0].mxu0
      %1497 = vmatprep.mubr.bf16.mxu0 0
      %1498 = vmatmul.mubr.bf16.gmra.mrb[0].mxu0 %v1385
      %v1499 = vpop.f32.mrb[0].mxu0
      %v1500 = vadd.f32 0.0, %v1499
      %v1501 = vpop.f32.mrb[0].mxu0
      %v1502 = vpop.f32.mrb[0].mxu0
      %v1503 = vadd.f32 0.0, %v1502
      %v1504 = vpop.f32.mrb[0].mxu0
      %1505 = vmatprep.mubr.bf16.mxu0 0
      %1506 = vmatmul.mubr.bf16.gmra.mrb[0].mxu0 %v1388
      %v1507 = vpop.f32.mrb[0].mxu0
      %v1508 = vadd.f32 0.0, %v1507
      %v1509 = vpop.f32.mrb[0].mxu0
      %v1510 = vpop.f32.mrb[0].mxu0
      %v1511 = vadd.f32 0.0, %v1510
      %v1512 = vpop.f32.mrb[0].mxu0
      %1513 = vmatprep.mubr.bf16.mxu0 0
      %1514 = vmatmul.mubr.bf16.gmra.mrb[0].mxu0 %v1391
      %v1515 = vpop.f32.mrb[0].mxu0
      %v1516 = vadd.f32 0.0, %v1515
      %v1517 = vpop.f32.mrb[0].mxu0
      %v1518 = vpop.f32.mrb[0].mxu0
      %v1519 = vadd.f32 0.0, %v1518
      %v1520 = vpop.f32.mrb[0].mxu0
      %1521 = vmatprep.mubr.bf16.mxu0 0
      %1522 = vmatmul.mubr.bf16.gmra.mrb[0].mxu0 %v1394
      %v1523 = vpop.f32.mrb[0].mxu0
      %v1524 = vadd.f32 0.0, %v1523
      %v1525 = vpop.f32.mrb[0].mxu0
      %v1526 = vpop.f32.mrb[0].mxu0
      %v1527 = vadd.f32 0.0, %v1526
      %v1528 = vpop.f32.mrb[0].mxu0
      %1529 = vmatprep.mubr.bf16.mxu0 0
      %1530 = vmatmul.mubr.bf16.gmra.mrb[0].mxu0 %v1397
      %v1531 = vpop.f32.mrb[0].mxu0
      %v1532 = vadd.f32 0.0, %v1531
      %v1533 = vpop.f32.mrb[0].mxu0
      %v1534 = vpop.f32.mrb[0].mxu0
      %v1535 = vadd.f32 0.0, %v1534
      %v1536 = vpop.f32.mrb[0].mxu0
      %1537 = vmatprep.mubr.bf16.mxu0 0
      %1538 = vmatmul.mubr.bf16.gmra.mrb[0].mxu0 %v1400
      %v1539 = vpop.f32.mrb[0].mxu0
      %v1540 = vadd.f32 0.0, %v1539
      %v1541 = vpop.f32.mrb[0].mxu0
      %v1542 = vpop.f32.mrb[0].mxu0
      %v1543 = vadd.f32 0.0, %v1542
      %v1544 = vpop.f32.mrb[0].mxu0
      %1545 = vmatprep.mubr.bf16.mxu0 0
      %1546 = vmatmul.mubr.bf16.gmra.mrb[0].mxu0 %v1403
      %v1547 = vpop.f32.mrb[0].mxu0
      %v1548 = vadd.f32 0.0, %v1547
      %v1549 = vpop.f32.mrb[0].mxu0
      %v1550 = vpop.f32.mrb[0].mxu0
      %v1551 = vadd.f32 0.0, %v1550
      %v1552 = vpop.f32.mrb[0].mxu0
      %1553 = vmatprep.mubr.bf16.mxu0 0
      %1554 = vmatmul.mubr.bf16.gmra.mrb[0].mxu0 %v1406
      %v1555 = vpop.f32.mrb[0].mxu0
      %v1556 = vadd.f32 0.0, %v1555
      %v1557 = vpop.f32.mrb[0].mxu0
      %v1558 = vpop.f32.mrb[0].mxu0
      %v1559 = vadd.f32 0.0, %v1558
      %v1560 = vpop.f32.mrb[0].mxu0
      %1561 = vmatprep.mubr.bf16.mxu0 0
      %1562 = vmatmul.mubr.bf16.gmra.mrb[0].mxu0 %v1409
      %v1563 = vpop.f32.mrb[0].mxu0
      %v1564 = vadd.f32 0.0, %v1563
      %v1565 = vpop.f32.mrb[0].mxu0
      %v1566 = vpop.f32.mrb[0].mxu0
      %v1567 = vadd.f32 0.0, %v1566
      %v1568 = vpop.f32.mrb[0].mxu0
      %1569 = vmatprep.mubr.bf16.mxu0 0
      %1570 = vmatmul.mubr.bf16.gmra.mrb[0].mxu0 %v1412
      %v1571 = vpop.f32.mrb[0].mxu0
      %v1572 = vadd.f32 0.0, %v1571
      %v1573 = vpop.f32.mrb[0].mxu0
      %v1574 = vpop.f32.mrb[0].mxu0
      %v1575 = vadd.f32 0.0, %v1574
      %v1576 = vpop.f32.mrb[0].mxu0
      %1577 = vdwg.mxu0
      %v1578 = vadd.f32 %v803, %v1452
      %v1579 = vadd.f32 %v806, %v1455
      %v1580 = vadd.f32 %v811, %v1460
      %v1581 = vadd.f32 %v814, %v1463
      %v1582 = vadd.f32 %v819, %v1468
      %v1583 = vadd.f32 %v822, %v1471
      %v1584 = vadd.f32 %v827, %v1476
      %v1585 = vadd.f32 %v830, %v1479
      %v1586 = vadd.f32 %v835, %v1484
      %v1587 = vadd.f32 %v838, %v1487
      %v1588 = vadd.f32 %v843, %v1492
      %v1589 = vadd.f32 %v846, %v1495
      %v1590 = vadd.f32 %v851, %v1500
      %v1591 = vadd.f32 %v854, %v1503
      %v1592 = vadd.f32 %v859, %v1508
      %v1593 = vadd.f32 %v862, %v1511
      %v1594 = vadd.f32 %v867, %v1516
      %v1595 = vadd.f32 %v870, %v1519
      %v1596 = vadd.f32 %v875, %v1524
      %v1597 = vadd.f32 %v878, %v1527
      %v1598 = vadd.f32 %v883, %v1532
      %v1599 = vadd.f32 %v886, %v1535
      %v1600 = vadd.f32 %v891, %v1540
      %v1601 = vadd.f32 %v894, %v1543
      %v1602 = vadd.f32 %v899, %v1548
      %v1603 = vadd.f32 %v902, %v1551
      %v1604 = vadd.f32 %v907, %v1556
      %v1605 = vadd.f32 %v910, %v1559
      %v1606 = vadd.f32 %v915, %v1564
      %v1607 = vadd.f32 %v918, %v1567
      %v1608 = vadd.f32 %v923, %v1572
      %v1609 = vadd.f32 %v926, %v1575
      %s1610 = scalar_lea.vmem %s1, 6
      %v1611 = vld [vmem:[%s1610] sm:$0x3]
      %v1644 = vunpack.c.l.b16 %v257
      %v1645 = vunpack.c.l.b16 %v258
      %v1646 = vunpack.c.l.b16 %v260
      %v1647 = vunpack.c.l.b16 %v261
      %v1648 = vunpack.c.l.b16 %v263
      %v1649 = vunpack.c.l.b16 %v264
      %v1650 = vunpack.c.l.b16 %v266
      %v1651 = vunpack.c.l.b16 %v267
      %v1652 = vunpack.c.l.b16 %v269
      %v1653 = vunpack.c.l.b16 %v270
      %v1654 = vunpack.c.l.b16 %v272
      %v1655 = vunpack.c.l.b16 %v273
      %v1656 = vunpack.c.l.b16 %v275
      %v1657 = vunpack.c.l.b16 %v276
      %v1658 = vunpack.c.l.b16 %v278
      %v1659 = vunpack.c.l.b16 %v279
      %v1660 = vunpack.c.l.b16 %v281
      %v1661 = vunpack.c.l.b16 %v282
      %v1662 = vunpack.c.l.b16 %v284
      %v1663 = vunpack.c.l.b16 %v285
      %v1664 = vunpack.c.l.b16 %v287
      %v1665 = vunpack.c.l.b16 %v288
      %v1666 = vunpack.c.l.b16 %v290
      %v1667 = vunpack.c.l.b16 %v291
      %v1668 = vunpack.c.l.b16 %v293
      %v1669 = vunpack.c.l.b16 %v294
      %v1670 = vunpack.c.l.b16 %v296
      %v1671 = vunpack.c.l.b16 %v297
      %v1672 = vunpack.c.l.b16 %v299
      %v1673 = vunpack.c.l.b16 %v300
      %v1674 = vunpack.c.l.b16 %v302
      %v1675 = vunpack.c.l.b16 %v303
      %v1676 = vpack.c.b16 %v1645, %v1644
      %v1677 = vpack.c.b16 %v1647, %v1646
      %v1678 = vpack.c.b16 %v1649, %v1648
      %v1679 = vpack.c.b16 %v1651, %v1650
      %v1680 = vpack.c.b16 %v1653, %v1652
      %v1681 = vpack.c.b16 %v1655, %v1654
      %v1682 = vpack.c.b16 %v1657, %v1656
      %v1683 = vpack.c.b16 %v1659, %v1658
      %v1684 = vpack.c.b16 %v1661, %v1660
      %v1685 = vpack.c.b16 %v1663, %v1662
      %v1686 = vpack.c.b16 %v1665, %v1664
      %v1687 = vpack.c.b16 %v1667, %v1666
      %v1688 = vpack.c.b16 %v1669, %v1668
      %v1689 = vpack.c.b16 %v1671, %v1670
      %v1690 = vpack.c.b16 %v1673, %v1672
      %v1691 = vpack.c.b16 %v1675, %v1674
      %v1693 = vsel %vm420, %v1676, 0
      %v1696 = vsel %vm420, %v1677, 0
      %v1699 = vsel %vm420, %v1678, 0
      %v1702 = vsel %vm420, %v1679, 0
      %v1705 = vsel %vm420, %v1680, 0
      %v1708 = vsel %vm420, %v1681, 0
      %v1711 = vsel %vm420, %v1682, 0
      %v1714 = vsel %vm420, %v1683, 0
      %v1717 = vsel %vm420, %v1684, 0
      %v1720 = vsel %vm420, %v1685, 0
      %v1723 = vsel %vm420, %v1686, 0
      %v1726 = vsel %vm420, %v1687, 0
      %v1729 = vsel %vm420, %v1688, 0
      %v1732 = vsel %vm420, %v1689, 0
      %v1735 = vsel %vm420, %v1690, 0
      %v1738 = vsel %vm420, %v1691, 0
      %v1741 = vand.u32 %v1611, %v472
      %1743 = vmatprep.subr.bf16.mxu0 0
      %1744 = vmatpush1.bf16.msra.mxu0 %v1741
      %1745 = vmatprep.subr.bf16.mxu0 0
      %1746 = vmatpush1.bf16.msra.mxu0 0
      %1747 = vmatprep.subr.bf16.mxu0 0
      %1748 = vmatpush1.bf16.msra.mxu0 0
      %1749 = vmatprep.subr.bf16.mxu0 0
      %1750 = vmatpush1.bf16.msra.mxu0 0
      %1751 = vmatprep.subr.bf16.mxu0 0
      %1752 = vmatpush1.bf16.msra.mxu0 0
      %1753 = vmatprep.subr.bf16.mxu0 0
      %1754 = vmatpush1.bf16.msra.mxu0 0
      %1755 = vmatprep.subr.bf16.mxu0 0
      %1756 = vmatpush1.bf16.msra.mxu0 0
      %1757 = vmatprep.subr.bf16.mxu0 0
      %1758 = vmatpush1.bf16.msra.mxu0 0
      %1759 = vmatprep.subr.bf16.mxu0 0
      %1760 = vmatpush1.bf16.msra.mxu0 0
      %1761 = vmatprep.subr.bf16.mxu0 0
      %1762 = vmatpush1.bf16.msra.mxu0 0
      %1763 = vmatprep.subr.bf16.mxu0 0
      %1764 = vmatpush1.bf16.msra.mxu0 0
      %1765 = vmatprep.subr.bf16.mxu0 0
      %1766 = vmatpush1.bf16.msra.mxu0 0
      %1767 = vmatprep.subr.bf16.mxu0 0
      %1768 = vmatpush1.bf16.msra.mxu0 0
      %1769 = vmatprep.subr.bf16.mxu0 0
      %1770 = vmatpush1.bf16.msra.mxu0 0
      %1771 = vmatprep.subr.bf16.mxu0 0
      %1772 = vmatpush1.bf16.msra.mxu0 0
      %1773 = vmatprep.subr.bf16.mxu0 0
      %1774 = vmatpush1.bf16.msra.mxu0 0
      %1775 = vmatprep.mubr.bf16.mxu0 0
      %1776 = vmatmul.mubr.bf16.gmra.mrb[0].mxu0 %v1693
      %v1777 = vpop.f32.mrb[0].mxu0
      %v1778 = vadd.f32 0.0, %v1777
      %v1779 = vpop.f32.mrb[0].mxu0
      %v1780 = vpop.f32.mrb[0].mxu0
      %v1781 = vadd.f32 0.0, %v1780
      %v1782 = vpop.f32.mrb[0].mxu0
      %1783 = vmatprep.mubr.bf16.mxu0 0
      %1784 = vmatmul.mubr.bf16.gmra.mrb[0].mxu0 %v1696
      %v1785 = vpop.f32.mrb[0].mxu0
      %v1786 = vadd.f32 0.0, %v1785
      %v1787 = vpop.f32.mrb[0].mxu0
      %v1788 = vpop.f32.mrb[0].mxu0
      %v1789 = vadd.f32 0.0, %v1788
      %v1790 = vpop.f32.mrb[0].mxu0
      %1791 = vmatprep.mubr.bf16.mxu0 0
      %1792 = vmatmul.mubr.bf16.gmra.mrb[0].mxu0 %v1699
      %v1793 = vpop.f32.mrb[0].mxu0
      %v1794 = vadd.f32 0.0, %v1793
      %v1795 = vpop.f32.mrb[0].mxu0
      %v1796 = vpop.f32.mrb[0].mxu0
      %v1797 = vadd.f32 0.0, %v1796
      %v1798 = vpop.f32.mrb[0].mxu0
      %1799 = vmatprep.mubr.bf16.mxu0 0
      %1800 = vmatmul.mubr.bf16.gmra.mrb[0].mxu0 %v1702
      %v1801 = vpop.f32.mrb[0].mxu0
      %v1802 = vadd.f32 0.0, %v1801
      %v1803 = vpop.f32.mrb[0].mxu0
      %v1804 = vpop.f32.mrb[0].mxu0
      %v1805 = vadd.f32 0.0, %v1804
      %v1806 = vpop.f32.mrb[0].mxu0
      %1807 = vmatprep.mubr.bf16.mxu0 0
      %1808 = vmatmul.mubr.bf16.gmra.mrb[0].mxu0 %v1705
      %v1809 = vpop.f32.mrb[0].mxu0
      %v1810 = vadd.f32 0.0, %v1809
      %v1811 = vpop.f32.mrb[0].mxu0
      %v1812 = vpop.f32.mrb[0].mxu0
      %v1813 = vadd.f32 0.0, %v1812
      %v1814 = vpop.f32.mrb[0].mxu0
      %1815 = vmatprep.mubr.bf16.mxu0 0
      %1816 = vmatmul.mubr.bf16.gmra.mrb[0].mxu0 %v1708
      %v1817 = vpop.f32.mrb[0].mxu0
      %v1818 = vadd.f32 0.0, %v1817
      %v1819 = vpop.f32.mrb[0].mxu0
      %v1820 = vpop.f32.mrb[0].mxu0
      %v1821 = vadd.f32 0.0, %v1820
      %v1822 = vpop.f32.mrb[0].mxu0
      %1823 = vmatprep.mubr.bf16.mxu0 0
      %1824 = vmatmul.mubr.bf16.gmra.mrb[0].mxu0 %v1711
      %v1825 = vpop.f32.mrb[0].mxu0
      %v1826 = vadd.f32 0.0, %v1825
      %v1827 = vpop.f32.mrb[0].mxu0
      %v1828 = vpop.f32.mrb[0].mxu0
      %v1829 = vadd.f32 0.0, %v1828
      %v1830 = vpop.f32.mrb[0].mxu0
      %1831 = vmatprep.mubr.bf16.mxu0 0
      %1832 = vmatmul.mubr.bf16.gmra.mrb[0].mxu0 %v1714
      %v1833 = vpop.f32.mrb[0].mxu0
      %v1834 = vadd.f32 0.0, %v1833
      %v1835 = vpop.f32.mrb[0].mxu0
      %v1836 = vpop.f32.mrb[0].mxu0
      %v1837 = vadd.f32 0.0, %v1836
      %v1838 = vpop.f32.mrb[0].mxu0
      %1839 = vmatprep.mubr.bf16.mxu0 0
      %1840 = vmatmul.mubr.bf16.gmra.mrb[0].mxu0 %v1717
      %v1841 = vpop.f32.mrb[0].mxu0
      %v1842 = vadd.f32 0.0, %v1841
      %v1843 = vpop.f32.mrb[0].mxu0
      %v1844 = vpop.f32.mrb[0].mxu0
      %v1845 = vadd.f32 0.0, %v1844
      %v1846 = vpop.f32.mrb[0].mxu0
      %1847 = vmatprep.mubr.bf16.mxu0 0
      %1848 = vmatmul.mubr.bf16.gmra.mrb[0].mxu0 %v1720
      %v1849 = vpop.f32.mrb[0].mxu0
      %v1850 = vadd.f32 0.0, %v1849
      %v1851 = vpop.f32.mrb[0].mxu0
      %v1852 = vpop.f32.mrb[0].mxu0
      %v1853 = vadd.f32 0.0, %v1852
      %v1854 = vpop.f32.mrb[0].mxu0
      %1855 = vmatprep.mubr.bf16.mxu0 0
      %1856 = vmatmul.mubr.bf16.gmra.mrb[0].mxu0 %v1723
      %v1857 = vpop.f32.mrb[0].mxu0
      %v1858 = vadd.f32 0.0, %v1857
      %v1859 = vpop.f32.mrb[0].mxu0
      %v1860 = vpop.f32.mrb[0].mxu0
      %v1861 = vadd.f32 0.0, %v1860
      %v1862 = vpop.f32.mrb[0].mxu0
      %1863 = vmatprep.mubr.bf16.mxu0 0
      %1864 = vmatmul.mubr.bf16.gmra.mrb[0].mxu0 %v1726
      %v1865 = vpop.f32.mrb[0].mxu0
      %v1866 = vadd.f32 0.0, %v1865
      %v1867 = vpop.f32.mrb[0].mxu0
      %v1868 = vpop.f32.mrb[0].mxu0
      %v1869 = vadd.f32 0.0, %v1868
      %v1870 = vpop.f32.mrb[0].mxu0
      %1871 = vmatprep.mubr.bf16.mxu0 0
      %1872 = vmatmul.mubr.bf16.gmra.mrb[0].mxu0 %v1729
      %v1873 = vpop.f32.mrb[0].mxu0
      %v1874 = vadd.f32 0.0, %v1873
      %v1875 = vpop.f32.mrb[0].mxu0
      %v1876 = vpop.f32.mrb[0].mxu0
      %v1877 = vadd.f32 0.0, %v1876
      %v1878 = vpop.f32.mrb[0].mxu0
      %1879 = vmatprep.mubr.bf16.mxu0 0
      %1880 = vmatmul.mubr.bf16.gmra.mrb[0].mxu0 %v1732
      %v1881 = vpop.f32.mrb[0].mxu0
      %v1882 = vadd.f32 0.0, %v1881
      %v1883 = vpop.f32.mrb[0].mxu0
      %v1884 = vpop.f32.mrb[0].mxu0
      %v1885 = vadd.f32 0.0, %v1884
      %v1886 = vpop.f32.mrb[0].mxu0
      %1887 = vmatprep.mubr.bf16.mxu0 0
      %1888 = vmatmul.mubr.bf16.gmra.mrb[0].mxu0 %v1735
      %v1889 = vpop.f32.mrb[0].mxu0
      %v1890 = vadd.f32 0.0, %v1889
      %v1891 = vpop.f32.mrb[0].mxu0
      %v1892 = vpop.f32.mrb[0].mxu0
      %v1893 = vadd.f32 0.0, %v1892
      %v1894 = vpop.f32.mrb[0].mxu0
      %1895 = vmatprep.mubr.bf16.mxu0 0
      %1896 = vmatmul.mubr.bf16.gmra.mrb[0].mxu0 %v1738
      %v1897 = vpop.f32.mrb[0].mxu0
      %v1898 = vadd.f32 0.0, %v1897
      %v1899 = vpop.f32.mrb[0].mxu0
      %v1900 = vpop.f32.mrb[0].mxu0
      %v1901 = vadd.f32 0.0, %v1900
      %v1902 = vpop.f32.mrb[0].mxu0
      %1903 = vdwg.mxu0
      %v1904 = vadd.f32 %v1578, %v1778
      %v1905 = vadd.f32 %v1579, %v1781
      %v1906 = vadd.f32 %v1580, %v1786
      %v1907 = vadd.f32 %v1581, %v1789
      %v1908 = vadd.f32 %v1582, %v1794
      %v1909 = vadd.f32 %v1583, %v1797
      %v1910 = vadd.f32 %v1584, %v1802
      %v1911 = vadd.f32 %v1585, %v1805
      %v1912 = vadd.f32 %v1586, %v1810
      %v1913 = vadd.f32 %v1587, %v1813
      %v1914 = vadd.f32 %v1588, %v1818
      %v1915 = vadd.f32 %v1589, %v1821
      %v1916 = vadd.f32 %v1590, %v1826
      %v1917 = vadd.f32 %v1591, %v1829
      %v1918 = vadd.f32 %v1592, %v1834
      %v1919 = vadd.f32 %v1593, %v1837
      %v1920 = vadd.f32 %v1594, %v1842
      %v1921 = vadd.f32 %v1595, %v1845
      %v1922 = vadd.f32 %v1596, %v1850
      %v1923 = vadd.f32 %v1597, %v1853
      %v1924 = vadd.f32 %v1598, %v1858
      %v1925 = vadd.f32 %v1599, %v1861
      %v1926 = vadd.f32 %v1600, %v1866
      %v1927 = vadd.f32 %v1601, %v1869
      %v1928 = vadd.f32 %v1602, %v1874
      %v1929 = vadd.f32 %v1603, %v1877
      %v1930 = vadd.f32 %v1604, %v1882
      %v1931 = vadd.f32 %v1605, %v1885
      %v1932 = vadd.f32 %v1606, %v1890
      %v1933 = vadd.f32 %v1607, %v1893
      %v1934 = vadd.f32 %v1608, %v1898
      %v1935 = vadd.f32 %v1609, %v1901
      %s1936 = scalar_lea.vmem %s1, 8
      %v1937 = vld [vmem:[%s1936] sm:$0x3]
      %v1970 = vunpack.c.l.b16 %v305
      %v1971 = vunpack.c.l.b16 %v306
      %v1972 = vunpack.c.l.b16 %v307
      %v1973 = vunpack.c.l.b16 %v308
      %v1974 = vunpack.c.l.b16 %v309
      %v1975 = vunpack.c.l.b16 %v310
      %v1976 = vunpack.c.l.b16 %v311
      %v1977 = vunpack.c.l.b16 %v312
      %v1978 = vunpack.c.l.b16 %v313
      %v1979 = vunpack.c.l.b16 %v314
      %v1980 = vunpack.c.l.b16 %v315
      %v1981 = vunpack.c.l.b16 %v316
      %v1982 = vunpack.c.l.b16 %v317
      %v1983 = vunpack.c.l.b16 %v318
      %v1984 = vunpack.c.l.b16 %v319
      %v1985 = vunpack.c.l.b16 %v320
      %v1986 = vunpack.c.l.b16 %v321
      %v1987 = vunpack.c.l.b16 %v322
      %v1988 = vunpack.c.l.b16 %v323
      %v1989 = vunpack.c.l.b16 %v324
      %v1990 = vunpack.c.l.b16 %v325
      %v1991 = vunpack.c.l.b16 %v326
      %v1992 = vunpack.c.l.b16 %v327
      %v1993 = vunpack.c.l.b16 %v328
      %v1994 = vunpack.c.l.b16 %v329
      %v1995 = vunpack.c.l.b16 %v330
      %v1996 = vunpack.c.l.b16 %v331
      %v1997 = vunpack.c.l.b16 %v332
      %v1998 = vunpack.c.l.b16 %v333
      %v1999 = vunpack.c.l.b16 %v334
      %v2000 = vunpack.c.l.b16 %v335
      %v2001 = vunpack.c.l.b16 %v336
      %v2002 = vpack.c.b16 %v1971, %v1970
      %v2003 = vpack.c.b16 %v1973, %v1972
      %v2004 = vpack.c.b16 %v1975, %v1974
      %v2005 = vpack.c.b16 %v1977, %v1976
      %v2006 = vpack.c.b16 %v1979, %v1978
      %v2007 = vpack.c.b16 %v1981, %v1980
      %v2008 = vpack.c.b16 %v1983, %v1982
      %v2009 = vpack.c.b16 %v1985, %v1984
      %v2010 = vpack.c.b16 %v1987, %v1986
      %v2011 = vpack.c.b16 %v1989, %v1988
      %v2012 = vpack.c.b16 %v1991, %v1990
      %v2013 = vpack.c.b16 %v1993, %v1992
      %v2014 = vpack.c.b16 %v1995, %v1994
      %v2015 = vpack.c.b16 %v1997, %v1996
      %v2016 = vpack.c.b16 %v1999, %v1998
      %v2017 = vpack.c.b16 %v2001, %v2000
      %v2019 = vsel %vm420, %v2002, 0
      %v2022 = vsel %vm420, %v2003, 0
      %v2025 = vsel %vm420, %v2004, 0
      %v2028 = vsel %vm420, %v2005, 0
      %v2031 = vsel %vm420, %v2006, 0
      %v2034 = vsel %vm420, %v2007, 0
      %v2037 = vsel %vm420, %v2008, 0
      %v2040 = vsel %vm420, %v2009, 0
      %v2043 = vsel %vm420, %v2010, 0
      %v2046 = vsel %vm420, %v2011, 0
      %v2049 = vsel %vm420, %v2012, 0
      %v2052 = vsel %vm420, %v2013, 0
      %v2055 = vsel %vm420, %v2014, 0
      %v2058 = vsel %vm420, %v2015, 0
      %v2061 = vsel %vm420, %v2016, 0
      %v2064 = vsel %vm420, %v2017, 0
      %v2067 = vand.u32 %v1937, %v472
      %2069 = vmatprep.subr.bf16.mxu0 0
      %2070 = vmatpush1.bf16.msra.mxu0 %v2067
      %2071 = vmatprep.subr.bf16.mxu0 0
      %2072 = vmatpush1.bf16.msra.mxu0 0
      %2073 = vmatprep.subr.bf16.mxu0 0
      %2074 = vmatpush1.bf16.msra.mxu0 0
      %2075 = vmatprep.subr.bf16.mxu0 0
      %2076 = vmatpush1.bf16.msra.mxu0 0
      %2077 = vmatprep.subr.bf16.mxu0 0
      %2078 = vmatpush1.bf16.msra.mxu0 0
      %2079 = vmatprep.subr.bf16.mxu0 0
      %2080 = vmatpush1.bf16.msra.mxu0 0
      %2081 = vmatprep.subr.bf16.mxu0 0
      %2082 = vmatpush1.bf16.msra.mxu0 0
      %2083 = vmatprep.subr.bf16.mxu0 0
      %2084 = vmatpush1.bf16.msra.mxu0 0
      %2085 = vmatprep.subr.bf16.mxu0 0
      %2086 = vmatpush1.bf16.msra.mxu0 0
      %2087 = vmatprep.subr.bf16.mxu0 0
      %2088 = vmatpush1.bf16.msra.mxu0 0
      %2089 = vmatprep.subr.bf16.mxu0 0
      %2090 = vmatpush1.bf16.msra.mxu0 0
      %2091 = vmatprep.subr.bf16.mxu0 0
      %2092 = vmatpush1.bf16.msra.mxu0 0
      %2093 = vmatprep.subr.bf16.mxu0 0
      %2094 = vmatpush1.bf16.msra.mxu0 0
      %2095 = vmatprep.subr.bf16.mxu0 0
      %2096 = vmatpush1.bf16.msra.mxu0 0
      %2097 = vmatprep.subr.bf16.mxu0 0
      %2098 = vmatpush1.bf16.msra.mxu0 0
      %2099 = vmatprep.subr.bf16.mxu0 0
      %2100 = vmatpush1.bf16.msra.mxu0 0
      %2101 = vmatprep.mubr.bf16.mxu0 0
      %2102 = vmatmul.mubr.bf16.gmra.mrb[0].mxu0 %v2019
      %v2103 = vpop.f32.mrb[0].mxu0
      %v2104 = vadd.f32 0.0, %v2103
      %v2105 = vpop.f32.mrb[0].mxu0
      %v2106 = vpop.f32.mrb[0].mxu0
      %v2107 = vadd.f32 0.0, %v2106
      %v2108 = vpop.f32.mrb[0].mxu0
      %2109 = vmatprep.mubr.bf16.mxu0 0
      %2110 = vmatmul.mubr.bf16.gmra.mrb[0].mxu0 %v2022
      %v2111 = vpop.f32.mrb[0].mxu0
      %v2112 = vadd.f32 0.0, %v2111
      %v2113 = vpop.f32.mrb[0].mxu0
      %v2114 = vpop.f32.mrb[0].mxu0
      %v2115 = vadd.f32 0.0, %v2114
      %v2116 = vpop.f32.mrb[0].mxu0
      %2117 = vmatprep.mubr.bf16.mxu0 0
      %2118 = vmatmul.mubr.bf16.gmra.mrb[0].mxu0 %v2025
      %v2119 = vpop.f32.mrb[0].mxu0
      %v2120 = vadd.f32 0.0, %v2119
      %v2121 = vpop.f32.mrb[0].mxu0
      %v2122 = vpop.f32.mrb[0].mxu0
      %v2123 = vadd.f32 0.0, %v2122
      %v2124 = vpop.f32.mrb[0].mxu0
      %2125 = vmatprep.mubr.bf16.mxu0 0
      %2126 = vmatmul.mubr.bf16.gmra.mrb[0].mxu0 %v2028
      %v2127 = vpop.f32.mrb[0].mxu0
      %v2128 = vadd.f32 0.0, %v2127
      %v2129 = vpop.f32.mrb[0].mxu0
      %v2130 = vpop.f32.mrb[0].mxu0
      %v2131 = vadd.f32 0.0, %v2130
      %v2132 = vpop.f32.mrb[0].mxu0
      %2133 = vmatprep.mubr.bf16.mxu0 0
      %2134 = vmatmul.mubr.bf16.gmra.mrb[0].mxu0 %v2031
      %v2135 = vpop.f32.mrb[0].mxu0
      %v2136 = vadd.f32 0.0, %v2135
      %v2137 = vpop.f32.mrb[0].mxu0
      %v2138 = vpop.f32.mrb[0].mxu0
      %v2139 = vadd.f32 0.0, %v2138
      %v2140 = vpop.f32.mrb[0].mxu0
      %2141 = vmatprep.mubr.bf16.mxu0 0
      %2142 = vmatmul.mubr.bf16.gmra.mrb[0].mxu0 %v2034
      %v2143 = vpop.f32.mrb[0].mxu0
      %v2144 = vadd.f32 0.0, %v2143
      %v2145 = vpop.f32.mrb[0].mxu0
      %v2146 = vpop.f32.mrb[0].mxu0
      %v2147 = vadd.f32 0.0, %v2146
      %v2148 = vpop.f32.mrb[0].mxu0
      %2149 = vmatprep.mubr.bf16.mxu0 0
      %2150 = vmatmul.mubr.bf16.gmra.mrb[0].mxu0 %v2037
      %v2151 = vpop.f32.mrb[0].mxu0
      %v2152 = vadd.f32 0.0, %v2151
      %v2153 = vpop.f32.mrb[0].mxu0
      %v2154 = vpop.f32.mrb[0].mxu0
      %v2155 = vadd.f32 0.0, %v2154
      %v2156 = vpop.f32.mrb[0].mxu0
      %2157 = vmatprep.mubr.bf16.mxu0 0
      %2158 = vmatmul.mubr.bf16.gmra.mrb[0].mxu0 %v2040
      %v2159 = vpop.f32.mrb[0].mxu0
      %v2160 = vadd.f32 0.0, %v2159
      %v2161 = vpop.f32.mrb[0].mxu0
      %v2162 = vpop.f32.mrb[0].mxu0
      %v2163 = vadd.f32 0.0, %v2162
      %v2164 = vpop.f32.mrb[0].mxu0
      %2165 = vmatprep.mubr.bf16.mxu0 0
      %2166 = vmatmul.mubr.bf16.gmra.mrb[0].mxu0 %v2043
      %v2167 = vpop.f32.mrb[0].mxu0
      %v2168 = vadd.f32 0.0, %v2167
      %v2169 = vpop.f32.mrb[0].mxu0
      %v2170 = vpop.f32.mrb[0].mxu0
      %v2171 = vadd.f32 0.0, %v2170
      %v2172 = vpop.f32.mrb[0].mxu0
      %2173 = vmatprep.mubr.bf16.mxu0 0
      %2174 = vmatmul.mubr.bf16.gmra.mrb[0].mxu0 %v2046
      %v2175 = vpop.f32.mrb[0].mxu0
      %v2176 = vadd.f32 0.0, %v2175
      %v2177 = vpop.f32.mrb[0].mxu0
      %v2178 = vpop.f32.mrb[0].mxu0
      %v2179 = vadd.f32 0.0, %v2178
      %v2180 = vpop.f32.mrb[0].mxu0
      %2181 = vmatprep.mubr.bf16.mxu0 0
      %2182 = vmatmul.mubr.bf16.gmra.mrb[0].mxu0 %v2049
      %v2183 = vpop.f32.mrb[0].mxu0
      %v2184 = vadd.f32 0.0, %v2183
      %v2185 = vpop.f32.mrb[0].mxu0
      %v2186 = vpop.f32.mrb[0].mxu0
      %v2187 = vadd.f32 0.0, %v2186
      %v2188 = vpop.f32.mrb[0].mxu0
      %2189 = vmatprep.mubr.bf16.mxu0 0
      %2190 = vmatmul.mubr.bf16.gmra.mrb[0].mxu0 %v2052
      %v2191 = vpop.f32.mrb[0].mxu0
      %v2192 = vadd.f32 0.0, %v2191
      %v2193 = vpop.f32.mrb[0].mxu0
      %v2194 = vpop.f32.mrb[0].mxu0
      %v2195 = vadd.f32 0.0, %v2194
      %v2196 = vpop.f32.mrb[0].mxu0
      %2197 = vmatprep.mubr.bf16.mxu0 0
      %2198 = vmatmul.mubr.bf16.gmra.mrb[0].mxu0 %v2055
      %v2199 = vpop.f32.mrb[0].mxu0
      %v2200 = vadd.f32 0.0, %v2199
      %v2201 = vpop.f32.mrb[0].mxu0
      %v2202 = vpop.f32.mrb[0].mxu0
      %v2203 = vadd.f32 0.0, %v2202
      %v2204 = vpop.f32.mrb[0].mxu0
      %2205 = vmatprep.mubr.bf16.mxu0 0
      %2206 = vmatmul.mubr.bf16.gmra.mrb[0].mxu0 %v2058
      %v2207 = vpop.f32.mrb[0].mxu0
      %v2208 = vadd.f32 0.0, %v2207
      %v2209 = vpop.f32.mrb[0].mxu0
      %v2210 = vpop.f32.mrb[0].mxu0
      %v2211 = vadd.f32 0.0, %v2210
      %v2212 = vpop.f32.mrb[0].mxu0
      %2213 = vmatprep.mubr.bf16.mxu0 0
      %2214 = vmatmul.mubr.bf16.gmra.mrb[0].mxu0 %v2061
      %v2215 = vpop.f32.mrb[0].mxu0
      %v2216 = vadd.f32 0.0, %v2215
      %v2217 = vpop.f32.mrb[0].mxu0
      %v2218 = vpop.f32.mrb[0].mxu0
      %v2219 = vadd.f32 0.0, %v2218
      %v2220 = vpop.f32.mrb[0].mxu0
      %2221 = vmatprep.mubr.bf16.mxu0 0
      %2222 = vmatmul.mubr.bf16.gmra.mrb[0].mxu0 %v2064
      %v2223 = vpop.f32.mrb[0].mxu0
      %v2224 = vadd.f32 0.0, %v2223
      %v2225 = vpop.f32.mrb[0].mxu0
      %v2226 = vpop.f32.mrb[0].mxu0
      %v2227 = vadd.f32 0.0, %v2226
      %v2228 = vpop.f32.mrb[0].mxu0
      %2229 = vdwg.mxu0
      %v2230 = vadd.f32 %v1904, %v2104
      %v2231 = vadd.f32 %v1905, %v2107
      %v2232 = vadd.f32 %v1906, %v2112
      %v2233 = vadd.f32 %v1907, %v2115
      %v2234 = vadd.f32 %v1908, %v2120
      %v2235 = vadd.f32 %v1909, %v2123
      %v2236 = vadd.f32 %v1910, %v2128
      %v2237 = vadd.f32 %v1911, %v2131
      %v2238 = vadd.f32 %v1912, %v2136
      %v2239 = vadd.f32 %v1913, %v2139
      %v2240 = vadd.f32 %v1914, %v2144
      %v2241 = vadd.f32 %v1915, %v2147
      %v2242 = vadd.f32 %v1916, %v2152
      %v2243 = vadd.f32 %v1917, %v2155
      %v2244 = vadd.f32 %v1918, %v2160
      %v2245 = vadd.f32 %v1919, %v2163
      %v2246 = vadd.f32 %v1920, %v2168
      %v2247 = vadd.f32 %v1921, %v2171
      %v2248 = vadd.f32 %v1922, %v2176
      %v2249 = vadd.f32 %v1923, %v2179
      %v2250 = vadd.f32 %v1924, %v2184
      %v2251 = vadd.f32 %v1925, %v2187
      %v2252 = vadd.f32 %v1926, %v2192
      %v2253 = vadd.f32 %v1927, %v2195
      %v2254 = vadd.f32 %v1928, %v2200
      %v2255 = vadd.f32 %v1929, %v2203
      %v2256 = vadd.f32 %v1930, %v2208
      %v2257 = vadd.f32 %v1931, %v2211
      %v2258 = vadd.f32 %v1932, %v2216
      %v2259 = vadd.f32 %v1933, %v2219
      %v2260 = vadd.f32 %v1934, %v2224
      %v2261 = vadd.f32 %v1935, %v2227
      %v2263 = vshrl.u32 %v257, 16
      %v2265 = vrot.slane %v2263, 4
      %v2266 = vshll.u32 %v257, 16
      %v2268 = vrot.slane %v2266, 5
      %v2269 = vor.u32 %v2265, %v2268
      %v2270 = vrot.slane %v2269, 4
      %v2272 = vshll.u32 %v258, 16
      %v2274 = vrot.slane %v2272, 5
      %v2275 = vsel %vm931, %v2270, %v2274
      %v2276 = vshrl.u32 %v258, 16
      %v2278 = vrot.slane %v2276, 4
      %v2279 = vor.u32 %v2278, %v2274
      %v2280 = vrot.slane %v2279, 4
      %v2282 = vshll.u32 %v259, 16
      %v2284 = vrot.slane %v2282, 5
      %v2285 = vsel %vm931, %v2280, %v2284
      %v2287 = vshrl.u32 %v260, 16
      %v2289 = vrot.slane %v2287, 4
      %v2290 = vshll.u32 %v260, 16
      %v2292 = vrot.slane %v2290, 5
      %v2293 = vor.u32 %v2289, %v2292
      %v2294 = vrot.slane %v2293, 4
      %v2296 = vshll.u32 %v261, 16
      %v2298 = vrot.slane %v2296, 5
      %v2299 = vsel %vm931, %v2294, %v2298
      %v2300 = vshrl.u32 %v261, 16
      %v2302 = vrot.slane %v2300, 4
      %v2303 = vor.u32 %v2302, %v2298
      %v2304 = vrot.slane %v2303, 4
      %v2306 = vshll.u32 %v262, 16
      %v2308 = vrot.slane %v2306, 5
      %v2309 = vsel %vm931, %v2304, %v2308
      %v2311 = vshrl.u32 %v263, 16
      %v2313 = vrot.slane %v2311, 4
      %v2314 = vshll.u32 %v263, 16
      %v2316 = vrot.slane %v2314, 5
      %v2317 = vor.u32 %v2313, %v2316
      %v2318 = vrot.slane %v2317, 4
      %v2320 = vshll.u32 %v264, 16
      %v2322 = vrot.slane %v2320, 5
      %v2323 = vsel %vm931, %v2318, %v2322
      %v2324 = vshrl.u32 %v264, 16
      %v2326 = vrot.slane %v2324, 4
      %v2327 = vor.u32 %v2326, %v2322
      %v2328 = vrot.slane %v2327, 4
      %v2330 = vshll.u32 %v265, 16
      %v2332 = vrot.slane %v2330, 5
      %v2333 = vsel %vm931, %v2328, %v2332
      %v2335 = vshrl.u32 %v266, 16
      %v2337 = vrot.slane %v2335, 4
      %v2338 = vshll.u32 %v266, 16
      %v2340 = vrot.slane %v2338, 5
      %v2341 = vor.u32 %v2337, %v2340
      %v2342 = vrot.slane %v2341, 4
      %v2344 = vshll.u32 %v267, 16
      %v2346 = vrot.slane %v2344, 5
      %v2347 = vsel %vm931, %v2342, %v2346
      %v2348 = vshrl.u32 %v267, 16
      %v2350 = vrot.slane %v2348, 4
      %v2351 = vor.u32 %v2350, %v2346
      %v2352 = vrot.slane %v2351, 4
      %v2354 = vshll.u32 %v268, 16
      %v2356 = vrot.slane %v2354, 5
      %v2357 = vsel %vm931, %v2352, %v2356
      %v2359 = vshrl.u32 %v269, 16
      %v2361 = vrot.slane %v2359, 4
      %v2362 = vshll.u32 %v269, 16
      %v2364 = vrot.slane %v2362, 5
      %v2365 = vor.u32 %v2361, %v2364
      %v2366 = vrot.slane %v2365, 4
      %v2368 = vshll.u32 %v270, 16
      %v2370 = vrot.slane %v2368, 5
      %v2371 = vsel %vm931, %v2366, %v2370
      %v2372 = vshrl.u32 %v270, 16
      %v2374 = vrot.slane %v2372, 4
      %v2375 = vor.u32 %v2374, %v2370
      %v2376 = vrot.slane %v2375, 4
      %v2378 = vshll.u32 %v271, 16
      %v2380 = vrot.slane %v2378, 5
      %v2381 = vsel %vm931, %v2376, %v2380
      %v2383 = vshrl.u32 %v272, 16
      %v2385 = vrot.slane %v2383, 4
      %v2386 = vshll.u32 %v272, 16
      %v2388 = vrot.slane %v2386, 5
      %v2389 = vor.u32 %v2385, %v2388
      %v2390 = vrot.slane %v2389, 4
      %v2392 = vshll.u32 %v273, 16
      %v2394 = vrot.slane %v2392, 5
      %v2395 = vsel %vm931, %v2390, %v2394
      %v2396 = vshrl.u32 %v273, 16
      %v2398 = vrot.slane %v2396, 4
      %v2399 = vor.u32 %v2398, %v2394
      %v2400 = vrot.slane %v2399, 4
      %v2402 = vshll.u32 %v274, 16
      %v2404 = vrot.slane %v2402, 5
      %v2405 = vsel %vm931, %v2400, %v2404
      %v2407 = vshrl.u32 %v275, 16
      %v2409 = vrot.slane %v2407, 4
      %v2410 = vshll.u32 %v275, 16
      %v2412 = vrot.slane %v2410, 5
      %v2413 = vor.u32 %v2409, %v2412
      %v2414 = vrot.slane %v2413, 4
      %v2416 = vshll.u32 %v276, 16
      %v2418 = vrot.slane %v2416, 5
      %v2419 = vsel %vm931, %v2414, %v2418
      %v2420 = vshrl.u32 %v276, 16
      %v2422 = vrot.slane %v2420, 4
      %v2423 = vor.u32 %v2422, %v2418
      %v2424 = vrot.slane %v2423, 4
      %v2426 = vshll.u32 %v277, 16
      %v2428 = vrot.slane %v2426, 5
      %v2429 = vsel %vm931, %v2424, %v2428
      %v2431 = vshrl.u32 %v278, 16
      %v2433 = vrot.slane %v2431, 4
      %v2434 = vshll.u32 %v278, 16
      %v2436 = vrot.slane %v2434, 5
      %v2437 = vor.u32 %v2433, %v2436
      %v2438 = vrot.slane %v2437, 4
      %v2440 = vshll.u32 %v279, 16
      %v2442 = vrot.slane %v2440, 5
      %v2443 = vsel %vm931, %v2438, %v2442
      %v2444 = vshrl.u32 %v279, 16
      %v2446 = vrot.slane %v2444, 4
      %v2447 = vor.u32 %v2446, %v2442
      %v2448 = vrot.slane %v2447, 4
      %v2450 = vshll.u32 %v280, 16
      %v2452 = vrot.slane %v2450, 5
      %v2453 = vsel %vm931, %v2448, %v2452
      %v2455 = vshrl.u32 %v281, 16
      %v2457 = vrot.slane %v2455, 4
      %v2458 = vshll.u32 %v281, 16
      %v2460 = vrot.slane %v2458, 5
      %v2461 = vor.u32 %v2457, %v2460
      %v2462 = vrot.slane %v2461, 4
      %v2464 = vshll.u32 %v282, 16
      %v2466 = vrot.slane %v2464, 5
      %v2467 = vsel %vm931, %v2462, %v2466
      %v2468 = vshrl.u32 %v282, 16
      %v2470 = vrot.slane %v2468, 4
      %v2471 = vor.u32 %v2470, %v2466
      %v2472 = vrot.slane %v2471, 4
      %v2474 = vshll.u32 %v283, 16
      %v2476 = vrot.slane %v2474, 5
      %v2477 = vsel %vm931, %v2472, %v2476
      %v2479 = vshrl.u32 %v284, 16
      %v2481 = vrot.slane %v2479, 4
      %v2482 = vshll.u32 %v284, 16
      %v2484 = vrot.slane %v2482, 5
      %v2485 = vor.u32 %v2481, %v2484
      %v2486 = vrot.slane %v2485, 4
      %v2488 = vshll.u32 %v285, 16
      %v2490 = vrot.slane %v2488, 5
      %v2491 = vsel %vm931, %v2486, %v2490
      %v2492 = vshrl.u32 %v285, 16
      %v2494 = vrot.slane %v2492, 4
      %v2495 = vor.u32 %v2494, %v2490
      %v2496 = vrot.slane %v2495, 4
      %v2498 = vshll.u32 %v286, 16
      %v2500 = vrot.slane %v2498, 5
      %v2501 = vsel %vm931, %v2496, %v2500
      %v2503 = vshrl.u32 %v287, 16
      %v2505 = vrot.slane %v2503, 4
      %v2506 = vshll.u32 %v287, 16
      %v2508 = vrot.slane %v2506, 5
      %v2509 = vor.u32 %v2505, %v2508
      %v2510 = vrot.slane %v2509, 4
      %v2512 = vshll.u32 %v288, 16
      %v2514 = vrot.slane %v2512, 5
      %v2515 = vsel %vm931, %v2510, %v2514
      %v2516 = vshrl.u32 %v288, 16
      %v2518 = vrot.slane %v2516, 4
      %v2519 = vor.u32 %v2518, %v2514
      %v2520 = vrot.slane %v2519, 4
      %v2522 = vshll.u32 %v289, 16
      %v2524 = vrot.slane %v2522, 5
      %v2525 = vsel %vm931, %v2520, %v2524
      %v2527 = vshrl.u32 %v290, 16
      %v2529 = vrot.slane %v2527, 4
      %v2530 = vshll.u32 %v290, 16
      %v2532 = vrot.slane %v2530, 5
      %v2533 = vor.u32 %v2529, %v2532
      %v2534 = vrot.slane %v2533, 4
      %v2536 = vshll.u32 %v291, 16
      %v2538 = vrot.slane %v2536, 5
      %v2539 = vsel %vm931, %v2534, %v2538
      %v2540 = vshrl.u32 %v291, 16
      %v2542 = vrot.slane %v2540, 4
      %v2543 = vor.u32 %v2542, %v2538
      %v2544 = vrot.slane %v2543, 4
      %v2546 = vshll.u32 %v292, 16
      %v2548 = vrot.slane %v2546, 5
      %v2549 = vsel %vm931, %v2544, %v2548
      %v2551 = vshrl.u32 %v293, 16
      %v2553 = vrot.slane %v2551, 4
      %v2554 = vshll.u32 %v293, 16
      %v2556 = vrot.slane %v2554, 5
      %v2557 = vor.u32 %v2553, %v2556
      %v2558 = vrot.slane %v2557, 4
      %v2560 = vshll.u32 %v294, 16
      %v2562 = vrot.slane %v2560, 5
      %v2563 = vsel %vm931, %v2558, %v2562
      %v2564 = vshrl.u32 %v294, 16
      %v2566 = vrot.slane %v2564, 4
      %v2567 = vor.u32 %v2566, %v2562
      %v2568 = vrot.slane %v2567, 4
      %v2570 = vshll.u32 %v295, 16
      %v2572 = vrot.slane %v2570, 5
      %v2573 = vsel %vm931, %v2568, %v2572
      %v2575 = vshrl.u32 %v296, 16
      %v2577 = vrot.slane %v2575, 4
      %v2578 = vshll.u32 %v296, 16
      %v2580 = vrot.slane %v2578, 5
      %v2581 = vor.u32 %v2577, %v2580
      %v2582 = vrot.slane %v2581, 4
      %v2584 = vshll.u32 %v297, 16
      %v2586 = vrot.slane %v2584, 5
      %v2587 = vsel %vm931, %v2582, %v2586
      %v2588 = vshrl.u32 %v297, 16
      %v2590 = vrot.slane %v2588, 4
      %v2591 = vor.u32 %v2590, %v2586
      %v2592 = vrot.slane %v2591, 4
      %v2594 = vshll.u32 %v298, 16
      %v2596 = vrot.slane %v2594, 5
      %v2597 = vsel %vm931, %v2592, %v2596
      %v2599 = vshrl.u32 %v299, 16
      %v2601 = vrot.slane %v2599, 4
      %v2602 = vshll.u32 %v299, 16
      %v2604 = vrot.slane %v2602, 5
      %v2605 = vor.u32 %v2601, %v2604
      %v2606 = vrot.slane %v2605, 4
      %v2608 = vshll.u32 %v300, 16
      %v2610 = vrot.slane %v2608, 5
      %v2611 = vsel %vm931, %v2606, %v2610
      %v2612 = vshrl.u32 %v300, 16
      %v2614 = vrot.slane %v2612, 4
      %v2615 = vor.u32 %v2614, %v2610
      %v2616 = vrot.slane %v2615, 4
      %v2618 = vshll.u32 %v301, 16
      %v2620 = vrot.slane %v2618, 5
      %v2621 = vsel %vm931, %v2616, %v2620
      %v2623 = vshrl.u32 %v302, 16
      %v2625 = vrot.slane %v2623, 4
      %v2626 = vshll.u32 %v302, 16
      %v2628 = vrot.slane %v2626, 5
      %v2629 = vor.u32 %v2625, %v2628
      %v2630 = vrot.slane %v2629, 4
      %v2632 = vshll.u32 %v303, 16
      %v2634 = vrot.slane %v2632, 5
      %v2635 = vsel %vm931, %v2630, %v2634
      %v2636 = vshrl.u32 %v303, 16
      %v2638 = vrot.slane %v2636, 4
      %v2639 = vor.u32 %v2638, %v2634
      %v2640 = vrot.slane %v2639, 4
      %v2642 = vshll.u32 %v304, 16
      %v2644 = vrot.slane %v2642, 5
      %v2645 = vsel %vm931, %v2640, %v2644
      %s2646 = scalar_lea.vmem %s1, 10
      %v2647 = vld [vmem:[%s2646] sm:$0x3]
      %v2648 = vunpack.c.l.b16 %v2275
      %v2649 = vunpack.c.l.b16 %v2285
      %v2650 = vunpack.c.l.b16 %v2299
      %v2651 = vunpack.c.l.b16 %v2309
      %v2652 = vunpack.c.l.b16 %v2323
      %v2653 = vunpack.c.l.b16 %v2333
      %v2654 = vunpack.c.l.b16 %v2347
      %v2655 = vunpack.c.l.b16 %v2357
      %v2656 = vunpack.c.l.b16 %v2371
      %v2657 = vunpack.c.l.b16 %v2381
      %v2658 = vunpack.c.l.b16 %v2395
      %v2659 = vunpack.c.l.b16 %v2405
      %v2660 = vunpack.c.l.b16 %v2419
      %v2661 = vunpack.c.l.b16 %v2429
      %v2662 = vunpack.c.l.b16 %v2443
      %v2663 = vunpack.c.l.b16 %v2453
      %v2664 = vunpack.c.l.b16 %v2467
      %v2665 = vunpack.c.l.b16 %v2477
      %v2666 = vunpack.c.l.b16 %v2491
      %v2667 = vunpack.c.l.b16 %v2501
      %v2668 = vunpack.c.l.b16 %v2515
      %v2669 = vunpack.c.l.b16 %v2525
      %v2670 = vunpack.c.l.b16 %v2539
      %v2671 = vunpack.c.l.b16 %v2549
      %v2672 = vunpack.c.l.b16 %v2563
      %v2673 = vunpack.c.l.b16 %v2573
      %v2674 = vunpack.c.l.b16 %v2587
      %v2675 = vunpack.c.l.b16 %v2597
      %v2676 = vunpack.c.l.b16 %v2611
      %v2677 = vunpack.c.l.b16 %v2621
      %v2678 = vunpack.c.l.b16 %v2635
      %v2679 = vunpack.c.l.b16 %v2645
      %v2680 = vpack.c.b16 %v2649, %v2648
      %v2681 = vpack.c.b16 %v2651, %v2650
      %v2682 = vpack.c.b16 %v2653, %v2652
      %v2683 = vpack.c.b16 %v2655, %v2654
      %v2684 = vpack.c.b16 %v2657, %v2656
      %v2685 = vpack.c.b16 %v2659, %v2658
      %v2686 = vpack.c.b16 %v2661, %v2660
      %v2687 = vpack.c.b16 %v2663, %v2662
      %v2688 = vpack.c.b16 %v2665, %v2664
      %v2689 = vpack.c.b16 %v2667, %v2666
      %v2690 = vpack.c.b16 %v2669, %v2668
      %v2691 = vpack.c.b16 %v2671, %v2670
      %v2692 = vpack.c.b16 %v2673, %v2672
      %v2693 = vpack.c.b16 %v2675, %v2674
      %v2694 = vpack.c.b16 %v2677, %v2676
      %v2695 = vpack.c.b16 %v2679, %v2678
      %v2697 = vsel %vm420, %v2680, 0
      %v2700 = vsel %vm420, %v2681, 0
      %v2703 = vsel %vm420, %v2682, 0
      %v2706 = vsel %vm420, %v2683, 0
      %v2709 = vsel %vm420, %v2684, 0
      %v2712 = vsel %vm420, %v2685, 0
      %v2715 = vsel %vm420, %v2686, 0
      %v2718 = vsel %vm420, %v2687, 0
      %v2721 = vsel %vm420, %v2688, 0
      %v2724 = vsel %vm420, %v2689, 0
      %v2727 = vsel %vm420, %v2690, 0
      %v2730 = vsel %vm420, %v2691, 0
      %v2733 = vsel %vm420, %v2692, 0
      %v2736 = vsel %vm420, %v2693, 0
      %v2739 = vsel %vm420, %v2694, 0
      %v2742 = vsel %vm420, %v2695, 0
      %v2745 = vand.u32 %v2647, %v472
      %2747 = vmatprep.subr.bf16.mxu0 0
      %2748 = vmatpush1.bf16.msra.mxu0 %v2745
      %2749 = vmatprep.subr.bf16.mxu0 0
      %2750 = vmatpush1.bf16.msra.mxu0 0
      %2751 = vmatprep.subr.bf16.mxu0 0
      %2752 = vmatpush1.bf16.msra.mxu0 0
      %2753 = vmatprep.subr.bf16.mxu0 0
      %2754 = vmatpush1.bf16.msra.mxu0 0
      %2755 = vmatprep.subr.bf16.mxu0 0
      %2756 = vmatpush1.bf16.msra.mxu0 0
      %2757 = vmatprep.subr.bf16.mxu0 0
      %2758 = vmatpush1.bf16.msra.mxu0 0
      %2759 = vmatprep.subr.bf16.mxu0 0
      %2760 = vmatpush1.bf16.msra.mxu0 0
      %2761 = vmatprep.subr.bf16.mxu0 0
      %2762 = vmatpush1.bf16.msra.mxu0 0
      %2763 = vmatprep.subr.bf16.mxu0 0
      %2764 = vmatpush1.bf16.msra.mxu0 0
      %2765 = vmatprep.subr.bf16.mxu0 0
      %2766 = vmatpush1.bf16.msra.mxu0 0
      %2767 = vmatprep.subr.bf16.mxu0 0
      %2768 = vmatpush1.bf16.msra.mxu0 0
      %2769 = vmatprep.subr.bf16.mxu0 0
      %2770 = vmatpush1.bf16.msra.mxu0 0
      %2771 = vmatprep.subr.bf16.mxu0 0
      %2772 = vmatpush1.bf16.msra.mxu0 0
      %2773 = vmatprep.subr.bf16.mxu0 0
      %2774 = vmatpush1.bf16.msra.mxu0 0
      %2775 = vmatprep.subr.bf16.mxu0 0
      %2776 = vmatpush1.bf16.msra.mxu0 0
      %2777 = vmatprep.subr.bf16.mxu0 0
      %2778 = vmatpush1.bf16.msra.mxu0 0
      %2779 = vmatprep.mubr.bf16.mxu0 0
      %2780 = vmatmul.mubr.bf16.gmra.mrb[0].mxu0 %v2697
      %v2781 = vpop.f32.mrb[0].mxu0
      %v2782 = vadd.f32 0.0, %v2781
      %v2783 = vpop.f32.mrb[0].mxu0
      %v2784 = vpop.f32.mrb[0].mxu0
      %v2785 = vadd.f32 0.0, %v2784
      %v2786 = vpop.f32.mrb[0].mxu0
      %2787 = vmatprep.mubr.bf16.mxu0 0
      %2788 = vmatmul.mubr.bf16.gmra.mrb[0].mxu0 %v2700
      %v2789 = vpop.f32.mrb[0].mxu0
      %v2790 = vadd.f32 0.0, %v2789
      %v2791 = vpop.f32.mrb[0].mxu0
      %v2792 = vpop.f32.mrb[0].mxu0
      %v2793 = vadd.f32 0.0, %v2792
      %v2794 = vpop.f32.mrb[0].mxu0
      %2795 = vmatprep.mubr.bf16.mxu0 0
      %2796 = vmatmul.mubr.bf16.gmra.mrb[0].mxu0 %v2703
      %v2797 = vpop.f32.mrb[0].mxu0
      %v2798 = vadd.f32 0.0, %v2797
      %v2799 = vpop.f32.mrb[0].mxu0
      %v2800 = vpop.f32.mrb[0].mxu0
      %v2801 = vadd.f32 0.0, %v2800
      %v2802 = vpop.f32.mrb[0].mxu0
      %2803 = vmatprep.mubr.bf16.mxu0 0
      %2804 = vmatmul.mubr.bf16.gmra.mrb[0].mxu0 %v2706
      %v2805 = vpop.f32.mrb[0].mxu0
      %v2806 = vadd.f32 0.0, %v2805
      %v2807 = vpop.f32.mrb[0].mxu0
      %v2808 = vpop.f32.mrb[0].mxu0
      %v2809 = vadd.f32 0.0, %v2808
      %v2810 = vpop.f32.mrb[0].mxu0
      %2811 = vmatprep.mubr.bf16.mxu0 0
      %2812 = vmatmul.mubr.bf16.gmra.mrb[0].mxu0 %v2709
      %v2813 = vpop.f32.mrb[0].mxu0
      %v2814 = vadd.f32 0.0, %v2813
      %v2815 = vpop.f32.mrb[0].mxu0
      %v2816 = vpop.f32.mrb[0].mxu0
      %v2817 = vadd.f32 0.0, %v2816
      %v2818 = vpop.f32.mrb[0].mxu0
      %2819 = vmatprep.mubr.bf16.mxu0 0
      %2820 = vmatmul.mubr.bf16.gmra.mrb[0].mxu0 %v2712
      %v2821 = vpop.f32.mrb[0].mxu0
      %v2822 = vadd.f32 0.0, %v2821
      %v2823 = vpop.f32.mrb[0].mxu0
      %v2824 = vpop.f32.mrb[0].mxu0
      %v2825 = vadd.f32 0.0, %v2824
      %v2826 = vpop.f32.mrb[0].mxu0
      %2827 = vmatprep.mubr.bf16.mxu0 0
      %2828 = vmatmul.mubr.bf16.gmra.mrb[0].mxu0 %v2715
      %v2829 = vpop.f32.mrb[0].mxu0
      %v2830 = vadd.f32 0.0, %v2829
      %v2831 = vpop.f32.mrb[0].mxu0
      %v2832 = vpop.f32.mrb[0].mxu0
      %v2833 = vadd.f32 0.0, %v2832
      %v2834 = vpop.f32.mrb[0].mxu0
      %2835 = vmatprep.mubr.bf16.mxu0 0
      %2836 = vmatmul.mubr.bf16.gmra.mrb[0].mxu0 %v2718
      %v2837 = vpop.f32.mrb[0].mxu0
      %v2838 = vadd.f32 0.0, %v2837
      %v2839 = vpop.f32.mrb[0].mxu0
      %v2840 = vpop.f32.mrb[0].mxu0
      %v2841 = vadd.f32 0.0, %v2840
      %v2842 = vpop.f32.mrb[0].mxu0
      %2843 = vmatprep.mubr.bf16.mxu0 0
      %2844 = vmatmul.mubr.bf16.gmra.mrb[0].mxu0 %v2721
      %v2845 = vpop.f32.mrb[0].mxu0
      %v2846 = vadd.f32 0.0, %v2845
      %v2847 = vpop.f32.mrb[0].mxu0
      %v2848 = vpop.f32.mrb[0].mxu0
      %v2849 = vadd.f32 0.0, %v2848
      %v2850 = vpop.f32.mrb[0].mxu0
      %2851 = vmatprep.mubr.bf16.mxu0 0
      %2852 = vmatmul.mubr.bf16.gmra.mrb[0].mxu0 %v2724
      %v2853 = vpop.f32.mrb[0].mxu0
      %v2854 = vadd.f32 0.0, %v2853
      %v2855 = vpop.f32.mrb[0].mxu0
      %v2856 = vpop.f32.mrb[0].mxu0
      %v2857 = vadd.f32 0.0, %v2856
      %v2858 = vpop.f32.mrb[0].mxu0
      %2859 = vmatprep.mubr.bf16.mxu0 0
      %2860 = vmatmul.mubr.bf16.gmra.mrb[0].mxu0 %v2727
      %v2861 = vpop.f32.mrb[0].mxu0
      %v2862 = vadd.f32 0.0, %v2861
      %v2863 = vpop.f32.mrb[0].mxu0
      %v2864 = vpop.f32.mrb[0].mxu0
      %v2865 = vadd.f32 0.0, %v2864
      %v2866 = vpop.f32.mrb[0].mxu0
      %2867 = vmatprep.mubr.bf16.mxu0 0
      %2868 = vmatmul.mubr.bf16.gmra.mrb[0].mxu0 %v2730
      %v2869 = vpop.f32.mrb[0].mxu0
      %v2870 = vadd.f32 0.0, %v2869
      %v2871 = vpop.f32.mrb[0].mxu0
      %v2872 = vpop.f32.mrb[0].mxu0
      %v2873 = vadd.f32 0.0, %v2872
      %v2874 = vpop.f32.mrb[0].mxu0
      %2875 = vmatprep.mubr.bf16.mxu0 0
      %2876 = vmatmul.mubr.bf16.gmra.mrb[0].mxu0 %v2733
      %v2877 = vpop.f32.mrb[0].mxu0
      %v2878 = vadd.f32 0.0, %v2877
      %v2879 = vpop.f32.mrb[0].mxu0
      %v2880 = vpop.f32.mrb[0].mxu0
      %v2881 = vadd.f32 0.0, %v2880
      %v2882 = vpop.f32.mrb[0].mxu0
      %2883 = vmatprep.mubr.bf16.mxu0 0
      %2884 = vmatmul.mubr.bf16.gmra.mrb[0].mxu0 %v2736
      %v2885 = vpop.f32.mrb[0].mxu0
      %v2886 = vadd.f32 0.0, %v2885
      %v2887 = vpop.f32.mrb[0].mxu0
      %v2888 = vpop.f32.mrb[0].mxu0
      %v2889 = vadd.f32 0.0, %v2888
      %v2890 = vpop.f32.mrb[0].mxu0
      %2891 = vmatprep.mubr.bf16.mxu0 0
      %2892 = vmatmul.mubr.bf16.gmra.mrb[0].mxu0 %v2739
      %v2893 = vpop.f32.mrb[0].mxu0
      %v2894 = vadd.f32 0.0, %v2893
      %v2895 = vpop.f32.mrb[0].mxu0
      %v2896 = vpop.f32.mrb[0].mxu0
      %v2897 = vadd.f32 0.0, %v2896
      %v2898 = vpop.f32.mrb[0].mxu0
      %2899 = vmatprep.mubr.bf16.mxu0 0
      %2900 = vmatmul.mubr.bf16.gmra.mrb[0].mxu0 %v2742
      %v2901 = vpop.f32.mrb[0].mxu0
      %v2902 = vadd.f32 0.0, %v2901
      %v2903 = vpop.f32.mrb[0].mxu0
      %v2904 = vpop.f32.mrb[0].mxu0
      %v2905 = vadd.f32 0.0, %v2904
      %v2906 = vpop.f32.mrb[0].mxu0
      %2907 = vdwg.mxu0
      %v2908 = vadd.f32 %v2230, %v2782
      %v2909 = vadd.f32 %v2231, %v2785
      %v2910 = vadd.f32 %v2232, %v2790
      %v2911 = vadd.f32 %v2233, %v2793
      %v2912 = vadd.f32 %v2234, %v2798
      %v2913 = vadd.f32 %v2235, %v2801
      %v2914 = vadd.f32 %v2236, %v2806
      %v2915 = vadd.f32 %v2237, %v2809
      %v2916 = vadd.f32 %v2238, %v2814
      %v2917 = vadd.f32 %v2239, %v2817
      %v2918 = vadd.f32 %v2240, %v2822
      %v2919 = vadd.f32 %v2241, %v2825
      %v2920 = vadd.f32 %v2242, %v2830
      %v2921 = vadd.f32 %v2243, %v2833
      %v2922 = vadd.f32 %v2244, %v2838
      %v2923 = vadd.f32 %v2245, %v2841
      %v2924 = vadd.f32 %v2246, %v2846
      %v2925 = vadd.f32 %v2247, %v2849
      %v2926 = vadd.f32 %v2248, %v2854
      %v2927 = vadd.f32 %v2249, %v2857
      %v2928 = vadd.f32 %v2250, %v2862
      %v2929 = vadd.f32 %v2251, %v2865
      %v2930 = vadd.f32 %v2252, %v2870
      %v2931 = vadd.f32 %v2253, %v2873
      %v2932 = vadd.f32 %v2254, %v2878
      %v2933 = vadd.f32 %v2255, %v2881
      %v2934 = vadd.f32 %v2256, %v2886
      %v2935 = vadd.f32 %v2257, %v2889
      %v2936 = vadd.f32 %v2258, %v2894
      %v2937 = vadd.f32 %v2259, %v2897
      %v2938 = vadd.f32 %v2260, %v2902
      %v2939 = vadd.f32 %v2261, %v2905
      %s2940 = scalar_lea.vmem %s1, 12
      %v2941 = vld [vmem:[%s2940] sm:$0x3]
      %v2944 = vunpack.c.l.b16 %v220
      %v2945 = vunpack.c.l.b16 %v221
      %v2946 = vpack.c.b16 %v2945, %v2944
      %v2948 = vsel %vm420, %v2946, 0
      %v2951 = vand.u32 %v2941, %v472
      %2953 = vmatprep.subr.bf16.mxu0 0
      %2954 = vmatpush1.bf16.msra.mxu0 %v2951
      %2955 = vmatprep.subr.bf16.mxu0 0
      %2956 = vmatpush1.bf16.msra.mxu0 0
      %2957 = vmatprep.subr.bf16.mxu0 0
      %2958 = vmatpush1.bf16.msra.mxu0 0
      %2959 = vmatprep.subr.bf16.mxu0 0
      %2960 = vmatpush1.bf16.msra.mxu0 0
      %2961 = vmatprep.subr.bf16.mxu0 0
      %2962 = vmatpush1.bf16.msra.mxu0 0
      %2963 = vmatprep.subr.bf16.mxu0 0
      %2964 = vmatpush1.bf16.msra.mxu0 0
      %2965 = vmatprep.subr.bf16.mxu0 0
      %2966 = vmatpush1.bf16.msra.mxu0 0
      %2967 = vmatprep.subr.bf16.mxu0 0
      %2968 = vmatpush1.bf16.msra.mxu0 0
      %2969 = vmatprep.subr.bf16.mxu0 0
      %2970 = vmatpush1.bf16.msra.mxu0 0
      %2971 = vmatprep.subr.bf16.mxu0 0
      %2972 = vmatpush1.bf16.msra.mxu0 0
      %2973 = vmatprep.subr.bf16.mxu0 0
      %2974 = vmatpush1.bf16.msra.mxu0 0
      %2975 = vmatprep.subr.bf16.mxu0 0
      %2976 = vmatpush1.bf16.msra.mxu0 0
      %2977 = vmatprep.subr.bf16.mxu0 0
      %2978 = vmatpush1.bf16.msra.mxu0 0
      %2979 = vmatprep.subr.bf16.mxu0 0
      %2980 = vmatpush1.bf16.msra.mxu0 0
      %2981 = vmatprep.subr.bf16.mxu0 0
      %2982 = vmatpush1.bf16.msra.mxu0 0
      %2983 = vmatprep.subr.bf16.mxu0 0
      %2984 = vmatpush1.bf16.msra.mxu0 0
      %2985 = vmatprep.mubr.bf16.mxu0 0
      %2986 = vmatmul.mubr.bf16.gmra.mrb[0].mxu0 %v721
      %v2987 = vpop.f32.mrb[0].mxu0
      %v2988 = vadd.f32 0.0, %v2987
      %v2989 = vpop.f32.mrb[0].mxu0
      %v2990 = vpop.f32.mrb[0].mxu0
      %v2991 = vadd.f32 0.0, %v2990
      %v2992 = vpop.f32.mrb[0].mxu0
      %2993 = vmatprep.mubr.bf16.mxu0 0
      %2994 = vmatmul.mubr.bf16.gmra.mrb[0].mxu0 %v724
      %v2995 = vpop.f32.mrb[0].mxu0
      %v2996 = vadd.f32 0.0, %v2995
      %v2997 = vpop.f32.mrb[0].mxu0
      %v2998 = vpop.f32.mrb[0].mxu0
      %v2999 = vadd.f32 0.0, %v2998
      %v3000 = vpop.f32.mrb[0].mxu0
      %3001 = vmatprep.mubr.bf16.mxu0 0
      %3002 = vmatmul.mubr.bf16.gmra.mrb[0].mxu0 %v727
      %v3003 = vpop.f32.mrb[0].mxu0
      %v3004 = vadd.f32 0.0, %v3003
      %v3005 = vpop.f32.mrb[0].mxu0
      %v3006 = vpop.f32.mrb[0].mxu0
      %v3007 = vadd.f32 0.0, %v3006
      %v3008 = vpop.f32.mrb[0].mxu0
      %3009 = vmatprep.mubr.bf16.mxu0 0
      %3010 = vmatmul.mubr.bf16.gmra.mrb[0].mxu0 %v730
      %v3011 = vpop.f32.mrb[0].mxu0
      %v3012 = vadd.f32 0.0, %v3011
      %v3013 = vpop.f32.mrb[0].mxu0
      %v3014 = vpop.f32.mrb[0].mxu0
      %v3015 = vadd.f32 0.0, %v3014
      %v3016 = vpop.f32.mrb[0].mxu0
      %3017 = vmatprep.mubr.bf16.mxu0 0
      %3018 = vmatmul.mubr.bf16.gmra.mrb[0].mxu0 %v733
      %v3019 = vpop.f32.mrb[0].mxu0
      %v3020 = vadd.f32 0.0, %v3019
      %v3021 = vpop.f32.mrb[0].mxu0
      %v3022 = vpop.f32.mrb[0].mxu0
      %v3023 = vadd.f32 0.0, %v3022
      %v3024 = vpop.f32.mrb[0].mxu0
      %3025 = vmatprep.mubr.bf16.mxu0 0
      %3026 = vmatmul.mubr.bf16.gmra.mrb[0].mxu0 %v736
      %v3027 = vpop.f32.mrb[0].mxu0
      %v3028 = vadd.f32 0.0, %v3027
      %v3029 = vpop.f32.mrb[0].mxu0
      %v3030 = vpop.f32.mrb[0].mxu0
      %v3031 = vadd.f32 0.0, %v3030
      %v3032 = vpop.f32.mrb[0].mxu0
      %3033 = vmatprep.mubr.bf16.mxu0 0
      %3034 = vmatmul.mubr.bf16.gmra.mrb[0].mxu0 %v739
      %v3035 = vpop.f32.mrb[0].mxu0
      %v3036 = vadd.f32 0.0, %v3035
      %v3037 = vpop.f32.mrb[0].mxu0
      %v3038 = vpop.f32.mrb[0].mxu0
      %v3039 = vadd.f32 0.0, %v3038
      %v3040 = vpop.f32.mrb[0].mxu0
      %3041 = vmatprep.mubr.bf16.mxu0 0
      %3042 = vmatmul.mubr.bf16.gmra.mrb[0].mxu0 %v742
      %v3043 = vpop.f32.mrb[0].mxu0
      %v3044 = vadd.f32 0.0, %v3043
      %v3045 = vpop.f32.mrb[0].mxu0
      %v3046 = vpop.f32.mrb[0].mxu0
      %v3047 = vadd.f32 0.0, %v3046
      %v3048 = vpop.f32.mrb[0].mxu0
      %3049 = vmatprep.mubr.bf16.mxu0 0
      %3050 = vmatmul.mubr.bf16.gmra.mrb[0].mxu0 %v745
      %v3051 = vpop.f32.mrb[0].mxu0
      %v3052 = vadd.f32 0.0, %v3051
      %v3053 = vpop.f32.mrb[0].mxu0
      %v3054 = vpop.f32.mrb[0].mxu0
      %v3055 = vadd.f32 0.0, %v3054
      %v3056 = vpop.f32.mrb[0].mxu0
      %3057 = vmatprep.mubr.bf16.mxu0 0
      %3058 = vmatmul.mubr.bf16.gmra.mrb[0].mxu0 %v748
      %v3059 = vpop.f32.mrb[0].mxu0
      %v3060 = vadd.f32 0.0, %v3059
      %v3061 = vpop.f32.mrb[0].mxu0
      %v3062 = vpop.f32.mrb[0].mxu0
      %v3063 = vadd.f32 0.0, %v3062
      %v3064 = vpop.f32.mrb[0].mxu0
      %3065 = vmatprep.mubr.bf16.mxu0 0
      %3066 = vmatmul.mubr.bf16.gmra.mrb[0].mxu0 %v751
      %v3067 = vpop.f32.mrb[0].mxu0
      %v3068 = vadd.f32 0.0, %v3067
      %v3069 = vpop.f32.mrb[0].mxu0
      %v3070 = vpop.f32.mrb[0].mxu0
      %v3071 = vadd.f32 0.0, %v3070
      %v3072 = vpop.f32.mrb[0].mxu0
      %3073 = vmatprep.mubr.bf16.mxu0 0
      %3074 = vmatmul.mubr.bf16.gmra.mrb[0].mxu0 %v754
      %v3075 = vpop.f32.mrb[0].mxu0
      %v3076 = vadd.f32 0.0, %v3075
      %v3077 = vpop.f32.mrb[0].mxu0
      %v3078 = vpop.f32.mrb[0].mxu0
      %v3079 = vadd.f32 0.0, %v3078
      %v3080 = vpop.f32.mrb[0].mxu0
      %3081 = vmatprep.mubr.bf16.mxu0 0
      %3082 = vmatmul.mubr.bf16.gmra.mrb[0].mxu0 %v757
      %v3083 = vpop.f32.mrb[0].mxu0
      %v3084 = vadd.f32 0.0, %v3083
      %v3085 = vpop.f32.mrb[0].mxu0
      %v3086 = vpop.f32.mrb[0].mxu0
      %v3087 = vadd.f32 0.0, %v3086
      %v3088 = vpop.f32.mrb[0].mxu0
      %3089 = vmatprep.mubr.bf16.mxu0 0
      %3090 = vmatmul.mubr.bf16.gmra.mrb[0].mxu0 %v760
      %v3091 = vpop.f32.mrb[0].mxu0
      %v3092 = vadd.f32 0.0, %v3091
      %v3093 = vpop.f32.mrb[0].mxu0
      %v3094 = vpop.f32.mrb[0].mxu0
      %v3095 = vadd.f32 0.0, %v3094
      %v3096 = vpop.f32.mrb[0].mxu0
      %3097 = vmatprep.mubr.bf16.mxu0 0
      %3098 = vmatmul.mubr.bf16.gmra.mrb[0].mxu0 %v763
      %v3099 = vpop.f32.mrb[0].mxu0
      %v3100 = vadd.f32 0.0, %v3099
      %v3101 = vpop.f32.mrb[0].mxu0
      %v3102 = vpop.f32.mrb[0].mxu0
      %v3103 = vadd.f32 0.0, %v3102
      %v3104 = vpop.f32.mrb[0].mxu0
      %3105 = vmatprep.mubr.bf16.mxu0 0
      %3106 = vmatmul.mubr.bf16.gmra.mrb[0].mxu0 %v2948
      %v3107 = vpop.f32.mrb[0].mxu0
      %v3108 = vadd.f32 0.0, %v3107
      %v3109 = vpop.f32.mrb[0].mxu0
      %v3110 = vpop.f32.mrb[0].mxu0
      %v3111 = vadd.f32 0.0, %v3110
      %v3112 = vpop.f32.mrb[0].mxu0
      %3113 = vdwg.mxu0
      %v3114 = vadd.f32 %v2908, %v2988
      %v3115 = vadd.f32 %v2909, %v2991
      %v3116 = vadd.f32 %v2910, %v2996
      %v3117 = vadd.f32 %v2911, %v2999
      %v3118 = vadd.f32 %v2912, %v3004
      %v3119 = vadd.f32 %v2913, %v3007
      %v3120 = vadd.f32 %v2914, %v3012
      %v3121 = vadd.f32 %v2915, %v3015
      %v3122 = vadd.f32 %v2916, %v3020
      %v3123 = vadd.f32 %v2917, %v3023
      %v3124 = vadd.f32 %v2918, %v3028
      %v3125 = vadd.f32 %v2919, %v3031
      %v3126 = vadd.f32 %v2920, %v3036
      %v3127 = vadd.f32 %v2921, %v3039
      %v3128 = vadd.f32 %v2922, %v3044
      %v3129 = vadd.f32 %v2923, %v3047
      %v3130 = vadd.f32 %v2924, %v3052
      %v3131 = vadd.f32 %v2925, %v3055
      %v3132 = vadd.f32 %v2926, %v3060
      %v3133 = vadd.f32 %v2927, %v3063
      %v3134 = vadd.f32 %v2928, %v3068
      %v3135 = vadd.f32 %v2929, %v3071
      %v3136 = vadd.f32 %v2930, %v3076
      %v3137 = vadd.f32 %v2931, %v3079
      %v3138 = vadd.f32 %v2932, %v3084
      %v3139 = vadd.f32 %v2933, %v3087
      %v3140 = vadd.f32 %v2934, %v3092
      %v3141 = vadd.f32 %v2935, %v3095
      %v3142 = vadd.f32 %v2936, %v3100
      %v3143 = vadd.f32 %v2937, %v3103
      %v3144 = vadd.f32 %v2938, %v3108
      %v3145 = vadd.f32 %v2939, %v3111
      %s3146 = scalar_lea.vmem %s1, 14
      %v3147 = vld [vmem:[%s3146] sm:$0x3]
      %v3150 = vunpack.c.l.b16 %v255
      %v3151 = vunpack.c.l.b16 %v256
      %v3152 = vpack.c.b16 %v3151, %v3150
      %v3154 = vsel %vm420, %v3152, 0
      %v3157 = vand.u32 %v3147, %v472
      %3159 = vmatprep.subr.bf16.mxu0 0
      %3160 = vmatpush1.bf16.msra.mxu0 %v3157
      %3161 = vmatprep.subr.bf16.mxu0 0
      %3162 = vmatpush1.bf16.msra.mxu0 0
      %3163 = vmatprep.subr.bf16.mxu0 0
      %3164 = vmatpush1.bf16.msra.mxu0 0
      %3165 = vmatprep.subr.bf16.mxu0 0
      %3166 = vmatpush1.bf16.msra.mxu0 0
      %3167 = vmatprep.subr.bf16.mxu0 0
      %3168 = vmatpush1.bf16.msra.mxu0 0
      %3169 = vmatprep.subr.bf16.mxu0 0
      %3170 = vmatpush1.bf16.msra.mxu0 0
      %3171 = vmatprep.subr.bf16.mxu0 0
      %3172 = vmatpush1.bf16.msra.mxu0 0
      %3173 = vmatprep.subr.bf16.mxu0 0
      %3174 = vmatpush1.bf16.msra.mxu0 0
      %3175 = vmatprep.subr.bf16.mxu0 0
      %3176 = vmatpush1.bf16.msra.mxu0 0
      %3177 = vmatprep.subr.bf16.mxu0 0
      %3178 = vmatpush1.bf16.msra.mxu0 0
      %3179 = vmatprep.subr.bf16.mxu0 0
      %3180 = vmatpush1.bf16.msra.mxu0 0
      %3181 = vmatprep.subr.bf16.mxu0 0
      %3182 = vmatpush1.bf16.msra.mxu0 0
      %3183 = vmatprep.subr.bf16.mxu0 0
      %3184 = vmatpush1.bf16.msra.mxu0 0
      %3185 = vmatprep.subr.bf16.mxu0 0
      %3186 = vmatpush1.bf16.msra.mxu0 0
      %3187 = vmatprep.subr.bf16.mxu0 0
      %3188 = vmatpush1.bf16.msra.mxu0 0
      %3189 = vmatprep.subr.bf16.mxu0 0
      %3190 = vmatpush1.bf16.msra.mxu0 0
      %3191 = vmatprep.mubr.bf16.mxu0 0
      %3192 = vmatmul.mubr.bf16.gmra.mrb[0].mxu0 %v425
      %v3193 = vpop.f32.mrb[0].mxu0
      %v3194 = vadd.f32 0.0, %v3193
      %v3195 = vpop.f32.mrb[0].mxu0
      %v3196 = vpop.f32.mrb[0].mxu0
      %v3197 = vadd.f32 0.0, %v3196
      %v3198 = vpop.f32.mrb[0].mxu0
      %3199 = vmatprep.mubr.bf16.mxu0 0
      %3200 = vmatmul.mubr.bf16.gmra.mrb[0].mxu0 %v428
      %v3201 = vpop.f32.mrb[0].mxu0
      %v3202 = vadd.f32 0.0, %v3201
      %v3203 = vpop.f32.mrb[0].mxu0
      %v3204 = vpop.f32.mrb[0].mxu0
      %v3205 = vadd.f32 0.0, %v3204
      %v3206 = vpop.f32.mrb[0].mxu0
      %3207 = vmatprep.mubr.bf16.mxu0 0
      %3208 = vmatmul.mubr.bf16.gmra.mrb[0].mxu0 %v431
      %v3209 = vpop.f32.mrb[0].mxu0
      %v3210 = vadd.f32 0.0, %v3209
      %v3211 = vpop.f32.mrb[0].mxu0
      %v3212 = vpop.f32.mrb[0].mxu0
      %v3213 = vadd.f32 0.0, %v3212
      %v3214 = vpop.f32.mrb[0].mxu0
      %3215 = vmatprep.mubr.bf16.mxu0 0
      %3216 = vmatmul.mubr.bf16.gmra.mrb[0].mxu0 %v434
      %v3217 = vpop.f32.mrb[0].mxu0
      %v3218 = vadd.f32 0.0, %v3217
      %v3219 = vpop.f32.mrb[0].mxu0
      %v3220 = vpop.f32.mrb[0].mxu0
      %v3221 = vadd.f32 0.0, %v3220
      %v3222 = vpop.f32.mrb[0].mxu0
      %3223 = vmatprep.mubr.bf16.mxu0 0
      %3224 = vmatmul.mubr.bf16.gmra.mrb[0].mxu0 %v437
      %v3225 = vpop.f32.mrb[0].mxu0
      %v3226 = vadd.f32 0.0, %v3225
      %v3227 = vpop.f32.mrb[0].mxu0
      %v3228 = vpop.f32.mrb[0].mxu0
      %v3229 = vadd.f32 0.0, %v3228
      %v3230 = vpop.f32.mrb[0].mxu0
      %3231 = vmatprep.mubr.bf16.mxu0 0
      %3232 = vmatmul.mubr.bf16.gmra.mrb[0].mxu0 %v440
      %v3233 = vpop.f32.mrb[0].mxu0
      %v3234 = vadd.f32 0.0, %v3233
      %v3235 = vpop.f32.mrb[0].mxu0
      %v3236 = vpop.f32.mrb[0].mxu0
      %v3237 = vadd.f32 0.0, %v3236
      %v3238 = vpop.f32.mrb[0].mxu0
      %3239 = vmatprep.mubr.bf16.mxu0 0
      %3240 = vmatmul.mubr.bf16.gmra.mrb[0].mxu0 %v443
      %v3241 = vpop.f32.mrb[0].mxu0
      %v3242 = vadd.f32 0.0, %v3241
      %v3243 = vpop.f32.mrb[0].mxu0
      %v3244 = vpop.f32.mrb[0].mxu0
      %v3245 = vadd.f32 0.0, %v3244
      %v3246 = vpop.f32.mrb[0].mxu0
      %3247 = vmatprep.mubr.bf16.mxu0 0
      %3248 = vmatmul.mubr.bf16.gmra.mrb[0].mxu0 %v446
      %v3249 = vpop.f32.mrb[0].mxu0
      %v3250 = vadd.f32 0.0, %v3249
      %v3251 = vpop.f32.mrb[0].mxu0
      %v3252 = vpop.f32.mrb[0].mxu0
      %v3253 = vadd.f32 0.0, %v3252
      %v3254 = vpop.f32.mrb[0].mxu0
      %3255 = vmatprep.mubr.bf16.mxu0 0
      %3256 = vmatmul.mubr.bf16.gmra.mrb[0].mxu0 %v449
      %v3257 = vpop.f32.mrb[0].mxu0
      %v3258 = vadd.f32 0.0, %v3257
      %v3259 = vpop.f32.mrb[0].mxu0
      %v3260 = vpop.f32.mrb[0].mxu0
      %v3261 = vadd.f32 0.0, %v3260
      %v3262 = vpop.f32.mrb[0].mxu0
      %3263 = vmatprep.mubr.bf16.mxu0 0
      %3264 = vmatmul.mubr.bf16.gmra.mrb[0].mxu0 %v452
      %v3265 = vpop.f32.mrb[0].mxu0
      %v3266 = vadd.f32 0.0, %v3265
      %v3267 = vpop.f32.mrb[0].mxu0
      %v3268 = vpop.f32.mrb[0].mxu0
      %v3269 = vadd.f32 0.0, %v3268
      %v3270 = vpop.f32.mrb[0].mxu0
      %3271 = vmatprep.mubr.bf16.mxu0 0
      %3272 = vmatmul.mubr.bf16.gmra.mrb[0].mxu0 %v455
      %v3273 = vpop.f32.mrb[0].mxu0
      %v3274 = vadd.f32 0.0, %v3273
      %v3275 = vpop.f32.mrb[0].mxu0
      %v3276 = vpop.f32.mrb[0].mxu0
      %v3277 = vadd.f32 0.0, %v3276
      %v3278 = vpop.f32.mrb[0].mxu0
      %3279 = vmatprep.mubr.bf16.mxu0 0
      %3280 = vmatmul.mubr.bf16.gmra.mrb[0].mxu0 %v458
      %v3281 = vpop.f32.mrb[0].mxu0
      %v3282 = vadd.f32 0.0, %v3281
      %v3283 = vpop.f32.mrb[0].mxu0
      %v3284 = vpop.f32.mrb[0].mxu0
      %v3285 = vadd.f32 0.0, %v3284
      %v3286 = vpop.f32.mrb[0].mxu0
      %3287 = vmatprep.mubr.bf16.mxu0 0
      %3288 = vmatmul.mubr.bf16.gmra.mrb[0].mxu0 %v461
      %v3289 = vpop.f32.mrb[0].mxu0
      %v3290 = vadd.f32 0.0, %v3289
      %v3291 = vpop.f32.mrb[0].mxu0
      %v3292 = vpop.f32.mrb[0].mxu0
      %v3293 = vadd.f32 0.0, %v3292
      %v3294 = vpop.f32.mrb[0].mxu0
      %3295 = vmatprep.mubr.bf16.mxu0 0
      %3296 = vmatmul.mubr.bf16.gmra.mrb[0].mxu0 %v464
      %v3297 = vpop.f32.mrb[0].mxu0
      %v3298 = vadd.f32 0.0, %v3297
      %v3299 = vpop.f32.mrb[0].mxu0
      %v3300 = vpop.f32.mrb[0].mxu0
      %v3301 = vadd.f32 0.0, %v3300
      %v3302 = vpop.f32.mrb[0].mxu0
      %3303 = vmatprep.mubr.bf16.mxu0 0
      %3304 = vmatmul.mubr.bf16.gmra.mrb[0].mxu0 %v467
      %v3305 = vpop.f32.mrb[0].mxu0
      %v3306 = vadd.f32 0.0, %v3305
      %v3307 = vpop.f32.mrb[0].mxu0
      %v3308 = vpop.f32.mrb[0].mxu0
      %v3309 = vadd.f32 0.0, %v3308
      %v3310 = vpop.f32.mrb[0].mxu0
      %3311 = vmatprep.mubr.bf16.mxu0 0
      %3312 = vmatmul.mubr.bf16.gmra.mrb[0].mxu0 %v3154
      %v3313 = vpop.f32.mrb[0].mxu0
      %v3314 = vadd.f32 0.0, %v3313
      %v3315 = vpop.f32.mrb[0].mxu0
      %v3316 = vpop.f32.mrb[0].mxu0
      %v3317 = vadd.f32 0.0, %v3316
      %v3318 = vpop.f32.mrb[0].mxu0
      %3319 = vdwg.mxu0
      %v3320 = vadd.f32 %v3114, %v3194
      %v3321 = vadd.f32 %v3115, %v3197
      %v3322 = vadd.f32 %v3116, %v3202
      %v3323 = vadd.f32 %v3117, %v3205
      %v3324 = vadd.f32 %v3118, %v3210
      %v3325 = vadd.f32 %v3119, %v3213
      %v3326 = vadd.f32 %v3120, %v3218
      %v3327 = vadd.f32 %v3121, %v3221
      %v3328 = vadd.f32 %v3122, %v3226
      %v3329 = vadd.f32 %v3123, %v3229
      %v3330 = vadd.f32 %v3124, %v3234
      %v3331 = vadd.f32 %v3125, %v3237
      %v3332 = vadd.f32 %v3126, %v3242
      %v3333 = vadd.f32 %v3127, %v3245
      %v3334 = vadd.f32 %v3128, %v3250
      %v3335 = vadd.f32 %v3129, %v3253
      %v3336 = vadd.f32 %v3130, %v3258
      %v3337 = vadd.f32 %v3131, %v3261
      %v3338 = vadd.f32 %v3132, %v3266
      %v3339 = vadd.f32 %v3133, %v3269
      %v3340 = vadd.f32 %v3134, %v3274
      %v3341 = vadd.f32 %v3135, %v3277
      %v3342 = vadd.f32 %v3136, %v3282
      %v3343 = vadd.f32 %v3137, %v3285
      %v3344 = vadd.f32 %v3138, %v3290
      %v3345 = vadd.f32 %v3139, %v3293
      %v3346 = vadd.f32 %v3140, %v3298
      %v3347 = vadd.f32 %v3141, %v3301
      %v3348 = vadd.f32 %v3142, %v3306
      %v3349 = vadd.f32 %v3143, %v3309
      %v3350 = vadd.f32 %v3144, %v3314
      %v3351 = vadd.f32 %v3145, %v3317
      %v3353 = vshrl.u32 %v220, 16
      %v3355 = vrot.slane %v3353, 4
      %v3356 = vshll.u32 %v220, 16
      %v3358 = vrot.slane %v3356, 5
      %v3359 = vor.u32 %v3355, %v3358
      %v3360 = vrot.slane %v3359, 4
      %v3362 = vshll.u32 %v221, 16
      %v3364 = vrot.slane %v3362, 5
      %v3365 = vsel %vm931, %v3360, %v3364
      %v3366 = vshrl.u32 %v221, 16
      %v3368 = vrot.slane %v3366, 4
      %v3369 = vor.u32 %v3368, %v3364
      %v3370 = vrot.slane %v3369, 4
      %v3372 = vshll.u32 %v222, 16
      %v3374 = vrot.slane %v3372, 5
      %v3375 = vsel %vm931, %v3370, %v3374
      %s3376 = scalar_lea.vmem %s1, 16
      %v3377 = vld [vmem:[%s3376] sm:$0x3]
      %v3378 = vunpack.c.l.b16 %v3365
      %v3379 = vunpack.c.l.b16 %v3375
      %v3380 = vpack.c.b16 %v3379, %v3378
      %v3382 = vsel %vm420, %v3380, 0
      %v3385 = vand.u32 %v3377, %v472
      %3387 = vmatprep.subr.bf16.mxu0 0
      %3388 = vmatpush1.bf16.msra.mxu0 %v3385
      %3389 = vmatprep.subr.bf16.mxu0 0
      %3390 = vmatpush1.bf16.msra.mxu0 0
      %3391 = vmatprep.subr.bf16.mxu0 0
      %3392 = vmatpush1.bf16.msra.mxu0 0
      %3393 = vmatprep.subr.bf16.mxu0 0
      %3394 = vmatpush1.bf16.msra.mxu0 0
      %3395 = vmatprep.subr.bf16.mxu0 0
      %3396 = vmatpush1.bf16.msra.mxu0 0
      %3397 = vmatprep.subr.bf16.mxu0 0
      %3398 = vmatpush1.bf16.msra.mxu0 0
      %3399 = vmatprep.subr.bf16.mxu0 0
      %3400 = vmatpush1.bf16.msra.mxu0 0
      %3401 = vmatprep.subr.bf16.mxu0 0
      %3402 = vmatpush1.bf16.msra.mxu0 0
      %3403 = vmatprep.subr.bf16.mxu0 0
      %3404 = vmatpush1.bf16.msra.mxu0 0
      %3405 = vmatprep.subr.bf16.mxu0 0
      %3406 = vmatpush1.bf16.msra.mxu0 0
      %3407 = vmatprep.subr.bf16.mxu0 0
      %3408 = vmatpush1.bf16.msra.mxu0 0
      %3409 = vmatprep.subr.bf16.mxu0 0
      %3410 = vmatpush1.bf16.msra.mxu0 0
      %3411 = vmatprep.subr.bf16.mxu0 0
      %3412 = vmatpush1.bf16.msra.mxu0 0
      %3413 = vmatprep.subr.bf16.mxu0 0
      %3414 = vmatpush1.bf16.msra.mxu0 0
      %3415 = vmatprep.subr.bf16.mxu0 0
      %3416 = vmatpush1.bf16.msra.mxu0 0
      %3417 = vmatprep.subr.bf16.mxu0 0
      %3418 = vmatpush1.bf16.msra.mxu0 0
      %3419 = vmatprep.mubr.bf16.mxu0 0
      %3420 = vmatmul.mubr.bf16.gmra.mrb[0].mxu0 %v1370
      %v3421 = vpop.f32.mrb[0].mxu0
      %v3422 = vadd.f32 0.0, %v3421
      %v3423 = vpop.f32.mrb[0].mxu0
      %v3424 = vpop.f32.mrb[0].mxu0
      %v3425 = vadd.f32 0.0, %v3424
      %v3426 = vpop.f32.mrb[0].mxu0
      %3427 = vmatprep.mubr.bf16.mxu0 0
      %3428 = vmatmul.mubr.bf16.gmra.mrb[0].mxu0 %v1373
      %v3429 = vpop.f32.mrb[0].mxu0
      %v3430 = vadd.f32 0.0, %v3429
      %v3431 = vpop.f32.mrb[0].mxu0
      %v3432 = vpop.f32.mrb[0].mxu0
      %v3433 = vadd.f32 0.0, %v3432
      %v3434 = vpop.f32.mrb[0].mxu0
      %3435 = vmatprep.mubr.bf16.mxu0 0
      %3436 = vmatmul.mubr.bf16.gmra.mrb[0].mxu0 %v1376
      %v3437 = vpop.f32.mrb[0].mxu0
      %v3438 = vadd.f32 0.0, %v3437
      %v3439 = vpop.f32.mrb[0].mxu0
      %v3440 = vpop.f32.mrb[0].mxu0
      %v3441 = vadd.f32 0.0, %v3440
      %v3442 = vpop.f32.mrb[0].mxu0
      %3443 = vmatprep.mubr.bf16.mxu0 0
      %3444 = vmatmul.mubr.bf16.gmra.mrb[0].mxu0 %v1379
      %v3445 = vpop.f32.mrb[0].mxu0
      %v3446 = vadd.f32 0.0, %v3445
      %v3447 = vpop.f32.mrb[0].mxu0
      %v3448 = vpop.f32.mrb[0].mxu0
      %v3449 = vadd.f32 0.0, %v3448
      %v3450 = vpop.f32.mrb[0].mxu0
      %3451 = vmatprep.mubr.bf16.mxu0 0
      %3452 = vmatmul.mubr.bf16.gmra.mrb[0].mxu0 %v1382
      %v3453 = vpop.f32.mrb[0].mxu0
      %v3454 = vadd.f32 0.0, %v3453
      %v3455 = vpop.f32.mrb[0].mxu0
      %v3456 = vpop.f32.mrb[0].mxu0
      %v3457 = vadd.f32 0.0, %v3456
      %v3458 = vpop.f32.mrb[0].mxu0
      %3459 = vmatprep.mubr.bf16.mxu0 0
      %3460 = vmatmul.mubr.bf16.gmra.mrb[0].mxu0 %v1385
      %v3461 = vpop.f32.mrb[0].mxu0
      %v3462 = vadd.f32 0.0, %v3461
      %v3463 = vpop.f32.mrb[0].mxu0
      %v3464 = vpop.f32.mrb[0].mxu0
      %v3465 = vadd.f32 0.0, %v3464
      %v3466 = vpop.f32.mrb[0].mxu0
      %3467 = vmatprep.mubr.bf16.mxu0 0
      %3468 = vmatmul.mubr.bf16.gmra.mrb[0].mxu0 %v1388
      %v3469 = vpop.f32.mrb[0].mxu0
      %v3470 = vadd.f32 0.0, %v3469
      %v3471 = vpop.f32.mrb[0].mxu0
      %v3472 = vpop.f32.mrb[0].mxu0
      %v3473 = vadd.f32 0.0, %v3472
      %v3474 = vpop.f32.mrb[0].mxu0
      %3475 = vmatprep.mubr.bf16.mxu0 0
      %3476 = vmatmul.mubr.bf16.gmra.mrb[0].mxu0 %v1391
      %v3477 = vpop.f32.mrb[0].mxu0
      %v3478 = vadd.f32 0.0, %v3477
      %v3479 = vpop.f32.mrb[0].mxu0
      %v3480 = vpop.f32.mrb[0].mxu0
      %v3481 = vadd.f32 0.0, %v3480
      %v3482 = vpop.f32.mrb[0].mxu0
      %3483 = vmatprep.mubr.bf16.mxu0 0
      %3484 = vmatmul.mubr.bf16.gmra.mrb[0].mxu0 %v1394
      %v3485 = vpop.f32.mrb[0].mxu0
      %v3486 = vadd.f32 0.0, %v3485
      %v3487 = vpop.f32.mrb[0].mxu0
      %v3488 = vpop.f32.mrb[0].mxu0
      %v3489 = vadd.f32 0.0, %v3488
      %v3490 = vpop.f32.mrb[0].mxu0
      %3491 = vmatprep.mubr.bf16.mxu0 0
      %3492 = vmatmul.mubr.bf16.gmra.mrb[0].mxu0 %v1397
      %v3493 = vpop.f32.mrb[0].mxu0
      %v3494 = vadd.f32 0.0, %v3493
      %v3495 = vpop.f32.mrb[0].mxu0
      %v3496 = vpop.f32.mrb[0].mxu0
      %v3497 = vadd.f32 0.0, %v3496
      %v3498 = vpop.f32.mrb[0].mxu0
      %3499 = vmatprep.mubr.bf16.mxu0 0
      %3500 = vmatmul.mubr.bf16.gmra.mrb[0].mxu0 %v1400
      %v3501 = vpop.f32.mrb[0].mxu0
      %v3502 = vadd.f32 0.0, %v3501
      %v3503 = vpop.f32.mrb[0].mxu0
      %v3504 = vpop.f32.mrb[0].mxu0
      %v3505 = vadd.f32 0.0, %v3504
      %v3506 = vpop.f32.mrb[0].mxu0
      %3507 = vmatprep.mubr.bf16.mxu0 0
      %3508 = vmatmul.mubr.bf16.gmra.mrb[0].mxu0 %v1403
      %v3509 = vpop.f32.mrb[0].mxu0
      %v3510 = vadd.f32 0.0, %v3509
      %v3511 = vpop.f32.mrb[0].mxu0
      %v3512 = vpop.f32.mrb[0].mxu0
      %v3513 = vadd.f32 0.0, %v3512
      %v3514 = vpop.f32.mrb[0].mxu0
      %3515 = vmatprep.mubr.bf16.mxu0 0
      %3516 = vmatmul.mubr.bf16.gmra.mrb[0].mxu0 %v1406
      %v3517 = vpop.f32.mrb[0].mxu0
      %v3518 = vadd.f32 0.0, %v3517
      %v3519 = vpop.f32.mrb[0].mxu0
      %v3520 = vpop.f32.mrb[0].mxu0
      %v3521 = vadd.f32 0.0, %v3520
      %v3522 = vpop.f32.mrb[0].mxu0
      %3523 = vmatprep.mubr.bf16.mxu0 0
      %3524 = vmatmul.mubr.bf16.gmra.mrb[0].mxu0 %v1409
      %v3525 = vpop.f32.mrb[0].mxu0
      %v3526 = vadd.f32 0.0, %v3525
      %v3527 = vpop.f32.mrb[0].mxu0
      %v3528 = vpop.f32.mrb[0].mxu0
      %v3529 = vadd.f32 0.0, %v3528
      %v3530 = vpop.f32.mrb[0].mxu0
      %3531 = vmatprep.mubr.bf16.mxu0 0
      %3532 = vmatmul.mubr.bf16.gmra.mrb[0].mxu0 %v1412
      %v3533 = vpop.f32.mrb[0].mxu0
      %v3534 = vadd.f32 0.0, %v3533
      %v3535 = vpop.f32.mrb[0].mxu0
      %v3536 = vpop.f32.mrb[0].mxu0
      %v3537 = vadd.f32 0.0, %v3536
      %v3538 = vpop.f32.mrb[0].mxu0
      %3539 = vmatprep.mubr.bf16.mxu0 0
      %3540 = vmatmul.mubr.bf16.gmra.mrb[0].mxu0 %v3382
      %v3541 = vpop.f32.mrb[0].mxu0
      %v3542 = vadd.f32 0.0, %v3541
      %v3543 = vpop.f32.mrb[0].mxu0
      %v3544 = vpop.f32.mrb[0].mxu0
      %v3545 = vadd.f32 0.0, %v3544
      %v3546 = vpop.f32.mrb[0].mxu0
      %3547 = vdwg.mxu0
      %v3548 = vadd.f32 %v3320, %v3422
      %v3549 = vadd.f32 %v3321, %v3425
      %v3550 = vadd.f32 %v3322, %v3430
      %v3551 = vadd.f32 %v3323, %v3433
      %v3552 = vadd.f32 %v3324, %v3438
      %v3553 = vadd.f32 %v3325, %v3441
      %v3554 = vadd.f32 %v3326, %v3446
      %v3555 = vadd.f32 %v3327, %v3449
      %v3556 = vadd.f32 %v3328, %v3454
      %v3557 = vadd.f32 %v3329, %v3457
      %v3558 = vadd.f32 %v3330, %v3462
      %v3559 = vadd.f32 %v3331, %v3465
      %v3560 = vadd.f32 %v3332, %v3470
      %v3561 = vadd.f32 %v3333, %v3473
      %v3562 = vadd.f32 %v3334, %v3478
      %v3563 = vadd.f32 %v3335, %v3481
      %v3564 = vadd.f32 %v3336, %v3486
      %v3565 = vadd.f32 %v3337, %v3489
      %v3566 = vadd.f32 %v3338, %v3494
      %v3567 = vadd.f32 %v3339, %v3497
      %v3568 = vadd.f32 %v3340, %v3502
      %v3569 = vadd.f32 %v3341, %v3505
      %v3570 = vadd.f32 %v3342, %v3510
      %v3571 = vadd.f32 %v3343, %v3513
      %v3572 = vadd.f32 %v3344, %v3518
      %v3573 = vadd.f32 %v3345, %v3521
      %v3574 = vadd.f32 %v3346, %v3526
      %v3575 = vadd.f32 %v3347, %v3529
      %v3576 = vadd.f32 %v3348, %v3534
      %v3577 = vadd.f32 %v3349, %v3537
      %v3578 = vadd.f32 %v3350, %v3542
      %v3579 = vadd.f32 %v3351, %v3545
      %v3580 = vld [vmem:[%s2] sm:$0x1]
      %v3582 = vlaneseq
      %v3583 = vshrl.u32 %v3582, 7
      %v3584 = vsub.s32 0, %v3583
      %v3585 = vrot.slane %v3580, %v3584
      %v3587 = vadd.f32 %v3548, %v3585
      %v3588 = vadd.f32 %v3549, %v3585
      %v3589 = vadd.f32 %v3550, %v3585
      %v3590 = vadd.f32 %v3551, %v3585
      %v3591 = vadd.f32 %v3552, %v3585
      %v3592 = vadd.f32 %v3553, %v3585
      %v3593 = vadd.f32 %v3554, %v3585
      %v3594 = vadd.f32 %v3555, %v3585
      %v3595 = vadd.f32 %v3556, %v3585
      %v3596 = vadd.f32 %v3557, %v3585
      %v3597 = vadd.f32 %v3558, %v3585
      %v3598 = vadd.f32 %v3559, %v3585
      %v3599 = vadd.f32 %v3560, %v3585
      %v3600 = vadd.f32 %v3561, %v3585
      %v3601 = vadd.f32 %v3562, %v3585
      %v3602 = vadd.f32 %v3563, %v3585
      %v3603 = vadd.f32 %v3564, %v3585
      %v3604 = vadd.f32 %v3565, %v3585
      %v3605 = vadd.f32 %v3566, %v3585
      %v3606 = vadd.f32 %v3567, %v3585
      %v3607 = vadd.f32 %v3568, %v3585
      %v3608 = vadd.f32 %v3569, %v3585
      %v3609 = vadd.f32 %v3570, %v3585
      %v3610 = vadd.f32 %v3571, %v3585
      %v3611 = vadd.f32 %v3572, %v3585
      %v3612 = vadd.f32 %v3573, %v3585
      %v3613 = vadd.f32 %v3574, %v3585
      %v3614 = vadd.f32 %v3575, %v3585
      %v3615 = vadd.f32 %v3576, %v3585
      %v3616 = vadd.f32 %v3577, %v3585
      %v3617 = vadd.f32 %v3578, %v3585
      %v3618 = vadd.f32 %v3579, %v3585
      %v3619 = vmax.f32 %v3587, 0.0
      %v3620 = vmax.f32 %v3588, 0.0
      %v3621 = vmax.f32 %v3589, 0.0
      %v3622 = vmax.f32 %v3590, 0.0
      %v3623 = vmax.f32 %v3591, 0.0
      %v3624 = vmax.f32 %v3592, 0.0
      %v3625 = vmax.f32 %v3593, 0.0
      %v3626 = vmax.f32 %v3594, 0.0
      %v3627 = vmax.f32 %v3595, 0.0
      %v3628 = vmax.f32 %v3596, 0.0
      %v3629 = vmax.f32 %v3597, 0.0
      %v3630 = vmax.f32 %v3598, 0.0
      %v3631 = vmax.f32 %v3599, 0.0
      %v3632 = vmax.f32 %v3600, 0.0
      %v3633 = vmax.f32 %v3601, 0.0
      %v3634 = vmax.f32 %v3602, 0.0
      %v3635 = vmax.f32 %v3603, 0.0
      %v3636 = vmax.f32 %v3604, 0.0
      %v3637 = vmax.f32 %v3605, 0.0
      %v3638 = vmax.f32 %v3606, 0.0
      %v3639 = vmax.f32 %v3607, 0.0
      %v3640 = vmax.f32 %v3608, 0.0
      %v3641 = vmax.f32 %v3609, 0.0
      %v3642 = vmax.f32 %v3610, 0.0
      %v3643 = vmax.f32 %v3611, 0.0
      %v3644 = vmax.f32 %v3612, 0.0
      %v3645 = vmax.f32 %v3613, 0.0
      %v3646 = vmax.f32 %v3614, 0.0
      %v3647 = vmax.f32 %v3615, 0.0
      %v3648 = vmax.f32 %v3616, 0.0
      %v3649 = vmax.f32 %v3617, 0.0
      %v3650 = vmax.f32 %v3618, 0.0
      %v3651 = vpack.c.bf16 %v3620, %v3619
      %v3652 = vpack.c.bf16 %v3622, %v3621
      %v3653 = vpack.c.bf16 %v3624, %v3623
      %v3654 = vpack.c.bf16 %v3626, %v3625
      %v3655 = vpack.c.bf16 %v3628, %v3627
      %v3656 = vpack.c.bf16 %v3630, %v3629
      %v3657 = vpack.c.bf16 %v3632, %v3631
      %v3658 = vpack.c.bf16 %v3634, %v3633
      %v3659 = vpack.c.bf16 %v3636, %v3635
      %v3660 = vpack.c.bf16 %v3638, %v3637
      %v3661 = vpack.c.bf16 %v3640, %v3639
      %v3662 = vpack.c.bf16 %v3642, %v3641
      %v3663 = vpack.c.bf16 %v3644, %v3643
      %v3664 = vpack.c.bf16 %v3646, %v3645
      %v3665 = vpack.c.bf16 %v3648, %v3647
      %v3666 = vpack.c.bf16 %v3650, %v3649
      %v3683 = vunpack.c.l.b16 %v3651
      %v3684 = vunpack.c.h.b16 %v3651
      %v3685 = vunpack.c.l.b16 %v3652
      %v3686 = vunpack.c.h.b16 %v3652
      %v3687 = vunpack.c.l.b16 %v3653
      %v3688 = vunpack.c.h.b16 %v3653
      %v3689 = vunpack.c.l.b16 %v3654
      %v3690 = vunpack.c.h.b16 %v3654
      %v3691 = vunpack.c.l.b16 %v3655
      %v3692 = vunpack.c.h.b16 %v3655
      %v3693 = vunpack.c.l.b16 %v3656
      %v3694 = vunpack.c.h.b16 %v3656
      %v3695 = vunpack.c.l.b16 %v3657
      %v3696 = vunpack.c.h.b16 %v3657
      %v3697 = vunpack.c.l.b16 %v3658
      %v3698 = vunpack.c.h.b16 %v3658
      %v3699 = vunpack.c.l.b16 %v3659
      %v3700 = vunpack.c.h.b16 %v3659
      %v3701 = vunpack.c.l.b16 %v3660
      %v3702 = vunpack.c.h.b16 %v3660
      %v3703 = vunpack.c.l.b16 %v3661
      %v3704 = vunpack.c.h.b16 %v3661
      %v3705 = vunpack.c.l.b16 %v3662
      %v3706 = vunpack.c.h.b16 %v3662
      %v3707 = vunpack.c.l.b16 %v3663
      %v3708 = vunpack.c.h.b16 %v3663
      %v3709 = vunpack.c.l.b16 %v3664
      %v3710 = vunpack.c.h.b16 %v3664
      %v3711 = vunpack.c.l.b16 %v3665
      %v3712 = vunpack.c.h.b16 %v3665
      %v3713 = vunpack.c.l.b16 %v3666
      %v3714 = vunpack.c.h.b16 %v3666
      %v3715 = vpack.c.b16 %v3683, %v3683
      %v3716 = vpack.c.b16 %v3684, %v3684
      %v3717 = vpack.c.b16 %v3685, %v3685
      %v3718 = vpack.c.b16 %v3686, %v3686
      %v3719 = vpack.c.b16 %v3687, %v3687
      %v3720 = vpack.c.b16 %v3688, %v3688
      %v3721 = vpack.c.b16 %v3689, %v3689
      %v3722 = vpack.c.b16 %v3690, %v3690
      %v3723 = vpack.c.b16 %v3691, %v3691
      %v3724 = vpack.c.b16 %v3692, %v3692
      %v3725 = vpack.c.b16 %v3693, %v3693
      %v3726 = vpack.c.b16 %v3694, %v3694
      %v3727 = vpack.c.b16 %v3695, %v3695
      %v3728 = vpack.c.b16 %v3696, %v3696
      %v3729 = vpack.c.b16 %v3697, %v3697
      %v3730 = vpack.c.b16 %v3698, %v3698
      %v3731 = vpack.c.b16 %v3699, %v3699
      %v3732 = vpack.c.b16 %v3700, %v3700
      %v3733 = vpack.c.b16 %v3701, %v3701
      %v3734 = vpack.c.b16 %v3702, %v3702
      %v3735 = vpack.c.b16 %v3703, %v3703
      %v3736 = vpack.c.b16 %v3704, %v3704
      %v3737 = vpack.c.b16 %v3705, %v3705
      %v3738 = vpack.c.b16 %v3706, %v3706
      %v3739 = vpack.c.b16 %v3707, %v3707
      %v3740 = vpack.c.b16 %v3708, %v3708
      %v3741 = vpack.c.b16 %v3709, %v3709
      %v3742 = vpack.c.b16 %v3710, %v3710
      %v3743 = vpack.c.b16 %v3711, %v3711
      %v3744 = vpack.c.b16 %v3712, %v3712
      %v3745 = vpack.c.b16 %v3713, %v3713
      %v3746 = vpack.c.b16 %v3714, %v3714
      %vm3779 = vcmask 257024
      %3780 = vst.msk [vmem:[%s170] sm:$0xf] %vm3779, %v3715
      %3781 = vst.msk [vmem:[%s170 + $0x4] sm:$0xf] %vm3779, %v3716
      %3782 = vst.msk [vmem:[%s170 + $0x8] sm:$0xf] %vm3779, %v3717
      %3783 = vst.msk [vmem:[%s170 + $0xc] sm:$0xf] %vm3779, %v3718
      %3784 = vst.msk [vmem:[%s170 + $0x10] sm:$0xf] %vm3779, %v3719
      %3785 = vst.msk [vmem:[%s170 + $0x14] sm:$0xf] %vm3779, %v3720
      %3786 = vst.msk [vmem:[%s170 + $0x18] sm:$0xf] %vm3779, %v3721
      %3787 = vst.msk [vmem:[%s170 + $0x1c] sm:$0xf] %vm3779, %v3722
      %3788 = vst.msk [vmem:[%s170 + $0x20] sm:$0xf] %vm3779, %v3723
      %3789 = vst.msk [vmem:[%s170 + $0x24] sm:$0xf] %vm3779, %v3724
      %3790 = vst.msk [vmem:[%s170 + $0x28] sm:$0xf] %vm3779, %v3725
      %3791 = vst.msk [vmem:[%s170 + $0x2c] sm:$0xf] %vm3779, %v3726
      %3792 = vst.msk [vmem:[%s170 + $0x30] sm:$0xf] %vm3779, %v3727
      %3793 = vst.msk [vmem:[%s170 + $0x34] sm:$0xf] %vm3779, %v3728
      %3794 = vst.msk [vmem:[%s170 + $0x38] sm:$0xf] %vm3779, %v3729
      %3795 = vst.msk [vmem:[%s170 + $0x3c] sm:$0xf] %vm3779, %v3730
      %3796 = vst.msk [vmem:[%s170 + $0x40] sm:$0xf] %vm3779, %v3731
      %3797 = vst.msk [vmem:[%s170 + $0x44] sm:$0xf] %vm3779, %v3732
      %3798 = vst.msk [vmem:[%s170 + $0x48] sm:$0xf] %vm3779, %v3733
      %3799 = vst.msk [vmem:[%s170 + $0x4c] sm:$0xf] %vm3779, %v3734
      %3800 = vst.msk [vmem:[%s170 + $0x50] sm:$0xf] %vm3779, %v3735
      %3801 = vst.msk [vmem:[%s170 + $0x54] sm:$0xf] %vm3779, %v3736
      %3802 = vst.msk [vmem:[%s170 + $0x58] sm:$0xf] %vm3779, %v3737
      %3803 = vst.msk [vmem:[%s170 + $0x5c] sm:$0xf] %vm3779, %v3738
      %3804 = vst.msk [vmem:[%s170 + $0x60] sm:$0xf] %vm3779, %v3739
      %3805 = vst.msk [vmem:[%s170 + $0x64] sm:$0xf] %vm3779, %v3740
      %3806 = vst.msk [vmem:[%s170 + $0x68] sm:$0xf] %vm3779, %v3741
      %3807 = vst.msk [vmem:[%s170 + $0x6c] sm:$0xf] %vm3779, %v3742
      %3808 = vst.msk [vmem:[%s170 + $0x70] sm:$0xf] %vm3779, %v3743
      %3809 = vst.msk [vmem:[%s170 + $0x74] sm:$0xf] %vm3779, %v3744
      %3810 = vst.msk [vmem:[%s170 + $0x78] sm:$0xf] %vm3779, %v3745
      %3811 = vst.msk [vmem:[%s170 + $0x7c] sm:$0xf] %vm3779, %v3746
      %p3812 = scmp.lt.s32.totalorder %s14, 1
      %s3813 = scalar_select %p3812, %s14, 1
      %s3814 = smul.addr %s3813, 32
      %s3815 = smul.addr %s3814, 4
      %s3816 = scalar_lea.vmem %s3, %s3815
      // Predicated region
      $region33: #{forward.3} parent=31 // pred_check
        %p3817 = pneg %p100
      $region34: #{forward.3} parent=31 // pred_check_branch
        %3819 = sbr.rel (%p3817) target = $region36
      $region35: #{forward.3} parent=31 // pred_region
        _
      $region36: #{forward.3} parent=31 // pred_fallthru
        _
    $region32: #{forward.3} parent=5 // pred_fallthru
      _
    %p3820 = scmp.le.s32.totalorder 2, %s9
    // Predicated region
    $region37: #{forward.3} parent=5 // pred_check
      %p3821 = pneg %p3820
    $region38: #{forward.3} parent=5 // pred_check_branch
      %3823 = sbr.rel (%p3821) target = $region40
    $region39: #{forward.3} parent=5 // pred_region
      %s3824 = ssub.s32 %s9, 2
      // Predicated region
      $region41: #{forward.3} parent=39 // pred_check
        %p3825 = pneg %p106
      $region42: #{forward.3} parent=39 // pred_check_branch
        %3827 = sbr.rel (%p3825) target = $region44
      $region43: #{forward.3} parent=39 // pred_region
        %p3828 = scmp.lt.s32.totalorder %s15, 1
        %s3829 = scalar_select %p3828, %s15, 1
        %s3830 = smul.addr %s3829, 32
        %s3831 = smul.addr %s3830, 4
        %s3832 = scalar_lea.vmem %s3, %s3831
      $region44: #{forward.3} parent=39 // pred_fallthru
        _
    $region40: #{forward.3} parent=5 // pred_fallthru
      _
  $region6: #{forward.3} parent=0 // loop_footer
    %s13 = sadd.s32 1, %s9
  $region7: #{forward.3} parent=0 // loop_footer_branch
    %8 = sbr.rel target = $region3
  $region8: #{forward.3} parent=0 // loop_exit
    _

// kernel: forward.4
$region0: #{forward.4}
  #allocation0 [shape = 'u32[]', space=smem, size = 0x4, offset = 0x4, fixed_abs, tag = 'smem constant byte address 0x4 - core index']
  #allocation1 [shape = 'u32[144,128]{1,0:T(1,128)}', space=vmem, size = 0x12000, scoped, tag = 'internal scratch']
  %s0 = inlined_call_operand.vmem [shape: bf16[2,36,9,32], index: 0, kind: input, shape index: {}]
  %s1 = inlined_call_operand.vmem [shape: bf16[9,32,64], index: 1, kind: input, shape index: {}]
  %s2 = inlined_call_operand.vmem [shape: f32[1,64], index: 2, kind: input, shape index: {}]
  %s3 = inlined_call_operand.vmem [shape: bf16[2,64,64], index: 3, kind: output, shape index: {}]
  %s4 = sld [smem:[#allocation0]]
  $region45: #{forward.4} parent=0
    _
  %s6 = ssub.s32 1, %s4
  %s7 = scalar_select 0, %s6, %s4
  loop: start=0, step=1, limit=4
  $region2: #{forward.4} parent=0 // loop_pre_header
    _
  $region3: #{forward.4} parent=0 // loop_header
    %s9 = sphi 0, %s13
    %p10 = scmp.ge.s32.totalorder %s9, 4
    %s19 = sphi 0, %s21
    %s22 = sphi 0, %s19
    %s23 = sphi 0, %s22
    %s39 = sphi 0, %s23
    %s43 = sphi 0, %s43
    %s45 = sphi 0, %s43
    %s46 = sphi 0, %s45
    %s60 = sphi 0, %s46
    %s64 = sphi 0, %s64
    %s66 = sphi 0, %s64
    %s67 = sphi 0, %s66
    %s81 = sphi 0, %s67
    %s87 = sphi 0, %s89
    %s90 = sphi 0, %s87
    %s91 = sphi 0, %s90
    %s107 = sphi 0, %s91
  $region4: #{forward.4} parent=0 // loop_header_branch
    %12 = sbr.rel (%p10) target = $region8
  $region5: #{forward.4} parent=0 // loop_body
    %s14 = ssub.s32 %s9, 1
    %s15 = ssub.s32 %s9, 2
    %s16 = sadd.s32 %s9, 1
    %s17 = ssub.s32 %s9, %s16
    %p18 = scmp.eq.s32.totalorder %s17, 0
    %s20 = sadd.s32 %s19, 1
    %s21 = scalar_select %p18, %s19, %s20
    %p24 = pneg %p18
    %p25 = scmp.eq.s32.totalorder %s9, 1
    %p26 = por %p24, %p25
    %p27 = scmp.ne.s32.totalorder %s19, %s22
    %p28 = scmp.eq.s32.totalorder %s9, 0
    %p29 = por %p27, %p28
    %p30 = scmp.ne.s32.totalorder %s19, %s22
    %p31 = scmp.eq.s32.totalorder %s14, 1
    %p32 = por %p30, %p31
    %p33 = scmp.ne.s32.totalorder %s22, %s23
    %p34 = scmp.eq.s32.totalorder %s14, 0
    %p35 = por %p33, %p34
    %p36 = scmp.ne.s32.totalorder %s22, %s23
    %p37 = scmp.eq.s32.totalorder %s15, 1
    %p38 = por %p36, %p37
    %p40 = scmp.ne.s32.totalorder %s23, %s39
    %p41 = scmp.eq.s32.totalorder %s15, 0
    %p42 = por %p40, %p41
    %s44 = sadd.s32 %s43, 1
    %p47 = scmp.eq.s32.totalorder %s9, 1
    %p48 = scmp.ne.s32.totalorder %s43, %s45
    %p49 = scmp.eq.s32.totalorder %s9, 0
    %p50 = por %p48, %p49
    %p51 = scmp.ne.s32.totalorder %s43, %s45
    %p52 = scmp.eq.s32.totalorder %s14, 1
    %p53 = por %p51, %p52
    %p54 = scmp.ne.s32.totalorder %s45, %s46
    %p55 = scmp.eq.s32.totalorder %s14, 0
    %p56 = por %p54, %p55
    %p57 = scmp.ne.s32.totalorder %s45, %s46
    %p58 = scmp.eq.s32.totalorder %s15, 1
    %p59 = por %p57, %p58
    %p61 = scmp.ne.s32.totalorder %s46, %s60
    %p62 = scmp.eq.s32.totalorder %s15, 0
    %p63 = por %p61, %p62
    %s65 = sadd.s32 %s64, 1
    %p68 = scmp.eq.s32.totalorder %s9, 1
    %p69 = scmp.ne.s32.totalorder %s64, %s66
    %p70 = scmp.eq.s32.totalorder %s9, 0
    %p71 = por %p69, %p70
    %p72 = scmp.ne.s32.totalorder %s64, %s66
    %p73 = scmp.eq.s32.totalorder %s14, 1
    %p74 = por %p72, %p73
    %p75 = scmp.ne.s32.totalorder %s66, %s67
    %p76 = scmp.eq.s32.totalorder %s14, 0
    %p77 = por %p75, %p76
    %p78 = scmp.ne.s32.totalorder %s66, %s67
    %p79 = scmp.eq.s32.totalorder %s15, 1
    %p80 = por %p78, %p79
    %p82 = scmp.ne.s32.totalorder %s67, %s81
    %p83 = scmp.eq.s32.totalorder %s15, 0
    %p84 = por %p82, %p83
    %s85 = ssub.s32 %s9, %s16
    %p86 = scmp.eq.s32.totalorder %s85, 0
    %s88 = sadd.s32 %s87, 1
    %s89 = scalar_select %p86, %s87, %s88
    %p92 = pneg %p86
    %p93 = scmp.eq.s32.totalorder %s9, 1
    %p94 = por %p92, %p93
    %p95 = scmp.ne.s32.totalorder %s87, %s90
    %p96 = scmp.eq.s32.totalorder %s9, 0
    %p97 = por %p95, %p96
    %p98 = scmp.ne.s32.totalorder %s87, %s90
    %p99 = scmp.eq.s32.totalorder %s14, 1
    %p100 = por %p98, %p99
    %p101 = scmp.ne.s32.totalorder %s90, %s91
    %p102 = scmp.eq.s32.totalorder %s14, 0
    %p103 = por %p101, %p102
    %p104 = scmp.ne.s32.totalorder %s90, %s91
    %p105 = scmp.eq.s32.totalorder %s15, 1
    %p106 = por %p104, %p105
    %p108 = scmp.ne.s32.totalorder %s91, %s107
    %p109 = scmp.eq.s32.totalorder %s15, 0
    %p110 = por %p108, %p109
    %p111 = scmp.le.s32.totalorder 1, %s9
    %p112 = scmp.lt.s32.totalorder %s9, 3
    %p113 = pnand %p111, %p112
    %p114 = pneg %p113
    // Predicated region
    $region9: #{forward.4} parent=5 // pred_check
      _
    $region10: #{forward.4} parent=5 // pred_check_branch
      %116 = sbr.rel (%p113) target = $region12
    $region11: #{forward.4} parent=5 // pred_region
      %s117 = ssub.s32 %s9, 1
      // Predicated region
      $region13: #{forward.4} parent=11 // pred_check
        %p118 = pneg %p56
      $region14: #{forward.4} parent=11 // pred_check_branch
        %120 = sbr.rel (%p118) target = $region16
      $region15: #{forward.4} parent=11 // pred_region
        _
      $region16: #{forward.4} parent=11 // pred_fallthru
        _
      // Predicated region
      $region17: #{forward.4} parent=11 // pred_check
        %p121 = pneg %p77
      $region18: #{forward.4} parent=11 // pred_check_branch
        %123 = sbr.rel (%p121) target = $region20
      $region19: #{forward.4} parent=11 // pred_region
        _
      $region20: #{forward.4} parent=11 // pred_fallthru
        _
    $region12: #{forward.4} parent=5 // pred_fallthru
      _
    %p124 = scmp.lt.s32.totalorder %s9, 2
    // Predicated region
    $region21: #{forward.4} parent=5 // pred_check
      %p125 = pneg %p124
    $region22: #{forward.4} parent=5 // pred_check_branch
      %127 = sbr.rel (%p125) target = $region24
    $region23: #{forward.4} parent=5 // pred_region
      // Predicated region
      $region25: #{forward.4} parent=23 // pred_check
        %p128 = pneg %p29
      $region26: #{forward.4} parent=23 // pred_check_branch
        %130 = sbr.rel (%p128) target = $region28
      $region27: #{forward.4} parent=23 // pred_region
        %p131 = scmp.lt.s32.totalorder %s9, 1
        %s132 = scalar_select %p131, %s9, 1
        %s133 = smul.addr %s132, 72
        %s134 = smul.addr %s133, 4
        %s135 = scalar_lea.vmem %s0, %s134
      $region28: #{forward.4} parent=23 // pred_fallthru
        _
    $region24: #{forward.4} parent=5 // pred_fallthru
      _
    %p136 = scmp.le.s32.totalorder 1, %s9
    %p137 = scmp.lt.s32.totalorder %s9, 3
    %p138 = pnand %p136, %p137
    %p139 = pneg %p138
    // Predicated region
    $region29: #{forward.4} parent=5 // pred_check
      _
    $region30: #{forward.4} parent=5 // pred_check_branch
      %141 = sbr.rel (%p138) target = $region32
    $region31: #{forward.4} parent=5 // pred_region
      %s142 = ssub.s32 %s9, 1
      %p143 = scmp.lt.s32.totalorder %s14, 1
      %s144 = scalar_select %p143, %s14, 1
      %s145 = smul.addr %s144, 72
      %s146 = smul.addr %s145, 4
      %s147 = scalar_lea.vmem %s0, %s146
      %p148 = pneg %p35
      %p149 = pneg %p32
      %p150 = pneg %p56
      %p151 = pneg %p53
      %p152 = pneg %p77
      %p153 = pneg %p74
      %p154 = pneg %p103
      %p155 = pneg %p100
      %p156 = scmp.lt.s32.totalorder %s14, 1
      %s157 = scalar_select %p156, %s14, 1
      %s158 = smul.addr %s157, 8
      %s159 = smul.addr %s158, 4
      %s160 = scalar_lea.vmem %s3, %s159
      %p161 = scmp.lt.s32.totalorder %s14, 1
      %s162 = scalar_select %p161, %s14, 1
      %s163 = smul.addr %s162, 72
      %s164 = smul.addr %s163, 4
      %s165 = scalar_lea.vmem %s0, %s164
      %p166 = scmp.lt.s32.totalorder %s14, 1
      %s167 = scalar_select %p166, %s14, 1
      %s168 = smul.addr %s167, 8
      %s169 = smul.addr %s168, 4
      %s170 = scalar_lea.vmem %s3, %s169
      %v172 = vld [vmem:[%s165] sm:$0xf]
      %v173 = vld [vmem:[%s165 + $0x4] sm:$0x1]
      %v174 = vld [vmem:[%s165 + $0x8] sm:$0xf]
      %v175 = vld [vmem:[%s165 + $0xc] sm:$0x1]
      %v176 = vld [vmem:[%s165 + $0x10] sm:$0xf]
      %v177 = vld [vmem:[%s165 + $0x14] sm:$0x1]
      %v178 = vld [vmem:[%s165 + $0x18] sm:$0xf]
      %v179 = vld [vmem:[%s165 + $0x1c] sm:$0x1]
      %v180 = vld [vmem:[%s165 + $0x20] sm:$0xf]
      %v181 = vld [vmem:[%s165 + $0x24] sm:$0x1]
      %v182 = vld [vmem:[%s165 + $0x28] sm:$0xf]
      %v183 = vld [vmem:[%s165 + $0x2c] sm:$0x1]
      %v184 = vld [vmem:[%s165 + $0x30] sm:$0xf]
      %v185 = vld [vmem:[%s165 + $0x34] sm:$0x1]
      %v186 = vld [vmem:[%s165 + $0x38] sm:$0xf]
      %v187 = vld [vmem:[%s165 + $0x3c] sm:$0x1]
      %v188 = vld [vmem:[%s165 + $0x40] sm:$0xf]
      %v189 = vld [vmem:[%s165 + $0x44] sm:$0x1]
      %v190 = vld [vmem:[%s165 + $0x48] sm:$0xf]
      %v191 = vld [vmem:[%s165 + $0x50] sm:$0xf]
      %v192 = vld [vmem:[%s165 + $0x58] sm:$0xf]
      %v193 = vld [vmem:[%s165 + $0x60] sm:$0xf]
      %v194 = vld [vmem:[%s165 + $0x68] sm:$0xf]
      %v195 = vld [vmem:[%s165 + $0x70] sm:$0xf]
      %v196 = vld [vmem:[%s165 + $0x78] sm:$0xf]
      %v197 = vld [vmem:[%s165 + $0x80] sm:$0xf]
      %v198 = vld [vmem:[%s165 + $0x88] sm:$0xf]
      %v199 = vld [vmem:[%s165 + $0x90] sm:$0xf]
      %v200 = vld [vmem:[%s165 + $0x94] sm:$0x1]
      %v201 = vld [vmem:[%s165 + $0x98] sm:$0xf]
      %v202 = vld [vmem:[%s165 + $0x9c] sm:$0x1]
      %v203 = vld [vmem:[%s165 + $0xa0] sm:$0xf]
      %v204 = vld [vmem:[%s165 + $0xa4] sm:$0x1]
      %v205 = vld [vmem:[%s165 + $0xa8] sm:$0xf]
      %v206 = vld [vmem:[%s165 + $0xac] sm:$0x1]
      %v207 = vld [vmem:[%s165 + $0xb0] sm:$0xf]
      %v208 = vld [vmem:[%s165 + $0xb4] sm:$0x1]
      %v209 = vld [vmem:[%s165 + $0xb8] sm:$0xf]
      %v210 = vld [vmem:[%s165 + $0xbc] sm:$0x1]
      %v211 = vld [vmem:[%s165 + $0xc0] sm:$0xf]
      %v212 = vld [vmem:[%s165 + $0xc4] sm:$0x1]
      %v213 = vld [vmem:[%s165 + $0xc8] sm:$0xf]
      %v214 = vld [vmem:[%s165 + $0xcc] sm:$0x1]
      %v215 = vld [vmem:[%s165 + $0xd8] sm:$0xf]
      %v216 = vld [vmem:[%s165 + $0xe0] sm:$0xf]
      %v217 = vld [vmem:[%s165 + $0xe8] sm:$0xf]
      %v218 = vld [vmem:[%s165 + $0xf0] sm:$0xf]
      %v219 = vld [vmem:[%s165 + $0xf8] sm:$0xf]
      %v220 = vld [vmem:[%s165 + $0x100] sm:$0xf]
      %v221 = vld [vmem:[%s165 + $0x108] sm:$0xf]
      %v222 = vld [vmem:[%s165 + $0x110] sm:$0xf]
      %v223 = vld [vmem:[%s1] sm:$0xf]
      %v224 = vld [vmem:[%s1 + $0x4] sm:$0xf]
      %v225 = vld [vmem:[%s1 + $0x8] sm:$0xf]
      %v226 = vld [vmem:[%s1 + $0xc] sm:$0xf]
      %s227 = scalar_lea.vmem %s1, 16
      %v228 = vld [vmem:[%s227] sm:$0xf]
      %v229 = vld [vmem:[%s227 + $0x4] sm:$0xf]
      %v230 = vld [vmem:[%s227 + $0x8] sm:$0xf]
      %v231 = vld [vmem:[%s227 + $0xc] sm:$0xf]
      %v240 = vunpack.c.l.b16 %v190
      %v241 = vunpack.c.l.b16 %v191
      %v242 = vunpack.c.l.b16 %v192
      %v243 = vunpack.c.l.b16 %v193
      %v244 = vunpack.c.l.b16 %v194
      %v245 = vunpack.c.l.b16 %v195
      %v246 = vunpack.c.l.b16 %v196
      %v247 = vunpack.c.l.b16 %v197
      %v248 = vpack.c.b16 %v241, %v240
      %v249 = vpack.c.b16 %v243, %v242
      %v250 = vpack.c.b16 %v245, %v244
      %v251 = vpack.c.b16 %v247, %v246
      %v256 = vunpack.c.l.b16 %v228
      %v257 = vunpack.c.l.b16 %v229
      %v258 = vunpack.c.l.b16 %v230
      %v259 = vunpack.c.l.b16 %v231
      %v260 = vpack.c.b16 %v257, %v256
      %v261 = vpack.c.b16 %v259, %v258
      %vm264 = vcmask 261120
      %v266 = vsel %vm264, %v248, 0
      %v269 = vsel %vm264, %v249, 0
      %v272 = vsel %vm264, %v250, 0
      %v275 = vsel %vm264, %v251, 0
      %277 = vmatprep.subr.bf16.mxu0 0
      %278 = vmatpush1.bf16.msra.mxu0 %v260
      %279 = vmatprep.subr.bf16.mxu0 0
      %280 = vmatpush1.bf16.msra.mxu0 %v261
      %281 = vmatprep.subr.bf16.mxu0 0
      %282 = vmatpush1.bf16.msra.mxu0 0
      %283 = vmatprep.subr.bf16.mxu0 0
      %284 = vmatpush1.bf16.msra.mxu0 0
      %285 = vmatprep.subr.bf16.mxu0 0
      %286 = vmatpush1.bf16.msra.mxu0 0
      %287 = vmatprep.subr.bf16.mxu0 0
      %288 = vmatpush1.bf16.msra.mxu0 0
      %289 = vmatprep.subr.bf16.mxu0 0
      %290 = vmatpush1.bf16.msra.mxu0 0
      %291 = vmatprep.subr.bf16.mxu0 0
      %292 = vmatpush1.bf16.msra.mxu0 0
      %293 = vmatprep.subr.bf16.mxu0 0
      %294 = vmatpush1.bf16.msra.mxu0 0
      %295 = vmatprep.subr.bf16.mxu0 0
      %296 = vmatpush1.bf16.msra.mxu0 0
      %297 = vmatprep.subr.bf16.mxu0 0
      %298 = vmatpush1.bf16.msra.mxu0 0
      %299 = vmatprep.subr.bf16.mxu0 0
      %300 = vmatpush1.bf16.msra.mxu0 0
      %301 = vmatprep.subr.bf16.mxu0 0
      %302 = vmatpush1.bf16.msra.mxu0 0
      %303 = vmatprep.subr.bf16.mxu0 0
      %304 = vmatpush1.bf16.msra.mxu0 0
      %305 = vmatprep.subr.bf16.mxu0 0
      %306 = vmatpush1.bf16.msra.mxu0 0
      %307 = vmatprep.subr.bf16.mxu0 0
      %308 = vmatpush1.bf16.msra.mxu0 0
      %309 = vmatprep.mubr.bf16.mxu0 0
      %310 = vmatmul.mubr.bf16.gmra.mrb[0].mxu0 %v266
      %v311 = vpop.f32.mrb[0].mxu0
      %v312 = vadd.f32 0.0, %v311
      %v313 = vpop.f32.mrb[0].mxu0
      %v314 = vpop.f32.mrb[0].mxu0
      %v315 = vadd.f32 0.0, %v314
      %v316 = vpop.f32.mrb[0].mxu0
      %317 = vmatprep.mubr.bf16.mxu0 0
      %318 = vmatmul.mubr.bf16.gmra.mrb[0].mxu0 %v269
      %v319 = vpop.f32.mrb[0].mxu0
      %v320 = vadd.f32 0.0, %v319
      %v321 = vpop.f32.mrb[0].mxu0
      %v322 = vpop.f32.mrb[0].mxu0
      %v323 = vadd.f32 0.0, %v322
      %v324 = vpop.f32.mrb[0].mxu0
      %325 = vmatprep.mubr.bf16.mxu0 0
      %326 = vmatmul.mubr.bf16.gmra.mrb[0].mxu0 %v272
      %v327 = vpop.f32.mrb[0].mxu0
      %v328 = vadd.f32 0.0, %v327
      %v329 = vpop.f32.mrb[0].mxu0
      %v330 = vpop.f32.mrb[0].mxu0
      %v331 = vadd.f32 0.0, %v330
      %v332 = vpop.f32.mrb[0].mxu0
      %333 = vmatprep.mubr.bf16.mxu0 0
      %334 = vmatmul.mubr.bf16.gmra.mrb[0].mxu0 %v275
      %v335 = vpop.f32.mrb[0].mxu0
      %v336 = vadd.f32 0.0, %v335
      %v337 = vpop.f32.mrb[0].mxu0
      %v338 = vpop.f32.mrb[0].mxu0
      %v339 = vadd.f32 0.0, %v338
      %v340 = vpop.f32.mrb[0].mxu0
      %341 = vdwg.mxu0
      %v350 = vunpack.c.l.b16 %v172
      %v351 = vunpack.c.l.b16 %v174
      %v352 = vunpack.c.l.b16 %v176
      %v353 = vunpack.c.l.b16 %v178
      %v354 = vunpack.c.l.b16 %v180
      %v355 = vunpack.c.l.b16 %v182
      %v356 = vunpack.c.l.b16 %v184
      %v357 = vunpack.c.l.b16 %v186
      %v358 = vpack.c.b16 %v351, %v350
      %v359 = vpack.c.b16 %v353, %v352
      %v360 = vpack.c.b16 %v355, %v354
      %v361 = vpack.c.b16 %v357, %v356
      %v366 = vunpack.c.l.b16 %v223
      %v367 = vunpack.c.l.b16 %v224
      %v368 = vunpack.c.l.b16 %v225
      %v369 = vunpack.c.l.b16 %v226
      %v370 = vpack.c.b16 %v367, %v366
      %v371 = vpack.c.b16 %v369, %v368
      %v375 = vsel %vm264, %v358, 0
      %v378 = vsel %vm264, %v359, 0
      %v381 = vsel %vm264, %v360, 0
      %v384 = vsel %vm264, %v361, 0
      %386 = vmatprep.subr.bf16.mxu0 0
      %387 = vmatpush1.bf16.msra.mxu0 %v370
      %388 = vmatprep.subr.bf16.mxu0 0
      %389 = vmatpush1.bf16.msra.mxu0 %v371
      %390 = vmatprep.subr.bf16.mxu0 0
      %391 = vmatpush1.bf16.msra.mxu0 0
      %392 = vmatprep.subr.bf16.mxu0 0
      %393 = vmatpush1.bf16.msra.mxu0 0
      %394 = vmatprep.subr.bf16.mxu0 0
      %395 = vmatpush1.bf16.msra.mxu0 0
      %396 = vmatprep.subr.bf16.mxu0 0
      %397 = vmatpush1.bf16.msra.mxu0 0
      %398 = vmatprep.subr.bf16.mxu0 0
      %399 = vmatpush1.bf16.msra.mxu0 0
      %400 = vmatprep.subr.bf16.mxu0 0
      %401 = vmatpush1.bf16.msra.mxu0 0
      %402 = vmatprep.subr.bf16.mxu0 0
      %403 = vmatpush1.bf16.msra.mxu0 0
      %404 = vmatprep.subr.bf16.mxu0 0
      %405 = vmatpush1.bf16.msra.mxu0 0
      %406 = vmatprep.subr.bf16.mxu0 0
      %407 = vmatpush1.bf16.msra.mxu0 0
      %408 = vmatprep.subr.bf16.mxu0 0
      %409 = vmatpush1.bf16.msra.mxu0 0
      %410 = vmatprep.subr.bf16.mxu0 0
      %411 = vmatpush1.bf16.msra.mxu0 0
      %412 = vmatprep.subr.bf16.mxu0 0
      %413 = vmatpush1.bf16.msra.mxu0 0
      %414 = vmatprep.subr.bf16.mxu0 0
      %415 = vmatpush1.bf16.msra.mxu0 0
      %416 = vmatprep.subr.bf16.mxu0 0
      %417 = vmatpush1.bf16.msra.mxu0 0
      %418 = vmatprep.mubr.bf16.mxu0 0
      %419 = vmatmul.mubr.bf16.gmra.mrb[0].mxu0 %v375
      %v420 = vpop.f32.mrb[0].mxu0
      %v421 = vadd.f32 %v312, %v420
      %v422 = vpop.f32.mrb[0].mxu0
      %v423 = vpop.f32.mrb[0].mxu0
      %v424 = vadd.f32 %v315, %v423
      %v425 = vpop.f32.mrb[0].mxu0
      %426 = vmatprep.mubr.bf16.mxu0 0
      %427 = vmatmul.mubr.bf16.gmra.mrb[0].mxu0 %v378
      %v428 = vpop.f32.mrb[0].mxu0
      %v429 = vadd.f32 %v320, %v428
      %v430 = vpop.f32.mrb[0].mxu0
      %v431 = vpop.f32.mrb[0].mxu0
      %v432 = vadd.f32 %v323, %v431
      %v433 = vpop.f32.mrb[0].mxu0
      %434 = vmatprep.mubr.bf16.mxu0 0
      %435 = vmatmul.mubr.bf16.gmra.mrb[0].mxu0 %v381
      %v436 = vpop.f32.mrb[0].mxu0
      %v437 = vadd.f32 %v328, %v436
      %v438 = vpop.f32.mrb[0].mxu0
      %v439 = vpop.f32.mrb[0].mxu0
      %v440 = vadd.f32 %v331, %v439
      %v441 = vpop.f32.mrb[0].mxu0
      %442 = vmatprep.mubr.bf16.mxu0 0
      %443 = vmatmul.mubr.bf16.gmra.mrb[0].mxu0 %v384
      %v444 = vpop.f32.mrb[0].mxu0
      %v445 = vadd.f32 %v336, %v444
      %v446 = vpop.f32.mrb[0].mxu0
      %v447 = vpop.f32.mrb[0].mxu0
      %v448 = vadd.f32 %v339, %v447
      %v449 = vpop.f32.mrb[0].mxu0
      %450 = vdwg.mxu0
      %vm451 = vsmask.f32 3328
      %vm452 = vsmask.f32 7440
      %vm453 = vmor %vm451, %vm452
      %v455 = vshrl.u32 %v172, 16
      %v457 = vrot.slane %v455, 4
      %v458 = vshll.u32 %v172, 16
      %v460 = vrot.slane %v458, 5
      %v461 = vor.u32 %v457, %v460
      %v462 = vrot.slane %v461, 4
      %v464 = vshll.u32 %v173, 16
      %v466 = vrot.slane %v464, 5
      %v467 = vsel %vm453, %v462, %v466
      %v469 = vshrl.u32 %v174, 16
      %v471 = vrot.slane %v469, 4
      %v472 = vshll.u32 %v174, 16
      %v474 = vrot.slane %v472, 5
      %v475 = vor.u32 %v471, %v474
      %v476 = vrot.slane %v475, 4
      %v478 = vshll.u32 %v175, 16
      %v480 = vrot.slane %v478, 5
      %v481 = vsel %vm453, %v476, %v480
      %v483 = vshrl.u32 %v176, 16
      %v485 = vrot.slane %v483, 4
      %v486 = vshll.u32 %v176, 16
      %v488 = vrot.slane %v486, 5
      %v489 = vor.u32 %v485, %v488
      %v490 = vrot.slane %v489, 4
      %v492 = vshll.u32 %v177, 16
      %v494 = vrot.slane %v492, 5
      %v495 = vsel %vm453, %v490, %v494
      %v497 = vshrl.u32 %v178, 16
      %v499 = vrot.slane %v497, 4
      %v500 = vshll.u32 %v178, 16
      %v502 = vrot.slane %v500, 5
      %v503 = vor.u32 %v499, %v502
      %v504 = vrot.slane %v503, 4
      %v506 = vshll.u32 %v179, 16
      %v508 = vrot.slane %v506, 5
      %v509 = vsel %vm453, %v504, %v508
      %v511 = vshrl.u32 %v180, 16
      %v513 = vrot.slane %v511, 4
      %v514 = vshll.u32 %v180, 16
      %v516 = vrot.slane %v514, 5
      %v517 = vor.u32 %v513, %v516
      %v518 = vrot.slane %v517, 4
      %v520 = vshll.u32 %v181, 16
      %v522 = vrot.slane %v520, 5
      %v523 = vsel %vm453, %v518, %v522
      %v525 = vshrl.u32 %v182, 16
      %v527 = vrot.slane %v525, 4
      %v528 = vshll.u32 %v182, 16
      %v530 = vrot.slane %v528, 5
      %v531 = vor.u32 %v527, %v530
      %v532 = vrot.slane %v531, 4
      %v534 = vshll.u32 %v183, 16
      %v536 = vrot.slane %v534, 5
      %v537 = vsel %vm453, %v532, %v536
      %v539 = vshrl.u32 %v184, 16
      %v541 = vrot.slane %v539, 4
      %v542 = vshll.u32 %v184, 16
      %v544 = vrot.slane %v542, 5
      %v545 = vor.u32 %v541, %v544
      %v546 = vrot.slane %v545, 4
      %v548 = vshll.u32 %v185, 16
      %v550 = vrot.slane %v548, 5
      %v551 = vsel %vm453, %v546, %v550
      %v553 = vshrl.u32 %v186, 16
      %v555 = vrot.slane %v553, 4
      %v556 = vshll.u32 %v186, 16
      %v558 = vrot.slane %v556, 5
      %v559 = vor.u32 %v555, %v558
      %v560 = vrot.slane %v559, 4
      %v562 = vshll.u32 %v187, 16
      %v564 = vrot.slane %v562, 5
      %v565 = vsel %vm453, %v560, %v564
      %s566 = scalar_lea.vmem %s1, 32
      %v567 = vld [vmem:[%s566] sm:$0xf]
      %v568 = vld [vmem:[%s566 + $0x4] sm:$0xf]
      %v569 = vld [vmem:[%s566 + $0x8] sm:$0xf]
      %v570 = vld [vmem:[%s566 + $0xc] sm:$0xf]
      %v571 = vunpack.c.l.b16 %v467
      %v572 = vunpack.c.l.b16 %v481
      %v573 = vunpack.c.l.b16 %v495
      %v574 = vunpack.c.l.b16 %v509
      %v575 = vunpack.c.l.b16 %v523
      %v576 = vunpack.c.l.b16 %v537
      %v577 = vunpack.c.l.b16 %v551
      %v578 = vunpack.c.l.b16 %v565
      %v579 = vpack.c.b16 %v572, %v571
      %v580 = vpack.c.b16 %v574, %v573
      %v581 = vpack.c.b16 %v576, %v575
      %v582 = vpack.c.b16 %v578, %v577
      %v587 = vunpack.c.l.b16 %v567
      %v588 = vunpack.c.l.b16 %v568
      %v589 = vunpack.c.l.b16 %v569
      %v590 = vunpack.c.l.b16 %v570
      %v591 = vpack.c.b16 %v588, %v587
      %v592 = vpack.c.b16 %v590, %v589
      %v596 = vsel %vm264, %v579, 0
      %v599 = vsel %vm264, %v580, 0
      %v602 = vsel %vm264, %v581, 0
      %v605 = vsel %vm264, %v582, 0
      %607 = vmatprep.subr.bf16.mxu0 0
      %608 = vmatpush1.bf16.msra.mxu0 %v591
      %609 = vmatprep.subr.bf16.mxu0 0
      %610 = vmatpush1.bf16.msra.mxu0 %v592
      %611 = vmatprep.subr.bf16.mxu0 0
      %612 = vmatpush1.bf16.msra.mxu0 0
      %613 = vmatprep.subr.bf16.mxu0 0
      %614 = vmatpush1.bf16.msra.mxu0 0
      %615 = vmatprep.subr.bf16.mxu0 0
      %616 = vmatpush1.bf16.msra.mxu0 0
      %617 = vmatprep.subr.bf16.mxu0 0
      %618 = vmatpush1.bf16.msra.mxu0 0
      %619 = vmatprep.subr.bf16.mxu0 0
      %620 = vmatpush1.bf16.msra.mxu0 0
      %621 = vmatprep.subr.bf16.mxu0 0
      %622 = vmatpush1.bf16.msra.mxu0 0
      %623 = vmatprep.subr.bf16.mxu0 0
      %624 = vmatpush1.bf16.msra.mxu0 0
      %625 = vmatprep.subr.bf16.mxu0 0
      %626 = vmatpush1.bf16.msra.mxu0 0
      %627 = vmatprep.subr.bf16.mxu0 0
      %628 = vmatpush1.bf16.msra.mxu0 0
      %629 = vmatprep.subr.bf16.mxu0 0
      %630 = vmatpush1.bf16.msra.mxu0 0
      %631 = vmatprep.subr.bf16.mxu0 0
      %632 = vmatpush1.bf16.msra.mxu0 0
      %633 = vmatprep.subr.bf16.mxu0 0
      %634 = vmatpush1.bf16.msra.mxu0 0
      %635 = vmatprep.subr.bf16.mxu0 0
      %636 = vmatpush1.bf16.msra.mxu0 0
      %637 = vmatprep.subr.bf16.mxu0 0
      %638 = vmatpush1.bf16.msra.mxu0 0
      %639 = vmatprep.mubr.bf16.mxu0 0
      %640 = vmatmul.mubr.bf16.gmra.mrb[0].mxu0 %v596
      %v641 = vpop.f32.mrb[0].mxu0
      %v642 = vadd.f32 0.0, %v641
      %v643 = vpop.f32.mrb[0].mxu0
      %v644 = vpop.f32.mrb[0].mxu0
      %v645 = vadd.f32 0.0, %v644
      %v646 = vpop.f32.mrb[0].mxu0
      %647 = vmatprep.mubr.bf16.mxu0 0
      %648 = vmatmul.mubr.bf16.gmra.mrb[0].mxu0 %v599
      %v649 = vpop.f32.mrb[0].mxu0
      %v650 = vadd.f32 0.0, %v649
      %v651 = vpop.f32.mrb[0].mxu0
      %v652 = vpop.f32.mrb[0].mxu0
      %v653 = vadd.f32 0.0, %v652
      %v654 = vpop.f32.mrb[0].mxu0
      %655 = vmatprep.mubr.bf16.mxu0 0
      %656 = vmatmul.mubr.bf16.gmra.mrb[0].mxu0 %v602
      %v657 = vpop.f32.mrb[0].mxu0
      %v658 = vadd.f32 0.0, %v657
      %v659 = vpop.f32.mrb[0].mxu0
      %v660 = vpop.f32.mrb[0].mxu0
      %v661 = vadd.f32 0.0, %v660
      %v662 = vpop.f32.mrb[0].mxu0
      %663 = vmatprep.mubr.bf16.mxu0 0
      %664 = vmatmul.mubr.bf16.gmra.mrb[0].mxu0 %v605
      %v665 = vpop.f32.mrb[0].mxu0
      %v666 = vadd.f32 0.0, %v665
      %v667 = vpop.f32.mrb[0].mxu0
      %v668 = vpop.f32.mrb[0].mxu0
      %v669 = vadd.f32 0.0, %v668
      %v670 = vpop.f32.mrb[0].mxu0
      %671 = vdwg.mxu0
      %v672 = vadd.f32 %v421, %v642
      %v673 = vadd.f32 %v424, %v645
      %v674 = vadd.f32 %v429, %v650
      %v675 = vadd.f32 %v432, %v653
      %v676 = vadd.f32 %v437, %v658
      %v677 = vadd.f32 %v440, %v661
      %v678 = vadd.f32 %v445, %v666
      %v679 = vadd.f32 %v448, %v669
      %s680 = scalar_lea.vmem %s1, 48
      %v681 = vld [vmem:[%s680] sm:$0xf]
      %v682 = vld [vmem:[%s680 + $0x4] sm:$0xf]
      %v683 = vld [vmem:[%s680 + $0x8] sm:$0xf]
      %v684 = vld [vmem:[%s680 + $0xc] sm:$0xf]
      %v693 = vunpack.c.l.b16 %v199
      %v694 = vunpack.c.l.b16 %v201
      %v695 = vunpack.c.l.b16 %v203
      %v696 = vunpack.c.l.b16 %v205
      %v697 = vunpack.c.l.b16 %v207
      %v698 = vunpack.c.l.b16 %v209
      %v699 = vunpack.c.l.b16 %v211
      %v700 = vunpack.c.l.b16 %v213
      %v701 = vpack.c.b16 %v694, %v693
      %v702 = vpack.c.b16 %v696, %v695
      %v703 = vpack.c.b16 %v698, %v697
      %v704 = vpack.c.b16 %v700, %v699
      %v709 = vunpack.c.l.b16 %v681
      %v710 = vunpack.c.l.b16 %v682
      %v711 = vunpack.c.l.b16 %v683
      %v712 = vunpack.c.l.b16 %v684
      %v713 = vpack.c.b16 %v710, %v709
      %v714 = vpack.c.b16 %v712, %v711
      %v718 = vsel %vm264, %v701, 0
      %v721 = vsel %vm264, %v702, 0
      %v724 = vsel %vm264, %v703, 0
      %v727 = vsel %vm264, %v704, 0
      %729 = vmatprep.subr.bf16.mxu0 0
      %730 = vmatpush1.bf16.msra.mxu0 %v713
      %731 = vmatprep.subr.bf16.mxu0 0
      %732 = vmatpush1.bf16.msra.mxu0 %v714
      %733 = vmatprep.subr.bf16.mxu0 0
      %734 = vmatpush1.bf16.msra.mxu0 0
      %735 = vmatprep.subr.bf16.mxu0 0
      %736 = vmatpush1.bf16.msra.mxu0 0
      %737 = vmatprep.subr.bf16.mxu0 0
      %738 = vmatpush1.bf16.msra.mxu0 0
      %739 = vmatprep.subr.bf16.mxu0 0
      %740 = vmatpush1.bf16.msra.mxu0 0
      %741 = vmatprep.subr.bf16.mxu0 0
      %742 = vmatpush1.bf16.msra.mxu0 0
      %743 = vmatprep.subr.bf16.mxu0 0
      %744 = vmatpush1.bf16.msra.mxu0 0
      %745 = vmatprep.subr.bf16.mxu0 0
      %746 = vmatpush1.bf16.msra.mxu0 0
      %747 = vmatprep.subr.bf16.mxu0 0
      %748 = vmatpush1.bf16.msra.mxu0 0
      %749 = vmatprep.subr.bf16.mxu0 0
      %750 = vmatpush1.bf16.msra.mxu0 0
      %751 = vmatprep.subr.bf16.mxu0 0
      %752 = vmatpush1.bf16.msra.mxu0 0
      %753 = vmatprep.subr.bf16.mxu0 0
      %754 = vmatpush1.bf16.msra.mxu0 0
      %755 = vmatprep.subr.bf16.mxu0 0
      %756 = vmatpush1.bf16.msra.mxu0 0
      %757 = vmatprep.subr.bf16.mxu0 0
      %758 = vmatpush1.bf16.msra.mxu0 0
      %759 = vmatprep.subr.bf16.mxu0 0
      %760 = vmatpush1.bf16.msra.mxu0 0
      %761 = vmatprep.mubr.bf16.mxu0 0
      %762 = vmatmul.mubr.bf16.gmra.mrb[0].mxu0 %v718
      %v763 = vpop.f32.mrb[0].mxu0
      %v764 = vadd.f32 0.0, %v763
      %v765 = vpop.f32.mrb[0].mxu0
      %v766 = vpop.f32.mrb[0].mxu0
      %v767 = vadd.f32 0.0, %v766
      %v768 = vpop.f32.mrb[0].mxu0
      %769 = vmatprep.mubr.bf16.mxu0 0
      %770 = vmatmul.mubr.bf16.gmra.mrb[0].mxu0 %v721
      %v771 = vpop.f32.mrb[0].mxu0
      %v772 = vadd.f32 0.0, %v771
      %v773 = vpop.f32.mrb[0].mxu0
      %v774 = vpop.f32.mrb[0].mxu0
      %v775 = vadd.f32 0.0, %v774
      %v776 = vpop.f32.mrb[0].mxu0
      %777 = vmatprep.mubr.bf16.mxu0 0
      %778 = vmatmul.mubr.bf16.gmra.mrb[0].mxu0 %v724
      %v779 = vpop.f32.mrb[0].mxu0
      %v780 = vadd.f32 0.0, %v779
      %v781 = vpop.f32.mrb[0].mxu0
      %v782 = vpop.f32.mrb[0].mxu0
      %v783 = vadd.f32 0.0, %v782
      %v784 = vpop.f32.mrb[0].mxu0
      %785 = vmatprep.mubr.bf16.mxu0 0
      %786 = vmatmul.mubr.bf16.gmra.mrb[0].mxu0 %v727
      %v787 = vpop.f32.mrb[0].mxu0
      %v788 = vadd.f32 0.0, %v787
      %v789 = vpop.f32.mrb[0].mxu0
      %v790 = vpop.f32.mrb[0].mxu0
      %v791 = vadd.f32 0.0, %v790
      %v792 = vpop.f32.mrb[0].mxu0
      %793 = vdwg.mxu0
      %v794 = vadd.f32 %v672, %v764
      %v795 = vadd.f32 %v673, %v767
      %v796 = vadd.f32 %v674, %v772
      %v797 = vadd.f32 %v675, %v775
      %v798 = vadd.f32 %v676, %v780
      %v799 = vadd.f32 %v677, %v783
      %v800 = vadd.f32 %v678, %v788
      %v801 = vadd.f32 %v679, %v791
      %s802 = scalar_lea.vmem %s1, 64
      %v803 = vld [vmem:[%s802] sm:$0xf]
      %v804 = vld [vmem:[%s802 + $0x4] sm:$0xf]
      %v805 = vld [vmem:[%s802 + $0x8] sm:$0xf]
      %v806 = vld [vmem:[%s802 + $0xc] sm:$0xf]
      %v815 = vunpack.c.l.b16 %v215
      %v816 = vunpack.c.l.b16 %v216
      %v817 = vunpack.c.l.b16 %v217
      %v818 = vunpack.c.l.b16 %v218
      %v819 = vunpack.c.l.b16 %v219
      %v820 = vunpack.c.l.b16 %v220
      %v821 = vunpack.c.l.b16 %v221
      %v822 = vunpack.c.l.b16 %v222
      %v823 = vpack.c.b16 %v816, %v815
      %v824 = vpack.c.b16 %v818, %v817
      %v825 = vpack.c.b16 %v820, %v819
      %v826 = vpack.c.b16 %v822, %v821
      %v831 = vunpack.c.l.b16 %v803
      %v832 = vunpack.c.l.b16 %v804
      %v833 = vunpack.c.l.b16 %v805
      %v834 = vunpack.c.l.b16 %v806
      %v835 = vpack.c.b16 %v832, %v831
      %v836 = vpack.c.b16 %v834, %v833
      %v840 = vsel %vm264, %v823, 0
      %v843 = vsel %vm264, %v824, 0
      %v846 = vsel %vm264, %v825, 0
      %v849 = vsel %vm264, %v826, 0
      %851 = vmatprep.subr.bf16.mxu0 0
      %852 = vmatpush1.bf16.msra.mxu0 %v835
      %853 = vmatprep.subr.bf16.mxu0 0
      %854 = vmatpush1.bf16.msra.mxu0 %v836
      %855 = vmatprep.subr.bf16.mxu0 0
      %856 = vmatpush1.bf16.msra.mxu0 0
      %857 = vmatprep.subr.bf16.mxu0 0
      %858 = vmatpush1.bf16.msra.mxu0 0
      %859 = vmatprep.subr.bf16.mxu0 0
      %860 = vmatpush1.bf16.msra.mxu0 0
      %861 = vmatprep.subr.bf16.mxu0 0
      %862 = vmatpush1.bf16.msra.mxu0 0
      %863 = vmatprep.subr.bf16.mxu0 0
      %864 = vmatpush1.bf16.msra.mxu0 0
      %865 = vmatprep.subr.bf16.mxu0 0
      %866 = vmatpush1.bf16.msra.mxu0 0
      %867 = vmatprep.subr.bf16.mxu0 0
      %868 = vmatpush1.bf16.msra.mxu0 0
      %869 = vmatprep.subr.bf16.mxu0 0
      %870 = vmatpush1.bf16.msra.mxu0 0
      %871 = vmatprep.subr.bf16.mxu0 0
      %872 = vmatpush1.bf16.msra.mxu0 0
      %873 = vmatprep.subr.bf16.mxu0 0
      %874 = vmatpush1.bf16.msra.mxu0 0
      %875 = vmatprep.subr.bf16.mxu0 0
      %876 = vmatpush1.bf16.msra.mxu0 0
      %877 = vmatprep.subr.bf16.mxu0 0
      %878 = vmatpush1.bf16.msra.mxu0 0
      %879 = vmatprep.subr.bf16.mxu0 0
      %880 = vmatpush1.bf16.msra.mxu0 0
      %881 = vmatprep.subr.bf16.mxu0 0
      %882 = vmatpush1.bf16.msra.mxu0 0
      %883 = vmatprep.mubr.bf16.mxu0 0
      %884 = vmatmul.mubr.bf16.gmra.mrb[0].mxu0 %v840
      %v885 = vpop.f32.mrb[0].mxu0
      %v886 = vadd.f32 0.0, %v885
      %v887 = vpop.f32.mrb[0].mxu0
      %v888 = vpop.f32.mrb[0].mxu0
      %v889 = vadd.f32 0.0, %v888
      %v890 = vpop.f32.mrb[0].mxu0
      %891 = vmatprep.mubr.bf16.mxu0 0
      %892 = vmatmul.mubr.bf16.gmra.mrb[0].mxu0 %v843
      %v893 = vpop.f32.mrb[0].mxu0
      %v894 = vadd.f32 0.0, %v893
      %v895 = vpop.f32.mrb[0].mxu0
      %v896 = vpop.f32.mrb[0].mxu0
      %v897 = vadd.f32 0.0, %v896
      %v898 = vpop.f32.mrb[0].mxu0
      %899 = vmatprep.mubr.bf16.mxu0 0
      %900 = vmatmul.mubr.bf16.gmra.mrb[0].mxu0 %v846
      %v901 = vpop.f32.mrb[0].mxu0
      %v902 = vadd.f32 0.0, %v901
      %v903 = vpop.f32.mrb[0].mxu0
      %v904 = vpop.f32.mrb[0].mxu0
      %v905 = vadd.f32 0.0, %v904
      %v906 = vpop.f32.mrb[0].mxu0
      %907 = vmatprep.mubr.bf16.mxu0 0
      %908 = vmatmul.mubr.bf16.gmra.mrb[0].mxu0 %v849
      %v909 = vpop.f32.mrb[0].mxu0
      %v910 = vadd.f32 0.0, %v909
      %v911 = vpop.f32.mrb[0].mxu0
      %v912 = vpop.f32.mrb[0].mxu0
      %v913 = vadd.f32 0.0, %v912
      %v914 = vpop.f32.mrb[0].mxu0
      %915 = vdwg.mxu0
      %v916 = vadd.f32 %v794, %v886
      %v917 = vadd.f32 %v795, %v889
      %v918 = vadd.f32 %v796, %v894
      %v919 = vadd.f32 %v797, %v897
      %v920 = vadd.f32 %v798, %v902
      %v921 = vadd.f32 %v799, %v905
      %v922 = vadd.f32 %v800, %v910
      %v923 = vadd.f32 %v801, %v913
      %v925 = vshrl.u32 %v199, 16
      %v927 = vrot.slane %v925, 4
      %v928 = vshll.u32 %v199, 16
      %v930 = vrot.slane %v928, 5
      %v931 = vor.u32 %v927, %v930
      %v932 = vrot.slane %v931, 4
      %v934 = vshll.u32 %v200, 16
      %v936 = vrot.slane %v934, 5
      %v937 = vsel %vm453, %v932, %v936
      %v939 = vshrl.u32 %v201, 16
      %v941 = vrot.slane %v939, 4
      %v942 = vshll.u32 %v201, 16
      %v944 = vrot.slane %v942, 5
      %v945 = vor.u32 %v941, %v944
      %v946 = vrot.slane %v945, 4
      %v948 = vshll.u32 %v202, 16
      %v950 = vrot.slane %v948, 5
      %v951 = vsel %vm453, %v946, %v950
      %v953 = vshrl.u32 %v203, 16
      %v955 = vrot.slane %v953, 4
      %v956 = vshll.u32 %v203, 16
      %v958 = vrot.slane %v956, 5
      %v959 = vor.u32 %v955, %v958
      %v960 = vrot.slane %v959, 4
      %v962 = vshll.u32 %v204, 16
      %v964 = vrot.slane %v962, 5
      %v965 = vsel %vm453, %v960, %v964
      %v967 = vshrl.u32 %v205, 16
      %v969 = vrot.slane %v967, 4
      %v970 = vshll.u32 %v205, 16
      %v972 = vrot.slane %v970, 5
      %v973 = vor.u32 %v969, %v972
      %v974 = vrot.slane %v973, 4
      %v976 = vshll.u32 %v206, 16
      %v978 = vrot.slane %v976, 5
      %v979 = vsel %vm453, %v974, %v978
      %v981 = vshrl.u32 %v207, 16
      %v983 = vrot.slane %v981, 4
      %v984 = vshll.u32 %v207, 16
      %v986 = vrot.slane %v984, 5
      %v987 = vor.u32 %v983, %v986
      %v988 = vrot.slane %v987, 4
      %v990 = vshll.u32 %v208, 16
      %v992 = vrot.slane %v990, 5
      %v993 = vsel %vm453, %v988, %v992
      %v995 = vshrl.u32 %v209, 16
      %v997 = vrot.slane %v995, 4
      %v998 = vshll.u32 %v209, 16
      %v1000 = vrot.slane %v998, 5
      %v1001 = vor.u32 %v997, %v1000
      %v1002 = vrot.slane %v1001, 4
      %v1004 = vshll.u32 %v210, 16
      %v1006 = vrot.slane %v1004, 5
      %v1007 = vsel %vm453, %v1002, %v1006
      %v1009 = vshrl.u32 %v211, 16
      %v1011 = vrot.slane %v1009, 4
      %v1012 = vshll.u32 %v211, 16
      %v1014 = vrot.slane %v1012, 5
      %v1015 = vor.u32 %v1011, %v1014
      %v1016 = vrot.slane %v1015, 4
      %v1018 = vshll.u32 %v212, 16
      %v1020 = vrot.slane %v1018, 5
      %v1021 = vsel %vm453, %v1016, %v1020
      %v1023 = vshrl.u32 %v213, 16
      %v1025 = vrot.slane %v1023, 4
      %v1026 = vshll.u32 %v213, 16
      %v1028 = vrot.slane %v1026, 5
      %v1029 = vor.u32 %v1025, %v1028
      %v1030 = vrot.slane %v1029, 4
      %v1032 = vshll.u32 %v214, 16
      %v1034 = vrot.slane %v1032, 5
      %v1035 = vsel %vm453, %v1030, %v1034
      %s1036 = scalar_lea.vmem %s1, 80
      %v1037 = vld [vmem:[%s1036] sm:$0xf]
      %v1038 = vld [vmem:[%s1036 + $0x4] sm:$0xf]
      %v1039 = vld [vmem:[%s1036 + $0x8] sm:$0xf]
      %v1040 = vld [vmem:[%s1036 + $0xc] sm:$0xf]
      %v1041 = vunpack.c.l.b16 %v937
      %v1042 = vunpack.c.l.b16 %v951
      %v1043 = vunpack.c.l.b16 %v965
      %v1044 = vunpack.c.l.b16 %v979
      %v1045 = vunpack.c.l.b16 %v993
      %v1046 = vunpack.c.l.b16 %v1007
      %v1047 = vunpack.c.l.b16 %v1021
      %v1048 = vunpack.c.l.b16 %v1035
      %v1049 = vpack.c.b16 %v1042, %v1041
      %v1050 = vpack.c.b16 %v1044, %v1043
      %v1051 = vpack.c.b16 %v1046, %v1045
      %v1052 = vpack.c.b16 %v1048, %v1047
      %v1057 = vunpack.c.l.b16 %v1037
      %v1058 = vunpack.c.l.b16 %v1038
      %v1059 = vunpack.c.l.b16 %v1039
      %v1060 = vunpack.c.l.b16 %v1040
      %v1061 = vpack.c.b16 %v1058, %v1057
      %v1062 = vpack.c.b16 %v1060, %v1059
      %v1066 = vsel %vm264, %v1049, 0
      %v1069 = vsel %vm264, %v1050, 0
      %v1072 = vsel %vm264, %v1051, 0
      %v1075 = vsel %vm264, %v1052, 0
      %1077 = vmatprep.subr.bf16.mxu0 0
      %1078 = vmatpush1.bf16.msra.mxu0 %v1061
      %1079 = vmatprep.subr.bf16.mxu0 0
      %1080 = vmatpush1.bf16.msra.mxu0 %v1062
      %1081 = vmatprep.subr.bf16.mxu0 0
      %1082 = vmatpush1.bf16.msra.mxu0 0
      %1083 = vmatprep.subr.bf16.mxu0 0
      %1084 = vmatpush1.bf16.msra.mxu0 0
      %1085 = vmatprep.subr.bf16.mxu0 0
      %1086 = vmatpush1.bf16.msra.mxu0 0
      %1087 = vmatprep.subr.bf16.mxu0 0
      %1088 = vmatpush1.bf16.msra.mxu0 0
      %1089 = vmatprep.subr.bf16.mxu0 0
      %1090 = vmatpush1.bf16.msra.mxu0 0
      %1091 = vmatprep.subr.bf16.mxu0 0
      %1092 = vmatpush1.bf16.msra.mxu0 0
      %1093 = vmatprep.subr.bf16.mxu0 0
      %1094 = vmatpush1.bf16.msra.mxu0 0
      %1095 = vmatprep.subr.bf16.mxu0 0
      %1096 = vmatpush1.bf16.msra.mxu0 0
      %1097 = vmatprep.subr.bf16.mxu0 0
      %1098 = vmatpush1.bf16.msra.mxu0 0
      %1099 = vmatprep.subr.bf16.mxu0 0
      %1100 = vmatpush1.bf16.msra.mxu0 0
      %1101 = vmatprep.subr.bf16.mxu0 0
      %1102 = vmatpush1.bf16.msra.mxu0 0
      %1103 = vmatprep.subr.bf16.mxu0 0
      %1104 = vmatpush1.bf16.msra.mxu0 0
      %1105 = vmatprep.subr.bf16.mxu0 0
      %1106 = vmatpush1.bf16.msra.mxu0 0
      %1107 = vmatprep.subr.bf16.mxu0 0
      %1108 = vmatpush1.bf16.msra.mxu0 0
      %1109 = vmatprep.mubr.bf16.mxu0 0
      %1110 = vmatmul.mubr.bf16.gmra.mrb[0].mxu0 %v1066
      %v1111 = vpop.f32.mrb[0].mxu0
      %v1112 = vadd.f32 0.0, %v1111
      %v1113 = vpop.f32.mrb[0].mxu0
      %v1114 = vpop.f32.mrb[0].mxu0
      %v1115 = vadd.f32 0.0, %v1114
      %v1116 = vpop.f32.mrb[0].mxu0
      %1117 = vmatprep.mubr.bf16.mxu0 0
      %1118 = vmatmul.mubr.bf16.gmra.mrb[0].mxu0 %v1069
      %v1119 = vpop.f32.mrb[0].mxu0
      %v1120 = vadd.f32 0.0, %v1119
      %v1121 = vpop.f32.mrb[0].mxu0
      %v1122 = vpop.f32.mrb[0].mxu0
      %v1123 = vadd.f32 0.0, %v1122
      %v1124 = vpop.f32.mrb[0].mxu0
      %1125 = vmatprep.mubr.bf16.mxu0 0
      %1126 = vmatmul.mubr.bf16.gmra.mrb[0].mxu0 %v1072
      %v1127 = vpop.f32.mrb[0].mxu0
      %v1128 = vadd.f32 0.0, %v1127
      %v1129 = vpop.f32.mrb[0].mxu0
      %v1130 = vpop.f32.mrb[0].mxu0
      %v1131 = vadd.f32 0.0, %v1130
      %v1132 = vpop.f32.mrb[0].mxu0
      %1133 = vmatprep.mubr.bf16.mxu0 0
      %1134 = vmatmul.mubr.bf16.gmra.mrb[0].mxu0 %v1075
      %v1135 = vpop.f32.mrb[0].mxu0
      %v1136 = vadd.f32 0.0, %v1135
      %v1137 = vpop.f32.mrb[0].mxu0
      %v1138 = vpop.f32.mrb[0].mxu0
      %v1139 = vadd.f32 0.0, %v1138
      %v1140 = vpop.f32.mrb[0].mxu0
      %1141 = vdwg.mxu0
      %v1142 = vadd.f32 %v916, %v1112
      %v1143 = vadd.f32 %v917, %v1115
      %v1144 = vadd.f32 %v918, %v1120
      %v1145 = vadd.f32 %v919, %v1123
      %v1146 = vadd.f32 %v920, %v1128
      %v1147 = vadd.f32 %v921, %v1131
      %v1148 = vadd.f32 %v922, %v1136
      %v1149 = vadd.f32 %v923, %v1139
      %s1150 = scalar_lea.vmem %s1, 96
      %v1151 = vld [vmem:[%s1150] sm:$0xf]
      %v1152 = vld [vmem:[%s1150 + $0x4] sm:$0xf]
      %v1153 = vld [vmem:[%s1150 + $0x8] sm:$0xf]
      %v1154 = vld [vmem:[%s1150 + $0xc] sm:$0xf]
      %v1156 = vunpack.c.l.b16 %v188
      %v1157 = vpack.c.b16 %v352, %v351
      %v1158 = vpack.c.b16 %v354, %v353
      %v1159 = vpack.c.b16 %v356, %v355
      %v1160 = vpack.c.b16 %v1156, %v357
      %v1165 = vunpack.c.l.b16 %v1151
      %v1166 = vunpack.c.l.b16 %v1152
      %v1167 = vunpack.c.l.b16 %v1153
      %v1168 = vunpack.c.l.b16 %v1154
      %v1169 = vpack.c.b16 %v1166, %v1165
      %v1170 = vpack.c.b16 %v1168, %v1167
      %v1174 = vsel %vm264, %v1157, 0
      %v1177 = vsel %vm264, %v1158, 0
      %v1180 = vsel %vm264, %v1159, 0
      %v1183 = vsel %vm264, %v1160, 0
      %1185 = vmatprep.subr.bf16.mxu0 0
      %1186 = vmatpush1.bf16.msra.mxu0 %v1169
      %1187 = vmatprep.subr.bf16.mxu0 0
      %1188 = vmatpush1.bf16.msra.mxu0 %v1170
      %1189 = vmatprep.subr.bf16.mxu0 0
      %1190 = vmatpush1.bf16.msra.mxu0 0
      %1191 = vmatprep.subr.bf16.mxu0 0
      %1192 = vmatpush1.bf16.msra.mxu0 0
      %1193 = vmatprep.subr.bf16.mxu0 0
      %1194 = vmatpush1.bf16.msra.mxu0 0
      %1195 = vmatprep.subr.bf16.mxu0 0
      %1196 = vmatpush1.bf16.msra.mxu0 0
      %1197 = vmatprep.subr.bf16.mxu0 0
      %1198 = vmatpush1.bf16.msra.mxu0 0
      %1199 = vmatprep.subr.bf16.mxu0 0
      %1200 = vmatpush1.bf16.msra.mxu0 0
      %1201 = vmatprep.subr.bf16.mxu0 0
      %1202 = vmatpush1.bf16.msra.mxu0 0
      %1203 = vmatprep.subr.bf16.mxu0 0
      %1204 = vmatpush1.bf16.msra.mxu0 0
      %1205 = vmatprep.subr.bf16.mxu0 0
      %1206 = vmatpush1.bf16.msra.mxu0 0
      %1207 = vmatprep.subr.bf16.mxu0 0
      %1208 = vmatpush1.bf16.msra.mxu0 0
      %1209 = vmatprep.subr.bf16.mxu0 0
      %1210 = vmatpush1.bf16.msra.mxu0 0
      %1211 = vmatprep.subr.bf16.mxu0 0
      %1212 = vmatpush1.bf16.msra.mxu0 0
      %1213 = vmatprep.subr.bf16.mxu0 0
      %1214 = vmatpush1.bf16.msra.mxu0 0
      %1215 = vmatprep.subr.bf16.mxu0 0
      %1216 = vmatpush1.bf16.msra.mxu0 0
      %1217 = vmatprep.mubr.bf16.mxu0 0
      %1218 = vmatmul.mubr.bf16.gmra.mrb[0].mxu0 %v1174
      %v1219 = vpop.f32.mrb[0].mxu0
      %v1220 = vadd.f32 0.0, %v1219
      %v1221 = vpop.f32.mrb[0].mxu0
      %v1222 = vpop.f32.mrb[0].mxu0
      %v1223 = vadd.f32 0.0, %v1222
      %v1224 = vpop.f32.mrb[0].mxu0
      %1225 = vmatprep.mubr.bf16.mxu0 0
      %1226 = vmatmul.mubr.bf16.gmra.mrb[0].mxu0 %v1177
      %v1227 = vpop.f32.mrb[0].mxu0
      %v1228 = vadd.f32 0.0, %v1227
      %v1229 = vpop.f32.mrb[0].mxu0
      %v1230 = vpop.f32.mrb[0].mxu0
      %v1231 = vadd.f32 0.0, %v1230
      %v1232 = vpop.f32.mrb[0].mxu0
      %1233 = vmatprep.mubr.bf16.mxu0 0
      %1234 = vmatmul.mubr.bf16.gmra.mrb[0].mxu0 %v1180
      %v1235 = vpop.f32.mrb[0].mxu0
      %v1236 = vadd.f32 0.0, %v1235
      %v1237 = vpop.f32.mrb[0].mxu0
      %v1238 = vpop.f32.mrb[0].mxu0
      %v1239 = vadd.f32 0.0, %v1238
      %v1240 = vpop.f32.mrb[0].mxu0
      %1241 = vmatprep.mubr.bf16.mxu0 0
      %1242 = vmatmul.mubr.bf16.gmra.mrb[0].mxu0 %v1183
      %v1243 = vpop.f32.mrb[0].mxu0
      %v1244 = vadd.f32 0.0, %v1243
      %v1245 = vpop.f32.mrb[0].mxu0
      %v1246 = vpop.f32.mrb[0].mxu0
      %v1247 = vadd.f32 0.0, %v1246
      %v1248 = vpop.f32.mrb[0].mxu0
      %1249 = vdwg.mxu0
      %v1250 = vadd.f32 %v1142, %v1220
      %v1251 = vadd.f32 %v1143, %v1223
      %v1252 = vadd.f32 %v1144, %v1228
      %v1253 = vadd.f32 %v1145, %v1231
      %v1254 = vadd.f32 %v1146, %v1236
      %v1255 = vadd.f32 %v1147, %v1239
      %v1256 = vadd.f32 %v1148, %v1244
      %v1257 = vadd.f32 %v1149, %v1247
      %s1258 = scalar_lea.vmem %s1, 112
      %v1259 = vld [vmem:[%s1258] sm:$0xf]
      %v1260 = vld [vmem:[%s1258 + $0x4] sm:$0xf]
      %v1261 = vld [vmem:[%s1258 + $0x8] sm:$0xf]
      %v1262 = vld [vmem:[%s1258 + $0xc] sm:$0xf]
      %v1264 = vunpack.c.l.b16 %v198
      %v1265 = vpack.c.b16 %v242, %v241
      %v1266 = vpack.c.b16 %v244, %v243
      %v1267 = vpack.c.b16 %v246, %v245
      %v1268 = vpack.c.b16 %v1264, %v247
      %v1273 = vunpack.c.l.b16 %v1259
      %v1274 = vunpack.c.l.b16 %v1260
      %v1275 = vunpack.c.l.b16 %v1261
      %v1276 = vunpack.c.l.b16 %v1262
      %v1277 = vpack.c.b16 %v1274, %v1273
      %v1278 = vpack.c.b16 %v1276, %v1275
      %v1282 = vsel %vm264, %v1265, 0
      %v1285 = vsel %vm264, %v1266, 0
      %v1288 = vsel %vm264, %v1267, 0
      %v1291 = vsel %vm264, %v1268, 0
      %1293 = vmatprep.subr.bf16.mxu0 0
      %1294 = vmatpush1.bf16.msra.mxu0 %v1277
      %1295 = vmatprep.subr.bf16.mxu0 0
      %1296 = vmatpush1.bf16.msra.mxu0 %v1278
      %1297 = vmatprep.subr.bf16.mxu0 0
      %1298 = vmatpush1.bf16.msra.mxu0 0
      %1299 = vmatprep.subr.bf16.mxu0 0
      %1300 = vmatpush1.bf16.msra.mxu0 0
      %1301 = vmatprep.subr.bf16.mxu0 0
      %1302 = vmatpush1.bf16.msra.mxu0 0
      %1303 = vmatprep.subr.bf16.mxu0 0
      %1304 = vmatpush1.bf16.msra.mxu0 0
      %1305 = vmatprep.subr.bf16.mxu0 0
      %1306 = vmatpush1.bf16.msra.mxu0 0
      %1307 = vmatprep.subr.bf16.mxu0 0
      %1308 = vmatpush1.bf16.msra.mxu0 0
      %1309 = vmatprep.subr.bf16.mxu0 0
      %1310 = vmatpush1.bf16.msra.mxu0 0
      %1311 = vmatprep.subr.bf16.mxu0 0
      %1312 = vmatpush1.bf16.msra.mxu0 0
      %1313 = vmatprep.subr.bf16.mxu0 0
      %1314 = vmatpush1.bf16.msra.mxu0 0
      %1315 = vmatprep.subr.bf16.mxu0 0
      %1316 = vmatpush1.bf16.msra.mxu0 0
      %1317 = vmatprep.subr.bf16.mxu0 0
      %1318 = vmatpush1.bf16.msra.mxu0 0
      %1319 = vmatprep.subr.bf16.mxu0 0
      %1320 = vmatpush1.bf16.msra.mxu0 0
      %1321 = vmatprep.subr.bf16.mxu0 0
      %1322 = vmatpush1.bf16.msra.mxu0 0
      %1323 = vmatprep.subr.bf16.mxu0 0
      %1324 = vmatpush1.bf16.msra.mxu0 0
      %1325 = vmatprep.mubr.bf16.mxu0 0
      %1326 = vmatmul.mubr.bf16.gmra.mrb[0].mxu0 %v1282
      %v1327 = vpop.f32.mrb[0].mxu0
      %v1328 = vadd.f32 0.0, %v1327
      %v1329 = vpop.f32.mrb[0].mxu0
      %v1330 = vpop.f32.mrb[0].mxu0
      %v1331 = vadd.f32 0.0, %v1330
      %v1332 = vpop.f32.mrb[0].mxu0
      %1333 = vmatprep.mubr.bf16.mxu0 0
      %1334 = vmatmul.mubr.bf16.gmra.mrb[0].mxu0 %v1285
      %v1335 = vpop.f32.mrb[0].mxu0
      %v1336 = vadd.f32 0.0, %v1335
      %v1337 = vpop.f32.mrb[0].mxu0
      %v1338 = vpop.f32.mrb[0].mxu0
      %v1339 = vadd.f32 0.0, %v1338
      %v1340 = vpop.f32.mrb[0].mxu0
      %1341 = vmatprep.mubr.bf16.mxu0 0
      %1342 = vmatmul.mubr.bf16.gmra.mrb[0].mxu0 %v1288
      %v1343 = vpop.f32.mrb[0].mxu0
      %v1344 = vadd.f32 0.0, %v1343
      %v1345 = vpop.f32.mrb[0].mxu0
      %v1346 = vpop.f32.mrb[0].mxu0
      %v1347 = vadd.f32 0.0, %v1346
      %v1348 = vpop.f32.mrb[0].mxu0
      %1349 = vmatprep.mubr.bf16.mxu0 0
      %1350 = vmatmul.mubr.bf16.gmra.mrb[0].mxu0 %v1291
      %v1351 = vpop.f32.mrb[0].mxu0
      %v1352 = vadd.f32 0.0, %v1351
      %v1353 = vpop.f32.mrb[0].mxu0
      %v1354 = vpop.f32.mrb[0].mxu0
      %v1355 = vadd.f32 0.0, %v1354
      %v1356 = vpop.f32.mrb[0].mxu0
      %1357 = vdwg.mxu0
      %v1358 = vadd.f32 %v1250, %v1328
      %v1359 = vadd.f32 %v1251, %v1331
      %v1360 = vadd.f32 %v1252, %v1336
      %v1361 = vadd.f32 %v1253, %v1339
      %v1362 = vadd.f32 %v1254, %v1344
      %v1363 = vadd.f32 %v1255, %v1347
      %v1364 = vadd.f32 %v1256, %v1352
      %v1365 = vadd.f32 %v1257, %v1355
      %v1367 = vshrl.u32 %v188, 16
      %v1369 = vrot.slane %v1367, 4
      %v1370 = vshll.u32 %v188, 16
      %v1372 = vrot.slane %v1370, 5
      %v1373 = vor.u32 %v1369, %v1372
      %v1374 = vrot.slane %v1373, 4
      %v1376 = vshll.u32 %v189, 16
      %v1378 = vrot.slane %v1376, 5
      %v1379 = vsel %vm453, %v1374, %v1378
      %s1380 = scalar_lea.vmem %s1, 128
      %v1381 = vld [vmem:[%s1380] sm:$0xf]
      %v1382 = vld [vmem:[%s1380 + $0x4] sm:$0xf]
      %v1383 = vld [vmem:[%s1380 + $0x8] sm:$0xf]
      %v1384 = vld [vmem:[%s1380 + $0xc] sm:$0xf]
      %v1385 = vunpack.c.l.b16 %v1379
      %v1386 = vpack.c.b16 %v573, %v572
      %v1387 = vpack.c.b16 %v575, %v574
      %v1388 = vpack.c.b16 %v577, %v576
      %v1389 = vpack.c.b16 %v1385, %v578
      %v1394 = vunpack.c.l.b16 %v1381
      %v1395 = vunpack.c.l.b16 %v1382
      %v1396 = vunpack.c.l.b16 %v1383
      %v1397 = vunpack.c.l.b16 %v1384
      %v1398 = vpack.c.b16 %v1395, %v1394
      %v1399 = vpack.c.b16 %v1397, %v1396
      %v1403 = vsel %vm264, %v1386, 0
      %v1406 = vsel %vm264, %v1387, 0
      %v1409 = vsel %vm264, %v1388, 0
      %v1412 = vsel %vm264, %v1389, 0
      %1414 = vmatprep.subr.bf16.mxu0 0
      %1415 = vmatpush1.bf16.msra.mxu0 %v1398
      %1416 = vmatprep.subr.bf16.mxu0 0
      %1417 = vmatpush1.bf16.msra.mxu0 %v1399
      %1418 = vmatprep.subr.bf16.mxu0 0
      %1419 = vmatpush1.bf16.msra.mxu0 0
      %1420 = vmatprep.subr.bf16.mxu0 0
      %1421 = vmatpush1.bf16.msra.mxu0 0
      %1422 = vmatprep.subr.bf16.mxu0 0
      %1423 = vmatpush1.bf16.msra.mxu0 0
      %1424 = vmatprep.subr.bf16.mxu0 0
      %1425 = vmatpush1.bf16.msra.mxu0 0
      %1426 = vmatprep.subr.bf16.mxu0 0
      %1427 = vmatpush1.bf16.msra.mxu0 0
      %1428 = vmatprep.subr.bf16.mxu0 0
      %1429 = vmatpush1.bf16.msra.mxu0 0
      %1430 = vmatprep.subr.bf16.mxu0 0
      %1431 = vmatpush1.bf16.msra.mxu0 0
      %1432 = vmatprep.subr.bf16.mxu0 0
      %1433 = vmatpush1.bf16.msra.mxu0 0
      %1434 = vmatprep.subr.bf16.mxu0 0
      %1435 = vmatpush1.bf16.msra.mxu0 0
      %1436 = vmatprep.subr.bf16.mxu0 0
      %1437 = vmatpush1.bf16.msra.mxu0 0
      %1438 = vmatprep.subr.bf16.mxu0 0
      %1439 = vmatpush1.bf16.msra.mxu0 0
      %1440 = vmatprep.subr.bf16.mxu0 0
      %1441 = vmatpush1.bf16.msra.mxu0 0
      %1442 = vmatprep.subr.bf16.mxu0 0
      %1443 = vmatpush1.bf16.msra.mxu0 0
      %1444 = vmatprep.subr.bf16.mxu0 0
      %1445 = vmatpush1.bf16.msra.mxu0 0
      %1446 = vmatprep.mubr.bf16.mxu0 0
      %1447 = vmatmul.mubr.bf16.gmra.mrb[0].mxu0 %v1403
      %v1448 = vpop.f32.mrb[0].mxu0
      %v1449 = vadd.f32 0.0, %v1448
      %v1450 = vpop.f32.mrb[0].mxu0
      %v1451 = vpop.f32.mrb[0].mxu0
      %v1452 = vadd.f32 0.0, %v1451
      %v1453 = vpop.f32.mrb[0].mxu0
      %1454 = vmatprep.mubr.bf16.mxu0 0
      %1455 = vmatmul.mubr.bf16.gmra.mrb[0].mxu0 %v1406
      %v1456 = vpop.f32.mrb[0].mxu0
      %v1457 = vadd.f32 0.0, %v1456
      %v1458 = vpop.f32.mrb[0].mxu0
      %v1459 = vpop.f32.mrb[0].mxu0
      %v1460 = vadd.f32 0.0, %v1459
      %v1461 = vpop.f32.mrb[0].mxu0
      %1462 = vmatprep.mubr.bf16.mxu0 0
      %1463 = vmatmul.mubr.bf16.gmra.mrb[0].mxu0 %v1409
      %v1464 = vpop.f32.mrb[0].mxu0
      %v1465 = vadd.f32 0.0, %v1464
      %v1466 = vpop.f32.mrb[0].mxu0
      %v1467 = vpop.f32.mrb[0].mxu0
      %v1468 = vadd.f32 0.0, %v1467
      %v1469 = vpop.f32.mrb[0].mxu0
      %1470 = vmatprep.mubr.bf16.mxu0 0
      %1471 = vmatmul.mubr.bf16.gmra.mrb[0].mxu0 %v1412
      %v1472 = vpop.f32.mrb[0].mxu0
      %v1473 = vadd.f32 0.0, %v1472
      %v1474 = vpop.f32.mrb[0].mxu0
      %v1475 = vpop.f32.mrb[0].mxu0
      %v1476 = vadd.f32 0.0, %v1475
      %v1477 = vpop.f32.mrb[0].mxu0
      %1478 = vdwg.mxu0
      %v1479 = vadd.f32 %v1358, %v1449
      %v1480 = vadd.f32 %v1359, %v1452
      %v1481 = vadd.f32 %v1360, %v1457
      %v1482 = vadd.f32 %v1361, %v1460
      %v1483 = vadd.f32 %v1362, %v1465
      %v1484 = vadd.f32 %v1363, %v1468
      %v1485 = vadd.f32 %v1364, %v1473
      %v1486 = vadd.f32 %v1365, %v1476
      %v1487 = vld [vmem:[%s2] sm:$0x1]
      %v1489 = vlaneseq
      %v1490 = vshrl.u32 %v1489, 7
      %v1491 = vsub.s32 0, %v1490
      %v1492 = vrot.slane %v1487, %v1491
      %v1494 = vadd.f32 %v1479, %v1492
      %v1495 = vadd.f32 %v1480, %v1492
      %v1496 = vadd.f32 %v1481, %v1492
      %v1497 = vadd.f32 %v1482, %v1492
      %v1498 = vadd.f32 %v1483, %v1492
      %v1499 = vadd.f32 %v1484, %v1492
      %v1500 = vadd.f32 %v1485, %v1492
      %v1501 = vadd.f32 %v1486, %v1492
      %v1502 = vmax.f32 %v1494, 0.0
      %v1503 = vmax.f32 %v1495, 0.0
      %v1504 = vmax.f32 %v1496, 0.0
      %v1505 = vmax.f32 %v1497, 0.0
      %v1506 = vmax.f32 %v1498, 0.0
      %v1507 = vmax.f32 %v1499, 0.0
      %v1508 = vmax.f32 %v1500, 0.0
      %v1509 = vmax.f32 %v1501, 0.0
      %v1510 = vpack.c.bf16 %v1503, %v1502
      %v1511 = vpack.c.bf16 %v1505, %v1504
      %v1512 = vpack.c.bf16 %v1507, %v1506
      %v1513 = vpack.c.bf16 %v1509, %v1508
      %v1518 = vunpack.c.l.b16 %v1510
      %v1519 = vunpack.c.h.b16 %v1510
      %v1520 = vunpack.c.l.b16 %v1511
      %v1521 = vunpack.c.h.b16 %v1511
      %v1522 = vunpack.c.l.b16 %v1512
      %v1523 = vunpack.c.h.b16 %v1512
      %v1524 = vunpack.c.l.b16 %v1513
      %v1525 = vunpack.c.h.b16 %v1513
      %v1526 = vpack.c.b16 %v1518, %v1518
      %v1527 = vpack.c.b16 %v1519, %v1519
      %v1528 = vpack.c.b16 %v1520, %v1520
      %v1529 = vpack.c.b16 %v1521, %v1521
      %v1530 = vpack.c.b16 %v1522, %v1522
      %v1531 = vpack.c.b16 %v1523, %v1523
      %v1532 = vpack.c.b16 %v1524, %v1524
      %v1533 = vpack.c.b16 %v1525, %v1525
      %vm1542 = vcmask 519168
      %1543 = vst.msk [vmem:[%s170] sm:$0xf] %vm1542, %v1526
      %1544 = vst.msk [vmem:[%s170 + $0x4] sm:$0xf] %vm1542, %v1527
      %1545 = vst.msk [vmem:[%s170 + $0x8] sm:$0xf] %vm1542, %v1528
      %1546 = vst.msk [vmem:[%s170 + $0xc] sm:$0xf] %vm1542, %v1529
      %1547 = vst.msk [vmem:[%s170 + $0x10] sm:$0xf] %vm1542, %v1530
      %1548 = vst.msk [vmem:[%s170 + $0x14] sm:$0xf] %vm1542, %v1531
      %1549 = vst.msk [vmem:[%s170 + $0x18] sm:$0xf] %vm1542, %v1532
      %1550 = vst.msk [vmem:[%s170 + $0x1c] sm:$0xf] %vm1542, %v1533
      %p1551 = scmp.lt.s32.totalorder %s14, 1
      %s1552 = scalar_select %p1551, %s14, 1
      %s1553 = smul.addr %s1552, 8
      %s1554 = smul.addr %s1553, 4
      %s1555 = scalar_lea.vmem %s3, %s1554
      // Predicated region
      $region33: #{forward.4} parent=31 // pred_check
        %p1556 = pneg %p100
      $region34: #{forward.4} parent=31 // pred_check_branch
        %1558 = sbr.rel (%p1556) target = $region36
      $region35: #{forward.4} parent=31 // pred_region
        _
      $region36: #{forward.4} parent=31 // pred_fallthru
        _
    $region32: #{forward.4} parent=5 // pred_fallthru
      _
    %p1559 = scmp.le.s32.totalorder 2, %s9
    // Predicated region
    $region37: #{forward.4} parent=5 // pred_check
      %p1560 = pneg %p1559
    $region38: #{forward.4} parent=5 // pred_check_branch
      %1562 = sbr.rel (%p1560) target = $region40
    $region39: #{forward.4} parent=5 // pred_region
      %s1563 = ssub.s32 %s9, 2
      // Predicated region
      $region41: #{forward.4} parent=39 // pred_check
        %p1564 = pneg %p106
      $region42: #{forward.4} parent=39 // pred_check_branch
        %1566 = sbr.rel (%p1564) target = $region44
      $region43: #{forward.4} parent=39 // pred_region
        %p1567 = scmp.lt.s32.totalorder %s15, 1
        %s1568 = scalar_select %p1567, %s15, 1
        %s1569 = smul.addr %s1568, 8
        %s1570 = smul.addr %s1569, 4
        %s1571 = scalar_lea.vmem %s3, %s1570
      $region44: #{forward.4} parent=39 // pred_fallthru
        _
    $region40: #{forward.4} parent=5 // pred_fallthru
      _
  $region6: #{forward.4} parent=0 // loop_footer
    %s13 = sadd.s32 1, %s9
  $region7: #{forward.4} parent=0 // loop_footer_branch
    %8 = sbr.rel target = $region3
  $region8: #{forward.4} parent=0 // loop_exit
    _

// kernel: forward.5
$region0: #{forward.5}
  #allocation0 [shape = 'u32[]', space=smem, size = 0x4, offset = 0x4, fixed_abs, tag = 'smem constant byte address 0x4 - core index']
  #allocation1 [shape = 'u32[144,128]{1,0:T(1,128)}', space=vmem, size = 0x12000, scoped, tag = 'internal scratch']
  %s0 = inlined_call_operand.vmem [shape: bf16[2,10,10,64], index: 0, kind: input, shape index: {}]
  %s1 = inlined_call_operand.vmem [shape: bf16[9,64,64], index: 1, kind: input, shape index: {}]
  %s2 = inlined_call_operand.vmem [shape: f32[1,64], index: 2, kind: input, shape index: {}]
  %s3 = inlined_call_operand.vmem [shape: bf16[64,128], index: 3, kind: input, shape index: {}]
  %s4 = inlined_call_operand.vmem [shape: f32[1,128], index: 4, kind: input, shape index: {}, may-alias: {4,6,8,10}]
  %s5 = inlined_call_operand.vmem [shape: bf16[64,128], index: 5, kind: input, shape index: {}]
  %s6 = inlined_call_operand.vmem [shape: f32[1,128], index: 6, kind: input, shape index: {}, may-alias: {4,6,8,10}]
  %s7 = inlined_call_operand.vmem [shape: bf16[128,128], index: 7, kind: input, shape index: {}]
  %s8 = inlined_call_operand.vmem [shape: f32[1,128], index: 8, kind: input, shape index: {}, may-alias: {4,6,8,10}]
  %s9 = inlined_call_operand.vmem [shape: bf16[128,128], index: 9, kind: input, shape index: {}]
  %s10 = inlined_call_operand.vmem [shape: f32[1,128], index: 10, kind: input, shape index: {}, may-alias: {4,6,8,10}]
  %s11 = inlined_call_operand.vmem [shape: f32[2,64,128], index: 11, kind: output, shape index: {0}]
  %s12 = inlined_call_operand.vmem [shape: f32[2,1,128], index: 12, kind: output, shape index: {1}]
  %13 = xla_tuple %s11, %s12
  %s14 = sld [smem:[#allocation0]]
  $region85: #{forward.5} parent=0
    _
  %s16 = ssub.s32 1, %s14
  %s17 = scalar_select 0, %s16, %s14
  loop: start=0, step=1, limit=4
  $region2: #{forward.5} parent=0 // loop_pre_header
    _
  $region3: #{forward.5} parent=0 // loop_header
    %s19 = sphi 0, %s23
    %p20 = scmp.ge.s32.totalorder %s19, 4
    %s29 = sphi 0, %s31
    %s32 = sphi 0, %s29
    %s33 = sphi 0, %s32
    %s49 = sphi 0, %s33
    %s53 = sphi 0, %s53
    %s55 = sphi 0, %s53
    %s56 = sphi 0, %s55
    %s70 = sphi 0, %s56
    %s74 = sphi 0, %s74
    %s76 = sphi 0, %s74
    %s77 = sphi 0, %s76
    %s91 = sphi 0, %s77
    %s95 = sphi 0, %s95
    %s97 = sphi 0, %s95
    %s98 = sphi 0, %s97
    %s112 = sphi 0, %s98
    %s116 = sphi 0, %s116
    %s118 = sphi 0, %s116
    %s119 = sphi 0, %s118
    %s133 = sphi 0, %s119
    %s137 = sphi 0, %s137
    %s139 = sphi 0, %s137
    %s140 = sphi 0, %s139
    %s154 = sphi 0, %s140
    %s158 = sphi 0, %s158
    %s160 = sphi 0, %s158
    %s161 = sphi 0, %s160
    %s175 = sphi 0, %s161
    %s179 = sphi 0, %s179
    %s181 = sphi 0, %s179
    %s182 = sphi 0, %s181
    %s196 = sphi 0, %s182
    %s200 = sphi 0, %s200
    %s202 = sphi 0, %s200
    %s203 = sphi 0, %s202
    %s217 = sphi 0, %s203
    %s221 = sphi 0, %s221
    %s223 = sphi 0, %s221
    %s224 = sphi 0, %s223
    %s238 = sphi 0, %s224
    %s242 = sphi 0, %s242
    %s244 = sphi 0, %s242
    %s245 = sphi 0, %s244
    %s259 = sphi 0, %s245
    %s265 = sphi 0, %s267
    %s268 = sphi 0, %s265
    %s269 = sphi 0, %s268
    %s285 = sphi 0, %s269
    %s291 = sphi 0, %s293
    %s294 = sphi 0, %s291
    %s295 = sphi 0, %s294
    %s311 = sphi 0, %s295
  $region4: #{forward.5} parent=0 // loop_header_branch
    %22 = sbr.rel (%p20) target = $region8
  $region5: #{forward.5} parent=0 // loop_body
    %s24 = ssub.s32 %s19, 1
    %s25 = ssub.s32 %s19, 2
    %s26 = sadd.s32 %s19, 1
    %s27 = ssub.s32 %s19, %s26
    %p28 = scmp.eq.s32.totalorder %s27, 0
    %s30 = sadd.s32 %s29, 1
    %s31 = scalar_select %p28, %s29, %s30
    %p34 = pneg %p28
    %p35 = scmp.eq.s32.totalorder %s19, 1
    %p36 = por %p34, %p35
    %p37 = scmp.ne.s32.totalorder %s29, %s32
    %p38 = scmp.eq.s32.totalorder %s19, 0
    %p39 = por %p37, %p38
    %p40 = scmp.ne.s32.totalorder %s29, %s32
    %p41 = scmp.eq.s32.totalorder %s24, 1
    %p42 = por %p40, %p41
    %p43 = scmp.ne.s32.totalorder %s32, %s33
    %p44 = scmp.eq.s32.totalorder %s24, 0
    %p45 = por %p43, %p44
    %p46 = scmp.ne.s32.totalorder %s32, %s33
    %p47 = scmp.eq.s32.totalorder %s25, 1
    %p48 = por %p46, %p47
    %p50 = scmp.ne.s32.totalorder %s33, %s49
    %p51 = scmp.eq.s32.totalorder %s25, 0
    %p52 = por %p50, %p51
    %s54 = sadd.s32 %s53, 1
    %p57 = scmp.eq.s32.totalorder %s19, 1
    %p58 = scmp.ne.s32.totalorder %s53, %s55
    %p59 = scmp.eq.s32.totalorder %s19, 0
    %p60 = por %p58, %p59
    %p61 = scmp.ne.s32.totalorder %s53, %s55
    %p62 = scmp.eq.s32.totalorder %s24, 1
    %p63 = por %p61, %p62
    %p64 = scmp.ne.s32.totalorder %s55, %s56
    %p65 = scmp.eq.s32.totalorder %s24, 0
    %p66 = por %p64, %p65
    %p67 = scmp.ne.s32.totalorder %s55, %s56
    %p68 = scmp.eq.s32.totalorder %s25, 1
    %p69 = por %p67, %p68
    %p71 = scmp.ne.s32.totalorder %s56, %s70
    %p72 = scmp.eq.s32.totalorder %s25, 0
    %p73 = por %p71, %p72
    %s75 = sadd.s32 %s74, 1
    %p78 = scmp.eq.s32.totalorder %s19, 1
    %p79 = scmp.ne.s32.totalorder %s74, %s76
    %p80 = scmp.eq.s32.totalorder %s19, 0
    %p81 = por %p79, %p80
    %p82 = scmp.ne.s32.totalorder %s74, %s76
    %p83 = scmp.eq.s32.totalorder %s24, 1
    %p84 = por %p82, %p83
    %p85 = scmp.ne.s32.totalorder %s76, %s77
    %p86 = scmp.eq.s32.totalorder %s24, 0
    %p87 = por %p85, %p86
    %p88 = scmp.ne.s32.totalorder %s76, %s77
    %p89 = scmp.eq.s32.totalorder %s25, 1
    %p90 = por %p88, %p89
    %p92 = scmp.ne.s32.totalorder %s77, %s91
    %p93 = scmp.eq.s32.totalorder %s25, 0
    %p94 = por %p92, %p93
    %s96 = sadd.s32 %s95, 1
    %p99 = scmp.eq.s32.totalorder %s19, 1
    %p100 = scmp.ne.s32.totalorder %s95, %s97
    %p101 = scmp.eq.s32.totalorder %s19, 0
    %p102 = por %p100, %p101
    %p103 = scmp.ne.s32.totalorder %s95, %s97
    %p104 = scmp.eq.s32.totalorder %s24, 1
    %p105 = por %p103, %p104
    %p106 = scmp.ne.s32.totalorder %s97, %s98
    %p107 = scmp.eq.s32.totalorder %s24, 0
    %p108 = por %p106, %p107
    %p109 = scmp.ne.s32.totalorder %s97, %s98
    %p110 = scmp.eq.s32.totalorder %s25, 1
    %p111 = por %p109, %p110
    %p113 = scmp.ne.s32.totalorder %s98, %s112
    %p114 = scmp.eq.s32.totalorder %s25, 0
    %p115 = por %p113, %p114
    %s117 = sadd.s32 %s116, 1
    %p120 = scmp.eq.s32.totalorder %s19, 1
    %p121 = scmp.ne.s32.totalorder %s116, %s118
    %p122 = scmp.eq.s32.totalorder %s19, 0
    %p123 = por %p121, %p122
    %p124 = scmp.ne.s32.totalorder %s116, %s118
    %p125 = scmp.eq.s32.totalorder %s24, 1
    %p126 = por %p124, %p125
    %p127 = scmp.ne.s32.totalorder %s118, %s119
    %p128 = scmp.eq.s32.totalorder %s24, 0
    %p129 = por %p127, %p128
    %p130 = scmp.ne.s32.totalorder %s118, %s119
    %p131 = scmp.eq.s32.totalorder %s25, 1
    %p132 = por %p130, %p131
    %p134 = scmp.ne.s32.totalorder %s119, %s133
    %p135 = scmp.eq.s32.totalorder %s25, 0
    %p136 = por %p134, %p135
    %s138 = sadd.s32 %s137, 1
    %p141 = scmp.eq.s32.totalorder %s19, 1
    %p142 = scmp.ne.s32.totalorder %s137, %s139
    %p143 = scmp.eq.s32.totalorder %s19, 0
    %p144 = por %p142, %p143
    %p145 = scmp.ne.s32.totalorder %s137, %s139
    %p146 = scmp.eq.s32.totalorder %s24, 1
    %p147 = por %p145, %p146
    %p148 = scmp.ne.s32.totalorder %s139, %s140
    %p149 = scmp.eq.s32.totalorder %s24, 0
    %p150 = por %p148, %p149
    %p151 = scmp.ne.s32.totalorder %s139, %s140
    %p152 = scmp.eq.s32.totalorder %s25, 1
    %p153 = por %p151, %p152
    %p155 = scmp.ne.s32.totalorder %s140, %s154
    %p156 = scmp.eq.s32.totalorder %s25, 0
    %p157 = por %p155, %p156
    %s159 = sadd.s32 %s158, 1
    %p162 = scmp.eq.s32.totalorder %s19, 1
    %p163 = scmp.ne.s32.totalorder %s158, %s160
    %p164 = scmp.eq.s32.totalorder %s19, 0
    %p165 = por %p163, %p164
    %p166 = scmp.ne.s32.totalorder %s158, %s160
    %p167 = scmp.eq.s32.totalorder %s24, 1
    %p168 = por %p166, %p167
    %p169 = scmp.ne.s32.totalorder %s160, %s161
    %p170 = scmp.eq.s32.totalorder %s24, 0
    %p171 = por %p169, %p170
    %p172 = scmp.ne.s32.totalorder %s160, %s161
    %p173 = scmp.eq.s32.totalorder %s25, 1
    %p174 = por %p172, %p173
    %p176 = scmp.ne.s32.totalorder %s161, %s175
    %p177 = scmp.eq.s32.totalorder %s25, 0
    %p178 = por %p176, %p177
    %s180 = sadd.s32 %s179, 1
    %p183 = scmp.eq.s32.totalorder %s19, 1
    %p184 = scmp.ne.s32.totalorder %s179, %s181
    %p185 = scmp.eq.s32.totalorder %s19, 0
    %p186 = por %p184, %p185
    %p187 = scmp.ne.s32.totalorder %s179, %s181
    %p188 = scmp.eq.s32.totalorder %s24, 1
    %p189 = por %p187, %p188
    %p190 = scmp.ne.s32.totalorder %s181, %s182
    %p191 = scmp.eq.s32.totalorder %s24, 0
    %p192 = por %p190, %p191
    %p193 = scmp.ne.s32.totalorder %s181, %s182
    %p194 = scmp.eq.s32.totalorder %s25, 1
    %p195 = por %p193, %p194
    %p197 = scmp.ne.s32.totalorder %s182, %s196
    %p198 = scmp.eq.s32.totalorder %s25, 0
    %p199 = por %p197, %p198
    %s201 = sadd.s32 %s200, 1
    %p204 = scmp.eq.s32.totalorder %s19, 1
    %p205 = scmp.ne.s32.totalorder %s200, %s202
    %p206 = scmp.eq.s32.totalorder %s19, 0
    %p207 = por %p205, %p206
    %p208 = scmp.ne.s32.totalorder %s200, %s202
    %p209 = scmp.eq.s32.totalorder %s24, 1
    %p210 = por %p208, %p209
    %p211 = scmp.ne.s32.totalorder %s202, %s203
    %p212 = scmp.eq.s32.totalorder %s24, 0
    %p213 = por %p211, %p212
    %p214 = scmp.ne.s32.totalorder %s202, %s203
    %p215 = scmp.eq.s32.totalorder %s25, 1
    %p216 = por %p214, %p215
    %p218 = scmp.ne.s32.totalorder %s203, %s217
    %p219 = scmp.eq.s32.totalorder %s25, 0
    %p220 = por %p218, %p219
    %s222 = sadd.s32 %s221, 1
    %p225 = scmp.eq.s32.totalorder %s19, 1
    %p226 = scmp.ne.s32.totalorder %s221, %s223
    %p227 = scmp.eq.s32.totalorder %s19, 0
    %p228 = por %p226, %p227
    %p229 = scmp.ne.s32.totalorder %s221, %s223
    %p230 = scmp.eq.s32.totalorder %s24, 1
    %p231 = por %p229, %p230
    %p232 = scmp.ne.s32.totalorder %s223, %s224
    %p233 = scmp.eq.s32.totalorder %s24, 0
    %p234 = por %p232, %p233
    %p235 = scmp.ne.s32.totalorder %s223, %s224
    %p236 = scmp.eq.s32.totalorder %s25, 1
    %p237 = por %p235, %p236
    %p239 = scmp.ne.s32.totalorder %s224, %s238
    %p240 = scmp.eq.s32.totalorder %s25, 0
    %p241 = por %p239, %p240
    %s243 = sadd.s32 %s242, 1
    %p246 = scmp.eq.s32.totalorder %s19, 1
    %p247 = scmp.ne.s32.totalorder %s242, %s244
    %p248 = scmp.eq.s32.totalorder %s19, 0
    %p249 = por %p247, %p248
    %p250 = scmp.ne.s32.totalorder %s242, %s244
    %p251 = scmp.eq.s32.totalorder %s24, 1
    %p252 = por %p250, %p251
    %p253 = scmp.ne.s32.totalorder %s244, %s245
    %p254 = scmp.eq.s32.totalorder %s24, 0
    %p255 = por %p253, %p254
    %p256 = scmp.ne.s32.totalorder %s244, %s245
    %p257 = scmp.eq.s32.totalorder %s25, 1
    %p258 = por %p256, %p257
    %p260 = scmp.ne.s32.totalorder %s245, %s259
    %p261 = scmp.eq.s32.totalorder %s25, 0
    %p262 = por %p260, %p261
    %s263 = ssub.s32 %s19, %s26
    %p264 = scmp.eq.s32.totalorder %s263, 0
    %s266 = sadd.s32 %s265, 1
    %s267 = scalar_select %p264, %s265, %s266
    %p270 = pneg %p264
    %p271 = scmp.eq.s32.totalorder %s19, 1
    %p272 = por %p270, %p271
    %p273 = scmp.ne.s32.totalorder %s265, %s268
    %p274 = scmp.eq.s32.totalorder %s19, 0
    %p275 = por %p273, %p274
    %p276 = scmp.ne.s32.totalorder %s265, %s268
    %p277 = scmp.eq.s32.totalorder %s24, 1
    %p278 = por %p276, %p277
    %p279 = scmp.ne.s32.totalorder %s268, %s269
    %p280 = scmp.eq.s32.totalorder %s24, 0
    %p281 = por %p279, %p280
    %p282 = scmp.ne.s32.totalorder %s268, %s269
    %p283 = scmp.eq.s32.totalorder %s25, 1
    %p284 = por %p282, %p283
    %p286 = scmp.ne.s32.totalorder %s269, %s285
    %p287 = scmp.eq.s32.totalorder %s25, 0
    %p288 = por %p286, %p287
    %s289 = ssub.s32 %s19, %s26
    %p290 = scmp.eq.s32.totalorder %s289, 0
    %s292 = sadd.s32 %s291, 1
    %s293 = scalar_select %p290, %s291, %s292
    %p296 = pneg %p290
    %p297 = scmp.eq.s32.totalorder %s19, 1
    %p298 = por %p296, %p297
    %p299 = scmp.ne.s32.totalorder %s291, %s294
    %p300 = scmp.eq.s32.totalorder %s19, 0
    %p301 = por %p299, %p300
    %p302 = scmp.ne.s32.totalorder %s291, %s294
    %p303 = scmp.eq.s32.totalorder %s24, 1
    %p304 = por %p302, %p303
    %p305 = scmp.ne.s32.totalorder %s294, %s295
    %p306 = scmp.eq.s32.totalorder %s24, 0
    %p307 = por %p305, %p306
    %p308 = scmp.ne.s32.totalorder %s294, %s295
    %p309 = scmp.eq.s32.totalorder %s25, 1
    %p310 = por %p308, %p309
    %p312 = scmp.ne.s32.totalorder %s295, %s311
    %p313 = scmp.eq.s32.totalorder %s25, 0
    %p314 = por %p312, %p313
    %p315 = scmp.le.s32.totalorder 1, %s19
    %p316 = scmp.lt.s32.totalorder %s19, 3
    %p317 = pnand %p315, %p316
    %p318 = pneg %p317
    // Predicated region
    $region9: #{forward.5} parent=5 // pred_check
      _
    $region10: #{forward.5} parent=5 // pred_check_branch
      %320 = sbr.rel (%p317) target = $region12
    $region11: #{forward.5} parent=5 // pred_region
      %s321 = ssub.s32 %s19, 1
      // Predicated region
      $region13: #{forward.5} parent=11 // pred_check
        %p322 = pneg %p66
      $region14: #{forward.5} parent=11 // pred_check_branch
        %324 = sbr.rel (%p322) target = $region16
      $region15: #{forward.5} parent=11 // pred_region
        _
      $region16: #{forward.5} parent=11 // pred_fallthru
        _
      // Predicated region
      $region17: #{forward.5} parent=11 // pred_check
        %p325 = pneg %p87
      $region18: #{forward.5} parent=11 // pred_check_branch
        %327 = sbr.rel (%p325) target = $region20
      $region19: #{forward.5} parent=11 // pred_region
        _
      $region20: #{forward.5} parent=11 // pred_fallthru
        _
      // Predicated region
      $region21: #{forward.5} parent=11 // pred_check
        %p328 = pneg %p108
      $region22: #{forward.5} parent=11 // pred_check_branch
        %330 = sbr.rel (%p328) target = $region24
      $region23: #{forward.5} parent=11 // pred_region
        _
      $region24: #{forward.5} parent=11 // pred_fallthru
        _
      // Predicated region
      $region25: #{forward.5} parent=11 // pred_check
        %p331 = pneg %p129
      $region26: #{forward.5} parent=11 // pred_check_branch
        %333 = sbr.rel (%p331) target = $region28
      $region27: #{forward.5} parent=11 // pred_region
        _
      $region28: #{forward.5} parent=11 // pred_fallthru
        _
      // Predicated region
      $region29: #{forward.5} parent=11 // pred_check
        %p334 = pneg %p150
      $region30: #{forward.5} parent=11 // pred_check_branch
        %336 = sbr.rel (%p334) target = $region32
      $region31: #{forward.5} parent=11 // pred_region
        _
      $region32: #{forward.5} parent=11 // pred_fallthru
        _
      // Predicated region
      $region33: #{forward.5} parent=11 // pred_check
        %p337 = pneg %p171
      $region34: #{forward.5} parent=11 // pred_check_branch
        %339 = sbr.rel (%p337) target = $region36
      $region35: #{forward.5} parent=11 // pred_region
        _
      $region36: #{forward.5} parent=11 // pred_fallthru
        _
      // Predicated region
      $region37: #{forward.5} parent=11 // pred_check
        %p340 = pneg %p192
      $region38: #{forward.5} parent=11 // pred_check_branch
        %342 = sbr.rel (%p340) target = $region40
      $region39: #{forward.5} parent=11 // pred_region
        _
      $region40: #{forward.5} parent=11 // pred_fallthru
        _
      // Predicated region
      $region41: #{forward.5} parent=11 // pred_check
        %p343 = pneg %p213
      $region42: #{forward.5} parent=11 // pred_check_branch
        %345 = sbr.rel (%p343) target = $region44
      $region43: #{forward.5} parent=11 // pred_region
        _
      $region44: #{forward.5} parent=11 // pred_fallthru
        _
      // Predicated region
      $region45: #{forward.5} parent=11 // pred_check
        %p346 = pneg %p234
      $region46: #{forward.5} parent=11 // pred_check_branch
        %348 = sbr.rel (%p346) target = $region48
      $region47: #{forward.5} parent=11 // pred_region
        _
      $region48: #{forward.5} parent=11 // pred_fallthru
        _
      // Predicated region
      $region49: #{forward.5} parent=11 // pred_check
        %p349 = pneg %p255
      $region50: #{forward.5} parent=11 // pred_check_branch
        %351 = sbr.rel (%p349) target = $region52
      $region51: #{forward.5} parent=11 // pred_region
        _
      $region52: #{forward.5} parent=11 // pred_fallthru
        _
    $region12: #{forward.5} parent=5 // pred_fallthru
      _
    %p352 = scmp.lt.s32.totalorder %s19, 2
    // Predicated region
    $region53: #{forward.5} parent=5 // pred_check
      %p353 = pneg %p352
    $region54: #{forward.5} parent=5 // pred_check_branch
      %355 = sbr.rel (%p353) target = $region56
    $region55: #{forward.5} parent=5 // pred_region
      // Predicated region
      $region57: #{forward.5} parent=55 // pred_check
        %p356 = pneg %p39
      $region58: #{forward.5} parent=55 // pred_check_branch
        %358 = sbr.rel (%p356) target = $region60
      $region59: #{forward.5} parent=55 // pred_region
        %p359 = scmp.lt.s32.totalorder %s19, 1
        %s360 = scalar_select %p359, %s19, 1
        %s361 = smul.addr %s360, 20
        %s362 = smul.addr %s361, 4
        %s363 = scalar_lea.vmem %s0, %s362
      $region60: #{forward.5} parent=55 // pred_fallthru
        _
    $region56: #{forward.5} parent=5 // pred_fallthru
      _
    %p364 = scmp.le.s32.totalorder 1, %s19
    %p365 = scmp.lt.s32.totalorder %s19, 3
    %p366 = pnand %p364, %p365
    %p367 = pneg %p366
    // Predicated region
    $region61: #{forward.5} parent=5 // pred_check
      _
    $region62: #{forward.5} parent=5 // pred_check_branch
      %369 = sbr.rel (%p366) target = $region64
    $region63: #{forward.5} parent=5 // pred_region
      %s370 = ssub.s32 %s19, 1
      %p371 = scmp.lt.s32.totalorder %s24, 1
      %s372 = scalar_select %p371, %s24, 1
      %s373 = smul.addr %s372, 20
      %s374 = smul.addr %s373, 4
      %s375 = scalar_lea.vmem %s0, %s374
      %p376 = pneg %p45
      %p377 = pneg %p42
      %p378 = pneg %p66
      %p379 = pneg %p63
      %p380 = pneg %p87
      %p381 = pneg %p84
      %p382 = pneg %p108
      %p383 = pneg %p105
      %p384 = pneg %p129
      %p385 = pneg %p126
      %p386 = pneg %p150
      %p387 = pneg %p147
      %p388 = pneg %p171
      %p389 = pneg %p168
      %p390 = pneg %p192
      %p391 = pneg %p189
      %p392 = pneg %p213
      %p393 = pneg %p210
      %p394 = pneg %p234
      %p395 = pneg %p231
      %p396 = pneg %p255
      %p397 = pneg %p252
      %p398 = pneg %p281
      %p399 = pneg %p278
      %p400 = scmp.lt.s32.totalorder %s24, 1
      %s401 = scalar_select %p400, %s24, 1
      %s402 = smul.addr %s401, 8
      %s403 = smul.addr %s402, 8
      %s404 = scalar_lea.vmem %s11, %s403
      %p405 = pneg %p307
      %p406 = pneg %p304
      %p407 = scmp.lt.s32.totalorder %s24, 1
      %s408 = scalar_select %p407, %s24, 1
      %s409 = scalar_lea.vmem %s12, %s408
      %p410 = scmp.lt.s32.totalorder %s24, 1
      %s411 = scalar_select %p410, %s24, 1
      %s412 = smul.addr %s411, 20
      %s413 = smul.addr %s412, 4
      %s414 = scalar_lea.vmem %s0, %s413
      %p415 = scmp.lt.s32.totalorder %s24, 1
      %s416 = scalar_select %p415, %s24, 1
      %s417 = smul.addr %s416, 8
      %s418 = smul.addr %s417, 8
      %s419 = scalar_lea.vmem %s11, %s418
      %p420 = scmp.lt.s32.totalorder %s24, 1
      %s421 = scalar_select %p420, %s24, 1
      %s422 = scalar_lea.vmem %s12, %s421
      %v424 = vld [vmem:[%s414] sm:$0xf]
      %v425 = vld [vmem:[%s414 + $0x4] sm:$0x1]
      %v426 = vld [vmem:[%s414 + $0x8] sm:$0xf]
      %v427 = vld [vmem:[%s414 + $0xc] sm:$0x1]
      %v428 = vld [vmem:[%s414 + $0x10] sm:$0xf]
      %v429 = vld [vmem:[%s414 + $0x14] sm:$0x1]
      %v430 = vld [vmem:[%s414 + $0x18] sm:$0xf]
      %v431 = vld [vmem:[%s414 + $0x1c] sm:$0x1]
      %v432 = vld [vmem:[%s414 + $0x20] sm:$0xf]
      %v433 = vld [vmem:[%s414 + $0x24] sm:$0x1]
      %v434 = vld [vmem:[%s414 + $0x28] sm:$0xf]
      %v435 = vld [vmem:[%s414 + $0x2c] sm:$0x1]
      %v436 = vld [vmem:[%s414 + $0x30] sm:$0xf]
      %v437 = vld [vmem:[%s414 + $0x34] sm:$0x1]
      %v438 = vld [vmem:[%s414 + $0x38] sm:$0xf]
      %v439 = vld [vmem:[%s414 + $0x3c] sm:$0x1]
      %v440 = vld [vmem:[%s414 + $0x40] sm:$0xf]
      %v441 = vld [vmem:[%s414 + $0x44] sm:$0x1]
      %v442 = vld [vmem:[%s414 + $0x48] sm:$0xf]
      %v443 = vld [vmem:[%s414 + $0x4c] sm:$0x1]
      %v444 = vld [vmem:[%s1] sm:$0xf]
      %v445 = vld [vmem:[%s1 + $0x4] sm:$0xf]
      %v446 = vld [vmem:[%s1 + $0x8] sm:$0xf]
      %v447 = vld [vmem:[%s1 + $0xc] sm:$0xf]
      %v448 = vld [vmem:[%s1 + $0x10] sm:$0xf]
      %v449 = vld [vmem:[%s1 + $0x14] sm:$0xf]
      %v450 = vld [vmem:[%s1 + $0x18] sm:$0xf]
      %v451 = vld [vmem:[%s1 + $0x1c] sm:$0xf]
      %vm452 = vsmask.f32 3328
      %vm453 = vsmask.f32 7440
      %vm454 = vmor %vm452, %vm453
      %v456 = vshrl.u32 %v424, 16
      %v458 = vrot.slane %v456, 4
      %v459 = vshll.u32 %v424, 16
      %v461 = vrot.slane %v459, 5
      %v462 = vor.u32 %v458, %v461
      %v463 = vrot.slane %v462, 4
      %v465 = vshll.u32 %v425, 16
      %v467 = vrot.slane %v465, 5
      %v468 = vsel %vm454, %v463, %v467
      %v470 = vshrl.u32 %v426, 16
      %v472 = vrot.slane %v470, 4
      %v473 = vshll.u32 %v426, 16
      %v475 = vrot.slane %v473, 5
      %v476 = vor.u32 %v472, %v475
      %v477 = vrot.slane %v476, 4
      %v479 = vshll.u32 %v427, 16
      %v481 = vrot.slane %v479, 5
      %v482 = vsel %vm454, %v477, %v481
      %v484 = vshrl.u32 %v428, 16
      %v486 = vrot.slane %v484, 4
      %v487 = vshll.u32 %v428, 16
      %v489 = vrot.slane %v487, 5
      %v490 = vor.u32 %v486, %v489
      %v491 = vrot.slane %v490, 4
      %v493 = vshll.u32 %v429, 16
      %v495 = vrot.slane %v493, 5
      %v496 = vsel %vm454, %v491, %v495
      %v498 = vshrl.u32 %v430, 16
      %v500 = vrot.slane %v498, 4
      %v501 = vshll.u32 %v430, 16
      %v503 = vrot.slane %v501, 5
      %v504 = vor.u32 %v500, %v503
      %v505 = vrot.slane %v504, 4
      %v507 = vshll.u32 %v431, 16
      %v509 = vrot.slane %v507, 5
      %v510 = vsel %vm454, %v505, %v509
      %v512 = vshrl.u32 %v432, 16
      %v514 = vrot.slane %v512, 4
      %v515 = vshll.u32 %v432, 16
      %v517 = vrot.slane %v515, 5
      %v518 = vor.u32 %v514, %v517
      %v519 = vrot.slane %v518, 4
      %v521 = vshll.u32 %v433, 16
      %v523 = vrot.slane %v521, 5
      %v524 = vsel %vm454, %v519, %v523
      %v526 = vshrl.u32 %v434, 16
      %v528 = vrot.slane %v526, 4
      %v529 = vshll.u32 %v434, 16
      %v531 = vrot.slane %v529, 5
      %v532 = vor.u32 %v528, %v531
      %v533 = vrot.slane %v532, 4
      %v535 = vshll.u32 %v435, 16
      %v537 = vrot.slane %v535, 5
      %v538 = vsel %vm454, %v533, %v537
      %v540 = vshrl.u32 %v436, 16
      %v542 = vrot.slane %v540, 4
      %v543 = vshll.u32 %v436, 16
      %v545 = vrot.slane %v543, 5
      %v546 = vor.u32 %v542, %v545
      %v547 = vrot.slane %v546, 4
      %v549 = vshll.u32 %v437, 16
      %v551 = vrot.slane %v549, 5
      %v552 = vsel %vm454, %v547, %v551
      %v554 = vshrl.u32 %v438, 16
      %v556 = vrot.slane %v554, 4
      %v557 = vshll.u32 %v438, 16
      %v559 = vrot.slane %v557, 5
      %v560 = vor.u32 %v556, %v559
      %v561 = vrot.slane %v560, 4
      %v563 = vshll.u32 %v439, 16
      %v565 = vrot.slane %v563, 5
      %v566 = vsel %vm454, %v561, %v565
      %s567 = scalar_lea.vmem %s1, 32
      %v568 = vld [vmem:[%s567] sm:$0xf]
      %v569 = vld [vmem:[%s567 + $0x4] sm:$0xf]
      %v570 = vld [vmem:[%s567 + $0x8] sm:$0xf]
      %v571 = vld [vmem:[%s567 + $0xc] sm:$0xf]
      %v572 = vld [vmem:[%s567 + $0x10] sm:$0xf]
      %v573 = vld [vmem:[%s567 + $0x14] sm:$0xf]
      %v574 = vld [vmem:[%s567 + $0x18] sm:$0xf]
      %v575 = vld [vmem:[%s567 + $0x1c] sm:$0xf]
      %v576 = vunpack.c.l.b16 %v468
      %v577 = vunpack.c.l.b16 %v482
      %v578 = vunpack.c.l.b16 %v496
      %v579 = vunpack.c.l.b16 %v510
      %v580 = vunpack.c.l.b16 %v524
      %v581 = vunpack.c.l.b16 %v538
      %v582 = vunpack.c.l.b16 %v552
      %v583 = vunpack.c.l.b16 %v566
      %v584 = vpack.c.b16 %v577, %v576
      %v585 = vpack.c.b16 %v579, %v578
      %v586 = vpack.c.b16 %v581, %v580
      %v587 = vpack.c.b16 %v583, %v582
      %v596 = vunpack.c.l.b16 %v568
      %v597 = vunpack.c.l.b16 %v569
      %v598 = vunpack.c.l.b16 %v570
      %v599 = vunpack.c.l.b16 %v571
      %v600 = vunpack.c.l.b16 %v572
      %v601 = vunpack.c.l.b16 %v573
      %v602 = vunpack.c.l.b16 %v574
      %v603 = vunpack.c.l.b16 %v575
      %v604 = vpack.c.b16 %v597, %v596
      %v605 = vpack.c.b16 %v599, %v598
      %v606 = vpack.c.b16 %v601, %v600
      %v607 = vpack.c.b16 %v603, %v602
      %vm612 = vcmask 523264
      %v614 = vsel %vm612, %v584, 0
      %v617 = vsel %vm612, %v585, 0
      %v620 = vsel %vm612, %v586, 0
      %v623 = vsel %vm612, %v587, 0
      %625 = vmatprep.subr.bf16.mxu0 0
      %626 = vmatpush1.bf16.msra.mxu0 %v604
      %627 = vmatprep.subr.bf16.mxu0 0
      %628 = vmatpush1.bf16.msra.mxu0 %v605
      %629 = vmatprep.subr.bf16.mxu0 0
      %630 = vmatpush1.bf16.msra.mxu0 %v606
      %631 = vmatprep.subr.bf16.mxu0 0
      %632 = vmatpush1.bf16.msra.mxu0 %v607
      %633 = vmatprep.subr.bf16.mxu0 0
      %634 = vmatpush1.bf16.msra.mxu0 0
      %635 = vmatprep.subr.bf16.mxu0 0
      %636 = vmatpush1.bf16.msra.mxu0 0
      %637 = vmatprep.subr.bf16.mxu0 0
      %638 = vmatpush1.bf16.msra.mxu0 0
      %639 = vmatprep.subr.bf16.mxu0 0
      %640 = vmatpush1.bf16.msra.mxu0 0
      %641 = vmatprep.subr.bf16.mxu0 0
      %642 = vmatpush1.bf16.msra.mxu0 0
      %643 = vmatprep.subr.bf16.mxu0 0
      %644 = vmatpush1.bf16.msra.mxu0 0
      %645 = vmatprep.subr.bf16.mxu0 0
      %646 = vmatpush1.bf16.msra.mxu0 0
      %647 = vmatprep.subr.bf16.mxu0 0
      %648 = vmatpush1.bf16.msra.mxu0 0
      %649 = vmatprep.subr.bf16.mxu0 0
      %650 = vmatpush1.bf16.msra.mxu0 0
      %651 = vmatprep.subr.bf16.mxu0 0
      %652 = vmatpush1.bf16.msra.mxu0 0
      %653 = vmatprep.subr.bf16.mxu0 0
      %654 = vmatpush1.bf16.msra.mxu0 0
      %655 = vmatprep.subr.bf16.mxu0 0
      %656 = vmatpush1.bf16.msra.mxu0 0
      %657 = vmatprep.mubr.bf16.mxu0 0
      %658 = vmatmul.mubr.bf16.gmra.mrb[0].mxu0 %v614
      %v659 = vpop.f32.mrb[0].mxu0
      %v660 = vadd.f32 0.0, %v659
      %v661 = vpop.f32.mrb[0].mxu0
      %v662 = vpop.f32.mrb[0].mxu0
      %v663 = vadd.f32 0.0, %v662
      %v664 = vpop.f32.mrb[0].mxu0
      %665 = vmatprep.mubr.bf16.mxu0 0
      %666 = vmatmul.mubr.bf16.gmra.mrb[0].mxu0 %v617
      %v667 = vpop.f32.mrb[0].mxu0
      %v668 = vadd.f32 0.0, %v667
      %v669 = vpop.f32.mrb[0].mxu0
      %v670 = vpop.f32.mrb[0].mxu0
      %v671 = vadd.f32 0.0, %v670
      %v672 = vpop.f32.mrb[0].mxu0
      %673 = vmatprep.mubr.bf16.mxu0 0
      %674 = vmatmul.mubr.bf16.gmra.mrb[0].mxu0 %v620
      %v675 = vpop.f32.mrb[0].mxu0
      %v676 = vadd.f32 0.0, %v675
      %v677 = vpop.f32.mrb[0].mxu0
      %v678 = vpop.f32.mrb[0].mxu0
      %v679 = vadd.f32 0.0, %v678
      %v680 = vpop.f32.mrb[0].mxu0
      %681 = vmatprep.mubr.bf16.mxu0 0
      %682 = vmatmul.mubr.bf16.gmra.mrb[0].mxu0 %v623
      %v683 = vpop.f32.mrb[0].mxu0
      %v684 = vadd.f32 0.0, %v683
      %v685 = vpop.f32.mrb[0].mxu0
      %v686 = vpop.f32.mrb[0].mxu0
      %v687 = vadd.f32 0.0, %v686
      %v688 = vpop.f32.mrb[0].mxu0
      %689 = vdwg.mxu0
      %v698 = vunpack.c.l.b16 %v424
      %v699 = vunpack.c.l.b16 %v426
      %v700 = vunpack.c.l.b16 %v428
      %v701 = vunpack.c.l.b16 %v430
      %v702 = vunpack.c.l.b16 %v432
      %v703 = vunpack.c.l.b16 %v434
      %v704 = vunpack.c.l.b16 %v436
      %v705 = vunpack.c.l.b16 %v438
      %v706 = vpack.c.b16 %v699, %v698
      %v707 = vpack.c.b16 %v701, %v700
      %v708 = vpack.c.b16 %v703, %v702
      %v709 = vpack.c.b16 %v705, %v704
      %v718 = vunpack.c.l.b16 %v444
      %v719 = vunpack.c.l.b16 %v445
      %v720 = vunpack.c.l.b16 %v446
      %v721 = vunpack.c.l.b16 %v447
      %v722 = vunpack.c.l.b16 %v448
      %v723 = vunpack.c.l.b16 %v449
      %v724 = vunpack.c.l.b16 %v450
      %v725 = vunpack.c.l.b16 %v451
      %v726 = vpack.c.b16 %v719, %v718
      %v727 = vpack.c.b16 %v721, %v720
      %v728 = vpack.c.b16 %v723, %v722
      %v729 = vpack.c.b16 %v725, %v724
      %v735 = vsel %vm612, %v706, 0
      %v738 = vsel %vm612, %v707, 0
      %v741 = vsel %vm612, %v708, 0
      %v744 = vsel %vm612, %v709, 0
      %746 = vmatprep.subr.bf16.mxu0 0
      %747 = vmatpush1.bf16.msra.mxu0 %v726
      %748 = vmatprep.subr.bf16.mxu0 0
      %749 = vmatpush1.bf16.msra.mxu0 %v727
      %750 = vmatprep.subr.bf16.mxu0 0
      %751 = vmatpush1.bf16.msra.mxu0 %v728
      %752 = vmatprep.subr.bf16.mxu0 0
      %753 = vmatpush1.bf16.msra.mxu0 %v729
      %754 = vmatprep.subr.bf16.mxu0 0
      %755 = vmatpush1.bf16.msra.mxu0 0
      %756 = vmatprep.subr.bf16.mxu0 0
      %757 = vmatpush1.bf16.msra.mxu0 0
      %758 = vmatprep.subr.bf16.mxu0 0
      %759 = vmatpush1.bf16.msra.mxu0 0
      %760 = vmatprep.subr.bf16.mxu0 0
      %761 = vmatpush1.bf16.msra.mxu0 0
      %762 = vmatprep.subr.bf16.mxu0 0
      %763 = vmatpush1.bf16.msra.mxu0 0
      %764 = vmatprep.subr.bf16.mxu0 0
      %765 = vmatpush1.bf16.msra.mxu0 0
      %766 = vmatprep.subr.bf16.mxu0 0
      %767 = vmatpush1.bf16.msra.mxu0 0
      %768 = vmatprep.subr.bf16.mxu0 0
      %769 = vmatpush1.bf16.msra.mxu0 0
      %770 = vmatprep.subr.bf16.mxu0 0
      %771 = vmatpush1.bf16.msra.mxu0 0
      %772 = vmatprep.subr.bf16.mxu0 0
      %773 = vmatpush1.bf16.msra.mxu0 0
      %774 = vmatprep.subr.bf16.mxu0 0
      %775 = vmatpush1.bf16.msra.mxu0 0
      %776 = vmatprep.subr.bf16.mxu0 0
      %777 = vmatpush1.bf16.msra.mxu0 0
      %778 = vmatprep.mubr.bf16.mxu0 0
      %779 = vmatmul.mubr.bf16.gmra.mrb[0].mxu0 %v735
      %v780 = vpop.f32.mrb[0].mxu0
      %v781 = vadd.f32 %v660, %v780
      %v782 = vpop.f32.mrb[0].mxu0
      %v783 = vpop.f32.mrb[0].mxu0
      %v784 = vadd.f32 %v663, %v783
      %v785 = vpop.f32.mrb[0].mxu0
      %786 = vmatprep.mubr.bf16.mxu0 0
      %787 = vmatmul.mubr.bf16.gmra.mrb[0].mxu0 %v738
      %v788 = vpop.f32.mrb[0].mxu0
      %v789 = vadd.f32 %v668, %v788
      %v790 = vpop.f32.mrb[0].mxu0
      %v791 = vpop.f32.mrb[0].mxu0
      %v792 = vadd.f32 %v671, %v791
      %v793 = vpop.f32.mrb[0].mxu0
      %794 = vmatprep.mubr.bf16.mxu0 0
      %795 = vmatmul.mubr.bf16.gmra.mrb[0].mxu0 %v741
      %v796 = vpop.f32.mrb[0].mxu0
      %v797 = vadd.f32 %v676, %v796
      %v798 = vpop.f32.mrb[0].mxu0
      %v799 = vpop.f32.mrb[0].mxu0
      %v800 = vadd.f32 %v679, %v799
      %v801 = vpop.f32.mrb[0].mxu0
      %802 = vmatprep.mubr.bf16.mxu0 0
      %803 = vmatmul.mubr.bf16.gmra.mrb[0].mxu0 %v744
      %v804 = vpop.f32.mrb[0].mxu0
      %v805 = vadd.f32 %v684, %v804
      %v806 = vpop.f32.mrb[0].mxu0
      %v807 = vpop.f32.mrb[0].mxu0
      %v808 = vadd.f32 %v687, %v807
      %v809 = vpop.f32.mrb[0].mxu0
      %810 = vdwg.mxu0
      %vm819 = vcmask 1042432
      %vm820 = vcmask 1046532
      %vm821 = vmor %vm819, %vm820
      %v822 = vrot.slane %v424, 5
      %v823 = vrot.slane %v822, 4
      %v824 = vrot.slane %v425, 5
      %v825 = vsel %vm821, %v823, %v824
      %v826 = vrot.slane %v426, 5
      %v827 = vrot.slane %v826, 4
      %v828 = vrot.slane %v427, 5
      %v829 = vsel %vm821, %v827, %v828
      %v830 = vrot.slane %v428, 5
      %v831 = vrot.slane %v830, 4
      %v832 = vrot.slane %v429, 5
      %v833 = vsel %vm821, %v831, %v832
      %v834 = vrot.slane %v430, 5
      %v835 = vrot.slane %v834, 4
      %v836 = vrot.slane %v431, 5
      %v837 = vsel %vm821, %v835, %v836
      %v838 = vrot.slane %v432, 5
      %v839 = vrot.slane %v838, 4
      %v840 = vrot.slane %v433, 5
      %v841 = vsel %vm821, %v839, %v840
      %v842 = vrot.slane %v434, 5
      %v843 = vrot.slane %v842, 4
      %v844 = vrot.slane %v435, 5
      %v845 = vsel %vm821, %v843, %v844
      %v846 = vrot.slane %v436, 5
      %v847 = vrot.slane %v846, 4
      %v848 = vrot.slane %v437, 5
      %v849 = vsel %vm821, %v847, %v848
      %v850 = vrot.slane %v438, 5
      %v851 = vrot.slane %v850, 4
      %v852 = vrot.slane %v439, 5
      %v853 = vsel %vm821, %v851, %v852
      %s854 = scalar_lea.vmem %s1, 64
      %v855 = vld [vmem:[%s854] sm:$0xf]
      %v856 = vld [vmem:[%s854 + $0x4] sm:$0xf]
      %v857 = vld [vmem:[%s854 + $0x8] sm:$0xf]
      %v858 = vld [vmem:[%s854 + $0xc] sm:$0xf]
      %v859 = vld [vmem:[%s854 + $0x10] sm:$0xf]
      %v860 = vld [vmem:[%s854 + $0x14] sm:$0xf]
      %v861 = vld [vmem:[%s854 + $0x18] sm:$0xf]
      %v862 = vld [vmem:[%s854 + $0x1c] sm:$0xf]
      %v863 = vunpack.c.l.b16 %v825
      %v864 = vunpack.c.l.b16 %v829
      %v865 = vunpack.c.l.b16 %v833
      %v866 = vunpack.c.l.b16 %v837
      %v867 = vunpack.c.l.b16 %v841
      %v868 = vunpack.c.l.b16 %v845
      %v869 = vunpack.c.l.b16 %v849
      %v870 = vunpack.c.l.b16 %v853
      %v871 = vpack.c.b16 %v864, %v863
      %v872 = vpack.c.b16 %v866, %v865
      %v873 = vpack.c.b16 %v868, %v867
      %v874 = vpack.c.b16 %v870, %v869
      %v883 = vunpack.c.l.b16 %v855
      %v884 = vunpack.c.l.b16 %v856
      %v885 = vunpack.c.l.b16 %v857
      %v886 = vunpack.c.l.b16 %v858
      %v887 = vunpack.c.l.b16 %v859
      %v888 = vunpack.c.l.b16 %v860
      %v889 = vunpack.c.l.b16 %v861
      %v890 = vunpack.c.l.b16 %v862
      %v891 = vpack.c.b16 %v884, %v883
      %v892 = vpack.c.b16 %v886, %v885
      %v893 = vpack.c.b16 %v888, %v887
      %v894 = vpack.c.b16 %v890, %v889
      %v900 = vsel %vm612, %v871, 0
      %v903 = vsel %vm612, %v872, 0
      %v906 = vsel %vm612, %v873, 0
      %v909 = vsel %vm612, %v874, 0
      %911 = vmatprep.subr.bf16.mxu0 0
      %912 = vmatpush1.bf16.msra.mxu0 %v891
      %913 = vmatprep.subr.bf16.mxu0 0
      %914 = vmatpush1.bf16.msra.mxu0 %v892
      %915 = vmatprep.subr.bf16.mxu0 0
      %916 = vmatpush1.bf16.msra.mxu0 %v893
      %917 = vmatprep.subr.bf16.mxu0 0
      %918 = vmatpush1.bf16.msra.mxu0 %v894
      %919 = vmatprep.subr.bf16.mxu0 0
      %920 = vmatpush1.bf16.msra.mxu0 0
      %921 = vmatprep.subr.bf16.mxu0 0
      %922 = vmatpush1.bf16.msra.mxu0 0
      %923 = vmatprep.subr.bf16.mxu0 0
      %924 = vmatpush1.bf16.msra.mxu0 0
      %925 = vmatprep.subr.bf16.mxu0 0
      %926 = vmatpush1.bf16.msra.mxu0 0
      %927 = vmatprep.subr.bf16.mxu0 0
      %928 = vmatpush1.bf16.msra.mxu0 0
      %929 = vmatprep.subr.bf16.mxu0 0
      %930 = vmatpush1.bf16.msra.mxu0 0
      %931 = vmatprep.subr.bf16.mxu0 0
      %932 = vmatpush1.bf16.msra.mxu0 0
      %933 = vmatprep.subr.bf16.mxu0 0
      %934 = vmatpush1.bf16.msra.mxu0 0
      %935 = vmatprep.subr.bf16.mxu0 0
      %936 = vmatpush1.bf16.msra.mxu0 0
      %937 = vmatprep.subr.bf16.mxu0 0
      %938 = vmatpush1.bf16.msra.mxu0 0
      %939 = vmatprep.subr.bf16.mxu0 0
      %940 = vmatpush1.bf16.msra.mxu0 0
      %941 = vmatprep.subr.bf16.mxu0 0
      %942 = vmatpush1.bf16.msra.mxu0 0
      %943 = vmatprep.mubr.bf16.mxu0 0
      %944 = vmatmul.mubr.bf16.gmra.mrb[0].mxu0 %v900
      %v945 = vpop.f32.mrb[0].mxu0
      %v946 = vadd.f32 0.0, %v945
      %v947 = vpop.f32.mrb[0].mxu0
      %v948 = vpop.f32.mrb[0].mxu0
      %v949 = vadd.f32 0.0, %v948
      %v950 = vpop.f32.mrb[0].mxu0
      %951 = vmatprep.mubr.bf16.mxu0 0
      %952 = vmatmul.mubr.bf16.gmra.mrb[0].mxu0 %v903
      %v953 = vpop.f32.mrb[0].mxu0
      %v954 = vadd.f32 0.0, %v953
      %v955 = vpop.f32.mrb[0].mxu0
      %v956 = vpop.f32.mrb[0].mxu0
      %v957 = vadd.f32 0.0, %v956
      %v958 = vpop.f32.mrb[0].mxu0
      %959 = vmatprep.mubr.bf16.mxu0 0
      %960 = vmatmul.mubr.bf16.gmra.mrb[0].mxu0 %v906
      %v961 = vpop.f32.mrb[0].mxu0
      %v962 = vadd.f32 0.0, %v961
      %v963 = vpop.f32.mrb[0].mxu0
      %v964 = vpop.f32.mrb[0].mxu0
      %v965 = vadd.f32 0.0, %v964
      %v966 = vpop.f32.mrb[0].mxu0
      %967 = vmatprep.mubr.bf16.mxu0 0
      %968 = vmatmul.mubr.bf16.gmra.mrb[0].mxu0 %v909
      %v969 = vpop.f32.mrb[0].mxu0
      %v970 = vadd.f32 0.0, %v969
      %v971 = vpop.f32.mrb[0].mxu0
      %v972 = vpop.f32.mrb[0].mxu0
      %v973 = vadd.f32 0.0, %v972
      %v974 = vpop.f32.mrb[0].mxu0
      %975 = vdwg.mxu0
      %v976 = vadd.f32 %v781, %v946
      %v977 = vadd.f32 %v784, %v949
      %v978 = vadd.f32 %v789, %v954
      %v979 = vadd.f32 %v792, %v957
      %v980 = vadd.f32 %v797, %v962
      %v981 = vadd.f32 %v800, %v965
      %v982 = vadd.f32 %v805, %v970
      %v983 = vadd.f32 %v808, %v973
      %s984 = scalar_lea.vmem %s1, 96
      %v985 = vld [vmem:[%s984] sm:$0xf]
      %v986 = vld [vmem:[%s984 + $0x4] sm:$0xf]
      %v987 = vld [vmem:[%s984 + $0x8] sm:$0xf]
      %v988 = vld [vmem:[%s984 + $0xc] sm:$0xf]
      %v989 = vld [vmem:[%s984 + $0x10] sm:$0xf]
      %v990 = vld [vmem:[%s984 + $0x14] sm:$0xf]
      %v991 = vld [vmem:[%s984 + $0x18] sm:$0xf]
      %v992 = vld [vmem:[%s984 + $0x1c] sm:$0xf]
      %v994 = vunpack.c.l.b16 %v440
      %v995 = vpack.c.b16 %v700, %v699
      %v996 = vpack.c.b16 %v702, %v701
      %v997 = vpack.c.b16 %v704, %v703
      %v998 = vpack.c.b16 %v994, %v705
      %v1007 = vunpack.c.l.b16 %v985
      %v1008 = vunpack.c.l.b16 %v986
      %v1009 = vunpack.c.l.b16 %v987
      %v1010 = vunpack.c.l.b16 %v988
      %v1011 = vunpack.c.l.b16 %v989
      %v1012 = vunpack.c.l.b16 %v990
      %v1013 = vunpack.c.l.b16 %v991
      %v1014 = vunpack.c.l.b16 %v992
      %v1015 = vpack.c.b16 %v1008, %v1007
      %v1016 = vpack.c.b16 %v1010, %v1009
      %v1017 = vpack.c.b16 %v1012, %v1011
      %v1018 = vpack.c.b16 %v1014, %v1013
      %v1024 = vsel %vm612, %v995, 0
      %v1027 = vsel %vm612, %v996, 0
      %v1030 = vsel %vm612, %v997, 0
      %v1033 = vsel %vm612, %v998, 0
      %1035 = vmatprep.subr.bf16.mxu0 0
      %1036 = vmatpush1.bf16.msra.mxu0 %v1015
      %1037 = vmatprep.subr.bf16.mxu0 0
      %1038 = vmatpush1.bf16.msra.mxu0 %v1016
      %1039 = vmatprep.subr.bf16.mxu0 0
      %1040 = vmatpush1.bf16.msra.mxu0 %v1017
      %1041 = vmatprep.subr.bf16.mxu0 0
      %1042 = vmatpush1.bf16.msra.mxu0 %v1018
      %1043 = vmatprep.subr.bf16.mxu0 0
      %1044 = vmatpush1.bf16.msra.mxu0 0
      %1045 = vmatprep.subr.bf16.mxu0 0
      %1046 = vmatpush1.bf16.msra.mxu0 0
      %1047 = vmatprep.subr.bf16.mxu0 0
      %1048 = vmatpush1.bf16.msra.mxu0 0
      %1049 = vmatprep.subr.bf16.mxu0 0
      %1050 = vmatpush1.bf16.msra.mxu0 0
      %1051 = vmatprep.subr.bf16.mxu0 0
      %1052 = vmatpush1.bf16.msra.mxu0 0
      %1053 = vmatprep.subr.bf16.mxu0 0
      %1054 = vmatpush1.bf16.msra.mxu0 0
      %1055 = vmatprep.subr.bf16.mxu0 0
      %1056 = vmatpush1.bf16.msra.mxu0 0
      %1057 = vmatprep.subr.bf16.mxu0 0
      %1058 = vmatpush1.bf16.msra.mxu0 0
      %1059 = vmatprep.subr.bf16.mxu0 0
      %1060 = vmatpush1.bf16.msra.mxu0 0
      %1061 = vmatprep.subr.bf16.mxu0 0
      %1062 = vmatpush1.bf16.msra.mxu0 0
      %1063 = vmatprep.subr.bf16.mxu0 0
      %1064 = vmatpush1.bf16.msra.mxu0 0
      %1065 = vmatprep.subr.bf16.mxu0 0
      %1066 = vmatpush1.bf16.msra.mxu0 0
      %1067 = vmatprep.mubr.bf16.mxu0 0
      %1068 = vmatmul.mubr.bf16.gmra.mrb[0].mxu0 %v1024
      %v1069 = vpop.f32.mrb[0].mxu0
      %v1070 = vadd.f32 0.0, %v1069
      %v1071 = vpop.f32.mrb[0].mxu0
      %v1072 = vpop.f32.mrb[0].mxu0
      %v1073 = vadd.f32 0.0, %v1072
      %v1074 = vpop.f32.mrb[0].mxu0
      %1075 = vmatprep.mubr.bf16.mxu0 0
      %1076 = vmatmul.mubr.bf16.gmra.mrb[0].mxu0 %v1027
      %v1077 = vpop.f32.mrb[0].mxu0
      %v1078 = vadd.f32 0.0, %v1077
      %v1079 = vpop.f32.mrb[0].mxu0
      %v1080 = vpop.f32.mrb[0].mxu0
      %v1081 = vadd.f32 0.0, %v1080
      %v1082 = vpop.f32.mrb[0].mxu0
      %1083 = vmatprep.mubr.bf16.mxu0 0
      %1084 = vmatmul.mubr.bf16.gmra.mrb[0].mxu0 %v1030
      %v1085 = vpop.f32.mrb[0].mxu0
      %v1086 = vadd.f32 0.0, %v1085
      %v1087 = vpop.f32.mrb[0].mxu0
      %v1088 = vpop.f32.mrb[0].mxu0
      %v1089 = vadd.f32 0.0, %v1088
      %v1090 = vpop.f32.mrb[0].mxu0
      %1091 = vmatprep.mubr.bf16.mxu0 0
      %1092 = vmatmul.mubr.bf16.gmra.mrb[0].mxu0 %v1033
      %v1093 = vpop.f32.mrb[0].mxu0
      %v1094 = vadd.f32 0.0, %v1093
      %v1095 = vpop.f32.mrb[0].mxu0
      %v1096 = vpop.f32.mrb[0].mxu0
      %v1097 = vadd.f32 0.0, %v1096
      %v1098 = vpop.f32.mrb[0].mxu0
      %1099 = vdwg.mxu0
      %v1100 = vadd.f32 %v976, %v1070
      %v1101 = vadd.f32 %v977, %v1073
      %v1102 = vadd.f32 %v978, %v1078
      %v1103 = vadd.f32 %v979, %v1081
      %v1104 = vadd.f32 %v980, %v1086
      %v1105 = vadd.f32 %v981, %v1089
      %v1106 = vadd.f32 %v982, %v1094
      %v1107 = vadd.f32 %v983, %v1097
      %v1109 = vshrl.u32 %v440, 16
      %v1111 = vrot.slane %v1109, 4
      %v1112 = vshll.u32 %v440, 16
      %v1114 = vrot.slane %v1112, 5
      %v1115 = vor.u32 %v1111, %v1114
      %v1116 = vrot.slane %v1115, 4
      %v1118 = vshll.u32 %v441, 16
      %v1120 = vrot.slane %v1118, 5
      %v1121 = vsel %vm454, %v1116, %v1120
      %s1122 = scalar_lea.vmem %s1, 128
      %v1123 = vld [vmem:[%s1122] sm:$0xf]
      %v1124 = vld [vmem:[%s1122 + $0x4] sm:$0xf]
      %v1125 = vld [vmem:[%s1122 + $0x8] sm:$0xf]
      %v1126 = vld [vmem:[%s1122 + $0xc] sm:$0xf]
      %v1127 = vld [vmem:[%s1122 + $0x10] sm:$0xf]
      %v1128 = vld [vmem:[%s1122 + $0x14] sm:$0xf]
      %v1129 = vld [vmem:[%s1122 + $0x18] sm:$0xf]
      %v1130 = vld [vmem:[%s1122 + $0x1c] sm:$0xf]
      %v1131 = vunpack.c.l.b16 %v1121
      %v1132 = vpack.c.b16 %v578, %v577
      %v1133 = vpack.c.b16 %v580, %v579
      %v1134 = vpack.c.b16 %v582, %v581
      %v1135 = vpack.c.b16 %v1131, %v583
      %v1144 = vunpack.c.l.b16 %v1123
      %v1145 = vunpack.c.l.b16 %v1124
      %v1146 = vunpack.c.l.b16 %v1125
      %v1147 = vunpack.c.l.b16 %v1126
      %v1148 = vunpack.c.l.b16 %v1127
      %v1149 = vunpack.c.l.b16 %v1128
      %v1150 = vunpack.c.l.b16 %v1129
      %v1151 = vunpack.c.l.b16 %v1130
      %v1152 = vpack.c.b16 %v1145, %v1144
      %v1153 = vpack.c.b16 %v1147, %v1146
      %v1154 = vpack.c.b16 %v1149, %v1148
      %v1155 = vpack.c.b16 %v1151, %v1150
      %v1161 = vsel %vm612, %v1132, 0
      %v1164 = vsel %vm612, %v1133, 0
      %v1167 = vsel %vm612, %v1134, 0
      %v1170 = vsel %vm612, %v1135, 0
      %1172 = vmatprep.subr.bf16.mxu0 0
      %1173 = vmatpush1.bf16.msra.mxu0 %v1152
      %1174 = vmatprep.subr.bf16.mxu0 0
      %1175 = vmatpush1.bf16.msra.mxu0 %v1153
      %1176 = vmatprep.subr.bf16.mxu0 0
      %1177 = vmatpush1.bf16.msra.mxu0 %v1154
      %1178 = vmatprep.subr.bf16.mxu0 0
      %1179 = vmatpush1.bf16.msra.mxu0 %v1155
      %1180 = vmatprep.subr.bf16.mxu0 0
      %1181 = vmatpush1.bf16.msra.mxu0 0
      %1182 = vmatprep.subr.bf16.mxu0 0
      %1183 = vmatpush1.bf16.msra.mxu0 0
      %1184 = vmatprep.subr.bf16.mxu0 0
      %1185 = vmatpush1.bf16.msra.mxu0 0
      %1186 = vmatprep.subr.bf16.mxu0 0
      %1187 = vmatpush1.bf16.msra.mxu0 0
      %1188 = vmatprep.subr.bf16.mxu0 0
      %1189 = vmatpush1.bf16.msra.mxu0 0
      %1190 = vmatprep.subr.bf16.mxu0 0
      %1191 = vmatpush1.bf16.msra.mxu0 0
      %1192 = vmatprep.subr.bf16.mxu0 0
      %1193 = vmatpush1.bf16.msra.mxu0 0
      %1194 = vmatprep.subr.bf16.mxu0 0
      %1195 = vmatpush1.bf16.msra.mxu0 0
      %1196 = vmatprep.subr.bf16.mxu0 0
      %1197 = vmatpush1.bf16.msra.mxu0 0
      %1198 = vmatprep.subr.bf16.mxu0 0
      %1199 = vmatpush1.bf16.msra.mxu0 0
      %1200 = vmatprep.subr.bf16.mxu0 0
      %1201 = vmatpush1.bf16.msra.mxu0 0
      %1202 = vmatprep.subr.bf16.mxu0 0
      %1203 = vmatpush1.bf16.msra.mxu0 0
      %1204 = vmatprep.mubr.bf16.mxu0 0
      %1205 = vmatmul.mubr.bf16.gmra.mrb[0].mxu0 %v1161
      %v1206 = vpop.f32.mrb[0].mxu0
      %v1207 = vadd.f32 0.0, %v1206
      %v1208 = vpop.f32.mrb[0].mxu0
      %v1209 = vpop.f32.mrb[0].mxu0
      %v1210 = vadd.f32 0.0, %v1209
      %v1211 = vpop.f32.mrb[0].mxu0
      %1212 = vmatprep.mubr.bf16.mxu0 0
      %1213 = vmatmul.mubr.bf16.gmra.mrb[0].mxu0 %v1164
      %v1214 = vpop.f32.mrb[0].mxu0
      %v1215 = vadd.f32 0.0, %v1214
      %v1216 = vpop.f32.mrb[0].mxu0
      %v1217 = vpop.f32.mrb[0].mxu0
      %v1218 = vadd.f32 0.0, %v1217
      %v1219 = vpop.f32.mrb[0].mxu0
      %1220 = vmatprep.mubr.bf16.mxu0 0
      %1221 = vmatmul.mubr.bf16.gmra.mrb[0].mxu0 %v1167
      %v1222 = vpop.f32.mrb[0].mxu0
      %v1223 = vadd.f32 0.0, %v1222
      %v1224 = vpop.f32.mrb[0].mxu0
      %v1225 = vpop.f32.mrb[0].mxu0
      %v1226 = vadd.f32 0.0, %v1225
      %v1227 = vpop.f32.mrb[0].mxu0
      %1228 = vmatprep.mubr.bf16.mxu0 0
      %1229 = vmatmul.mubr.bf16.gmra.mrb[0].mxu0 %v1170
      %v1230 = vpop.f32.mrb[0].mxu0
      %v1231 = vadd.f32 0.0, %v1230
      %v1232 = vpop.f32.mrb[0].mxu0
      %v1233 = vpop.f32.mrb[0].mxu0
      %v1234 = vadd.f32 0.0, %v1233
      %v1235 = vpop.f32.mrb[0].mxu0
      %1236 = vdwg.mxu0
      %v1237 = vadd.f32 %v1100, %v1207
      %v1238 = vadd.f32 %v1101, %v1210
      %v1239 = vadd.f32 %v1102, %v1215
      %v1240 = vadd.f32 %v1103, %v1218
      %v1241 = vadd.f32 %v1104, %v1223
      %v1242 = vadd.f32 %v1105, %v1226
      %v1243 = vadd.f32 %v1106, %v1231
      %v1244 = vadd.f32 %v1107, %v1234
      %v1246 = vrot.slane %v440, 5
      %v1247 = vrot.slane %v1246, 4
      %v1248 = vrot.slane %v441, 5
      %v1249 = vsel %vm821, %v1247, %v1248
      %s1250 = scalar_lea.vmem %s1, 160
      %v1251 = vld [vmem:[%s1250] sm:$0xf]
      %v1252 = vld [vmem:[%s1250 + $0x4] sm:$0xf]
      %v1253 = vld [vmem:[%s1250 + $0x8] sm:$0xf]
      %v1254 = vld [vmem:[%s1250 + $0xc] sm:$0xf]
      %v1255 = vld [vmem:[%s1250 + $0x10] sm:$0xf]
      %v1256 = vld [vmem:[%s1250 + $0x14] sm:$0xf]
      %v1257 = vld [vmem:[%s1250 + $0x18] sm:$0xf]
      %v1258 = vld [vmem:[%s1250 + $0x1c] sm:$0xf]
      %v1259 = vunpack.c.l.b16 %v1249
      %v1260 = vpack.c.b16 %v865, %v864
      %v1261 = vpack.c.b16 %v867, %v866
      %v1262 = vpack.c.b16 %v869, %v868
      %v1263 = vpack.c.b16 %v1259, %v870
      %v1272 = vunpack.c.l.b16 %v1251
      %v1273 = vunpack.c.l.b16 %v1252
      %v1274 = vunpack.c.l.b16 %v1253
      %v1275 = vunpack.c.l.b16 %v1254
      %v1276 = vunpack.c.l.b16 %v1255
      %v1277 = vunpack.c.l.b16 %v1256
      %v1278 = vunpack.c.l.b16 %v1257
      %v1279 = vunpack.c.l.b16 %v1258
      %v1280 = vpack.c.b16 %v1273, %v1272
      %v1281 = vpack.c.b16 %v1275, %v1274
      %v1282 = vpack.c.b16 %v1277, %v1276
      %v1283 = vpack.c.b16 %v1279, %v1278
      %v1289 = vsel %vm612, %v1260, 0
      %v1292 = vsel %vm612, %v1261, 0
      %v1295 = vsel %vm612, %v1262, 0
      %v1298 = vsel %vm612, %v1263, 0
      %1300 = vmatprep.subr.bf16.mxu0 0
      %1301 = vmatpush1.bf16.msra.mxu0 %v1280
      %1302 = vmatprep.subr.bf16.mxu0 0
      %1303 = vmatpush1.bf16.msra.mxu0 %v1281
      %1304 = vmatprep.subr.bf16.mxu0 0
      %1305 = vmatpush1.bf16.msra.mxu0 %v1282
      %1306 = vmatprep.subr.bf16.mxu0 0
      %1307 = vmatpush1.bf16.msra.mxu0 %v1283
      %1308 = vmatprep.subr.bf16.mxu0 0
      %1309 = vmatpush1.bf16.msra.mxu0 0
      %1310 = vmatprep.subr.bf16.mxu0 0
      %1311 = vmatpush1.bf16.msra.mxu0 0
      %1312 = vmatprep.subr.bf16.mxu0 0
      %1313 = vmatpush1.bf16.msra.mxu0 0
      %1314 = vmatprep.subr.bf16.mxu0 0
      %1315 = vmatpush1.bf16.msra.mxu0 0
      %1316 = vmatprep.subr.bf16.mxu0 0
      %1317 = vmatpush1.bf16.msra.mxu0 0
      %1318 = vmatprep.subr.bf16.mxu0 0
      %1319 = vmatpush1.bf16.msra.mxu0 0
      %1320 = vmatprep.subr.bf16.mxu0 0
      %1321 = vmatpush1.bf16.msra.mxu0 0
      %1322 = vmatprep.subr.bf16.mxu0 0
      %1323 = vmatpush1.bf16.msra.mxu0 0
      %1324 = vmatprep.subr.bf16.mxu0 0
      %1325 = vmatpush1.bf16.msra.mxu0 0
      %1326 = vmatprep.subr.bf16.mxu0 0
      %1327 = vmatpush1.bf16.msra.mxu0 0
      %1328 = vmatprep.subr.bf16.mxu0 0
      %1329 = vmatpush1.bf16.msra.mxu0 0
      %1330 = vmatprep.subr.bf16.mxu0 0
      %1331 = vmatpush1.bf16.msra.mxu0 0
      %1332 = vmatprep.mubr.bf16.mxu0 0
      %1333 = vmatmul.mubr.bf16.gmra.mrb[0].mxu0 %v1289
      %v1334 = vpop.f32.mrb[0].mxu0
      %v1335 = vadd.f32 0.0, %v1334
      %v1336 = vpop.f32.mrb[0].mxu0
      %v1337 = vpop.f32.mrb[0].mxu0
      %v1338 = vadd.f32 0.0, %v1337
      %v1339 = vpop.f32.mrb[0].mxu0
      %1340 = vmatprep.mubr.bf16.mxu0 0
      %1341 = vmatmul.mubr.bf16.gmra.mrb[0].mxu0 %v1292
      %v1342 = vpop.f32.mrb[0].mxu0
      %v1343 = vadd.f32 0.0, %v1342
      %v1344 = vpop.f32.mrb[0].mxu0
      %v1345 = vpop.f32.mrb[0].mxu0
      %v1346 = vadd.f32 0.0, %v1345
      %v1347 = vpop.f32.mrb[0].mxu0
      %1348 = vmatprep.mubr.bf16.mxu0 0
      %1349 = vmatmul.mubr.bf16.gmra.mrb[0].mxu0 %v1295
      %v1350 = vpop.f32.mrb[0].mxu0
      %v1351 = vadd.f32 0.0, %v1350
      %v1352 = vpop.f32.mrb[0].mxu0
      %v1353 = vpop.f32.mrb[0].mxu0
      %v1354 = vadd.f32 0.0, %v1353
      %v1355 = vpop.f32.mrb[0].mxu0
      %1356 = vmatprep.mubr.bf16.mxu0 0
      %1357 = vmatmul.mubr.bf16.gmra.mrb[0].mxu0 %v1298
      %v1358 = vpop.f32.mrb[0].mxu0
      %v1359 = vadd.f32 0.0, %v1358
      %v1360 = vpop.f32.mrb[0].mxu0
      %v1361 = vpop.f32.mrb[0].mxu0
      %v1362 = vadd.f32 0.0, %v1361
      %v1363 = vpop.f32.mrb[0].mxu0
      %1364 = vdwg.mxu0
      %v1365 = vadd.f32 %v1237, %v1335
      %v1366 = vadd.f32 %v1238, %v1338
      %v1367 = vadd.f32 %v1239, %v1343
      %v1368 = vadd.f32 %v1240, %v1346
      %v1369 = vadd.f32 %v1241, %v1351
      %v1370 = vadd.f32 %v1242, %v1354
      %v1371 = vadd.f32 %v1243, %v1359
      %v1372 = vadd.f32 %v1244, %v1362
      %s1373 = scalar_lea.vmem %s1, 192
      %v1374 = vld [vmem:[%s1373] sm:$0xf]
      %v1375 = vld [vmem:[%s1373 + $0x4] sm:$0xf]
      %v1376 = vld [vmem:[%s1373 + $0x8] sm:$0xf]
      %v1377 = vld [vmem:[%s1373 + $0xc] sm:$0xf]
      %v1378 = vld [vmem:[%s1373 + $0x10] sm:$0xf]
      %v1379 = vld [vmem:[%s1373 + $0x14] sm:$0xf]
      %v1380 = vld [vmem:[%s1373 + $0x18] sm:$0xf]
      %v1381 = vld [vmem:[%s1373 + $0x1c] sm:$0xf]
      %v1383 = vunpack.c.l.b16 %v442
      %v1384 = vpack.c.b16 %v1383, %v994
      %v1393 = vunpack.c.l.b16 %v1374
      %v1394 = vunpack.c.l.b16 %v1375
      %v1395 = vunpack.c.l.b16 %v1376
      %v1396 = vunpack.c.l.b16 %v1377
      %v1397 = vunpack.c.l.b16 %v1378
      %v1398 = vunpack.c.l.b16 %v1379
      %v1399 = vunpack.c.l.b16 %v1380
      %v1400 = vunpack.c.l.b16 %v1381
      %v1401 = vpack.c.b16 %v1394, %v1393
      %v1402 = vpack.c.b16 %v1396, %v1395
      %v1403 = vpack.c.b16 %v1398, %v1397
      %v1404 = vpack.c.b16 %v1400, %v1399
      %v1410 = vsel %vm612, %v1384, 0
      %1412 = vmatprep.subr.bf16.mxu0 0
      %1413 = vmatpush1.bf16.msra.mxu0 %v1401
      %1414 = vmatprep.subr.bf16.mxu0 0
      %1415 = vmatpush1.bf16.msra.mxu0 %v1402
      %1416 = vmatprep.subr.bf16.mxu0 0
      %1417 = vmatpush1.bf16.msra.mxu0 %v1403
      %1418 = vmatprep.subr.bf16.mxu0 0
      %1419 = vmatpush1.bf16.msra.mxu0 %v1404
      %1420 = vmatprep.subr.bf16.mxu0 0
      %1421 = vmatpush1.bf16.msra.mxu0 0
      %1422 = vmatprep.subr.bf16.mxu0 0
      %1423 = vmatpush1.bf16.msra.mxu0 0
      %1424 = vmatprep.subr.bf16.mxu0 0
      %1425 = vmatpush1.bf16.msra.mxu0 0
      %1426 = vmatprep.subr.bf16.mxu0 0
      %1427 = vmatpush1.bf16.msra.mxu0 0
      %1428 = vmatprep.subr.bf16.mxu0 0
      %1429 = vmatpush1.bf16.msra.mxu0 0
      %1430 = vmatprep.subr.bf16.mxu0 0
      %1431 = vmatpush1.bf16.msra.mxu0 0
      %1432 = vmatprep.subr.bf16.mxu0 0
      %1433 = vmatpush1.bf16.msra.mxu0 0
      %1434 = vmatprep.subr.bf16.mxu0 0
      %1435 = vmatpush1.bf16.msra.mxu0 0
      %1436 = vmatprep.subr.bf16.mxu0 0
      %1437 = vmatpush1.bf16.msra.mxu0 0
      %1438 = vmatprep.subr.bf16.mxu0 0
      %1439 = vmatpush1.bf16.msra.mxu0 0
      %1440 = vmatprep.subr.bf16.mxu0 0
      %1441 = vmatpush1.bf16.msra.mxu0 0
      %1442 = vmatprep.subr.bf16.mxu0 0
      %1443 = vmatpush1.bf16.msra.mxu0 0
      %1444 = vmatprep.mubr.bf16.mxu0 0
      %1445 = vmatmul.mubr.bf16.gmra.mrb[0].mxu0 %v738
      %v1446 = vpop.f32.mrb[0].mxu0
      %v1447 = vadd.f32 0.0, %v1446
      %v1448 = vpop.f32.mrb[0].mxu0
      %v1449 = vpop.f32.mrb[0].mxu0
      %v1450 = vadd.f32 0.0, %v1449
      %v1451 = vpop.f32.mrb[0].mxu0
      %1452 = vmatprep.mubr.bf16.mxu0 0
      %1453 = vmatmul.mubr.bf16.gmra.mrb[0].mxu0 %v741
      %v1454 = vpop.f32.mrb[0].mxu0
      %v1455 = vadd.f32 0.0, %v1454
      %v1456 = vpop.f32.mrb[0].mxu0
      %v1457 = vpop.f32.mrb[0].mxu0
      %v1458 = vadd.f32 0.0, %v1457
      %v1459 = vpop.f32.mrb[0].mxu0
      %1460 = vmatprep.mubr.bf16.mxu0 0
      %1461 = vmatmul.mubr.bf16.gmra.mrb[0].mxu0 %v744
      %v1462 = vpop.f32.mrb[0].mxu0
      %v1463 = vadd.f32 0.0, %v1462
      %v1464 = vpop.f32.mrb[0].mxu0
      %v1465 = vpop.f32.mrb[0].mxu0
      %v1466 = vadd.f32 0.0, %v1465
      %v1467 = vpop.f32.mrb[0].mxu0
      %1468 = vmatprep.mubr.bf16.mxu0 0
      %1469 = vmatmul.mubr.bf16.gmra.mrb[0].mxu0 %v1410
      %v1470 = vpop.f32.mrb[0].mxu0
      %v1471 = vadd.f32 0.0, %v1470
      %v1472 = vpop.f32.mrb[0].mxu0
      %v1473 = vpop.f32.mrb[0].mxu0
      %v1474 = vadd.f32 0.0, %v1473
      %v1475 = vpop.f32.mrb[0].mxu0
      %1476 = vdwg.mxu0
      %v1477 = vadd.f32 %v1365, %v1447
      %v1478 = vadd.f32 %v1366, %v1450
      %v1479 = vadd.f32 %v1367, %v1455
      %v1480 = vadd.f32 %v1368, %v1458
      %v1481 = vadd.f32 %v1369, %v1463
      %v1482 = vadd.f32 %v1370, %v1466
      %v1483 = vadd.f32 %v1371, %v1471
      %v1484 = vadd.f32 %v1372, %v1474
      %v1486 = vshrl.u32 %v442, 16
      %v1488 = vrot.slane %v1486, 4
      %v1489 = vshll.u32 %v442, 16
      %v1491 = vrot.slane %v1489, 5
      %v1492 = vor.u32 %v1488, %v1491
      %v1493 = vrot.slane %v1492, 4
      %v1495 = vshll.u32 %v443, 16
      %v1497 = vrot.slane %v1495, 5
      %v1498 = vsel %vm454, %v1493, %v1497
      %s1499 = scalar_lea.vmem %s1, 224
      %v1500 = vld [vmem:[%s1499] sm:$0xf]
      %v1501 = vld [vmem:[%s1499 + $0x4] sm:$0xf]
      %v1502 = vld [vmem:[%s1499 + $0x8] sm:$0xf]
      %v1503 = vld [vmem:[%s1499 + $0xc] sm:$0xf]
      %v1504 = vld [vmem:[%s1499 + $0x10] sm:$0xf]
      %v1505 = vld [vmem:[%s1499 + $0x14] sm:$0xf]
      %v1506 = vld [vmem:[%s1499 + $0x18] sm:$0xf]
      %v1507 = vld [vmem:[%s1499 + $0x1c] sm:$0xf]
      %v1508 = vunpack.c.l.b16 %v1498
      %v1509 = vpack.c.b16 %v1508, %v1131
      %v1518 = vunpack.c.l.b16 %v1500
      %v1519 = vunpack.c.l.b16 %v1501
      %v1520 = vunpack.c.l.b16 %v1502
      %v1521 = vunpack.c.l.b16 %v1503
      %v1522 = vunpack.c.l.b16 %v1504
      %v1523 = vunpack.c.l.b16 %v1505
      %v1524 = vunpack.c.l.b16 %v1506
      %v1525 = vunpack.c.l.b16 %v1507
      %v1526 = vpack.c.b16 %v1519, %v1518
      %v1527 = vpack.c.b16 %v1521, %v1520
      %v1528 = vpack.c.b16 %v1523, %v1522
      %v1529 = vpack.c.b16 %v1525, %v1524
      %v1535 = vsel %vm612, %v1509, 0
      %1537 = vmatprep.subr.bf16.mxu0 0
      %1538 = vmatpush1.bf16.msra.mxu0 %v1526
      %1539 = vmatprep.subr.bf16.mxu0 0
      %1540 = vmatpush1.bf16.msra.mxu0 %v1527
      %1541 = vmatprep.subr.bf16.mxu0 0
      %1542 = vmatpush1.bf16.msra.mxu0 %v1528
      %1543 = vmatprep.subr.bf16.mxu0 0
      %1544 = vmatpush1.bf16.msra.mxu0 %v1529
      %1545 = vmatprep.subr.bf16.mxu0 0
      %1546 = vmatpush1.bf16.msra.mxu0 0
      %1547 = vmatprep.subr.bf16.mxu0 0
      %1548 = vmatpush1.bf16.msra.mxu0 0
      %1549 = vmatprep.subr.bf16.mxu0 0
      %1550 = vmatpush1.bf16.msra.mxu0 0
      %1551 = vmatprep.subr.bf16.mxu0 0
      %1552 = vmatpush1.bf16.msra.mxu0 0
      %1553 = vmatprep.subr.bf16.mxu0 0
      %1554 = vmatpush1.bf16.msra.mxu0 0
      %1555 = vmatprep.subr.bf16.mxu0 0
      %1556 = vmatpush1.bf16.msra.mxu0 0
      %1557 = vmatprep.subr.bf16.mxu0 0
      %1558 = vmatpush1.bf16.msra.mxu0 0
      %1559 = vmatprep.subr.bf16.mxu0 0
      %1560 = vmatpush1.bf16.msra.mxu0 0
      %1561 = vmatprep.subr.bf16.mxu0 0
      %1562 = vmatpush1.bf16.msra.mxu0 0
      %1563 = vmatprep.subr.bf16.mxu0 0
      %1564 = vmatpush1.bf16.msra.mxu0 0
      %1565 = vmatprep.subr.bf16.mxu0 0
      %1566 = vmatpush1.bf16.msra.mxu0 0
      %1567 = vmatprep.subr.bf16.mxu0 0
      %1568 = vmatpush1.bf16.msra.mxu0 0
      %1569 = vmatprep.mubr.bf16.mxu0 0
      %1570 = vmatmul.mubr.bf16.gmra.mrb[0].mxu0 %v617
      %v1571 = vpop.f32.mrb[0].mxu0
      %v1572 = vadd.f32 0.0, %v1571
      %v1573 = vpop.f32.mrb[0].mxu0
      %v1574 = vpop.f32.mrb[0].mxu0
      %v1575 = vadd.f32 0.0, %v1574
      %v1576 = vpop.f32.mrb[0].mxu0
      %1577 = vmatprep.mubr.bf16.mxu0 0
      %1578 = vmatmul.mubr.bf16.gmra.mrb[0].mxu0 %v620
      %v1579 = vpop.f32.mrb[0].mxu0
      %v1580 = vadd.f32 0.0, %v1579
      %v1581 = vpop.f32.mrb[0].mxu0
      %v1582 = vpop.f32.mrb[0].mxu0
      %v1583 = vadd.f32 0.0, %v1582
      %v1584 = vpop.f32.mrb[0].mxu0
      %1585 = vmatprep.mubr.bf16.mxu0 0
      %1586 = vmatmul.mubr.bf16.gmra.mrb[0].mxu0 %v623
      %v1587 = vpop.f32.mrb[0].mxu0
      %v1588 = vadd.f32 0.0, %v1587
      %v1589 = vpop.f32.mrb[0].mxu0
      %v1590 = vpop.f32.mrb[0].mxu0
      %v1591 = vadd.f32 0.0, %v1590
      %v1592 = vpop.f32.mrb[0].mxu0
      %1593 = vmatprep.mubr.bf16.mxu0 0
      %1594 = vmatmul.mubr.bf16.gmra.mrb[0].mxu0 %v1535
      %v1595 = vpop.f32.mrb[0].mxu0
      %v1596 = vadd.f32 0.0, %v1595
      %v1597 = vpop.f32.mrb[0].mxu0
      %v1598 = vpop.f32.mrb[0].mxu0
      %v1599 = vadd.f32 0.0, %v1598
      %v1600 = vpop.f32.mrb[0].mxu0
      %1601 = vdwg.mxu0
      %v1602 = vadd.f32 %v1477, %v1572
      %v1603 = vadd.f32 %v1478, %v1575
      %v1604 = vadd.f32 %v1479, %v1580
      %v1605 = vadd.f32 %v1480, %v1583
      %v1606 = vadd.f32 %v1481, %v1588
      %v1607 = vadd.f32 %v1482, %v1591
      %v1608 = vadd.f32 %v1483, %v1596
      %v1609 = vadd.f32 %v1484, %v1599
      %v1611 = vrot.slane %v442, 5
      %v1612 = vrot.slane %v1611, 4
      %v1613 = vrot.slane %v443, 5
      %v1614 = vsel %vm821, %v1612, %v1613
      %s1615 = scalar_lea.vmem %s1, 256
      %v1616 = vld [vmem:[%s1615] sm:$0xf]
      %v1617 = vld [vmem:[%s1615 + $0x4] sm:$0xf]
      %v1618 = vld [vmem:[%s1615 + $0x8] sm:$0xf]
      %v1619 = vld [vmem:[%s1615 + $0xc] sm:$0xf]
      %v1620 = vld [vmem:[%s1615 + $0x10] sm:$0xf]
      %v1621 = vld [vmem:[%s1615 + $0x14] sm:$0xf]
      %v1622 = vld [vmem:[%s1615 + $0x18] sm:$0xf]
      %v1623 = vld [vmem:[%s1615 + $0x1c] sm:$0xf]
      %v1624 = vunpack.c.l.b16 %v1614
      %v1625 = vpack.c.b16 %v1624, %v1259
      %v1634 = vunpack.c.l.b16 %v1616
      %v1635 = vunpack.c.l.b16 %v1617
      %v1636 = vunpack.c.l.b16 %v1618
      %v1637 = vunpack.c.l.b16 %v1619
      %v1638 = vunpack.c.l.b16 %v1620
      %v1639 = vunpack.c.l.b16 %v1621
      %v1640 = vunpack.c.l.b16 %v1622
      %v1641 = vunpack.c.l.b16 %v1623
      %v1642 = vpack.c.b16 %v1635, %v1634
      %v1643 = vpack.c.b16 %v1637, %v1636
      %v1644 = vpack.c.b16 %v1639, %v1638
      %v1645 = vpack.c.b16 %v1641, %v1640
      %v1651 = vsel %vm612, %v1625, 0
      %1653 = vmatprep.subr.bf16.mxu0 0
      %1654 = vmatpush1.bf16.msra.mxu0 %v1642
      %1655 = vmatprep.subr.bf16.mxu0 0
      %1656 = vmatpush1.bf16.msra.mxu0 %v1643
      %1657 = vmatprep.subr.bf16.mxu0 0
      %1658 = vmatpush1.bf16.msra.mxu0 %v1644
      %1659 = vmatprep.subr.bf16.mxu0 0
      %1660 = vmatpush1.bf16.msra.mxu0 %v1645
      %1661 = vmatprep.subr.bf16.mxu0 0
      %1662 = vmatpush1.bf16.msra.mxu0 0
      %1663 = vmatprep.subr.bf16.mxu0 0
      %1664 = vmatpush1.bf16.msra.mxu0 0
      %1665 = vmatprep.subr.bf16.mxu0 0
      %1666 = vmatpush1.bf16.msra.mxu0 0
      %1667 = vmatprep.subr.bf16.mxu0 0
      %1668 = vmatpush1.bf16.msra.mxu0 0
      %1669 = vmatprep.subr.bf16.mxu0 0
      %1670 = vmatpush1.bf16.msra.mxu0 0
      %1671 = vmatprep.subr.bf16.mxu0 0
      %1672 = vmatpush1.bf16.msra.mxu0 0
      %1673 = vmatprep.subr.bf16.mxu0 0
      %1674 = vmatpush1.bf16.msra.mxu0 0
      %1675 = vmatprep.subr.bf16.mxu0 0
      %1676 = vmatpush1.bf16.msra.mxu0 0
      %1677 = vmatprep.subr.bf16.mxu0 0
      %1678 = vmatpush1.bf16.msra.mxu0 0
      %1679 = vmatprep.subr.bf16.mxu0 0
      %1680 = vmatpush1.bf16.msra.mxu0 0
      %1681 = vmatprep.subr.bf16.mxu0 0
      %1682 = vmatpush1.bf16.msra.mxu0 0
      %1683 = vmatprep.subr.bf16.mxu0 0
      %1684 = vmatpush1.bf16.msra.mxu0 0
      %1685 = vmatprep.mubr.bf16.mxu0 0
      %1686 = vmatmul.mubr.bf16.gmra.mrb[0].mxu0 %v903
      %v1687 = vpop.f32.mrb[0].mxu0
      %v1688 = vadd.f32 0.0, %v1687
      %v1689 = vpop.f32.mrb[0].mxu0
      %v1690 = vpop.f32.mrb[0].mxu0
      %v1691 = vadd.f32 0.0, %v1690
      %v1692 = vpop.f32.mrb[0].mxu0
      %1693 = vmatprep.mubr.bf16.mxu0 0
      %1694 = vmatmul.mubr.bf16.gmra.mrb[0].mxu0 %v906
      %v1695 = vpop.f32.mrb[0].mxu0
      %v1696 = vadd.f32 0.0, %v1695
      %v1697 = vpop.f32.mrb[0].mxu0
      %v1698 = vpop.f32.mrb[0].mxu0
      %v1699 = vadd.f32 0.0, %v1698
      %v1700 = vpop.f32.mrb[0].mxu0
      %1701 = vmatprep.mubr.bf16.mxu0 0
      %1702 = vmatmul.mubr.bf16.gmra.mrb[0].mxu0 %v909
      %v1703 = vpop.f32.mrb[0].mxu0
      %v1704 = vadd.f32 0.0, %v1703
      %v1705 = vpop.f32.mrb[0].mxu0
      %v1706 = vpop.f32.mrb[0].mxu0
      %v1707 = vadd.f32 0.0, %v1706
      %v1708 = vpop.f32.mrb[0].mxu0
      %1709 = vmatprep.mubr.bf16.mxu0 0
      %1710 = vmatmul.mubr.bf16.gmra.mrb[0].mxu0 %v1651
      %v1711 = vpop.f32.mrb[0].mxu0
      %v1712 = vadd.f32 0.0, %v1711
      %v1713 = vpop.f32.mrb[0].mxu0
      %v1714 = vpop.f32.mrb[0].mxu0
      %v1715 = vadd.f32 0.0, %v1714
      %v1716 = vpop.f32.mrb[0].mxu0
      %1717 = vdwg.mxu0
      %v1718 = vadd.f32 %v1602, %v1688
      %v1719 = vadd.f32 %v1603, %v1691
      %v1720 = vadd.f32 %v1604, %v1696
      %v1721 = vadd.f32 %v1605, %v1699
      %v1722 = vadd.f32 %v1606, %v1704
      %v1723 = vadd.f32 %v1607, %v1707
      %v1724 = vadd.f32 %v1608, %v1712
      %v1725 = vadd.f32 %v1609, %v1715
      %v1726 = vld [vmem:[%s2] sm:$0x1]
      %v1728 = vlaneseq
      %v1729 = vshrl.u32 %v1728, 7
      %v1730 = vsub.s32 0, %v1729
      %v1731 = vrot.slane %v1726, %v1730
      %v1733 = vadd.f32 %v1718, %v1731
      %v1734 = vadd.f32 %v1719, %v1731
      %v1735 = vadd.f32 %v1720, %v1731
      %v1736 = vadd.f32 %v1721, %v1731
      %v1737 = vadd.f32 %v1722, %v1731
      %v1738 = vadd.f32 %v1723, %v1731
      %v1739 = vadd.f32 %v1724, %v1731
      %v1740 = vadd.f32 %v1725, %v1731
      %v1741 = vmax.f32 %v1733, 0.0
      %v1742 = vmax.f32 %v1734, 0.0
      %v1743 = vmax.f32 %v1735, 0.0
      %v1744 = vmax.f32 %v1736, 0.0
      %v1745 = vmax.f32 %v1737, 0.0
      %v1746 = vmax.f32 %v1738, 0.0
      %v1747 = vmax.f32 %v1739, 0.0
      %v1748 = vmax.f32 %v1740, 0.0
      %v1749 = vpack.c.bf16 %v1742, %v1741
      %v1750 = vpack.c.bf16 %v1744, %v1743
      %v1751 = vpack.c.bf16 %v1746, %v1745
      %v1752 = vpack.c.bf16 %v1748, %v1747
      %v1753 = vld [vmem:[%s3] sm:$0xf]
      %v1754 = vld [vmem:[%s3 + $0x4] sm:$0xf]
      %v1755 = vld [vmem:[%s3 + $0x8] sm:$0xf]
      %v1756 = vld [vmem:[%s3 + $0xc] sm:$0xf]
      %v1757 = vld [vmem:[%s3 + $0x10] sm:$0xf]
      %v1758 = vld [vmem:[%s3 + $0x14] sm:$0xf]
      %v1759 = vld [vmem:[%s3 + $0x18] sm:$0xf]
      %v1760 = vld [vmem:[%s3 + $0x1c] sm:$0xf]
      %v1761 = vld [vmem:[%s4] sm:$0x1]
      %v1763 = vlaneseq
      %v1764 = vshrl.u32 %v1763, 7
      %v1765 = vsub.s32 0, %v1764
      %v1766 = vrot.slane %v1761, %v1765
      %v1776 = vunpack.c.l.b16 %v1753
      %v1777 = vunpack.c.l.b16 %v1754
      %v1778 = vunpack.c.l.b16 %v1755
      %v1779 = vunpack.c.l.b16 %v1756
      %v1780 = vunpack.c.l.b16 %v1757
      %v1781 = vunpack.c.l.b16 %v1758
      %v1782 = vunpack.c.l.b16 %v1759
      %v1783 = vunpack.c.l.b16 %v1760
      %v1784 = vpack.c.b16 %v1777, %v1776
      %v1785 = vpack.c.b16 %v1779, %v1778
      %v1786 = vpack.c.b16 %v1781, %v1780
      %v1787 = vpack.c.b16 %v1783, %v1782
      %v1793 = vsel %vm612, %v1749, 0
      %v1796 = vsel %vm612, %v1750, 0
      %v1799 = vsel %vm612, %v1751, 0
      %v1802 = vsel %vm612, %v1752, 0
      %1804 = vmatprep.subr.bf16.mxu0 0
      %1805 = vmatpush1.bf16.msra.mxu0 %v1784
      %1806 = vmatprep.subr.bf16.mxu0 0
      %1807 = vmatpush1.bf16.msra.mxu0 %v1785
      %1808 = vmatprep.subr.bf16.mxu0 0
      %1809 = vmatpush1.bf16.msra.mxu0 %v1786
      %1810 = vmatprep.subr.bf16.mxu0 0
      %1811 = vmatpush1.bf16.msra.mxu0 %v1787
      %1812 = vmatprep.subr.bf16.mxu0 0
      %1813 = vmatpush1.bf16.msra.mxu0 0
      %1814 = vmatprep.subr.bf16.mxu0 0
      %1815 = vmatpush1.bf16.msra.mxu0 0
      %1816 = vmatprep.subr.bf16.mxu0 0
      %1817 = vmatpush1.bf16.msra.mxu0 0
      %1818 = vmatprep.subr.bf16.mxu0 0
      %1819 = vmatpush1.bf16.msra.mxu0 0
      %1820 = vmatprep.subr.bf16.mxu0 0
      %1821 = vmatpush1.bf16.msra.mxu0 0
      %1822 = vmatprep.subr.bf16.mxu0 0
      %1823 = vmatpush1.bf16.msra.mxu0 0
      %1824 = vmatprep.subr.bf16.mxu0 0
      %1825 = vmatpush1.bf16.msra.mxu0 0
      %1826 = vmatprep.subr.bf16.mxu0 0
      %1827 = vmatpush1.bf16.msra.mxu0 0
      %1828 = vmatprep.subr.bf16.mxu0 0
      %1829 = vmatpush1.bf16.msra.mxu0 0
      %1830 = vmatprep.subr.bf16.mxu0 0
      %1831 = vmatpush1.bf16.msra.mxu0 0
      %1832 = vmatprep.subr.bf16.mxu0 0
      %1833 = vmatpush1.bf16.msra.mxu0 0
      %1834 = vmatprep.subr.bf16.mxu0 0
      %1835 = vmatpush1.bf16.msra.mxu0 0
      %1836 = vmatprep.mubr.bf16.mxu0 0
      %1837 = vmatmul.mubr.bf16.gmra.mrb[0].mxu0 %v1793
      %v1838 = vpop.f32.mrb[0].mxu0
      %v1839 = vadd.f32 %v1766, %v1838
      %v1840 = vpop.f32.mrb[0].mxu0
      %v1841 = vpop.f32.mrb[0].mxu0
      %v1842 = vadd.f32 %v1766, %v1841
      %v1843 = vpop.f32.mrb[0].mxu0
      %1844 = vmatprep.mubr.bf16.mxu0 0
      %1845 = vmatmul.mubr.bf16.gmra.mrb[0].mxu0 %v1796
      %v1846 = vpop.f32.mrb[0].mxu0
      %v1847 = vadd.f32 %v1766, %v1846
      %v1848 = vpop.f32.mrb[0].mxu0
      %v1849 = vpop.f32.mrb[0].mxu0
      %v1850 = vadd.f32 %v1766, %v1849
      %v1851 = vpop.f32.mrb[0].mxu0
      %1852 = vmatprep.mubr.bf16.mxu0 0
      %1853 = vmatmul.mubr.bf16.gmra.mrb[0].mxu0 %v1799
      %v1854 = vpop.f32.mrb[0].mxu0
      %v1855 = vadd.f32 %v1766, %v1854
      %v1856 = vpop.f32.mrb[0].mxu0
      %v1857 = vpop.f32.mrb[0].mxu0
      %v1858 = vadd.f32 %v1766, %v1857
      %v1859 = vpop.f32.mrb[0].mxu0
      %1860 = vmatprep.mubr.bf16.mxu0 0
      %1861 = vmatmul.mubr.bf16.gmra.mrb[0].mxu0 %v1802
      %v1862 = vpop.f32.mrb[0].mxu0
      %v1863 = vadd.f32 %v1766, %v1862
      %v1864 = vpop.f32.mrb[0].mxu0
      %v1865 = vpop.f32.mrb[0].mxu0
      %v1866 = vadd.f32 %v1766, %v1865
      %v1867 = vpop.f32.mrb[0].mxu0
      %1868 = vdwg.mxu0
      %1869 = vst [vmem:[%s419] sm:$0xff] %v1839
      %1870 = vst [vmem:[%s419 + $0x8] sm:$0xff] %v1842
      %1871 = vst [vmem:[%s419 + $0x10] sm:$0xff] %v1847
      %1872 = vst [vmem:[%s419 + $0x18] sm:$0xff] %v1850
      %1873 = vst [vmem:[%s419 + $0x20] sm:$0xff] %v1855
      %1874 = vst [vmem:[%s419 + $0x28] sm:$0xff] %v1858
      %1875 = vst [vmem:[%s419 + $0x30] sm:$0xff] %v1863
      %1876 = vst [vmem:[%s419 + $0x38] sm:$0xff] %v1866
      %v1877 = vunpack.c.l.bf16 %v426
      %v1878 = vunpack.c.l.bf16 %v427
      %v1879 = vunpack.c.l.bf16 %v428
      %v1880 = vunpack.c.l.bf16 %v429
      %v1881 = vunpack.c.l.bf16 %v430
      %v1882 = vunpack.c.l.bf16 %v431
      %v1883 = vunpack.c.l.bf16 %v432
      %v1884 = vunpack.c.l.bf16 %v433
      %v1885 = vunpack.c.l.bf16 %v434
      %v1886 = vunpack.c.l.bf16 %v435
      %v1887 = vunpack.c.l.bf16 %v436
      %v1888 = vunpack.c.l.bf16 %v437
      %v1889 = vunpack.c.l.bf16 %v438
      %v1890 = vunpack.c.l.bf16 %v439
      %v1891 = vunpack.c.l.bf16 %v440
      %v1892 = vunpack.c.l.bf16 %v441
      %vm1909 = vcmask 1046528
      %v1910 = vrot.slane %v1877, 1
      %v1911 = vrot.slane %v1878, 1
      %v1912 = vsel %vm1909, %v1910, %v1911
      %v1913 = vrot.slane %v1879, 1
      %v1914 = vrot.slane %v1880, 1
      %v1915 = vsel %vm1909, %v1913, %v1914
      %v1916 = vrot.slane %v1881, 1
      %v1917 = vrot.slane %v1882, 1
      %v1918 = vsel %vm1909, %v1916, %v1917
      %v1919 = vrot.slane %v1883, 1
      %v1920 = vrot.slane %v1884, 1
      %v1921 = vsel %vm1909, %v1919, %v1920
      %v1922 = vrot.slane %v1885, 1
      %v1923 = vrot.slane %v1886, 1
      %v1924 = vsel %vm1909, %v1922, %v1923
      %v1925 = vrot.slane %v1887, 1
      %v1926 = vrot.slane %v1888, 1
      %v1927 = vsel %vm1909, %v1925, %v1926
      %v1928 = vrot.slane %v1889, 1
      %v1929 = vrot.slane %v1890, 1
      %v1930 = vsel %vm1909, %v1928, %v1929
      %v1931 = vrot.slane %v1891, 1
      %v1932 = vrot.slane %v1892, 1
      %v1933 = vsel %vm1909, %v1931, %v1932
      %v1942 = vsel %vm612, %v1912, 0.0
      %v1943 = vsel %vm612, %v1915, 0.0
      %v1944 = vadd.f32 %v1942, %v1943
      %v1945 = vsel %vm612, %v1918, 0.0
      %v1946 = vadd.f32 %v1944, %v1945
      %v1947 = vsel %vm612, %v1921, 0.0
      %v1948 = vadd.f32 %v1946, %v1947
      %v1949 = vsel %vm612, %v1924, 0.0
      %v1950 = vadd.f32 %v1948, %v1949
      %v1951 = vsel %vm612, %v1927, 0.0
      %v1952 = vadd.f32 %v1950, %v1951
      %v1953 = vsel %vm612, %v1930, 0.0
      %v1954 = vadd.f32 %v1952, %v1953
      %v1955 = vsel %vm612, %v1933, 0.0
      %v1956 = vadd.f32 %v1954, %v1955
      %v1957 = vrot.slane %v1956, 4
      %v1958 = vadd.f32 %v1956, %v1957
      %v1959 = vrot.slane %v1958, 2
      %v1960 = vadd.f32 %v1958, %v1959
      %v1961 = vrot.slane %v1960, 1
      %v1962 = vadd.f32 %v1960, %v1961
      %v1963 = vrcp.pop 64.0
      %v1964 = vmul.f32 %v1962, %v1963
      %v1965 = vpack.c.bf16 %v1964, %v1964
      %v1966 = vld [vmem:[%s5] sm:$0xf]
      %v1967 = vld [vmem:[%s5 + $0x4] sm:$0xf]
      %v1968 = vld [vmem:[%s5 + $0x8] sm:$0xf]
      %v1969 = vld [vmem:[%s5 + $0xc] sm:$0xf]
      %v1970 = vld [vmem:[%s5 + $0x10] sm:$0xf]
      %v1971 = vld [vmem:[%s5 + $0x14] sm:$0xf]
      %v1972 = vld [vmem:[%s5 + $0x18] sm:$0xf]
      %v1973 = vld [vmem:[%s5 + $0x1c] sm:$0xf]
      %v1974 = vld [vmem:[%s6] sm:$0x1]
      %v1983 = vunpack.c.l.b16 %v1966
      %v1984 = vunpack.c.l.b16 %v1967
      %v1985 = vunpack.c.l.b16 %v1968
      %v1986 = vunpack.c.l.b16 %v1969
      %v1987 = vunpack.c.l.b16 %v1970
      %v1988 = vunpack.c.l.b16 %v1971
      %v1989 = vunpack.c.l.b16 %v1972
      %v1990 = vunpack.c.l.b16 %v1973
      %v1991 = vpack.c.b16 %v1984, %v1983
      %v1992 = vpack.c.b16 %v1986, %v1985
      %v1993 = vpack.c.b16 %v1988, %v1987
      %v1994 = vpack.c.b16 %v1990, %v1989
      %v2000 = vsel %vm612, %v1965, 0
      %2002 = vmatprep.subr.bf16.mxu0 0
      %2003 = vmatpush1.bf16.msra.mxu0 %v1991
      %2004 = vmatprep.subr.bf16.mxu0 0
      %2005 = vmatpush1.bf16.msra.mxu0 %v1992
      %2006 = vmatprep.subr.bf16.mxu0 0
      %2007 = vmatpush1.bf16.msra.mxu0 %v1993
      %2008 = vmatprep.subr.bf16.mxu0 0
      %2009 = vmatpush1.bf16.msra.mxu0 %v1994
      %2010 = vmatprep.subr.bf16.mxu0 0
      %2011 = vmatpush1.bf16.msra.mxu0 0
      %2012 = vmatprep.subr.bf16.mxu0 0
      %2013 = vmatpush1.bf16.msra.mxu0 0
      %2014 = vmatprep.subr.bf16.mxu0 0
      %2015 = vmatpush1.bf16.msra.mxu0 0
      %2016 = vmatprep.subr.bf16.mxu0 0
      %2017 = vmatpush1.bf16.msra.mxu0 0
      %2018 = vmatprep.subr.bf16.mxu0 0
      %2019 = vmatpush1.bf16.msra.mxu0 0
      %2020 = vmatprep.subr.bf16.mxu0 0
      %2021 = vmatpush1.bf16.msra.mxu0 0
      %2022 = vmatprep.subr.bf16.mxu0 0
      %2023 = vmatpush1.bf16.msra.mxu0 0
      %2024 = vmatprep.subr.bf16.mxu0 0
      %2025 = vmatpush1.bf16.msra.mxu0 0
      %2026 = vmatprep.subr.bf16.mxu0 0
      %2027 = vmatpush1.bf16.msra.mxu0 0
      %2028 = vmatprep.subr.bf16.mxu0 0
      %2029 = vmatpush1.bf16.msra.mxu0 0
      %2030 = vmatprep.subr.bf16.mxu0 0
      %2031 = vmatpush1.bf16.msra.mxu0 0
      %2032 = vmatprep.subr.bf16.mxu0 0
      %2033 = vmatpush1.bf16.msra.mxu0 0
      %2034 = vmatprep.mubr.bf16.mxu0 0
      %2035 = vmatmul.mubr.bf16.gmra.mrb[0].mxu0 %v2000
      %v2036 = vpop.f32.mrb[0].mxu0
      %v2037 = vadd.f32 %v1974, %v2036
      %v2038 = vpop.f32.mrb[0].mxu0
      %v2039 = vpop.f32.mrb[0].mxu0
      %v2040 = vpop.f32.mrb[0].mxu0
      %2041 = vdwg.mxu0
      %v2042 = vmax.f32 %v2037, 0.0
      %v2043 = vpack.c.bf16 %v2042, %v2042
      %v2044 = vld [vmem:[%s7] sm:$0xf]
      %v2045 = vld [vmem:[%s7 + $0x4] sm:$0xf]
      %v2046 = vld [vmem:[%s7 + $0x8] sm:$0xf]
      %v2047 = vld [vmem:[%s7 + $0xc] sm:$0xf]
      %v2048 = vld [vmem:[%s7 + $0x10] sm:$0xf]
      %v2049 = vld [vmem:[%s7 + $0x14] sm:$0xf]
      %v2050 = vld [vmem:[%s7 + $0x18] sm:$0xf]
      %v2051 = vld [vmem:[%s7 + $0x1c] sm:$0xf]
      %v2052 = vld [vmem:[%s7 + $0x20] sm:$0xf]
      %v2053 = vld [vmem:[%s7 + $0x24] sm:$0xf]
      %v2054 = vld [vmem:[%s7 + $0x28] sm:$0xf]
      %v2055 = vld [vmem:[%s7 + $0x2c] sm:$0xf]
      %v2056 = vld [vmem:[%s7 + $0x30] sm:$0xf]
      %v2057 = vld [vmem:[%s7 + $0x34] sm:$0xf]
      %v2058 = vld [vmem:[%s7 + $0x38] sm:$0xf]
      %v2059 = vld [vmem:[%s7 + $0x3c] sm:$0xf]
      %v2060 = vld [vmem:[%s8] sm:$0x1]
      %v2077 = vunpack.c.l.b16 %v2044
      %v2078 = vunpack.c.l.b16 %v2045
      %v2079 = vunpack.c.l.b16 %v2046
      %v2080 = vunpack.c.l.b16 %v2047
      %v2081 = vunpack.c.l.b16 %v2048
      %v2082 = vunpack.c.l.b16 %v2049
      %v2083 = vunpack.c.l.b16 %v2050
      %v2084 = vunpack.c.l.b16 %v2051
      %v2085 = vunpack.c.l.b16 %v2052
      %v2086 = vunpack.c.l.b16 %v2053
      %v2087 = vunpack.c.l.b16 %v2054
      %v2088 = vunpack.c.l.b16 %v2055
      %v2089 = vunpack.c.l.b16 %v2056
      %v2090 = vunpack.c.l.b16 %v2057
      %v2091 = vunpack.c.l.b16 %v2058
      %v2092 = vunpack.c.l.b16 %v2059
      %v2093 = vpack.c.b16 %v2078, %v2077
      %v2094 = vpack.c.b16 %v2080, %v2079
      %v2095 = vpack.c.b16 %v2082, %v2081
      %v2096 = vpack.c.b16 %v2084, %v2083
      %v2097 = vpack.c.b16 %v2086, %v2085
      %v2098 = vpack.c.b16 %v2088, %v2087
      %v2099 = vpack.c.b16 %v2090, %v2089
      %v2100 = vpack.c.b16 %v2092, %v2091
      %2109 = vmatprep.subr.bf16.mxu0 0
      %2110 = vmatpush1.bf16.msra.mxu0 %v2093
      %2111 = vmatprep.subr.bf16.mxu0 0
      %2112 = vmatpush1.bf16.msra.mxu0 %v2094
      %2113 = vmatprep.subr.bf16.mxu0 0
      %2114 = vmatpush1.bf16.msra.mxu0 %v2095
      %2115 = vmatprep.subr.bf16.mxu0 0
      %2116 = vmatpush1.bf16.msra.mxu0 %v2096
      %2117 = vmatprep.subr.bf16.mxu0 0
      %2118 = vmatpush1.bf16.msra.mxu0 %v2097
      %2119 = vmatprep.subr.bf16.mxu0 0
      %2120 = vmatpush1.bf16.msra.mxu0 %v2098
      %2121 = vmatprep.subr.bf16.mxu0 0
      %2122 = vmatpush1.bf16.msra.mxu0 %v2099
      %2123 = vmatprep.subr.bf16.mxu0 0
      %2124 = vmatpush1.bf16.msra.mxu0 %v2100
      %2125 = vmatprep.subr.bf16.mxu0 0
      %2126 = vmatpush1.bf16.msra.mxu0 0
      %2127 = vmatprep.subr.bf16.mxu0 0
      %2128 = vmatpush1.bf16.msra.mxu0 0
      %2129 = vmatprep.subr.bf16.mxu0 0
      %2130 = vmatpush1.bf16.msra.mxu0 0
      %2131 = vmatprep.subr.bf16.mxu0 0
      %2132 = vmatpush1.bf16.msra.mxu0 0
      %2133 = vmatprep.subr.bf16.mxu0 0
      %2134 = vmatpush1.bf16.msra.mxu0 0
      %2135 = vmatprep.subr.bf16.mxu0 0
      %2136 = vmatpush1.bf16.msra.mxu0 0
      %2137 = vmatprep.subr.bf16.mxu0 0
      %2138 = vmatpush1.bf16.msra.mxu0 0
      %2139 = vmatprep.subr.bf16.mxu0 0
      %2140 = vmatpush1.bf16.msra.mxu0 0
      %2141 = vmatprep.mubr.bf16.mxu0 0
      %2142 = vmatmul.mubr.bf16.gmra.mrb[0].mxu0 %v2043
      %v2143 = vpop.f32.mrb[0].mxu0
      %v2144 = vadd.f32 %v2060, %v2143
      %v2145 = vpop.f32.mrb[0].mxu0
      %v2146 = vpop.f32.mrb[0].mxu0
      %v2147 = vpop.f32.mrb[0].mxu0
      %2148 = vdwg.mxu0
      %v2149 = vmax.f32 %v2144, 0.0
      %v2150 = vpack.c.bf16 %v2149, %v2149
      %v2151 = vld [vmem:[%s9] sm:$0xf]
      %v2152 = vld [vmem:[%s9 + $0x4] sm:$0xf]
      %v2153 = vld [vmem:[%s9 + $0x8] sm:$0xf]
      %v2154 = vld [vmem:[%s9 + $0xc] sm:$0xf]
      %v2155 = vld [vmem:[%s9 + $0x10] sm:$0xf]
      %v2156 = vld [vmem:[%s9 + $0x14] sm:$0xf]
      %v2157 = vld [vmem:[%s9 + $0x18] sm:$0xf]
      %v2158 = vld [vmem:[%s9 + $0x1c] sm:$0xf]
      %v2159 = vld [vmem:[%s9 + $0x20] sm:$0xf]
      %v2160 = vld [vmem:[%s9 + $0x24] sm:$0xf]
      %v2161 = vld [vmem:[%s9 + $0x28] sm:$0xf]
      %v2162 = vld [vmem:[%s9 + $0x2c] sm:$0xf]
      %v2163 = vld [vmem:[%s9 + $0x30] sm:$0xf]
      %v2164 = vld [vmem:[%s9 + $0x34] sm:$0xf]
      %v2165 = vld [vmem:[%s9 + $0x38] sm:$0xf]
      %v2166 = vld [vmem:[%s9 + $0x3c] sm:$0xf]
      %v2167 = vld [vmem:[%s10] sm:$0x1]
      %v2184 = vunpack.c.l.b16 %v2151
      %v2185 = vunpack.c.l.b16 %v2152
      %v2186 = vunpack.c.l.b16 %v2153
      %v2187 = vunpack.c.l.b16 %v2154
      %v2188 = vunpack.c.l.b16 %v2155
      %v2189 = vunpack.c.l.b16 %v2156
      %v2190 = vunpack.c.l.b16 %v2157
      %v2191 = vunpack.c.l.b16 %v2158
      %v2192 = vunpack.c.l.b16 %v2159
      %v2193 = vunpack.c.l.b16 %v2160
      %v2194 = vunpack.c.l.b16 %v2161
      %v2195 = vunpack.c.l.b16 %v2162
      %v2196 = vunpack.c.l.b16 %v2163
      %v2197 = vunpack.c.l.b16 %v2164
      %v2198 = vunpack.c.l.b16 %v2165
      %v2199 = vunpack.c.l.b16 %v2166
      %v2200 = vpack.c.b16 %v2185, %v2184
      %v2201 = vpack.c.b16 %v2187, %v2186
      %v2202 = vpack.c.b16 %v2189, %v2188
      %v2203 = vpack.c.b16 %v2191, %v2190
      %v2204 = vpack.c.b16 %v2193, %v2192
      %v2205 = vpack.c.b16 %v2195, %v2194
      %v2206 = vpack.c.b16 %v2197, %v2196
      %v2207 = vpack.c.b16 %v2199, %v2198
      %2216 = vmatprep.subr.bf16.mxu0 0
      %2217 = vmatpush1.bf16.msra.mxu0 %v2200
      %2218 = vmatprep.subr.bf16.mxu0 0
      %2219 = vmatpush1.bf16.msra.mxu0 %v2201
      %2220 = vmatprep.subr.bf16.mxu0 0
      %2221 = vmatpush1.bf16.msra.mxu0 %v2202
      %2222 = vmatprep.subr.bf16.mxu0 0
      %2223 = vmatpush1.bf16.msra.mxu0 %v2203
      %2224 = vmatprep.subr.bf16.mxu0 0
      %2225 = vmatpush1.bf16.msra.mxu0 %v2204
      %2226 = vmatprep.subr.bf16.mxu0 0
      %2227 = vmatpush1.bf16.msra.mxu0 %v2205
      %2228 = vmatprep.subr.bf16.mxu0 0
      %2229 = vmatpush1.bf16.msra.mxu0 %v2206
      %2230 = vmatprep.subr.bf16.mxu0 0
      %2231 = vmatpush1.bf16.msra.mxu0 %v2207
      %2232 = vmatprep.subr.bf16.mxu0 0
      %2233 = vmatpush1.bf16.msra.mxu0 0
      %2234 = vmatprep.subr.bf16.mxu0 0
      %2235 = vmatpush1.bf16.msra.mxu0 0
      %2236 = vmatprep.subr.bf16.mxu0 0
      %2237 = vmatpush1.bf16.msra.mxu0 0
      %2238 = vmatprep.subr.bf16.mxu0 0
      %2239 = vmatpush1.bf16.msra.mxu0 0
      %2240 = vmatprep.subr.bf16.mxu0 0
      %2241 = vmatpush1.bf16.msra.mxu0 0
      %2242 = vmatprep.subr.bf16.mxu0 0
      %2243 = vmatpush1.bf16.msra.mxu0 0
      %2244 = vmatprep.subr.bf16.mxu0 0
      %2245 = vmatpush1.bf16.msra.mxu0 0
      %2246 = vmatprep.subr.bf16.mxu0 0
      %2247 = vmatpush1.bf16.msra.mxu0 0
      %2248 = vmatprep.mubr.bf16.mxu0 0
      %2249 = vmatmul.mubr.bf16.gmra.mrb[0].mxu0 %v2150
      %v2250 = vpop.f32.mrb[0].mxu0
      %v2251 = vadd.f32 %v2167, %v2250
      %v2252 = vpop.f32.mrb[0].mxu0
      %v2253 = vpop.f32.mrb[0].mxu0
      %v2254 = vpop.f32.mrb[0].mxu0
      %2255 = vdwg.mxu0
      %2256 = vst [vmem:[%s422] sm:$0x1] %v2251
      %p2257 = scmp.lt.s32.totalorder %s24, 1
      %s2258 = scalar_select %p2257, %s24, 1
      %s2259 = smul.addr %s2258, 8
      %s2260 = smul.addr %s2259, 8
      %s2261 = scalar_lea.vmem %s11, %s2260
      %p2262 = scmp.lt.s32.totalorder %s24, 1
      %s2263 = scalar_select %p2262, %s24, 1
      %s2264 = scalar_lea.vmem %s12, %s2263
      // Predicated region
      $region65: #{forward.5} parent=63 // pred_check
        %p2265 = pneg %p278
      $region66: #{forward.5} parent=63 // pred_check_branch
        %2267 = sbr.rel (%p2265) target = $region68
      $region67: #{forward.5} parent=63 // pred_region
        _
      $region68: #{forward.5} parent=63 // pred_fallthru
        _
      // Predicated region
      $region69: #{forward.5} parent=63 // pred_check
        %p2268 = pneg %p304
      $region70: #{forward.5} parent=63 // pred_check_branch
        %2270 = sbr.rel (%p2268) target = $region72
      $region71: #{forward.5} parent=63 // pred_region
        _
      $region72: #{forward.5} parent=63 // pred_fallthru
        _
    $region64: #{forward.5} parent=5 // pred_fallthru
      _
    %p2271 = scmp.le.s32.totalorder 2, %s19
    // Predicated region
    $region73: #{forward.5} parent=5 // pred_check
      %p2272 = pneg %p2271
    $region74: #{forward.5} parent=5 // pred_check_branch
      %2274 = sbr.rel (%p2272) target = $region76
    $region75: #{forward.5} parent=5 // pred_region
      %s2275 = ssub.s32 %s19, 2
      // Predicated region
      $region77: #{forward.5} parent=75 // pred_check
        %p2276 = pneg %p284
      $region78: #{forward.5} parent=75 // pred_check_branch
        %2278 = sbr.rel (%p2276) target = $region80
      $region79: #{forward.5} parent=75 // pred_region
        %p2279 = scmp.lt.s32.totalorder %s25, 1
        %s2280 = scalar_select %p2279, %s25, 1
        %s2281 = smul.addr %s2280, 8
        %s2282 = smul.addr %s2281, 8
        %s2283 = scalar_lea.vmem %s11, %s2282
      $region80: #{forward.5} parent=75 // pred_fallthru
        _
      // Predicated region
      $region81: #{forward.5} parent=75 // pred_check
        %p2284 = pneg %p310
      $region82: #{forward.5} parent=75 // pred_check_branch
        %2286 = sbr.rel (%p2284) target = $region84
      $region83: #{forward.5} parent=75 // pred_region
        %p2287 = scmp.lt.s32.totalorder %s25, 1
        %s2288 = scalar_select %p2287, %s25, 1
        %s2289 = scalar_lea.vmem %s12, %s2288
      $region84: #{forward.5} parent=75 // pred_fallthru
        _
    $region76: #{forward.5} parent=5 // pred_fallthru
      _
  $region6: #{forward.5} parent=0 // loop_footer
    %s23 = sadd.s32 1, %s19
  $region7: #{forward.5} parent=0 // loop_footer_branch
    %18 = sbr.rel target = $region3
  $region8: #{forward.5} parent=0 // loop_exit
    _

</llo_original>
